<compile_context>
chip_gen: v7x
topology: tpu7x:2x2x1
jax: 0.10.0
libtpu: 0.0.40
codegen_flags: <defaults>
</compile_context>

<pallas_src>
import jax
import jax.numpy as jnp
from jax import lax
from jax.experimental import pallas as pl
from jax.experimental.pallas import tpu as pltpu

LEAKY_SLOPE = 0.01         # PyTorch LeakyReLU default


# ---------------------------------------------------------------------------
# Fused kernel: gate values -> (precomputed) top-k mask -> experts -> combine
# grid = (num_token_tiles,), scalar prefetch = per-tile expert-active mask
# ---------------------------------------------------------------------------
def fused_moe_kernel(tilemask_ref,                       # SMEM (num_tiles, E) int32
                     x_ref, sel_ref, wg_ref, bg_ref,
                     w1_ref, b1_ref, w2_ref, b2_ref, w3_ref, b3_ref,
                     o_ref, acc_ref, den_ref):
    tile = pl.program_id(0)
    x = x_ref[...]                                       # (tN, D_in_p) bf16

    # Gate values: softmax numerators p = exp(logit - rowmax).  The softmax
    # denominator cancels in the L1-normalized gates, so it is never formed.
    logits = jnp.dot(x, wg_ref[...],
                     preferred_element_type=jnp.float32) + bg_ref[...]
    p = jnp.exp(logits - logits.max(axis=-1, keepdims=True))   # (tN, E) f32
    gated = p * sel_ref[...]                              # zero non-top-k experts

    acc_ref[...] = jnp.zeros_like(acc_ref)
    den_ref[...] = jnp.zeros_like(den_ref)

    E = gated.shape[-1]
    for e in range(E):                                    # unrolled, E is small/static
        # Skip an expert entirely when no token in this tile routes to it.
        # Consistent by construction: tilemask = OR over tokens of sel, so a
        # skipped expert has gated[:, e] == 0 (no num/den contribution lost).
        @pl.when(tilemask_ref[tile, e] > 0)
        def _run_expert(e=e):
            w_e = gated[:, e:e + 1]                       # (tN, 1) static column
            h = jnp.dot(x, w1_ref[e],
                        preferred_element_type=jnp.float32) + b1_ref[e]
            h = jnp.where(h > 0, h, LEAKY_SLOPE * h)
            h = jnp.dot(h.astype(jnp.bfloat16), w2_ref[e],
                        preferred_element_type=jnp.float32) + b2_ref[e]
            h = jnp.where(h > 0, h, LEAKY_SLOPE * h)
            out_e = jnp.dot(h.astype(jnp.bfloat16), w3_ref[e],
                            preferred_element_type=jnp.float32) + b3_ref[e]
            acc_ref[...] += w_e * out_e
            den_ref[...] += w_e

    # output = (sum_e g_e * out_e) / max(sum_e g_e, eps)  ==  F.normalize(p=1) combine
    inv = pl.reciprocal(jnp.maximum(den_ref[...], 1e-12), approx=True)
    o_ref[...] = (acc_ref[...] * inv).astype(o_ref.dtype)


# ---------------------------------------------------------------------------
# Wrapper
# ---------------------------------------------------------------------------
def _round_up(x, m):
    return (x + m - 1) // m * m


def _pick_tile_n(n):
    # Big tiles amortize per-step overhead and fill the MXU M dim; keep >= 2
    # tiles for realistic N so both of v7x's TensorCores get work.  Tiny N is
    # padded up to one 128-row tile.
    if n >= 1024:
        return 512
    if n >= 512:
        return 256
    return 128


def moe_layer_forward(x, params, num_experts_per_tok, *, tile_n=None,
                      out_dtype=jnp.float32):
    """x: (B, T, D_in) float32.  Returns (B, T, D_out) in out_dtype."""
    B, T, D_in = x.shape
    Wg, bg, W1, b1, W2, b2, W3, b3 = params
    E = Wg.shape[1]
    H = W1.shape[2]
    D_out = W3.shape[2]
    k = int(num_experts_per_tok)
    assert 1 <= k <= E, "num_experts_per_tok must be in [1, num_experts]"

    N = B * T
    if tile_n is None:
        tile_n = _pick_tile_n(N)
    assert tile_n % 8 == 0
    N_pad = _round_up(N, tile_n)
    num_tiles = N_pad // tile_n

    # Lane-dense feature dims (multiples of 128); zero padding is exact.
    D_in_p = _round_up(D_in, 128)
    H_p = _round_up(H, 128)
    D_out_p = _round_up(D_out, 128)

    # --- pad + cast operands ---
    x2 = jnp.pad(x.reshape(N, D_in).astype(jnp.float32),
                 ((0, N_pad - N), (0, D_in_p - D_in)))
    x_bf = x2.astype(jnp.bfloat16)                                 # streamed bf16

    Wg_f32p = jnp.pad(Wg.astype(jnp.float32), ((0, D_in_p - D_in), (0, 0)))
    Wgb = Wg_f32p.astype(jnp.bfloat16)
    bg2 = bg.reshape(1, E).astype(jnp.float32)

    def pad_w(w, r, c):
        return jnp.pad(w.astype(jnp.float32),
                       ((0, 0), (0, r), (0, c))).astype(jnp.bfloat16)

    W1b = pad_w(W1, D_in_p - D_in, H_p - H)
    W2b = pad_w(W2, H_p - H, H_p - H)
    W3b = pad_w(W3, H_p - H, D_out_p - D_out)
    b1p = jnp.pad(b1.astype(jnp.float32), ((0, 0), (0, H_p - H))).reshape(E, 1, H_p)
    b2p = jnp.pad(b2.astype(jnp.float32), ((0, 0), (0, H_p - H))).reshape(E, 1, H_p)
    b3p = jnp.pad(b3.astype(jnp.float32),
                  ((0, 0), (0, D_out_p - D_out))).reshape(E, 1, D_out_p)

    # --- cheap f32 XLA routing pass (exactly the reference's selection) ---
    # FLOPs are < 1% of the expert matmuls; the discrete top-k decision is
    # taken here in f32 so it matches the PyTorch/f32 module bit-for-bit,
    # while the continuous gate values are recomputed fused in the kernel.
    scores_r = jax.nn.softmax(x2 @ Wg_f32p + bg2, axis=-1)        # (N_pad, E)
    _, top_idx = lax.top_k(scores_r, k)
    sel = jnp.sum(jax.nn.one_hot(top_idx, E, dtype=jnp.float32), axis=-2)  # {0,1}
    tile_mask = (sel.reshape(num_tiles, tile_n, E).max(axis=1) > 0).astype(jnp.int32)

    # --- VMEM budget: 1x resident weights (Buffered(1)), 2x streamed tiles,
    #     scratch accumulators, plus headroom for Mosaic internal scratch. ---
    out_isize = jnp.dtype(out_dtype).itemsize
    resident = ((W1b.size + W2b.size + W3b.size + Wgb.size) * 2
                + (b1p.size + b2p.size + b3p.size + bg2.size) * 4)
    streamed = 2 * tile_n * (D_in_p * 2 + E * 4 + D_out_p * out_isize)
    scratch = tile_n * (D_out_p + 128) * 4
    needed = resident + streamed + scratch + (8 << 20)
    try:
        cap = pltpu.get_tpu_info().vmem_capacity_bytes
    except Exception:
        cap = 64 << 20                      # conservative (v7x per-TC) fallback
    vmem_limit = int(min(max(needed, 32 << 20), cap - (8 << 20)))

    def _build_and_call(resident_mode):
        def rspec(shape, imap):
            # Constant-index (VMEM-resident) operands: single-buffer when the
            # installed JAX supports pipeline_mode=pl.Buffered(1).
            if resident_mode is None:
                return pl.BlockSpec(shape, imap)
            return pl.BlockSpec(shape, imap, pipeline_mode=resident_mode)

        imap2 = lambda i, m: (0, 0)
        imap3 = lambda i, m: (0, 0, 0)

        grid_spec = pltpu.PrefetchScalarGridSpec(
            num_scalar_prefetch=1,
            grid=(num_tiles,),
            in_specs=[
                pl.BlockSpec((tile_n, D_in_p), lambda i, m: (i, 0)),   # x (bf16)
                pl.BlockSpec((tile_n, E), lambda i, m: (i, 0)),        # top-k mask
                rspec((D_in_p, E), imap2),                             # Wg
                rspec((1, E), imap2),                                  # bg
                rspec((E, D_in_p, H_p), imap3),                        # W1
                rspec((E, 1, H_p), imap3),                             # b1
                rspec((E, H_p, H_p), imap3),                           # W2
                rspec((E, 1, H_p), imap3),                             # b2
                rspec((E, H_p, D_out_p), imap3),                       # W3
                rspec((E, 1, D_out_p), imap3),                         # b3
            ],
            out_specs=pl.BlockSpec((tile_n, D_out_p), lambda i, m: (i, 0)),
            scratch_shapes=[pltpu.VMEM((tile_n, D_out_p), jnp.float32),
                            pltpu.VMEM((tile_n, 1), jnp.float32)],
        )
        return pl.pallas_call(
            fused_moe_kernel,
            out_shape=jax.ShapeDtypeStruct((N_pad, D_out_p), out_dtype),
            grid_spec=grid_spec,
            compiler_params=pltpu.CompilerParams(
                dimension_semantics=("parallel",),
                vmem_limit_bytes=vmem_limit),
        )(tile_mask, x_bf, sel, Wgb, bg2, W1b, b1p, W2b, b2p, W3b, b3p)

    try:
        out = _build_and_call(pl.Buffered(1))
    except Exception:
        out = _build_and_call(None)         # fall back to default double buffering

    return out[:N, :D_out].reshape(B, T, D_out)


# ---------------------------------------------------------------------------
# Pure-JAX reference (mirrors the PyTorch forward, all f32)
# ---------------------------------------------------------------------------
def moe_layer_reference(x, params, k):
    Wg, bg, W1, b1, W2, b2, W3, b3 = params
    E = Wg.shape[1]
    scores = jax.nn.softmax(x @ Wg + bg, axis=-1)                 # (B,T,E)
    _, top_idx = lax.top_k(scores, k)
    mask = jnp.sum(jax.nn.one_hot(top_idx, E, dtype=scores.dtype), axis=-2)
    gated = scores * mask
    gated = gated / jnp.maximum(gated.sum(-1, keepdims=True), 1e-12)

    outs = []
    for e in range(E):
        h = x @ W1[e] + b1[e]
        h = jnp.where(h > 0, h, LEAKY_SLOPE * h)
        h = h @ W2[e] + b2[e]
        h = jnp.where(h > 0, h, LEAKY_SLOPE * h)
        outs.append(h @ W3[e] + b3[e])
    expert_outputs = jnp.stack(outs, axis=2)                      # (B,T,E,O)
    return jnp.einsum('bte,bteo->bto', gated, expert_outputs)


# ---------------------------------------------------------------------------
def init_params(key, D_in, H, D_out, E):
    ks = jax.random.split(key, 8)
    s_in, s_h = 1.0 / jnp.sqrt(D_in), 1.0 / jnp.sqrt(H)
    Wg = jax.random.uniform(ks[0], (D_in, E), jnp.float32, -s_in, s_in)
    bg = jax.random.uniform(ks[1], (E,), jnp.float32, -s_in, s_in)
    W1 = jax.random.uniform(ks[2], (E, D_in, H), jnp.float32, -s_in, s_in)
    b1 = jax.random.uniform(ks[3], (E, H), jnp.float32, -s_in, s_in)
    W2 = jax.random.uniform(ks[4], (E, H, H), jnp.float32, -s_h, s_h)
    b2 = jax.random.uniform(ks[5], (E, H), jnp.float32, -s_h, s_h)
    W3 = jax.random.uniform(ks[6], (E, H, D_out), jnp.float32, -s_h, s_h)
    b3 = jax.random.uniform(ks[7], (E, D_out), jnp.float32, -s_h, s_h)
    return (Wg, bg, W1, b1, W2, b2, W3, b3)


if __name__ == "__main__":
    B, T = 2, 8
    D_in, H, D_out = 32, 32, 32
    E, k = 4, 2

    key = jax.random.PRNGKey(0)
    kx, kp = jax.random.split(key)
    x = jax.random.normal(kx, (B, T, D_in), jnp.float32)
    params = init_params(kp, D_in, H, D_out, E)

    out = moe_layer_forward(x, params, k)
    out = jax.block_until_ready(out)

    ref = moe_layer_reference(x, params, k)
    assert out.shape == (B, T, D_out)
    # Routing (top-k selection) matches the f32 reference exactly (computed in
    # the f32 XLA pre-pass); residual error is bf16 MXU matmuls + one EUP
    # approximate reciprocal, so bf16-level tolerance vs the pure-f32 reference.
    assert jnp.allclose(out, ref, rtol=2.5e-2, atol=2.5e-2), "mismatch vs reference"

    print("KERNEL_OK")
</pallas_src>

<mosaic_0001>
module attributes {stable_mosaic.version = 11 : i64} {
  func.func @fused_moe_kernel(%arg0: i32, %arg1: memref<1x4xi32, #tpu.memory_space<smem>>, %arg2: memref<128x128xbf16, #tpu.memory_space<vmem>>, %arg3: memref<128x4xf32, #tpu.memory_space<vmem>>, %arg4: memref<128x4xbf16, #tpu.memory_space<vmem>>, %arg5: memref<1x4xf32, #tpu.memory_space<vmem>>, %arg6: memref<4x128x128xbf16, #tpu.memory_space<vmem>>, %arg7: memref<4x1x128xf32, #tpu.memory_space<vmem>>, %arg8: memref<4x128x128xbf16, #tpu.memory_space<vmem>>, %arg9: memref<4x1x128xf32, #tpu.memory_space<vmem>>, %arg10: memref<4x128x128xbf16, #tpu.memory_space<vmem>>, %arg11: memref<4x1x128xf32, #tpu.memory_space<vmem>>, %arg12: memref<128x128xf32, #tpu.memory_space<vmem>>, %arg13: memref<128x128xf32, #tpu.memory_space<vmem>>, %arg14: memref<128x1xf32, #tpu.memory_space<vmem>>) attributes {dimension_semantics = [#tpu.dimension_semantics<parallel>], iteration_bounds = array<i64: 1>, scalar_prefetch = 1 : i64, scratch_operands = 2 : i64, tpu.core_type = #tpu.core_type<tc>, window_params = [{transform_indices = @transform_0, window_bounds = array<i64: 128, 128>}, {transform_indices = @transform_1, window_bounds = array<i64: 128, 4>}, {pipeline_mode = #tpu.pipeline_mode<synchronous>, transform_indices = @transform_2, window_bounds = array<i64: 128, 4>}, {pipeline_mode = #tpu.pipeline_mode<synchronous>, transform_indices = @transform_3, window_bounds = array<i64: 1, 4>}, {pipeline_mode = #tpu.pipeline_mode<synchronous>, transform_indices = @transform_4, window_bounds = array<i64: 4, 128, 128>}, {pipeline_mode = #tpu.pipeline_mode<synchronous>, transform_indices = @transform_5, window_bounds = array<i64: 4, 1, 128>}, {pipeline_mode = #tpu.pipeline_mode<synchronous>, transform_indices = @transform_6, window_bounds = array<i64: 4, 128, 128>}, {pipeline_mode = #tpu.pipeline_mode<synchronous>, transform_indices = @transform_7, window_bounds = array<i64: 4, 1, 128>}, {pipeline_mode = #tpu.pipeline_mode<synchronous>, transform_indices = @transform_8, window_bounds = array<i64: 4, 128, 128>}, {pipeline_mode = #tpu.pipeline_mode<synchronous>, transform_indices = @transform_9, window_bounds = array<i64: 4, 1, 128>}, {transform_indices = @transform_10, window_bounds = array<i64: 128, 128>}]} {
    %c0 = arith.constant 0 : index
    %c0_0 = arith.constant 0 : index
    %0 = vector.load %arg2[%c0, %c0_0] : memref<128x128xbf16, #tpu.memory_space<vmem>>, vector<128x128xbf16>
    %c0_1 = arith.constant 0 : index
    %c0_2 = arith.constant 0 : index
    %1 = vector.load %arg4[%c0_1, %c0_2] : memref<128x4xbf16, #tpu.memory_space<vmem>>, vector<128x4xbf16>
    %cst = arith.constant dense<0.000000e+00> : vector<128x4xf32>
    %2 = tpu.matmul %0, %1, %cst {dimension_numbers = #tpu.dot_dimension_numbers<[1], [0], [0], [1], [0, 0, 1, 1], [], []>} : vector<128x128xbf16>, vector<128x4xbf16>, vector<128x4xf32> -> vector<128x4xf32>
    %c0_3 = arith.constant 0 : index
    %c0_4 = arith.constant 0 : index
    %3 = vector.load %arg5[%c0_3, %c0_4] : memref<1x4xf32, #tpu.memory_space<vmem>>, vector<1x4xf32>
    %4 = vector.broadcast %3 : vector<1x4xf32> to vector<128x4xf32>
    %5 = arith.addf %2, %4 : vector<128x4xf32>
    %cst_5 = arith.constant dense<0xFF800000> : vector<128xf32>
    %6 = vector.multi_reduction <maximumf>, %5, %cst_5 [1] : vector<128x4xf32> to vector<128xf32>
    %7 = vector.shape_cast %6 : vector<128xf32> to vector<128x1xf32>
    %8 = vector.broadcast %7 : vector<128x1xf32> to vector<128x4xf32>
    %9 = arith.subf %5, %8 : vector<128x4xf32>
    %10 = math.exp %9 : vector<128x4xf32>
    %c0_6 = arith.constant 0 : index
    %c0_7 = arith.constant 0 : index
    %11 = vector.load %arg3[%c0_6, %c0_7] : memref<128x4xf32, #tpu.memory_space<vmem>>, vector<128x4xf32>
    %12 = arith.mulf %10, %11 : vector<128x4xf32>
    %cst_8 = arith.constant 0.000000e+00 : f32
    %13 = vector.broadcast %cst_8 : f32 to vector<128x128xf32>
    %c0_9 = arith.constant 0 : index
    %c0_10 = arith.constant 0 : index
    %14 = vector.load %arg13[%c0_9, %c0_10] : memref<128x128xf32, #tpu.memory_space<vmem>>, vector<128x128xf32>
    tpu.vector_store %arg13[%c0_9, %c0_10], %13 {strides = array<i32>} : memref<128x128xf32, #tpu.memory_space<vmem>>, vector<128x128xf32>,
    %cst_11 = arith.constant 0.000000e+00 : f32
    %15 = vector.broadcast %cst_11 : f32 to vector<128x1xf32>
    %c0_12 = arith.constant 0 : index
    %c0_13 = arith.constant 0 : index
    %16 = vector.load %arg14[%c0_12, %c0_13] : memref<128x1xf32, #tpu.memory_space<vmem>>, vector<128x1xf32>
    tpu.vector_store %arg14[%c0_12, %c0_13], %15 {strides = array<i32>} : memref<128x1xf32, #tpu.memory_space<vmem>>, vector<128x1xf32>,
    %17 = arith.index_cast %arg0 : i32 to index
    %c0_14 = arith.constant 0 : index
    %18 = memref.load %arg1[%17, %c0_14] : memref<1x4xi32, #tpu.memory_space<smem>>
    %c0_i32 = arith.constant 0 : i32
    %19 = arith.cmpi sgt, %18, %c0_i32 : i32
    %20 = arith.extui %19 : i1 to i32
    %c0_i32_15 = arith.constant 0 : i32
    %21 = arith.cmpi ne, %20, %c0_i32_15 : i32
    scf.if %21 {
      %45 = vector.extract_strided_slice %12 {offsets = [0, 0], sizes = [128, 1], strides = [1, 1]} : vector<128x4xf32> to vector<128x1xf32>
      %c0_29 = arith.constant 0 : index
      %c0_30 = arith.constant 0 : index
      %c0_31 = arith.constant 0 : index
      %46 = vector.load %arg6[%c0_29, %c0_30, %c0_31] : memref<4x128x128xbf16, #tpu.memory_space<vmem>>, vector<1x128x128xbf16>
      %47 = vector.shape_cast %46 : vector<1x128x128xbf16> to vector<128x128xbf16>
      %cst_32 = arith.constant dense<0.000000e+00> : vector<128x128xf32>
      %48 = tpu.matmul %0, %47, %cst_32 {dimension_numbers = #tpu.dot_dimension_numbers<[1], [0], [0], [1], [0, 0, 1, 1], [], []>} : vector<128x128xbf16>, vector<128x128xbf16>, vector<128x128xf32> -> vector<128x128xf32>
      %c0_33 = arith.constant 0 : index
      %c0_34 = arith.constant 0 : index
      %c0_35 = arith.constant 0 : index
      %49 = vector.load %arg7[%c0_33, %c0_34, %c0_35] : memref<4x1x128xf32, #tpu.memory_space<vmem>>, vector<1x1x128xf32>
      %50 = vector.shape_cast %49 : vector<1x1x128xf32> to vector<1x128xf32>
      %51 = vector.broadcast %50 : vector<1x128xf32> to vector<128x128xf32>
      %52 = arith.addf %48, %51 : vector<128x128xf32>
      %cst_36 = arith.constant 0.000000e+00 : f32
      %53 = vector.broadcast %cst_36 : f32 to vector<128x128xf32>
      %54 = arith.cmpf ogt, %52, %53 : vector<128x128xf32>
      %cst_37 = arith.constant 0.00999999977 : f32
      %55 = vector.broadcast %cst_37 : f32 to vector<128x128xf32>
      %56 = arith.mulf %55, %52 : vector<128x128xf32>
      %57 = arith.select %54, %52, %56 : vector<128x128xi1>, vector<128x128xf32>
      %58 = arith.truncf %57 : vector<128x128xf32> to vector<128x128xbf16>
      %c0_38 = arith.constant 0 : index
      %c0_39 = arith.constant 0 : index
      %c0_40 = arith.constant 0 : index
      %59 = vector.load %arg8[%c0_38, %c0_39, %c0_40] : memref<4x128x128xbf16, #tpu.memory_space<vmem>>, vector<1x128x128xbf16>
      %60 = vector.shape_cast %59 : vector<1x128x128xbf16> to vector<128x128xbf16>
      %cst_41 = arith.constant dense<0.000000e+00> : vector<128x128xf32>
      %61 = tpu.matmul %58, %60, %cst_41 {dimension_numbers = #tpu.dot_dimension_numbers<[1], [0], [0], [1], [0, 0, 1, 1], [], []>} : vector<128x128xbf16>, vector<128x128xbf16>, vector<128x128xf32> -> vector<128x128xf32>
      %c0_42 = arith.constant 0 : index
      %c0_43 = arith.constant 0 : index
      %c0_44 = arith.constant 0 : index
      %62 = vector.load %arg9[%c0_42, %c0_43, %c0_44] : memref<4x1x128xf32, #tpu.memory_space<vmem>>, vector<1x1x128xf32>
      %63 = vector.shape_cast %62 : vector<1x1x128xf32> to vector<1x128xf32>
      %64 = vector.broadcast %63 : vector<1x128xf32> to vector<128x128xf32>
      %65 = arith.addf %61, %64 : vector<128x128xf32>
      %cst_45 = arith.constant 0.000000e+00 : f32
      %66 = vector.broadcast %cst_45 : f32 to vector<128x128xf32>
      %67 = arith.cmpf ogt, %65, %66 : vector<128x128xf32>
      %cst_46 = arith.constant 0.00999999977 : f32
      %68 = vector.broadcast %cst_46 : f32 to vector<128x128xf32>
      %69 = arith.mulf %68, %65 : vector<128x128xf32>
      %70 = arith.select %67, %65, %69 : vector<128x128xi1>, vector<128x128xf32>
      %71 = arith.truncf %70 : vector<128x128xf32> to vector<128x128xbf16>
      %c0_47 = arith.constant 0 : index
      %c0_48 = arith.constant 0 : index
      %c0_49 = arith.constant 0 : index
      %72 = vector.load %arg10[%c0_47, %c0_48, %c0_49] : memref<4x128x128xbf16, #tpu.memory_space<vmem>>, vector<1x128x128xbf16>
      %73 = vector.shape_cast %72 : vector<1x128x128xbf16> to vector<128x128xbf16>
      %cst_50 = arith.constant dense<0.000000e+00> : vector<128x128xf32>
      %74 = tpu.matmul %71, %73, %cst_50 {dimension_numbers = #tpu.dot_dimension_numbers<[1], [0], [0], [1], [0, 0, 1, 1], [], []>} : vector<128x128xbf16>, vector<128x128xbf16>, vector<128x128xf32> -> vector<128x128xf32>
      %c0_51 = arith.constant 0 : index
      %c0_52 = arith.constant 0 : index
      %c0_53 = arith.constant 0 : index
      %75 = vector.load %arg11[%c0_51, %c0_52, %c0_53] : memref<4x1x128xf32, #tpu.memory_space<vmem>>, vector<1x1x128xf32>
      %76 = vector.shape_cast %75 : vector<1x1x128xf32> to vector<1x128xf32>
      %77 = vector.broadcast %76 : vector<1x128xf32> to vector<128x128xf32>
      %78 = arith.addf %74, %77 : vector<128x128xf32>
      %c0_54 = arith.constant 0 : index
      %c0_55 = arith.constant 0 : index
      %79 = vector.load %arg13[%c0_54, %c0_55] : memref<128x128xf32, #tpu.memory_space<vmem>>, vector<128x128xf32>
      %80 = vector.broadcast %45 : vector<128x1xf32> to vector<128x128xf32>
      %81 = arith.mulf %80, %78 : vector<128x128xf32>
      %82 = arith.addf %79, %81 : vector<128x128xf32>
      %c0_56 = arith.constant 0 : index
      %c0_57 = arith.constant 0 : index
      %83 = vector.load %arg13[%c0_56, %c0_57] : memref<128x128xf32, #tpu.memory_space<vmem>>, vector<128x128xf32>
      tpu.vector_store %arg13[%c0_56, %c0_57], %82 {strides = array<i32>} : memref<128x128xf32, #tpu.memory_space<vmem>>, vector<128x128xf32>,
      %c0_58 = arith.constant 0 : index
      %c0_59 = arith.constant 0 : index
      %84 = vector.load %arg14[%c0_58, %c0_59] : memref<128x1xf32, #tpu.memory_space<vmem>>, vector<128x1xf32>
      %85 = arith.addf %84, %45 : vector<128x1xf32>
      %c0_60 = arith.constant 0 : index
      %c0_61 = arith.constant 0 : index
      %86 = vector.load %arg14[%c0_60, %c0_61] : memref<128x1xf32, #tpu.memory_space<vmem>>, vector<128x1xf32>
      tpu.vector_store %arg14[%c0_60, %c0_61], %85 {strides = array<i32>} : memref<128x1xf32, #tpu.memory_space<vmem>>, vector<128x1xf32>,
    } else {
    }
    %22 = arith.index_cast %arg0 : i32 to index
    %c1 = arith.constant 1 : index
    %23 = memref.load %arg1[%22, %c1] : memref<1x4xi32, #tpu.memory_space<smem>>
    %c0_i32_16 = arith.constant 0 : i32
    %24 = arith.cmpi sgt, %23, %c0_i32_16 : i32
    %25 = arith.extui %24 : i1 to i32
    %c0_i32_17 = arith.constant 0 : i32
    %26 = arith.cmpi ne, %25, %c0_i32_17 : i32
    scf.if %26 {
      %45 = vector.extract_strided_slice %12 {offsets = [0, 1], sizes = [128, 1], strides = [1, 1]} : vector<128x4xf32> to vector<128x1xf32>
      %c1_29 = arith.constant 1 : index
      %c0_30 = arith.constant 0 : index
      %c0_31 = arith.constant 0 : index
      %46 = vector.load %arg6[%c1_29, %c0_30, %c0_31] : memref<4x128x128xbf16, #tpu.memory_space<vmem>>, vector<1x128x128xbf16>
      %47 = vector.shape_cast %46 : vector<1x128x128xbf16> to vector<128x128xbf16>
      %cst_32 = arith.constant dense<0.000000e+00> : vector<128x128xf32>
      %48 = tpu.matmul %0, %47, %cst_32 {dimension_numbers = #tpu.dot_dimension_numbers<[1], [0], [0], [1], [0, 0, 1, 1], [], []>} : vector<128x128xbf16>, vector<128x128xbf16>, vector<128x128xf32> -> vector<128x128xf32>
      %c1_33 = arith.constant 1 : index
      %c0_34 = arith.constant 0 : index
      %c0_35 = arith.constant 0 : index
      %49 = vector.load %arg7[%c1_33, %c0_34, %c0_35] : memref<4x1x128xf32, #tpu.memory_space<vmem>>, vector<1x1x128xf32>
      %50 = vector.shape_cast %49 : vector<1x1x128xf32> to vector<1x128xf32>
      %51 = vector.broadcast %50 : vector<1x128xf32> to vector<128x128xf32>
      %52 = arith.addf %48, %51 : vector<128x128xf32>
      %cst_36 = arith.constant 0.000000e+00 : f32
      %53 = vector.broadcast %cst_36 : f32 to vector<128x128xf32>
      %54 = arith.cmpf ogt, %52, %53 : vector<128x128xf32>
      %cst_37 = arith.constant 0.00999999977 : f32
      %55 = vector.broadcast %cst_37 : f32 to vector<128x128xf32>
      %56 = arith.mulf %55, %52 : vector<128x128xf32>
      %57 = arith.select %54, %52, %56 : vector<128x128xi1>, vector<128x128xf32>
      %58 = arith.truncf %57 : vector<128x128xf32> to vector<128x128xbf16>
      %c1_38 = arith.constant 1 : index
      %c0_39 = arith.constant 0 : index
      %c0_40 = arith.constant 0 : index
      %59 = vector.load %arg8[%c1_38, %c0_39, %c0_40] : memref<4x128x128xbf16, #tpu.memory_space<vmem>>, vector<1x128x128xbf16>
      %60 = vector.shape_cast %59 : vector<1x128x128xbf16> to vector<128x128xbf16>
      %cst_41 = arith.constant dense<0.000000e+00> : vector<128x128xf32>
      %61 = tpu.matmul %58, %60, %cst_41 {dimension_numbers = #tpu.dot_dimension_numbers<[1], [0], [0], [1], [0, 0, 1, 1], [], []>} : vector<128x128xbf16>, vector<128x128xbf16>, vector<128x128xf32> -> vector<128x128xf32>
      %c1_42 = arith.constant 1 : index
      %c0_43 = arith.constant 0 : index
      %c0_44 = arith.constant 0 : index
      %62 = vector.load %arg9[%c1_42, %c0_43, %c0_44] : memref<4x1x128xf32, #tpu.memory_space<vmem>>, vector<1x1x128xf32>
      %63 = vector.shape_cast %62 : vector<1x1x128xf32> to vector<1x128xf32>
      %64 = vector.broadcast %63 : vector<1x128xf32> to vector<128x128xf32>
      %65 = arith.addf %61, %64 : vector<128x128xf32>
      %cst_45 = arith.constant 0.000000e+00 : f32
      %66 = vector.broadcast %cst_45 : f32 to vector<128x128xf32>
      %67 = arith.cmpf ogt, %65, %66 : vector<128x128xf32>
      %cst_46 = arith.constant 0.00999999977 : f32
      %68 = vector.broadcast %cst_46 : f32 to vector<128x128xf32>
      %69 = arith.mulf %68, %65 : vector<128x128xf32>
      %70 = arith.select %67, %65, %69 : vector<128x128xi1>, vector<128x128xf32>
      %71 = arith.truncf %70 : vector<128x128xf32> to vector<128x128xbf16>
      %c1_47 = arith.constant 1 : index
      %c0_48 = arith.constant 0 : index
      %c0_49 = arith.constant 0 : index
      %72 = vector.load %arg10[%c1_47, %c0_48, %c0_49] : memref<4x128x128xbf16, #tpu.memory_space<vmem>>, vector<1x128x128xbf16>
      %73 = vector.shape_cast %72 : vector<1x128x128xbf16> to vector<128x128xbf16>
      %cst_50 = arith.constant dense<0.000000e+00> : vector<128x128xf32>
      %74 = tpu.matmul %71, %73, %cst_50 {dimension_numbers = #tpu.dot_dimension_numbers<[1], [0], [0], [1], [0, 0, 1, 1], [], []>} : vector<128x128xbf16>, vector<128x128xbf16>, vector<128x128xf32> -> vector<128x128xf32>
      %c1_51 = arith.constant 1 : index
      %c0_52 = arith.constant 0 : index
      %c0_53 = arith.constant 0 : index
      %75 = vector.load %arg11[%c1_51, %c0_52, %c0_53] : memref<4x1x128xf32, #tpu.memory_space<vmem>>, vector<1x1x128xf32>
      %76 = vector.shape_cast %75 : vector<1x1x128xf32> to vector<1x128xf32>
      %77 = vector.broadcast %76 : vector<1x128xf32> to vector<128x128xf32>
      %78 = arith.addf %74, %77 : vector<128x128xf32>
      %c0_54 = arith.constant 0 : index
      %c0_55 = arith.constant 0 : index
      %79 = vector.load %arg13[%c0_54, %c0_55] : memref<128x128xf32, #tpu.memory_space<vmem>>, vector<128x128xf32>
      %80 = vector.broadcast %45 : vector<128x1xf32> to vector<128x128xf32>
      %81 = arith.mulf %80, %78 : vector<128x128xf32>
      %82 = arith.addf %79, %81 : vector<128x128xf32>
      %c0_56 = arith.constant 0 : index
      %c0_57 = arith.constant 0 : index
      %83 = vector.load %arg13[%c0_56, %c0_57] : memref<128x128xf32, #tpu.memory_space<vmem>>, vector<128x128xf32>
      tpu.vector_store %arg13[%c0_56, %c0_57], %82 {strides = array<i32>} : memref<128x128xf32, #tpu.memory_space<vmem>>, vector<128x128xf32>,
      %c0_58 = arith.constant 0 : index
      %c0_59 = arith.constant 0 : index
      %84 = vector.load %arg14[%c0_58, %c0_59] : memref<128x1xf32, #tpu.memory_space<vmem>>, vector<128x1xf32>
      %85 = arith.addf %84, %45 : vector<128x1xf32>
      %c0_60 = arith.constant 0 : index
      %c0_61 = arith.constant 0 : index
      %86 = vector.load %arg14[%c0_60, %c0_61] : memref<128x1xf32, #tpu.memory_space<vmem>>, vector<128x1xf32>
      tpu.vector_store %arg14[%c0_60, %c0_61], %85 {strides = array<i32>} : memref<128x1xf32, #tpu.memory_space<vmem>>, vector<128x1xf32>,
    } else {
    }
    %27 = arith.index_cast %arg0 : i32 to index
    %c2 = arith.constant 2 : index
    %28 = memref.load %arg1[%27, %c2] : memref<1x4xi32, #tpu.memory_space<smem>>
    %c0_i32_18 = arith.constant 0 : i32
    %29 = arith.cmpi sgt, %28, %c0_i32_18 : i32
    %30 = arith.extui %29 : i1 to i32
    %c0_i32_19 = arith.constant 0 : i32
    %31 = arith.cmpi ne, %30, %c0_i32_19 : i32
    scf.if %31 {
      %45 = vector.extract_strided_slice %12 {offsets = [0, 2], sizes = [128, 1], strides = [1, 1]} : vector<128x4xf32> to vector<128x1xf32>
      %c2_29 = arith.constant 2 : index
      %c0_30 = arith.constant 0 : index
      %c0_31 = arith.constant 0 : index
      %46 = vector.load %arg6[%c2_29, %c0_30, %c0_31] : memref<4x128x128xbf16, #tpu.memory_space<vmem>>, vector<1x128x128xbf16>
      %47 = vector.shape_cast %46 : vector<1x128x128xbf16> to vector<128x128xbf16>
      %cst_32 = arith.constant dense<0.000000e+00> : vector<128x128xf32>
      %48 = tpu.matmul %0, %47, %cst_32 {dimension_numbers = #tpu.dot_dimension_numbers<[1], [0], [0], [1], [0, 0, 1, 1], [], []>} : vector<128x128xbf16>, vector<128x128xbf16>, vector<128x128xf32> -> vector<128x128xf32>
      %c2_33 = arith.constant 2 : index
      %c0_34 = arith.constant 0 : index
      %c0_35 = arith.constant 0 : index
      %49 = vector.load %arg7[%c2_33, %c0_34, %c0_35] : memref<4x1x128xf32, #tpu.memory_space<vmem>>, vector<1x1x128xf32>
      %50 = vector.shape_cast %49 : vector<1x1x128xf32> to vector<1x128xf32>
      %51 = vector.broadcast %50 : vector<1x128xf32> to vector<128x128xf32>
      %52 = arith.addf %48, %51 : vector<128x128xf32>
      %cst_36 = arith.constant 0.000000e+00 : f32
      %53 = vector.broadcast %cst_36 : f32 to vector<128x128xf32>
      %54 = arith.cmpf ogt, %52, %53 : vector<128x128xf32>
      %cst_37 = arith.constant 0.00999999977 : f32
      %55 = vector.broadcast %cst_37 : f32 to vector<128x128xf32>
      %56 = arith.mulf %55, %52 : vector<128x128xf32>
      %57 = arith.select %54, %52, %56 : vector<128x128xi1>, vector<128x128xf32>
      %58 = arith.truncf %57 : vector<128x128xf32> to vector<128x128xbf16>
      %c2_38 = arith.constant 2 : index
      %c0_39 = arith.constant 0 : index
      %c0_40 = arith.constant 0 : index
      %59 = vector.load %arg8[%c2_38, %c0_39, %c0_40] : memref<4x128x128xbf16, #tpu.memory_space<vmem>>, vector<1x128x128xbf16>
      %60 = vector.shape_cast %59 : vector<1x128x128xbf16> to vector<128x128xbf16>
      %cst_41 = arith.constant dense<0.000000e+00> : vector<128x128xf32>
      %61 = tpu.matmul %58, %60, %cst_41 {dimension_numbers = #tpu.dot_dimension_numbers<[1], [0], [0], [1], [0, 0, 1, 1], [], []>} : vector<128x128xbf16>, vector<128x128xbf16>, vector<128x128xf32> -> vector<128x128xf32>
      %c2_42 = arith.constant 2 : index
      %c0_43 = arith.constant 0 : index
      %c0_44 = arith.constant 0 : index
      %62 = vector.load %arg9[%c2_42, %c0_43, %c0_44] : memref<4x1x128xf32, #tpu.memory_space<vmem>>, vector<1x1x128xf32>
      %63 = vector.shape_cast %62 : vector<1x1x128xf32> to vector<1x128xf32>
      %64 = vector.broadcast %63 : vector<1x128xf32> to vector<128x128xf32>
      %65 = arith.addf %61, %64 : vector<128x128xf32>
      %cst_45 = arith.constant 0.000000e+00 : f32
      %66 = vector.broadcast %cst_45 : f32 to vector<128x128xf32>
      %67 = arith.cmpf ogt, %65, %66 : vector<128x128xf32>
      %cst_46 = arith.constant 0.00999999977 : f32
      %68 = vector.broadcast %cst_46 : f32 to vector<128x128xf32>
      %69 = arith.mulf %68, %65 : vector<128x128xf32>
      %70 = arith.select %67, %65, %69 : vector<128x128xi1>, vector<128x128xf32>
      %71 = arith.truncf %70 : vector<128x128xf32> to vector<128x128xbf16>
      %c2_47 = arith.constant 2 : index
      %c0_48 = arith.constant 0 : index
      %c0_49 = arith.constant 0 : index
      %72 = vector.load %arg10[%c2_47, %c0_48, %c0_49] : memref<4x128x128xbf16, #tpu.memory_space<vmem>>, vector<1x128x128xbf16>
      %73 = vector.shape_cast %72 : vector<1x128x128xbf16> to vector<128x128xbf16>
      %cst_50 = arith.constant dense<0.000000e+00> : vector<128x128xf32>
      %74 = tpu.matmul %71, %73, %cst_50 {dimension_numbers = #tpu.dot_dimension_numbers<[1], [0], [0], [1], [0, 0, 1, 1], [], []>} : vector<128x128xbf16>, vector<128x128xbf16>, vector<128x128xf32> -> vector<128x128xf32>
      %c2_51 = arith.constant 2 : index
      %c0_52 = arith.constant 0 : index
      %c0_53 = arith.constant 0 : index
      %75 = vector.load %arg11[%c2_51, %c0_52, %c0_53] : memref<4x1x128xf32, #tpu.memory_space<vmem>>, vector<1x1x128xf32>
      %76 = vector.shape_cast %75 : vector<1x1x128xf32> to vector<1x128xf32>
      %77 = vector.broadcast %76 : vector<1x128xf32> to vector<128x128xf32>
      %78 = arith.addf %74, %77 : vector<128x128xf32>
      %c0_54 = arith.constant 0 : index
      %c0_55 = arith.constant 0 : index
      %79 = vector.load %arg13[%c0_54, %c0_55] : memref<128x128xf32, #tpu.memory_space<vmem>>, vector<128x128xf32>
      %80 = vector.broadcast %45 : vector<128x1xf32> to vector<128x128xf32>
      %81 = arith.mulf %80, %78 : vector<128x128xf32>
      %82 = arith.addf %79, %81 : vector<128x128xf32>
      %c0_56 = arith.constant 0 : index
      %c0_57 = arith.constant 0 : index
      %83 = vector.load %arg13[%c0_56, %c0_57] : memref<128x128xf32, #tpu.memory_space<vmem>>, vector<128x128xf32>
      tpu.vector_store %arg13[%c0_56, %c0_57], %82 {strides = array<i32>} : memref<128x128xf32, #tpu.memory_space<vmem>>, vector<128x128xf32>,
      %c0_58 = arith.constant 0 : index
      %c0_59 = arith.constant 0 : index
      %84 = vector.load %arg14[%c0_58, %c0_59] : memref<128x1xf32, #tpu.memory_space<vmem>>, vector<128x1xf32>
      %85 = arith.addf %84, %45 : vector<128x1xf32>
      %c0_60 = arith.constant 0 : index
      %c0_61 = arith.constant 0 : index
      %86 = vector.load %arg14[%c0_60, %c0_61] : memref<128x1xf32, #tpu.memory_space<vmem>>, vector<128x1xf32>
      tpu.vector_store %arg14[%c0_60, %c0_61], %85 {strides = array<i32>} : memref<128x1xf32, #tpu.memory_space<vmem>>, vector<128x1xf32>,
    } else {
    }
    %32 = arith.index_cast %arg0 : i32 to index
    %c3 = arith.constant 3 : index
    %33 = memref.load %arg1[%32, %c3] : memref<1x4xi32, #tpu.memory_space<smem>>
    %c0_i32_20 = arith.constant 0 : i32
    %34 = arith.cmpi sgt, %33, %c0_i32_20 : i32
    %35 = arith.extui %34 : i1 to i32
    %c0_i32_21 = arith.constant 0 : i32
    %36 = arith.cmpi ne, %35, %c0_i32_21 : i32
    scf.if %36 {
      %45 = vector.extract_strided_slice %12 {offsets = [0, 3], sizes = [128, 1], strides = [1, 1]} : vector<128x4xf32> to vector<128x1xf32>
      %c3_29 = arith.constant 3 : index
      %c0_30 = arith.constant 0 : index
      %c0_31 = arith.constant 0 : index
      %46 = vector.load %arg6[%c3_29, %c0_30, %c0_31] : memref<4x128x128xbf16, #tpu.memory_space<vmem>>, vector<1x128x128xbf16>
      %47 = vector.shape_cast %46 : vector<1x128x128xbf16> to vector<128x128xbf16>
      %cst_32 = arith.constant dense<0.000000e+00> : vector<128x128xf32>
      %48 = tpu.matmul %0, %47, %cst_32 {dimension_numbers = #tpu.dot_dimension_numbers<[1], [0], [0], [1], [0, 0, 1, 1], [], []>} : vector<128x128xbf16>, vector<128x128xbf16>, vector<128x128xf32> -> vector<128x128xf32>
      %c3_33 = arith.constant 3 : index
      %c0_34 = arith.constant 0 : index
      %c0_35 = arith.constant 0 : index
      %49 = vector.load %arg7[%c3_33, %c0_34, %c0_35] : memref<4x1x128xf32, #tpu.memory_space<vmem>>, vector<1x1x128xf32>
      %50 = vector.shape_cast %49 : vector<1x1x128xf32> to vector<1x128xf32>
      %51 = vector.broadcast %50 : vector<1x128xf32> to vector<128x128xf32>
      %52 = arith.addf %48, %51 : vector<128x128xf32>
      %cst_36 = arith.constant 0.000000e+00 : f32
      %53 = vector.broadcast %cst_36 : f32 to vector<128x128xf32>
      %54 = arith.cmpf ogt, %52, %53 : vector<128x128xf32>
      %cst_37 = arith.constant 0.00999999977 : f32
      %55 = vector.broadcast %cst_37 : f32 to vector<128x128xf32>
      %56 = arith.mulf %55, %52 : vector<128x128xf32>
      %57 = arith.select %54, %52, %56 : vector<128x128xi1>, vector<128x128xf32>
      %58 = arith.truncf %57 : vector<128x128xf32> to vector<128x128xbf16>
      %c3_38 = arith.constant 3 : index
      %c0_39 = arith.constant 0 : index
      %c0_40 = arith.constant 0 : index
      %59 = vector.load %arg8[%c3_38, %c0_39, %c0_40] : memref<4x128x128xbf16, #tpu.memory_space<vmem>>, vector<1x128x128xbf16>
      %60 = vector.shape_cast %59 : vector<1x128x128xbf16> to vector<128x128xbf16>
      %cst_41 = arith.constant dense<0.000000e+00> : vector<128x128xf32>
      %61 = tpu.matmul %58, %60, %cst_41 {dimension_numbers = #tpu.dot_dimension_numbers<[1], [0], [0], [1], [0, 0, 1, 1], [], []>} : vector<128x128xbf16>, vector<128x128xbf16>, vector<128x128xf32> -> vector<128x128xf32>
      %c3_42 = arith.constant 3 : index
      %c0_43 = arith.constant 0 : index
      %c0_44 = arith.constant 0 : index
      %62 = vector.load %arg9[%c3_42, %c0_43, %c0_44] : memref<4x1x128xf32, #tpu.memory_space<vmem>>, vector<1x1x128xf32>
      %63 = vector.shape_cast %62 : vector<1x1x128xf32> to vector<1x128xf32>
      %64 = vector.broadcast %63 : vector<1x128xf32> to vector<128x128xf32>
      %65 = arith.addf %61, %64 : vector<128x128xf32>
      %cst_45 = arith.constant 0.000000e+00 : f32
      %66 = vector.broadcast %cst_45 : f32 to vector<128x128xf32>
      %67 = arith.cmpf ogt, %65, %66 : vector<128x128xf32>
      %cst_46 = arith.constant 0.00999999977 : f32
      %68 = vector.broadcast %cst_46 : f32 to vector<128x128xf32>
      %69 = arith.mulf %68, %65 : vector<128x128xf32>
      %70 = arith.select %67, %65, %69 : vector<128x128xi1>, vector<128x128xf32>
      %71 = arith.truncf %70 : vector<128x128xf32> to vector<128x128xbf16>
      %c3_47 = arith.constant 3 : index
      %c0_48 = arith.constant 0 : index
      %c0_49 = arith.constant 0 : index
      %72 = vector.load %arg10[%c3_47, %c0_48, %c0_49] : memref<4x128x128xbf16, #tpu.memory_space<vmem>>, vector<1x128x128xbf16>
      %73 = vector.shape_cast %72 : vector<1x128x128xbf16> to vector<128x128xbf16>
      %cst_50 = arith.constant dense<0.000000e+00> : vector<128x128xf32>
      %74 = tpu.matmul %71, %73, %cst_50 {dimension_numbers = #tpu.dot_dimension_numbers<[1], [0], [0], [1], [0, 0, 1, 1], [], []>} : vector<128x128xbf16>, vector<128x128xbf16>, vector<128x128xf32> -> vector<128x128xf32>
      %c3_51 = arith.constant 3 : index
      %c0_52 = arith.constant 0 : index
      %c0_53 = arith.constant 0 : index
      %75 = vector.load %arg11[%c3_51, %c0_52, %c0_53] : memref<4x1x128xf32, #tpu.memory_space<vmem>>, vector<1x1x128xf32>
      %76 = vector.shape_cast %75 : vector<1x1x128xf32> to vector<1x128xf32>
      %77 = vector.broadcast %76 : vector<1x128xf32> to vector<128x128xf32>
      %78 = arith.addf %74, %77 : vector<128x128xf32>
      %c0_54 = arith.constant 0 : index
      %c0_55 = arith.constant 0 : index
      %79 = vector.load %arg13[%c0_54, %c0_55] : memref<128x128xf32, #tpu.memory_space<vmem>>, vector<128x128xf32>
      %80 = vector.broadcast %45 : vector<128x1xf32> to vector<128x128xf32>
      %81 = arith.mulf %80, %78 : vector<128x128xf32>
      %82 = arith.addf %79, %81 : vector<128x128xf32>
      %c0_56 = arith.constant 0 : index
      %c0_57 = arith.constant 0 : index
      %83 = vector.load %arg13[%c0_56, %c0_57] : memref<128x128xf32, #tpu.memory_space<vmem>>, vector<128x128xf32>
      tpu.vector_store %arg13[%c0_56, %c0_57], %82 {strides = array<i32>} : memref<128x128xf32, #tpu.memory_space<vmem>>, vector<128x128xf32>,
      %c0_58 = arith.constant 0 : index
      %c0_59 = arith.constant 0 : index
      %84 = vector.load %arg14[%c0_58, %c0_59] : memref<128x1xf32, #tpu.memory_space<vmem>>, vector<128x1xf32>
      %85 = arith.addf %84, %45 : vector<128x1xf32>
      %c0_60 = arith.constant 0 : index
      %c0_61 = arith.constant 0 : index
      %86 = vector.load %arg14[%c0_60, %c0_61] : memref<128x1xf32, #tpu.memory_space<vmem>>, vector<128x1xf32>
      tpu.vector_store %arg14[%c0_60, %c0_61], %85 {strides = array<i32>} : memref<128x1xf32, #tpu.memory_space<vmem>>, vector<128x1xf32>,
    } else {
    }
    %c0_22 = arith.constant 0 : index
    %c0_23 = arith.constant 0 : index
    %37 = vector.load %arg14[%c0_22, %c0_23] : memref<128x1xf32, #tpu.memory_space<vmem>>, vector<128x1xf32>
    %cst_24 = arith.constant 9.99999996E-13 : f32
    %38 = vector.broadcast %cst_24 : f32 to vector<128x1xf32>
    %39 = arith.maximumf %37, %38 : vector<128x1xf32>
    %40 = tpu.reciprocal %39 {approx = true} : vector<128x1xf32> -> vector<128x1xf32>
    %c0_25 = arith.constant 0 : index
    %c0_26 = arith.constant 0 : index
    %41 = vector.load %arg13[%c0_25, %c0_26] : memref<128x128xf32, #tpu.memory_space<vmem>>, vector<128x128xf32>
    %42 = vector.broadcast %40 : vector<128x1xf32> to vector<128x128xf32>
    %43 = arith.mulf %41, %42 : vector<128x128xf32>
    %c0_27 = arith.constant 0 : index
    %c0_28 = arith.constant 0 : index
    %44 = vector.load %arg12[%c0_27, %c0_28] : memref<128x128xf32, #tpu.memory_space<vmem>>, vector<128x128xf32>
    tpu.vector_store %arg12[%c0_27, %c0_28], %43 {strides = array<i32>} : memref<128x128xf32, #tpu.memory_space<vmem>>, vector<128x128xf32>,
    return
  }
  func.func @transform_0(%arg0: i32, %arg1: memref<1x4xi32, #tpu.memory_space<smem>>) -> (i32, i32) {
    %c0_i32 = arith.constant 0 : i32
    %c0_i32_0 = arith.constant 0 : i32
    return %arg0, %c0_i32 : i32, i32
  }
  func.func @transform_1(%arg0: i32, %arg1: memref<1x4xi32, #tpu.memory_space<smem>>) -> (i32, i32) {
    %c0_i32 = arith.constant 0 : i32
    %c0_i32_0 = arith.constant 0 : i32
    return %arg0, %c0_i32 : i32, i32
  }
  func.func @transform_2(%arg0: i32, %arg1: memref<1x4xi32, #tpu.memory_space<smem>>) -> (i32, i32) {
    %c0_i32 = arith.constant 0 : i32
    %c0_i32_0 = arith.constant 0 : i32
    %c0_i32_1 = arith.constant 0 : i32
    return %c0_i32, %c0_i32_0 : i32, i32
  }
  func.func @transform_3(%arg0: i32, %arg1: memref<1x4xi32, #tpu.memory_space<smem>>) -> (i32, i32) {
    %c0_i32 = arith.constant 0 : i32
    %c0_i32_0 = arith.constant 0 : i32
    %c0_i32_1 = arith.constant 0 : i32
    return %c0_i32, %c0_i32_0 : i32, i32
  }
  func.func @transform_4(%arg0: i32, %arg1: memref<1x4xi32, #tpu.memory_space<smem>>) -> (i32, i32, i32) {
    %c0_i32 = arith.constant 0 : i32
    %c0_i32_0 = arith.constant 0 : i32
    %c0_i32_1 = arith.constant 0 : i32
    %c0_i32_2 = arith.constant 0 : i32
    return %c0_i32, %c0_i32_0, %c0_i32_1 : i32, i32, i32
  }
  func.func @transform_5(%arg0: i32, %arg1: memref<1x4xi32, #tpu.memory_space<smem>>) -> (i32, i32, i32) {
    %c0_i32 = arith.constant 0 : i32
    %c0_i32_0 = arith.constant 0 : i32
    %c0_i32_1 = arith.constant 0 : i32
    %c0_i32_2 = arith.constant 0 : i32
    return %c0_i32, %c0_i32_0, %c0_i32_1 : i32, i32, i32
  }
  func.func @transform_6(%arg0: i32, %arg1: memref<1x4xi32, #tpu.memory_space<smem>>) -> (i32, i32, i32) {
    %c0_i32 = arith.constant 0 : i32
    %c0_i32_0 = arith.constant 0 : i32
    %c0_i32_1 = arith.constant 0 : i32
    %c0_i32_2 = arith.constant 0 : i32
    return %c0_i32, %c0_i32_0, %c0_i32_1 : i32, i32, i32
  }
  func.func @transform_7(%arg0: i32, %arg1: memref<1x4xi32, #tpu.memory_space<smem>>) -> (i32, i32, i32) {
    %c0_i32 = arith.constant 0 : i32
    %c0_i32_0 = arith.constant 0 : i32
    %c0_i32_1 = arith.constant 0 : i32
    %c0_i32_2 = arith.constant 0 : i32
    return %c0_i32, %c0_i32_0, %c0_i32_1 : i32, i32, i32
  }
  func.func @transform_8(%arg0: i32, %arg1: memref<1x4xi32, #tpu.memory_space<smem>>) -> (i32, i32, i32) {
    %c0_i32 = arith.constant 0 : i32
    %c0_i32_0 = arith.constant 0 : i32
    %c0_i32_1 = arith.constant 0 : i32
    %c0_i32_2 = arith.constant 0 : i32
    return %c0_i32, %c0_i32_0, %c0_i32_1 : i32, i32, i32
  }
  func.func @transform_9(%arg0: i32, %arg1: memref<1x4xi32, #tpu.memory_space<smem>>) -> (i32, i32, i32) {
    %c0_i32 = arith.constant 0 : i32
    %c0_i32_0 = arith.constant 0 : i32
    %c0_i32_1 = arith.constant 0 : i32
    %c0_i32_2 = arith.constant 0 : i32
    return %c0_i32, %c0_i32_0, %c0_i32_1 : i32, i32, i32
  }
  func.func @transform_10(%arg0: i32, %arg1: memref<1x4xi32, #tpu.memory_space<smem>>) -> (i32, i32) {
    %c0_i32 = arith.constant 0 : i32
    %c0_i32_0 = arith.constant 0 : i32
    return %arg0, %c0_i32 : i32, i32
  }
}

module attributes {stable_mosaic.version = 11 : i64} {
  func.func @fused_moe_kernel(%arg0: i32, %arg1: memref<1x4xi32, #tpu.memory_space<smem>>, %arg2: memref<128x128xbf16, #tpu.memory_space<vmem>>, %arg3: memref<128x4xf32, #tpu.memory_space<vmem>>, %arg4: memref<128x4xbf16, #tpu.memory_space<vmem>>, %arg5: memref<1x4xf32, #tpu.memory_space<vmem>>, %arg6: memref<4x128x128xbf16, #tpu.memory_space<vmem>>, %arg7: memref<4x1x128xf32, #tpu.memory_space<vmem>>, %arg8: memref<4x128x128xbf16, #tpu.memory_space<vmem>>, %arg9: memref<4x1x128xf32, #tpu.memory_space<vmem>>, %arg10: memref<4x128x128xbf16, #tpu.memory_space<vmem>>, %arg11: memref<4x1x128xf32, #tpu.memory_space<vmem>>, %arg12: memref<128x128xf32, #tpu.memory_space<vmem>>, %arg13: memref<128x128xf32, #tpu.memory_space<vmem>>, %arg14: memref<128x1xf32, #tpu.memory_space<vmem>>) attributes {dimension_semantics = [#tpu.dimension_semantics<parallel>], iteration_bounds = array<i64: 1>, scalar_prefetch = 1 : i64, scratch_operands = 2 : i64, tpu.core_type = #tpu.core_type<tc>, window_params = [{transform_indices = @transform_0, window_bounds = array<i64: 128, 128>}, {transform_indices = @transform_1, window_bounds = array<i64: 128, 4>}, {pipeline_mode = #tpu.pipeline_mode<synchronous>, transform_indices = @transform_2, window_bounds = array<i64: 128, 4>}, {pipeline_mode = #tpu.pipeline_mode<synchronous>, transform_indices = @transform_3, window_bounds = array<i64: 1, 4>}, {pipeline_mode = #tpu.pipeline_mode<synchronous>, transform_indices = @transform_4, window_bounds = array<i64: 4, 128, 128>}, {pipeline_mode = #tpu.pipeline_mode<synchronous>, transform_indices = @transform_5, window_bounds = array<i64: 4, 1, 128>}, {pipeline_mode = #tpu.pipeline_mode<synchronous>, transform_indices = @transform_6, window_bounds = array<i64: 4, 128, 128>}, {pipeline_mode = #tpu.pipeline_mode<synchronous>, transform_indices = @transform_7, window_bounds = array<i64: 4, 1, 128>}, {pipeline_mode = #tpu.pipeline_mode<synchronous>, transform_indices = @transform_8, window_bounds = array<i64: 4, 128, 128>}, {pipeline_mode = #tpu.pipeline_mode<synchronous>, transform_indices = @transform_9, window_bounds = array<i64: 4, 1, 128>}, {transform_indices = @transform_10, window_bounds = array<i64: 128, 128>}]} {
    %c0 = arith.constant 0 : index
    %c0_0 = arith.constant 0 : index
    %0 = vector.load %arg2[%c0, %c0_0] : memref<128x128xbf16, #tpu.memory_space<vmem>>, vector<128x128xbf16>
    %c0_1 = arith.constant 0 : index
    %c0_2 = arith.constant 0 : index
    %1 = vector.load %arg4[%c0_1, %c0_2] : memref<128x4xbf16, #tpu.memory_space<vmem>>, vector<128x4xbf16>
    %cst = arith.constant dense<0.000000e+00> : vector<128x4xf32>
    %2 = tpu.matmul %0, %1, %cst {dimension_numbers = #tpu.dot_dimension_numbers<[1], [0], [0], [1], [0, 0, 1, 1], [], []>} : vector<128x128xbf16>, vector<128x4xbf16>, vector<128x4xf32> -> vector<128x4xf32>
    %c0_3 = arith.constant 0 : index
    %c0_4 = arith.constant 0 : index
    %3 = vector.load %arg5[%c0_3, %c0_4] : memref<1x4xf32, #tpu.memory_space<vmem>>, vector<1x4xf32>
    %4 = vector.broadcast %3 : vector<1x4xf32> to vector<128x4xf32>
    %5 = arith.addf %2, %4 : vector<128x4xf32>
    %cst_5 = arith.constant dense<0xFF800000> : vector<128xf32>
    %6 = vector.multi_reduction <maximumf>, %5, %cst_5 [1] : vector<128x4xf32> to vector<128xf32>
    %7 = vector.shape_cast %6 : vector<128xf32> to vector<128x1xf32>
    %8 = vector.broadcast %7 : vector<128x1xf32> to vector<128x4xf32>
    %9 = arith.subf %5, %8 : vector<128x4xf32>
    %10 = math.exp %9 : vector<128x4xf32>
    %c0_6 = arith.constant 0 : index
    %c0_7 = arith.constant 0 : index
    %11 = vector.load %arg3[%c0_6, %c0_7] : memref<128x4xf32, #tpu.memory_space<vmem>>, vector<128x4xf32>
    %12 = arith.mulf %10, %11 : vector<128x4xf32>
    %cst_8 = arith.constant 0.000000e+00 : f32
    %13 = vector.broadcast %cst_8 : f32 to vector<128x128xf32>
    %c0_9 = arith.constant 0 : index
    %c0_10 = arith.constant 0 : index
    %14 = vector.load %arg13[%c0_9, %c0_10] : memref<128x128xf32, #tpu.memory_space<vmem>>, vector<128x128xf32>
    tpu.vector_store %arg13[%c0_9, %c0_10], %13 {strides = array<i32>} : memref<128x128xf32, #tpu.memory_space<vmem>>, vector<128x128xf32>,
    %cst_11 = arith.constant 0.000000e+00 : f32
    %15 = vector.broadcast %cst_11 : f32 to vector<128x1xf32>
    %c0_12 = arith.constant 0 : index
    %c0_13 = arith.constant 0 : index
    %16 = vector.load %arg14[%c0_12, %c0_13] : memref<128x1xf32, #tpu.memory_space<vmem>>, vector<128x1xf32>
    tpu.vector_store %arg14[%c0_12, %c0_13], %15 {strides = array<i32>} : memref<128x1xf32, #tpu.memory_space<vmem>>, vector<128x1xf32>,
    %17 = arith.index_cast %arg0 : i32 to index
    %c0_14 = arith.constant 0 : index
    %18 = memref.load %arg1[%17, %c0_14] : memref<1x4xi32, #tpu.memory_space<smem>>
    %c0_i32 = arith.constant 0 : i32
    %19 = arith.cmpi sgt, %18, %c0_i32 : i32
    %20 = arith.extui %19 : i1 to i32
    %c0_i32_15 = arith.constant 0 : i32
    %21 = arith.cmpi ne, %20, %c0_i32_15 : i32
    scf.if %21 {
      %45 = vector.extract_strided_slice %12 {offsets = [0, 0], sizes = [128, 1], strides = [1, 1]} : vector<128x4xf32> to vector<128x1xf32>
      %c0_29 = arith.constant 0 : index
      %c0_30 = arith.constant 0 : index
      %c0_31 = arith.constant 0 : index
      %46 = vector.load %arg6[%c0_29, %c0_30, %c0_31] : memref<4x128x128xbf16, #tpu.memory_space<vmem>>, vector<1x128x128xbf16>
      %47 = vector.shape_cast %46 : vector<1x128x128xbf16> to vector<128x128xbf16>
      %cst_32 = arith.constant dense<0.000000e+00> : vector<128x128xf32>
      %48 = tpu.matmul %0, %47, %cst_32 {dimension_numbers = #tpu.dot_dimension_numbers<[1], [0], [0], [1], [0, 0, 1, 1], [], []>} : vector<128x128xbf16>, vector<128x128xbf16>, vector<128x128xf32> -> vector<128x128xf32>
      %c0_33 = arith.constant 0 : index
      %c0_34 = arith.constant 0 : index
      %c0_35 = arith.constant 0 : index
      %49 = vector.load %arg7[%c0_33, %c0_34, %c0_35] : memref<4x1x128xf32, #tpu.memory_space<vmem>>, vector<1x1x128xf32>
      %50 = vector.shape_cast %49 : vector<1x1x128xf32> to vector<1x128xf32>
      %51 = vector.broadcast %50 : vector<1x128xf32> to vector<128x128xf32>
      %52 = arith.addf %48, %51 : vector<128x128xf32>
      %cst_36 = arith.constant 0.000000e+00 : f32
      %53 = vector.broadcast %cst_36 : f32 to vector<128x128xf32>
      %54 = arith.cmpf ogt, %52, %53 : vector<128x128xf32>
      %cst_37 = arith.constant 0.00999999977 : f32
      %55 = vector.broadcast %cst_37 : f32 to vector<128x128xf32>
      %56 = arith.mulf %55, %52 : vector<128x128xf32>
      %57 = arith.select %54, %52, %56 : vector<128x128xi1>, vector<128x128xf32>
      %58 = arith.truncf %57 : vector<128x128xf32> to vector<128x128xbf16>
      %c0_38 = arith.constant 0 : index
      %c0_39 = arith.constant 0 : index
      %c0_40 = arith.constant 0 : index
      %59 = vector.load %arg8[%c0_38, %c0_39, %c0_40] : memref<4x128x128xbf16, #tpu.memory_space<vmem>>, vector<1x128x128xbf16>
      %60 = vector.shape_cast %59 : vector<1x128x128xbf16> to vector<128x128xbf16>
      %cst_41 = arith.constant dense<0.000000e+00> : vector<128x128xf32>
      %61 = tpu.matmul %58, %60, %cst_41 {dimension_numbers = #tpu.dot_dimension_numbers<[1], [0], [0], [1], [0, 0, 1, 1], [], []>} : vector<128x128xbf16>, vector<128x128xbf16>, vector<128x128xf32> -> vector<128x128xf32>
      %c0_42 = arith.constant 0 : index
      %c0_43 = arith.constant 0 : index
      %c0_44 = arith.constant 0 : index
      %62 = vector.load %arg9[%c0_42, %c0_43, %c0_44] : memref<4x1x128xf32, #tpu.memory_space<vmem>>, vector<1x1x128xf32>
      %63 = vector.shape_cast %62 : vector<1x1x128xf32> to vector<1x128xf32>
      %64 = vector.broadcast %63 : vector<1x128xf32> to vector<128x128xf32>
      %65 = arith.addf %61, %64 : vector<128x128xf32>
      %cst_45 = arith.constant 0.000000e+00 : f32
      %66 = vector.broadcast %cst_45 : f32 to vector<128x128xf32>
      %67 = arith.cmpf ogt, %65, %66 : vector<128x128xf32>
      %cst_46 = arith.constant 0.00999999977 : f32
      %68 = vector.broadcast %cst_46 : f32 to vector<128x128xf32>
      %69 = arith.mulf %68, %65 : vector<128x128xf32>
      %70 = arith.select %67, %65, %69 : vector<128x128xi1>, vector<128x128xf32>
      %71 = arith.truncf %70 : vector<128x128xf32> to vector<128x128xbf16>
      %c0_47 = arith.constant 0 : index
      %c0_48 = arith.constant 0 : index
      %c0_49 = arith.constant 0 : index
      %72 = vector.load %arg10[%c0_47, %c0_48, %c0_49] : memref<4x128x128xbf16, #tpu.memory_space<vmem>>, vector<1x128x128xbf16>
      %73 = vector.shape_cast %72 : vector<1x128x128xbf16> to vector<128x128xbf16>
      %cst_50 = arith.constant dense<0.000000e+00> : vector<128x128xf32>
      %74 = tpu.matmul %71, %73, %cst_50 {dimension_numbers = #tpu.dot_dimension_numbers<[1], [0], [0], [1], [0, 0, 1, 1], [], []>} : vector<128x128xbf16>, vector<128x128xbf16>, vector<128x128xf32> -> vector<128x128xf32>
      %c0_51 = arith.constant 0 : index
      %c0_52 = arith.constant 0 : index
      %c0_53 = arith.constant 0 : index
      %75 = vector.load %arg11[%c0_51, %c0_52, %c0_53] : memref<4x1x128xf32, #tpu.memory_space<vmem>>, vector<1x1x128xf32>
      %76 = vector.shape_cast %75 : vector<1x1x128xf32> to vector<1x128xf32>
      %77 = vector.broadcast %76 : vector<1x128xf32> to vector<128x128xf32>
      %78 = arith.addf %74, %77 : vector<128x128xf32>
      %c0_54 = arith.constant 0 : index
      %c0_55 = arith.constant 0 : index
      %79 = vector.load %arg13[%c0_54, %c0_55] : memref<128x128xf32, #tpu.memory_space<vmem>>, vector<128x128xf32>
      %80 = vector.broadcast %45 : vector<128x1xf32> to vector<128x128xf32>
      %81 = arith.mulf %80, %78 : vector<128x128xf32>
      %82 = arith.addf %79, %81 : vector<128x128xf32>
      %c0_56 = arith.constant 0 : index
      %c0_57 = arith.constant 0 : index
      %83 = vector.load %arg13[%c0_56, %c0_57] : memref<128x128xf32, #tpu.memory_space<vmem>>, vector<128x128xf32>
      tpu.vector_store %arg13[%c0_56, %c0_57], %82 {strides = array<i32>} : memref<128x128xf32, #tpu.memory_space<vmem>>, vector<128x128xf32>,
      %c0_58 = arith.constant 0 : index
      %c0_59 = arith.constant 0 : index
      %84 = vector.load %arg14[%c0_58, %c0_59] : memref<128x1xf32, #tpu.memory_space<vmem>>, vector<128x1xf32>
      %85 = arith.addf %84, %45 : vector<128x1xf32>
      %c0_60 = arith.constant 0 : index
      %c0_61 = arith.constant 0 : index
      %86 = vector.load %arg14[%c0_60, %c0_61] : memref<128x1xf32, #tpu.memory_space<vmem>>, vector<128x1xf32>
      tpu.vector_store %arg14[%c0_60, %c0_61], %85 {strides = array<i32>} : memref<128x1xf32, #tpu.memory_space<vmem>>, vector<128x1xf32>,
    } else {
    }
    %22 = arith.index_cast %arg0 : i32 to index
    %c1 = arith.constant 1 : index
    %23 = memref.load %arg1[%22, %c1] : memref<1x4xi32, #tpu.memory_space<smem>>
    %c0_i32_16 = arith.constant 0 : i32
    %24 = arith.cmpi sgt, %23, %c0_i32_16 : i32
    %25 = arith.extui %24 : i1 to i32
    %c0_i32_17 = arith.constant 0 : i32
    %26 = arith.cmpi ne, %25, %c0_i32_17 : i32
    scf.if %26 {
      %45 = vector.extract_strided_slice %12 {offsets = [0, 1], sizes = [128, 1], strides = [1, 1]} : vector<128x4xf32> to vector<128x1xf32>
      %c1_29 = arith.constant 1 : index
      %c0_30 = arith.constant 0 : index
      %c0_31 = arith.constant 0 : index
      %46 = vector.load %arg6[%c1_29, %c0_30, %c0_31] : memref<4x128x128xbf16, #tpu.memory_space<vmem>>, vector<1x128x128xbf16>
      %47 = vector.shape_cast %46 : vector<1x128x128xbf16> to vector<128x128xbf16>
      %cst_32 = arith.constant dense<0.000000e+00> : vector<128x128xf32>
      %48 = tpu.matmul %0, %47, %cst_32 {dimension_numbers = #tpu.dot_dimension_numbers<[1], [0], [0], [1], [0, 0, 1, 1], [], []>} : vector<128x128xbf16>, vector<128x128xbf16>, vector<128x128xf32> -> vector<128x128xf32>
      %c1_33 = arith.constant 1 : index
      %c0_34 = arith.constant 0 : index
      %c0_35 = arith.constant 0 : index
      %49 = vector.load %arg7[%c1_33, %c0_34, %c0_35] : memref<4x1x128xf32, #tpu.memory_space<vmem>>, vector<1x1x128xf32>
      %50 = vector.shape_cast %49 : vector<1x1x128xf32> to vector<1x128xf32>
      %51 = vector.broadcast %50 : vector<1x128xf32> to vector<128x128xf32>
      %52 = arith.addf %48, %51 : vector<128x128xf32>
      %cst_36 = arith.constant 0.000000e+00 : f32
      %53 = vector.broadcast %cst_36 : f32 to vector<128x128xf32>
      %54 = arith.cmpf ogt, %52, %53 : vector<128x128xf32>
      %cst_37 = arith.constant 0.00999999977 : f32
      %55 = vector.broadcast %cst_37 : f32 to vector<128x128xf32>
      %56 = arith.mulf %55, %52 : vector<128x128xf32>
      %57 = arith.select %54, %52, %56 : vector<128x128xi1>, vector<128x128xf32>
      %58 = arith.truncf %57 : vector<128x128xf32> to vector<128x128xbf16>
      %c1_38 = arith.constant 1 : index
      %c0_39 = arith.constant 0 : index
      %c0_40 = arith.constant 0 : index
      %59 = vector.load %arg8[%c1_38, %c0_39, %c0_40] : memref<4x128x128xbf16, #tpu.memory_space<vmem>>, vector<1x128x128xbf16>
      %60 = vector.shape_cast %59 : vector<1x128x128xbf16> to vector<128x128xbf16>
      %cst_41 = arith.constant dense<0.000000e+00> : vector<128x128xf32>
      %61 = tpu.matmul %58, %60, %cst_41 {dimension_numbers = #tpu.dot_dimension_numbers<[1], [0], [0], [1], [0, 0, 1, 1], [], []>} : vector<128x128xbf16>, vector<128x128xbf16>, vector<128x128xf32> -> vector<128x128xf32>
      %c1_42 = arith.constant 1 : index
      %c0_43 = arith.constant 0 : index
      %c0_44 = arith.constant 0 : index
      %62 = vector.load %arg9[%c1_42, %c0_43, %c0_44] : memref<4x1x128xf32, #tpu.memory_space<vmem>>, vector<1x1x128xf32>
      %63 = vector.shape_cast %62 : vector<1x1x128xf32> to vector<1x128xf32>
      %64 = vector.broadcast %63 : vector<1x128xf32> to vector<128x128xf32>
      %65 = arith.addf %61, %64 : vector<128x128xf32>
      %cst_45 = arith.constant 0.000000e+00 : f32
      %66 = vector.broadcast %cst_45 : f32 to vector<128x128xf32>
      %67 = arith.cmpf ogt, %65, %66 : vector<128x128xf32>
      %cst_46 = arith.constant 0.00999999977 : f32
      %68 = vector.broadcast %cst_46 : f32 to vector<128x128xf32>
      %69 = arith.mulf %68, %65 : vector<128x128xf32>
      %70 = arith.select %67, %65, %69 : vector<128x128xi1>, vector<128x128xf32>
      %71 = arith.truncf %70 : vector<128x128xf32> to vector<128x128xbf16>
      %c1_47 = arith.constant 1 : index
      %c0_48 = arith.constant 0 : index
      %c0_49 = arith.constant 0 : index
      %72 = vector.load %arg10[%c1_47, %c0_48, %c0_49] : memref<4x128x128xbf16, #tpu.memory_space<vmem>>, vector<1x128x128xbf16>
      %73 = vector.shape_cast %72 : vector<1x128x128xbf16> to vector<128x128xbf16>
      %cst_50 = arith.constant dense<0.000000e+00> : vector<128x128xf32>
      %74 = tpu.matmul %71, %73, %cst_50 {dimension_numbers = #tpu.dot_dimension_numbers<[1], [0], [0], [1], [0, 0, 1, 1], [], []>} : vector<128x128xbf16>, vector<128x128xbf16>, vector<128x128xf32> -> vector<128x128xf32>
      %c1_51 = arith.constant 1 : index
      %c0_52 = arith.constant 0 : index
      %c0_53 = arith.constant 0 : index
      %75 = vector.load %arg11[%c1_51, %c0_52, %c0_53] : memref<4x1x128xf32, #tpu.memory_space<vmem>>, vector<1x1x128xf32>
      %76 = vector.shape_cast %75 : vector<1x1x128xf32> to vector<1x128xf32>
      %77 = vector.broadcast %76 : vector<1x128xf32> to vector<128x128xf32>
      %78 = arith.addf %74, %77 : vector<128x128xf32>
      %c0_54 = arith.constant 0 : index
      %c0_55 = arith.constant 0 : index
      %79 = vector.load %arg13[%c0_54, %c0_55] : memref<128x128xf32, #tpu.memory_space<vmem>>, vector<128x128xf32>
      %80 = vector.broadcast %45 : vector<128x1xf32> to vector<128x128xf32>
      %81 = arith.mulf %80, %78 : vector<128x128xf32>
      %82 = arith.addf %79, %81 : vector<128x128xf32>
      %c0_56 = arith.constant 0 : index
      %c0_57 = arith.constant 0 : index
      %83 = vector.load %arg13[%c0_56, %c0_57] : memref<128x128xf32, #tpu.memory_space<vmem>>, vector<128x128xf32>
      tpu.vector_store %arg13[%c0_56, %c0_57], %82 {strides = array<i32>} : memref<128x128xf32, #tpu.memory_space<vmem>>, vector<128x128xf32>,
      %c0_58 = arith.constant 0 : index
      %c0_59 = arith.constant 0 : index
      %84 = vector.load %arg14[%c0_58, %c0_59] : memref<128x1xf32, #tpu.memory_space<vmem>>, vector<128x1xf32>
      %85 = arith.addf %84, %45 : vector<128x1xf32>
      %c0_60 = arith.constant 0 : index
      %c0_61 = arith.constant 0 : index
      %86 = vector.load %arg14[%c0_60, %c0_61] : memref<128x1xf32, #tpu.memory_space<vmem>>, vector<128x1xf32>
      tpu.vector_store %arg14[%c0_60, %c0_61], %85 {strides = array<i32>} : memref<128x1xf32, #tpu.memory_space<vmem>>, vector<128x1xf32>,
    } else {
    }
    %27 = arith.index_cast %arg0 : i32 to index
    %c2 = arith.constant 2 : index
    %28 = memref.load %arg1[%27, %c2] : memref<1x4xi32, #tpu.memory_space<smem>>
    %c0_i32_18 = arith.constant 0 : i32
    %29 = arith.cmpi sgt, %28, %c0_i32_18 : i32
    %30 = arith.extui %29 : i1 to i32
    %c0_i32_19 = arith.constant 0 : i32
    %31 = arith.cmpi ne, %30, %c0_i32_19 : i32
    scf.if %31 {
      %45 = vector.extract_strided_slice %12 {offsets = [0, 2], sizes = [128, 1], strides = [1, 1]} : vector<128x4xf32> to vector<128x1xf32>
      %c2_29 = arith.constant 2 : index
      %c0_30 = arith.constant 0 : index
      %c0_31 = arith.constant 0 : index
      %46 = vector.load %arg6[%c2_29, %c0_30, %c0_31] : memref<4x128x128xbf16, #tpu.memory_space<vmem>>, vector<1x128x128xbf16>
      %47 = vector.shape_cast %46 : vector<1x128x128xbf16> to vector<128x128xbf16>
      %cst_32 = arith.constant dense<0.000000e+00> : vector<128x128xf32>
      %48 = tpu.matmul %0, %47, %cst_32 {dimension_numbers = #tpu.dot_dimension_numbers<[1], [0], [0], [1], [0, 0, 1, 1], [], []>} : vector<128x128xbf16>, vector<128x128xbf16>, vector<128x128xf32> -> vector<128x128xf32>
      %c2_33 = arith.constant 2 : index
      %c0_34 = arith.constant 0 : index
      %c0_35 = arith.constant 0 : index
      %49 = vector.load %arg7[%c2_33, %c0_34, %c0_35] : memref<4x1x128xf32, #tpu.memory_space<vmem>>, vector<1x1x128xf32>
      %50 = vector.shape_cast %49 : vector<1x1x128xf32> to vector<1x128xf32>
      %51 = vector.broadcast %50 : vector<1x128xf32> to vector<128x128xf32>
      %52 = arith.addf %48, %51 : vector<128x128xf32>
      %cst_36 = arith.constant 0.000000e+00 : f32
      %53 = vector.broadcast %cst_36 : f32 to vector<128x128xf32>
      %54 = arith.cmpf ogt, %52, %53 : vector<128x128xf32>
      %cst_37 = arith.constant 0.00999999977 : f32
      %55 = vector.broadcast %cst_37 : f32 to vector<128x128xf32>
      %56 = arith.mulf %55, %52 : vector<128x128xf32>
      %57 = arith.select %54, %52, %56 : vector<128x128xi1>, vector<128x128xf32>
      %58 = arith.truncf %57 : vector<128x128xf32> to vector<128x128xbf16>
      %c2_38 = arith.constant 2 : index
      %c0_39 = arith.constant 0 : index
      %c0_40 = arith.constant 0 : index
      %59 = vector.load %arg8[%c2_38, %c0_39, %c0_40] : memref<4x128x128xbf16, #tpu.memory_space<vmem>>, vector<1x128x128xbf16>
      %60 = vector.shape_cast %59 : vector<1x128x128xbf16> to vector<128x128xbf16>
      %cst_41 = arith.constant dense<0.000000e+00> : vector<128x128xf32>
      %61 = tpu.matmul %58, %60, %cst_41 {dimension_numbers = #tpu.dot_dimension_numbers<[1], [0], [0], [1], [0, 0, 1, 1], [], []>} : vector<128x128xbf16>, vector<128x128xbf16>, vector<128x128xf32> -> vector<128x128xf32>
      %c2_42 = arith.constant 2 : index
      %c0_43 = arith.constant 0 : index
      %c0_44 = arith.constant 0 : index
      %62 = vector.load %arg9[%c2_42, %c0_43, %c0_44] : memref<4x1x128xf32, #tpu.memory_space<vmem>>, vector<1x1x128xf32>
      %63 = vector.shape_cast %62 : vector<1x1x128xf32> to vector<1x128xf32>
      %64 = vector.broadcast %63 : vector<1x128xf32> to vector<128x128xf32>
      %65 = arith.addf %61, %64 : vector<128x128xf32>
      %cst_45 = arith.constant 0.000000e+00 : f32
      %66 = vector.broadcast %cst_45 : f32 to vector<128x128xf32>
      %67 = arith.cmpf ogt, %65, %66 : vector<128x128xf32>
      %cst_46 = arith.constant 0.00999999977 : f32
      %68 = vector.broadcast %cst_46 : f32 to vector<128x128xf32>
      %69 = arith.mulf %68, %65 : vector<128x128xf32>
      %70 = arith.select %67, %65, %69 : vector<128x128xi1>, vector<128x128xf32>
      %71 = arith.truncf %70 : vector<128x128xf32> to vector<128x128xbf16>
      %c2_47 = arith.constant 2 : index
      %c0_48 = arith.constant 0 : index
      %c0_49 = arith.constant 0 : index
      %72 = vector.load %arg10[%c2_47, %c0_48, %c0_49] : memref<4x128x128xbf16, #tpu.memory_space<vmem>>, vector<1x128x128xbf16>
      %73 = vector.shape_cast %72 : vector<1x128x128xbf16> to vector<128x128xbf16>
      %cst_50 = arith.constant dense<0.000000e+00> : vector<128x128xf32>
      %74 = tpu.matmul %71, %73, %cst_50 {dimension_numbers = #tpu.dot_dimension_numbers<[1], [0], [0], [1], [0, 0, 1, 1], [], []>} : vector<128x128xbf16>, vector<128x128xbf16>, vector<128x128xf32> -> vector<128x128xf32>
      %c2_51 = arith.constant 2 : index
      %c0_52 = arith.constant 0 : index
      %c0_53 = arith.constant 0 : index
      %75 = vector.load %arg11[%c2_51, %c0_52, %c0_53] : memref<4x1x128xf32, #tpu.memory_space<vmem>>, vector<1x1x128xf32>
      %76 = vector.shape_cast %75 : vector<1x1x128xf32> to vector<1x128xf32>
      %77 = vector.broadcast %76 : vector<1x128xf32> to vector<128x128xf32>
      %78 = arith.addf %74, %77 : vector<128x128xf32>
      %c0_54 = arith.constant 0 : index
      %c0_55 = arith.constant 0 : index
      %79 = vector.load %arg13[%c0_54, %c0_55] : memref<128x128xf32, #tpu.memory_space<vmem>>, vector<128x128xf32>
      %80 = vector.broadcast %45 : vector<128x1xf32> to vector<128x128xf32>
      %81 = arith.mulf %80, %78 : vector<128x128xf32>
      %82 = arith.addf %79, %81 : vector<128x128xf32>
      %c0_56 = arith.constant 0 : index
      %c0_57 = arith.constant 0 : index
      %83 = vector.load %arg13[%c0_56, %c0_57] : memref<128x128xf32, #tpu.memory_space<vmem>>, vector<128x128xf32>
      tpu.vector_store %arg13[%c0_56, %c0_57], %82 {strides = array<i32>} : memref<128x128xf32, #tpu.memory_space<vmem>>, vector<128x128xf32>,
      %c0_58 = arith.constant 0 : index
      %c0_59 = arith.constant 0 : index
      %84 = vector.load %arg14[%c0_58, %c0_59] : memref<128x1xf32, #tpu.memory_space<vmem>>, vector<128x1xf32>
      %85 = arith.addf %84, %45 : vector<128x1xf32>
      %c0_60 = arith.constant 0 : index
      %c0_61 = arith.constant 0 : index
      %86 = vector.load %arg14[%c0_60, %c0_61] : memref<128x1xf32, #tpu.memory_space<vmem>>, vector<128x1xf32>
      tpu.vector_store %arg14[%c0_60, %c0_61], %85 {strides = array<i32>} : memref<128x1xf32, #tpu.memory_space<vmem>>, vector<128x1xf32>,
    } else {
    }
    %32 = arith.index_cast %arg0 : i32 to index
    %c3 = arith.constant 3 : index
    %33 = memref.load %arg1[%32, %c3] : memref<1x4xi32, #tpu.memory_space<smem>>
    %c0_i32_20 = arith.constant 0 : i32
    %34 = arith.cmpi sgt, %33, %c0_i32_20 : i32
    %35 = arith.extui %34 : i1 to i32
    %c0_i32_21 = arith.constant 0 : i32
    %36 = arith.cmpi ne, %35, %c0_i32_21 : i32
    scf.if %36 {
      %45 = vector.extract_strided_slice %12 {offsets = [0, 3], sizes = [128, 1], strides = [1, 1]} : vector<128x4xf32> to vector<128x1xf32>
      %c3_29 = arith.constant 3 : index
      %c0_30 = arith.constant 0 : index
      %c0_31 = arith.constant 0 : index
      %46 = vector.load %arg6[%c3_29, %c0_30, %c0_31] : memref<4x128x128xbf16, #tpu.memory_space<vmem>>, vector<1x128x128xbf16>
      %47 = vector.shape_cast %46 : vector<1x128x128xbf16> to vector<128x128xbf16>
      %cst_32 = arith.constant dense<0.000000e+00> : vector<128x128xf32>
      %48 = tpu.matmul %0, %47, %cst_32 {dimension_numbers = #tpu.dot_dimension_numbers<[1], [0], [0], [1], [0, 0, 1, 1], [], []>} : vector<128x128xbf16>, vector<128x128xbf16>, vector<128x128xf32> -> vector<128x128xf32>
      %c3_33 = arith.constant 3 : index
      %c0_34 = arith.constant 0 : index
      %c0_35 = arith.constant 0 : index
      %49 = vector.load %arg7[%c3_33, %c0_34, %c0_35] : memref<4x1x128xf32, #tpu.memory_space<vmem>>, vector<1x1x128xf32>
      %50 = vector.shape_cast %49 : vector<1x1x128xf32> to vector<1x128xf32>
      %51 = vector.broadcast %50 : vector<1x128xf32> to vector<128x128xf32>
      %52 = arith.addf %48, %51 : vector<128x128xf32>
      %cst_36 = arith.constant 0.000000e+00 : f32
      %53 = vector.broadcast %cst_36 : f32 to vector<128x128xf32>
      %54 = arith.cmpf ogt, %52, %53 : vector<128x128xf32>
      %cst_37 = arith.constant 0.00999999977 : f32
      %55 = vector.broadcast %cst_37 : f32 to vector<128x128xf32>
      %56 = arith.mulf %55, %52 : vector<128x128xf32>
      %57 = arith.select %54, %52, %56 : vector<128x128xi1>, vector<128x128xf32>
      %58 = arith.truncf %57 : vector<128x128xf32> to vector<128x128xbf16>
      %c3_38 = arith.constant 3 : index
      %c0_39 = arith.constant 0 : index
      %c0_40 = arith.constant 0 : index
      %59 = vector.load %arg8[%c3_38, %c0_39, %c0_40] : memref<4x128x128xbf16, #tpu.memory_space<vmem>>, vector<1x128x128xbf16>
      %60 = vector.shape_cast %59 : vector<1x128x128xbf16> to vector<128x128xbf16>
      %cst_41 = arith.constant dense<0.000000e+00> : vector<128x128xf32>
      %61 = tpu.matmul %58, %60, %cst_41 {dimension_numbers = #tpu.dot_dimension_numbers<[1], [0], [0], [1], [0, 0, 1, 1], [], []>} : vector<128x128xbf16>, vector<128x128xbf16>, vector<128x128xf32> -> vector<128x128xf32>
      %c3_42 = arith.constant 3 : index
      %c0_43 = arith.constant 0 : index
      %c0_44 = arith.constant 0 : index
      %62 = vector.load %arg9[%c3_42, %c0_43, %c0_44] : memref<4x1x128xf32, #tpu.memory_space<vmem>>, vector<1x1x128xf32>
      %63 = vector.shape_cast %62 : vector<1x1x128xf32> to vector<1x128xf32>
      %64 = vector.broadcast %63 : vector<1x128xf32> to vector<128x128xf32>
      %65 = arith.addf %61, %64 : vector<128x128xf32>
      %cst_45 = arith.constant 0.000000e+00 : f32
      %66 = vector.broadcast %cst_45 : f32 to vector<128x128xf32>
      %67 = arith.cmpf ogt, %65, %66 : vector<128x128xf32>
      %cst_46 = arith.constant 0.00999999977 : f32
      %68 = vector.broadcast %cst_46 : f32 to vector<128x128xf32>
      %69 = arith.mulf %68, %65 : vector<128x128xf32>
      %70 = arith.select %67, %65, %69 : vector<128x128xi1>, vector<128x128xf32>
      %71 = arith.truncf %70 : vector<128x128xf32> to vector<128x128xbf16>
      %c3_47 = arith.constant 3 : index
      %c0_48 = arith.constant 0 : index
      %c0_49 = arith.constant 0 : index
      %72 = vector.load %arg10[%c3_47, %c0_48, %c0_49] : memref<4x128x128xbf16, #tpu.memory_space<vmem>>, vector<1x128x128xbf16>
      %73 = vector.shape_cast %72 : vector<1x128x128xbf16> to vector<128x128xbf16>
      %cst_50 = arith.constant dense<0.000000e+00> : vector<128x128xf32>
      %74 = tpu.matmul %71, %73, %cst_50 {dimension_numbers = #tpu.dot_dimension_numbers<[1], [0], [0], [1], [0, 0, 1, 1], [], []>} : vector<128x128xbf16>, vector<128x128xbf16>, vector<128x128xf32> -> vector<128x128xf32>
      %c3_51 = arith.constant 3 : index
      %c0_52 = arith.constant 0 : index
      %c0_53 = arith.constant 0 : index
      %75 = vector.load %arg11[%c3_51, %c0_52, %c0_53] : memref<4x1x128xf32, #tpu.memory_space<vmem>>, vector<1x1x128xf32>
      %76 = vector.shape_cast %75 : vector<1x1x128xf32> to vector<1x128xf32>
      %77 = vector.broadcast %76 : vector<1x128xf32> to vector<128x128xf32>
      %78 = arith.addf %74, %77 : vector<128x128xf32>
      %c0_54 = arith.constant 0 : index
      %c0_55 = arith.constant 0 : index
      %79 = vector.load %arg13[%c0_54, %c0_55] : memref<128x128xf32, #tpu.memory_space<vmem>>, vector<128x128xf32>
      %80 = vector.broadcast %45 : vector<128x1xf32> to vector<128x128xf32>
      %81 = arith.mulf %80, %78 : vector<128x128xf32>
      %82 = arith.addf %79, %81 : vector<128x128xf32>
      %c0_56 = arith.constant 0 : index
      %c0_57 = arith.constant 0 : index
      %83 = vector.load %arg13[%c0_56, %c0_57] : memref<128x128xf32, #tpu.memory_space<vmem>>, vector<128x128xf32>
      tpu.vector_store %arg13[%c0_56, %c0_57], %82 {strides = array<i32>} : memref<128x128xf32, #tpu.memory_space<vmem>>, vector<128x128xf32>,
      %c0_58 = arith.constant 0 : index
      %c0_59 = arith.constant 0 : index
      %84 = vector.load %arg14[%c0_58, %c0_59] : memref<128x1xf32, #tpu.memory_space<vmem>>, vector<128x1xf32>
      %85 = arith.addf %84, %45 : vector<128x1xf32>
      %c0_60 = arith.constant 0 : index
      %c0_61 = arith.constant 0 : index
      %86 = vector.load %arg14[%c0_60, %c0_61] : memref<128x1xf32, #tpu.memory_space<vmem>>, vector<128x1xf32>
      tpu.vector_store %arg14[%c0_60, %c0_61], %85 {strides = array<i32>} : memref<128x1xf32, #tpu.memory_space<vmem>>, vector<128x1xf32>,
    } else {
    }
    %c0_22 = arith.constant 0 : index
    %c0_23 = arith.constant 0 : index
    %37 = vector.load %arg14[%c0_22, %c0_23] : memref<128x1xf32, #tpu.memory_space<vmem>>, vector<128x1xf32>
    %cst_24 = arith.constant 9.99999996E-13 : f32
    %38 = vector.broadcast %cst_24 : f32 to vector<128x1xf32>
    %39 = arith.maximumf %37, %38 : vector<128x1xf32>
    %40 = tpu.reciprocal %39 {approx = true} : vector<128x1xf32> -> vector<128x1xf32>
    %c0_25 = arith.constant 0 : index
    %c0_26 = arith.constant 0 : index
    %41 = vector.load %arg13[%c0_25, %c0_26] : memref<128x128xf32, #tpu.memory_space<vmem>>, vector<128x128xf32>
    %42 = vector.broadcast %40 : vector<128x1xf32> to vector<128x128xf32>
    %43 = arith.mulf %41, %42 : vector<128x128xf32>
    %c0_27 = arith.constant 0 : index
    %c0_28 = arith.constant 0 : index
    %44 = vector.load %arg12[%c0_27, %c0_28] : memref<128x128xf32, #tpu.memory_space<vmem>>, vector<128x128xf32>
    tpu.vector_store %arg12[%c0_27, %c0_28], %43 {strides = array<i32>} : memref<128x128xf32, #tpu.memory_space<vmem>>, vector<128x128xf32>,
    return
  }
  func.func @transform_0(%arg0: i32, %arg1: memref<1x4xi32, #tpu.memory_space<smem>>) -> (i32, i32) {
    %c0_i32 = arith.constant 0 : i32
    %c0_i32_0 = arith.constant 0 : i32
    return %arg0, %c0_i32 : i32, i32
  }
  func.func @transform_1(%arg0: i32, %arg1: memref<1x4xi32, #tpu.memory_space<smem>>) -> (i32, i32) {
    %c0_i32 = arith.constant 0 : i32
    %c0_i32_0 = arith.constant 0 : i32
    return %arg0, %c0_i32 : i32, i32
  }
  func.func @transform_2(%arg0: i32, %arg1: memref<1x4xi32, #tpu.memory_space<smem>>) -> (i32, i32) {
    %c0_i32 = arith.constant 0 : i32
    %c0_i32_0 = arith.constant 0 : i32
    %c0_i32_1 = arith.constant 0 : i32
    return %c0_i32, %c0_i32_0 : i32, i32
  }
  func.func @transform_3(%arg0: i32, %arg1: memref<1x4xi32, #tpu.memory_space<smem>>) -> (i32, i32) {
    %c0_i32 = arith.constant 0 : i32
    %c0_i32_0 = arith.constant 0 : i32
    %c0_i32_1 = arith.constant 0 : i32
    return %c0_i32, %c0_i32_0 : i32, i32
  }
  func.func @transform_4(%arg0: i32, %arg1: memref<1x4xi32, #tpu.memory_space<smem>>) -> (i32, i32, i32) {
    %c0_i32 = arith.constant 0 : i32
    %c0_i32_0 = arith.constant 0 : i32
    %c0_i32_1 = arith.constant 0 : i32
    %c0_i32_2 = arith.constant 0 : i32
    return %c0_i32, %c0_i32_0, %c0_i32_1 : i32, i32, i32
  }
  func.func @transform_5(%arg0: i32, %arg1: memref<1x4xi32, #tpu.memory_space<smem>>) -> (i32, i32, i32) {
    %c0_i32 = arith.constant 0 : i32
    %c0_i32_0 = arith.constant 0 : i32
    %c0_i32_1 = arith.constant 0 : i32
    %c0_i32_2 = arith.constant 0 : i32
    return %c0_i32, %c0_i32_0, %c0_i32_1 : i32, i32, i32
  }
  func.func @transform_6(%arg0: i32, %arg1: memref<1x4xi32, #tpu.memory_space<smem>>) -> (i32, i32, i32) {
    %c0_i32 = arith.constant 0 : i32
    %c0_i32_0 = arith.constant 0 : i32
    %c0_i32_1 = arith.constant 0 : i32
    %c0_i32_2 = arith.constant 0 : i32
    return %c0_i32, %c0_i32_0, %c0_i32_1 : i32, i32, i32
  }
  func.func @transform_7(%arg0: i32, %arg1: memref<1x4xi32, #tpu.memory_space<smem>>) -> (i32, i32, i32) {
    %c0_i32 = arith.constant 0 : i32
    %c0_i32_0 = arith.constant 0 : i32
    %c0_i32_1 = arith.constant 0 : i32
    %c0_i32_2 = arith.constant 0 : i32
    return %c0_i32, %c0_i32_0, %c0_i32_1 : i32, i32, i32
  }
  func.func @transform_8(%arg0: i32, %arg1: memref<1x4xi32, #tpu.memory_space<smem>>) -> (i32, i32, i32) {
    %c0_i32 = arith.constant 0 : i32
    %c0_i32_0 = arith.constant 0 : i32
    %c0_i32_1 = arith.constant 0 : i32
    %c0_i32_2 = arith.constant 0 : i32
    return %c0_i32, %c0_i32_0, %c0_i32_1 : i32, i32, i32
  }
  func.func @transform_9(%arg0: i32, %arg1: memref<1x4xi32, #tpu.memory_space<smem>>) -> (i32, i32, i32) {
    %c0_i32 = arith.constant 0 : i32
    %c0_i32_0 = arith.constant 0 : i32
    %c0_i32_1 = arith.constant 0 : i32
    %c0_i32_2 = arith.constant 0 : i32
    return %c0_i32, %c0_i32_0, %c0_i32_1 : i32, i32, i32
  }
  func.func @transform_10(%arg0: i32, %arg1: memref<1x4xi32, #tpu.memory_space<smem>>) -> (i32, i32) {
    %c0_i32 = arith.constant 0 : i32
    %c0_i32_0 = arith.constant 0 : i32
    return %arg0, %c0_i32 : i32, i32
  }
}

</mosaic_0001>

<llo_original>
// kernel: tpu_custom_call.1
$region0: #{tpu_custom_call.1}
  #allocation0 [shape = 'u32[]', space=smem, size = 0x4, offset = 0x4, fixed_abs, tag = 'smem constant byte address 0x4 - core index']
  #allocation1 [shape = 'u32[144,128]{1,0:T(1,128)}', space=vmem, size = 0x12000, scoped, tag = 'internal scratch']
  #allocation2 [shape = 'f32[128,128]{1,0:T(8,128)}', space=vmem, size = 0x10000, scoped, tag = 'scratch operand']
  #allocation3 [shape = 'f32[128,1]{1,0:T(8,128)}', space=vmem, size = 0x10000, scoped, tag = 'scratch operand']
  #allocation4 [shape = 's32[1]{0}', space=sflag, size = 0x4, scoped, tag = 'scoped memory for tpu_custom_call.1']
  #allocation5 [shape = 'u8[512]{0}', space=smem, size = 0x200, scoped, tag = 'prefetched SMEM operand 0']
  %s0 = inlined_call_operand.vmem [shape: s32[1,4], index: 0, kind: input, shape index: {}]
  %s1 = inlined_call_operand.vmem [shape: bf16[128,128], index: 1, kind: input, shape index: {}]
  %s2 = inlined_call_operand.vmem [shape: f32[128,4], index: 2, kind: input, shape index: {}]
  %s3 = inlined_call_operand.vmem [shape: bf16[128,4], index: 3, kind: input, shape index: {}]
  %s4 = inlined_call_operand.vmem [shape: f32[1,4], index: 4, kind: input, shape index: {}]
  %s5 = inlined_call_operand.hbm [shape: bf16[4,128,128], index: 5, kind: input, shape index: {}]
  %s6 = inlined_call_operand.vmem [shape: f32[4,1,128], index: 6, kind: input, shape index: {}]
  %s7 = inlined_call_operand.hbm [shape: bf16[4,128,128], index: 7, kind: input, shape index: {}]
  %s8 = inlined_call_operand.vmem [shape: f32[4,1,128], index: 8, kind: input, shape index: {}]
  %s9 = inlined_call_operand.hbm [shape: bf16[4,128,128], index: 9, kind: input, shape index: {}]
  %s10 = inlined_call_operand.vmem [shape: f32[4,1,128], index: 10, kind: input, shape index: {}]
  %s11 = inlined_call_operand.hbm [shape: f32[128,128], index: 11, kind: output, shape index: {}]
  %s12 = sld [smem:[#allocation0]]
  $region78: #{tpu_custom_call.1} parent=0
    _
  %s14 = ssub.s32 1, %s12
  %s15 = scalar_select 0, %s14, %s12
  %s16 = sshll.u32 %s0, 4
  %s17 = int_to_ptr.vmem [resolvable:$true] %s16
  %19 = dma.vmem_to_smem %s17, 16, [#allocation5], [#allocation4]
  %20 = dma.done [#allocation4], 16
  %21 = sfence
  $region1: #{tpu_custom_call.1} parent=0
    #allocation6 [shape = 'u8[131072]{0}', space=vmem, size = 0x20000, scoped, tag = 'input window, operand 5, single buffered']
    #allocation7 [shape = 's32[1]{0}', space=sflag, size = 0x4, scoped, tag = 'scoped memory for tpu_custom_call.1']
    #allocation8 [shape = 's32[1]{0}', space=sflag, size = 0x4, scoped, tag = 'scoped memory for tpu_custom_call.1']
    #allocation9 [shape = 'u8[131072]{0}', space=vmem, size = 0x20000, scoped, tag = 'input window, operand 7, single buffered']
    #allocation10 [shape = 's32[1]{0}', space=sflag, size = 0x4, scoped, tag = 'scoped memory for tpu_custom_call.1']
    #allocation11 [shape = 'u8[131072]{0}', space=vmem, size = 0x20000, scoped, tag = 'input window, operand 9, single buffered']
    #allocation12 [shape = 'u8[65536]{0}', space=vmem, size = 0x10000, scoped, tag = 'output window, operand 0, single buffered']
    %22 = vsyncpa [#allocation7], 0
    %23 = vsyncpa [#allocation10], 0
    %24 = vsyncpa [#allocation8], 0
    // Predicated region
    $region2: #{tpu_custom_call.1} parent=1 // pred_check
      _
    $region3: #{tpu_custom_call.1} parent=1 // pred_check_branch
      %26 = sbr.rel (0) target = $region5
    $region4: #{tpu_custom_call.1} parent=1 // pred_region
      _
    $region5: #{tpu_custom_call.1} parent=1 // pred_fallthru
      _
    // Predicated region
    $region6: #{tpu_custom_call.1} parent=1 // pred_check
      _
    $region7: #{tpu_custom_call.1} parent=1 // pred_check_branch
      %28 = sbr.rel (0) target = $region9
    $region8: #{tpu_custom_call.1} parent=1 // pred_region
      _
    $region9: #{tpu_custom_call.1} parent=1 // pred_fallthru
      _
    // Predicated region
    $region10: #{tpu_custom_call.1} parent=1 // pred_check
      _
    $region11: #{tpu_custom_call.1} parent=1 // pred_check_branch
      %30 = sbr.rel (0) target = $region13
    $region12: #{tpu_custom_call.1} parent=1 // pred_region
      _
    $region13: #{tpu_custom_call.1} parent=1 // pred_fallthru
      _
    // Predicated region
    $region14: #{tpu_custom_call.1} parent=1 // pred_check
      _
    $region15: #{tpu_custom_call.1} parent=1 // pred_check_branch
      %32 = sbr.rel (0) target = $region17
    $region16: #{tpu_custom_call.1} parent=1 // pred_region
      _
    $region17: #{tpu_custom_call.1} parent=1 // pred_fallthru
      _
    // Predicated region
    $region18: #{tpu_custom_call.1} parent=1 // pred_check
      _
    $region19: #{tpu_custom_call.1} parent=1 // pred_check_branch
      %34 = sbr.rel (0) target = $region21
    $region20: #{tpu_custom_call.1} parent=1 // pred_region
      %s36 = ssub.s32 4096, 4096
      %37 = vsyncadd [#allocation7], %s36
      %s38 = sshll.u32 [#allocation6], 4
      %s39 = int_to_ptr.vmem [resolvable:$true] %s38
      %44 = dma.hbm_to_vmem [thread:$0]  %s5, 4096, %s39, [#allocation7], 64, 64, 4
    $region21: #{tpu_custom_call.1} parent=1 // pred_fallthru
      _
    // Predicated region
    $region22: #{tpu_custom_call.1} parent=1 // pred_check
      _
    $region23: #{tpu_custom_call.1} parent=1 // pred_check_branch
      %46 = sbr.rel (0) target = $region25
    $region24: #{tpu_custom_call.1} parent=1 // pred_region
      _
    $region25: #{tpu_custom_call.1} parent=1 // pred_fallthru
      _
    // Predicated region
    $region26: #{tpu_custom_call.1} parent=1 // pred_check
      _
    $region27: #{tpu_custom_call.1} parent=1 // pred_check_branch
      %48 = sbr.rel (0) target = $region29
    $region28: #{tpu_custom_call.1} parent=1 // pred_region
      %s50 = ssub.s32 4096, 4096
      %51 = vsyncadd [#allocation10], %s50
      %s52 = sshll.u32 [#allocation9], 4
      %s53 = int_to_ptr.vmem [resolvable:$true] %s52
      %58 = dma.hbm_to_vmem [thread:$0]  %s7, 4096, %s53, [#allocation10], 64, 64, 4
    $region29: #{tpu_custom_call.1} parent=1 // pred_fallthru
      _
    // Predicated region
    $region30: #{tpu_custom_call.1} parent=1 // pred_check
      _
    $region31: #{tpu_custom_call.1} parent=1 // pred_check_branch
      %60 = sbr.rel (0) target = $region33
    $region32: #{tpu_custom_call.1} parent=1 // pred_region
      _
    $region33: #{tpu_custom_call.1} parent=1 // pred_fallthru
      _
    // Predicated region
    $region34: #{tpu_custom_call.1} parent=1 // pred_check
      _
    $region35: #{tpu_custom_call.1} parent=1 // pred_check_branch
      %62 = sbr.rel (0) target = $region37
    $region36: #{tpu_custom_call.1} parent=1 // pred_region
      %s64 = ssub.s32 4096, 4096
      %65 = vsyncadd [#allocation10], %s64
      %s66 = sshll.u32 [#allocation11], 4
      %s67 = int_to_ptr.vmem [resolvable:$true] %s66
      %72 = dma.hbm_to_vmem [thread:$0]  %s9, 4096, %s67, [#allocation10], 64, 64, 4
    $region37: #{tpu_custom_call.1} parent=1 // pred_fallthru
      _
    // Predicated region
    $region38: #{tpu_custom_call.1} parent=1 // pred_check
      _
    $region39: #{tpu_custom_call.1} parent=1 // pred_check_branch
      %74 = sbr.rel (0) target = $region41
    $region40: #{tpu_custom_call.1} parent=1 // pred_region
      _
    $region41: #{tpu_custom_call.1} parent=1 // pred_fallthru
      _
    // Predicated region
    $region42: #{tpu_custom_call.1} parent=1 // pred_check
      _
    $region43: #{tpu_custom_call.1} parent=1 // pred_check_branch
      %76 = sbr.rel (0) target = $region45
    $region44: #{tpu_custom_call.1} parent=1 // pred_region
      %77 = dma.done [#allocation7], 4096
    $region45: #{tpu_custom_call.1} parent=1 // pred_fallthru
      _
    // Predicated region
    $region46: #{tpu_custom_call.1} parent=1 // pred_check
      _
    $region47: #{tpu_custom_call.1} parent=1 // pred_check_branch
      %79 = sbr.rel (0) target = $region49
    $region48: #{tpu_custom_call.1} parent=1 // pred_region
      %80 = dma.done [#allocation10], 4096
    $region49: #{tpu_custom_call.1} parent=1 // pred_fallthru
      _
    // Predicated region
    $region50: #{tpu_custom_call.1} parent=1 // pred_check
      _
    $region51: #{tpu_custom_call.1} parent=1 // pred_check_branch
      %82 = sbr.rel (0) target = $region53
    $region52: #{tpu_custom_call.1} parent=1 // pred_region
      %83 = dma.done [#allocation10], 4096
    $region53: #{tpu_custom_call.1} parent=1 // pred_fallthru
      _
    %v85 = vld [vmem:[%s1] sm:$0xf]
    %v86 = vld [vmem:[%s1 + $0x4] sm:$0xf]
    %v87 = vld [vmem:[%s1 + $0x8] sm:$0xf]
    %v88 = vld [vmem:[%s1 + $0xc] sm:$0xf]
    %v89 = vld [vmem:[%s1 + $0x10] sm:$0xf]
    %v90 = vld [vmem:[%s1 + $0x14] sm:$0xf]
    %v91 = vld [vmem:[%s1 + $0x18] sm:$0xf]
    %v92 = vld [vmem:[%s1 + $0x1c] sm:$0xf]
    %v93 = vld [vmem:[%s1 + $0x20] sm:$0xf]
    %v94 = vld [vmem:[%s1 + $0x24] sm:$0xf]
    %v95 = vld [vmem:[%s1 + $0x28] sm:$0xf]
    %v96 = vld [vmem:[%s1 + $0x2c] sm:$0xf]
    %v97 = vld [vmem:[%s1 + $0x30] sm:$0xf]
    %v98 = vld [vmem:[%s1 + $0x34] sm:$0xf]
    %v99 = vld [vmem:[%s1 + $0x38] sm:$0xf]
    %v100 = vld [vmem:[%s1 + $0x3c] sm:$0xf]
    %v101 = vld [vmem:[%s3] sm:$0xf]
    %v102 = vld [vmem:[%s3 + $0x4] sm:$0xf]
    %v103 = vld [vmem:[%s3 + $0x8] sm:$0xf]
    %v104 = vld [vmem:[%s3 + $0xc] sm:$0xf]
    %v105 = vld [vmem:[%s3 + $0x10] sm:$0xf]
    %v106 = vld [vmem:[%s3 + $0x14] sm:$0xf]
    %v107 = vld [vmem:[%s3 + $0x18] sm:$0xf]
    %v108 = vld [vmem:[%s3 + $0x1c] sm:$0xf]
    %v109 = vld [vmem:[%s3 + $0x20] sm:$0xf]
    %v110 = vld [vmem:[%s3 + $0x24] sm:$0xf]
    %v111 = vld [vmem:[%s3 + $0x28] sm:$0xf]
    %v112 = vld [vmem:[%s3 + $0x2c] sm:$0xf]
    %v113 = vld [vmem:[%s3 + $0x30] sm:$0xf]
    %v114 = vld [vmem:[%s3 + $0x34] sm:$0xf]
    %v115 = vld [vmem:[%s3 + $0x38] sm:$0xf]
    %v116 = vld [vmem:[%s3 + $0x3c] sm:$0xf]
    %v117 = vld [vmem:[%s4] sm:$0x1]
    %v119 = vlaneseq
    %v120 = vshrl.u32 %v119, 7
    %v121 = vsub.s32 0, %v120
    %v122 = vrot.slane %v117, %v121
    %v140 = vunpack.c.l.b16 %v85
    %v141 = vunpack.c.l.b16 %v86
    %v142 = vunpack.c.l.b16 %v87
    %v143 = vunpack.c.l.b16 %v88
    %v144 = vunpack.c.l.b16 %v89
    %v145 = vunpack.c.l.b16 %v90
    %v146 = vunpack.c.l.b16 %v91
    %v147 = vunpack.c.l.b16 %v92
    %v148 = vunpack.c.l.b16 %v93
    %v149 = vunpack.c.l.b16 %v94
    %v150 = vunpack.c.l.b16 %v95
    %v151 = vunpack.c.l.b16 %v96
    %v152 = vunpack.c.l.b16 %v97
    %v153 = vunpack.c.l.b16 %v98
    %v154 = vunpack.c.l.b16 %v99
    %v155 = vunpack.c.l.b16 %v100
    %v156 = vpack.c.b16 %v141, %v140
    %v157 = vpack.c.b16 %v143, %v142
    %v158 = vpack.c.b16 %v145, %v144
    %v159 = vpack.c.b16 %v147, %v146
    %v160 = vpack.c.b16 %v149, %v148
    %v161 = vpack.c.b16 %v151, %v150
    %v162 = vpack.c.b16 %v153, %v152
    %v163 = vpack.c.b16 %v155, %v154
    %v188 = vunpack.c.l.b16 %v101
    %v189 = vunpack.c.l.b16 %v102
    %v190 = vunpack.c.l.b16 %v103
    %v191 = vunpack.c.l.b16 %v104
    %v192 = vunpack.c.l.b16 %v105
    %v193 = vunpack.c.l.b16 %v106
    %v194 = vunpack.c.l.b16 %v107
    %v195 = vunpack.c.l.b16 %v108
    %v196 = vunpack.c.l.b16 %v109
    %v197 = vunpack.c.l.b16 %v110
    %v198 = vunpack.c.l.b16 %v111
    %v199 = vunpack.c.l.b16 %v112
    %v200 = vunpack.c.l.b16 %v113
    %v201 = vunpack.c.l.b16 %v114
    %v202 = vunpack.c.l.b16 %v115
    %v203 = vunpack.c.l.b16 %v116
    %v204 = vpack.c.b16 %v189, %v188
    %v205 = vpack.c.b16 %v191, %v190
    %v206 = vpack.c.b16 %v193, %v192
    %v207 = vpack.c.b16 %v195, %v194
    %v208 = vpack.c.b16 %v197, %v196
    %v209 = vpack.c.b16 %v199, %v198
    %v210 = vpack.c.b16 %v201, %v200
    %v211 = vpack.c.b16 %v203, %v202
    %220 = vmatprep.subr.bf16.mxu0 0
    %221 = vmatpush1.bf16.msra.mxu0 %v204
    %222 = vmatprep.subr.bf16.mxu0 0
    %223 = vmatpush1.bf16.msra.mxu0 %v205
    %224 = vmatprep.subr.bf16.mxu0 0
    %225 = vmatpush1.bf16.msra.mxu0 %v206
    %226 = vmatprep.subr.bf16.mxu0 0
    %227 = vmatpush1.bf16.msra.mxu0 %v207
    %228 = vmatprep.subr.bf16.mxu0 0
    %229 = vmatpush1.bf16.msra.mxu0 %v208
    %230 = vmatprep.subr.bf16.mxu0 0
    %231 = vmatpush1.bf16.msra.mxu0 %v209
    %232 = vmatprep.subr.bf16.mxu0 0
    %233 = vmatpush1.bf16.msra.mxu0 %v210
    %234 = vmatprep.subr.bf16.mxu0 0
    %235 = vmatpush1.bf16.msra.mxu0 %v211
    %236 = vmatprep.subr.bf16.mxu0 0
    %237 = vmatpush1.bf16.msra.mxu0 0
    %238 = vmatprep.subr.bf16.mxu0 0
    %239 = vmatpush1.bf16.msra.mxu0 0
    %240 = vmatprep.subr.bf16.mxu0 0
    %241 = vmatpush1.bf16.msra.mxu0 0
    %242 = vmatprep.subr.bf16.mxu0 0
    %243 = vmatpush1.bf16.msra.mxu0 0
    %244 = vmatprep.subr.bf16.mxu0 0
    %245 = vmatpush1.bf16.msra.mxu0 0
    %246 = vmatprep.subr.bf16.mxu0 0
    %247 = vmatpush1.bf16.msra.mxu0 0
    %248 = vmatprep.subr.bf16.mxu0 0
    %249 = vmatpush1.bf16.msra.mxu0 0
    %250 = vmatprep.subr.bf16.mxu0 0
    %251 = vmatpush1.bf16.msra.mxu0 0
    %252 = vmatprep.mubr.bf16.mxu0 0
    %253 = vmatmul.mubr.bf16.gmra.mrb[0].mxu0 %v156
    %v254 = vpop.f32.mrb[0].mxu0
    %v255 = vadd.f32 %v122, %v254
    %v256 = vpop.f32.mrb[0].mxu0
    %v257 = vpop.f32.mrb[0].mxu0
    %v258 = vadd.f32 %v122, %v257
    %v259 = vpop.f32.mrb[0].mxu0
    %260 = vmatprep.mubr.bf16.mxu0 0
    %261 = vmatmul.mubr.bf16.gmra.mrb[0].mxu0 %v157
    %v262 = vpop.f32.mrb[0].mxu0
    %v263 = vadd.f32 %v122, %v262
    %v264 = vpop.f32.mrb[0].mxu0
    %v265 = vpop.f32.mrb[0].mxu0
    %v266 = vadd.f32 %v122, %v265
    %v267 = vpop.f32.mrb[0].mxu0
    %268 = vmatprep.mubr.bf16.mxu0 0
    %269 = vmatmul.mubr.bf16.gmra.mrb[0].mxu0 %v158
    %v270 = vpop.f32.mrb[0].mxu0
    %v271 = vadd.f32 %v122, %v270
    %v272 = vpop.f32.mrb[0].mxu0
    %v273 = vpop.f32.mrb[0].mxu0
    %v274 = vadd.f32 %v122, %v273
    %v275 = vpop.f32.mrb[0].mxu0
    %276 = vmatprep.mubr.bf16.mxu0 0
    %277 = vmatmul.mubr.bf16.gmra.mrb[0].mxu0 %v159
    %v278 = vpop.f32.mrb[0].mxu0
    %v279 = vadd.f32 %v122, %v278
    %v280 = vpop.f32.mrb[0].mxu0
    %v281 = vpop.f32.mrb[0].mxu0
    %v282 = vadd.f32 %v122, %v281
    %v283 = vpop.f32.mrb[0].mxu0
    %284 = vmatprep.mubr.bf16.mxu0 0
    %285 = vmatmul.mubr.bf16.gmra.mrb[0].mxu0 %v160
    %v286 = vpop.f32.mrb[0].mxu0
    %v287 = vadd.f32 %v122, %v286
    %v288 = vpop.f32.mrb[0].mxu0
    %v289 = vpop.f32.mrb[0].mxu0
    %v290 = vadd.f32 %v122, %v289
    %v291 = vpop.f32.mrb[0].mxu0
    %292 = vmatprep.mubr.bf16.mxu0 0
    %293 = vmatmul.mubr.bf16.gmra.mrb[0].mxu0 %v161
    %v294 = vpop.f32.mrb[0].mxu0
    %v295 = vadd.f32 %v122, %v294
    %v296 = vpop.f32.mrb[0].mxu0
    %v297 = vpop.f32.mrb[0].mxu0
    %v298 = vadd.f32 %v122, %v297
    %v299 = vpop.f32.mrb[0].mxu0
    %300 = vmatprep.mubr.bf16.mxu0 0
    %301 = vmatmul.mubr.bf16.gmra.mrb[0].mxu0 %v162
    %v302 = vpop.f32.mrb[0].mxu0
    %v303 = vadd.f32 %v122, %v302
    %v304 = vpop.f32.mrb[0].mxu0
    %v305 = vpop.f32.mrb[0].mxu0
    %v306 = vadd.f32 %v122, %v305
    %v307 = vpop.f32.mrb[0].mxu0
    %308 = vmatprep.mubr.bf16.mxu0 0
    %309 = vmatmul.mubr.bf16.gmra.mrb[0].mxu0 %v163
    %v310 = vpop.f32.mrb[0].mxu0
    %v311 = vadd.f32 %v122, %v310
    %v312 = vpop.f32.mrb[0].mxu0
    %v313 = vpop.f32.mrb[0].mxu0
    %v314 = vadd.f32 %v122, %v313
    %v315 = vpop.f32.mrb[0].mxu0
    %316 = vdwg.mxu0
    %vm317 = vcmask 31744
    %v318 = vsel %vm317, %v255, -inf
    %319 = vmax.xlane.f32.xlu0 %v318
    %v320 = vpop.xlane.xlu0 %319
    %v321 = vsel %vm317, %v258, -inf
    %322 = vmax.xlane.f32.xlu0 %v321
    %v323 = vpop.xlane.xlu0 %322
    %v324 = vsel %vm317, %v263, -inf
    %325 = vmax.xlane.f32.xlu0 %v324
    %v326 = vpop.xlane.xlu0 %325
    %v327 = vsel %vm317, %v266, -inf
    %328 = vmax.xlane.f32.xlu0 %v327
    %v329 = vpop.xlane.xlu0 %328
    %v330 = vsel %vm317, %v271, -inf
    %331 = vmax.xlane.f32.xlu0 %v330
    %v332 = vpop.xlane.xlu0 %331
    %v333 = vsel %vm317, %v274, -inf
    %334 = vmax.xlane.f32.xlu0 %v333
    %v335 = vpop.xlane.xlu0 %334
    %v336 = vsel %vm317, %v279, -inf
    %337 = vmax.xlane.f32.xlu0 %v336
    %v338 = vpop.xlane.xlu0 %337
    %v339 = vsel %vm317, %v282, -inf
    %340 = vmax.xlane.f32.xlu0 %v339
    %v341 = vpop.xlane.xlu0 %340
    %v342 = vsel %vm317, %v287, -inf
    %343 = vmax.xlane.f32.xlu0 %v342
    %v344 = vpop.xlane.xlu0 %343
    %v345 = vsel %vm317, %v290, -inf
    %346 = vmax.xlane.f32.xlu0 %v345
    %v347 = vpop.xlane.xlu0 %346
    %v348 = vsel %vm317, %v295, -inf
    %349 = vmax.xlane.f32.xlu0 %v348
    %v350 = vpop.xlane.xlu0 %349
    %v351 = vsel %vm317, %v298, -inf
    %352 = vmax.xlane.f32.xlu0 %v351
    %v353 = vpop.xlane.xlu0 %352
    %v354 = vsel %vm317, %v303, -inf
    %355 = vmax.xlane.f32.xlu0 %v354
    %v356 = vpop.xlane.xlu0 %355
    %v357 = vsel %vm317, %v306, -inf
    %358 = vmax.xlane.f32.xlu0 %v357
    %v359 = vpop.xlane.xlu0 %358
    %v360 = vsel %vm317, %v311, -inf
    %361 = vmax.xlane.f32.xlu0 %v360
    %v362 = vpop.xlane.xlu0 %361
    %v363 = vsel %vm317, %v314, -inf
    %364 = vmax.xlane.f32.xlu0 %v363
    %v365 = vpop.xlane.xlu0 %364
    %v366 = vsub.f32 %v255, %v320
    %v367 = vsub.f32 %v258, %v323
    %v368 = vsub.f32 %v263, %v326
    %v369 = vsub.f32 %v266, %v329
    %v370 = vsub.f32 %v271, %v332
    %v371 = vsub.f32 %v274, %v335
    %v372 = vsub.f32 %v279, %v338
    %v373 = vsub.f32 %v282, %v341
    %v374 = vsub.f32 %v287, %v344
    %v375 = vsub.f32 %v290, %v347
    %v376 = vsub.f32 %v295, %v350
    %v377 = vsub.f32 %v298, %v353
    %v378 = vsub.f32 %v303, %v356
    %v379 = vsub.f32 %v306, %v359
    %v380 = vsub.f32 %v311, %v362
    %v381 = vsub.f32 %v314, %v365
    %v382 = vmul.f32 %v366, 1.442695
    %v383 = vpow.pop %v382
    %v384 = vmul.f32 %v367, 1.442695
    %v385 = vpow.pop %v384
    %v386 = vmul.f32 %v368, 1.442695
    %v387 = vpow.pop %v386
    %v388 = vmul.f32 %v369, 1.442695
    %v389 = vpow.pop %v388
    %v390 = vmul.f32 %v370, 1.442695
    %v391 = vpow.pop %v390
    %v392 = vmul.f32 %v371, 1.442695
    %v393 = vpow.pop %v392
    %v394 = vmul.f32 %v372, 1.442695
    %v395 = vpow.pop %v394
    %v396 = vmul.f32 %v373, 1.442695
    %v397 = vpow.pop %v396
    %v398 = vmul.f32 %v374, 1.442695
    %v399 = vpow.pop %v398
    %v400 = vmul.f32 %v375, 1.442695
    %v401 = vpow.pop %v400
    %v402 = vmul.f32 %v376, 1.442695
    %v403 = vpow.pop %v402
    %v404 = vmul.f32 %v377, 1.442695
    %v405 = vpow.pop %v404
    %v406 = vmul.f32 %v378, 1.442695
    %v407 = vpow.pop %v406
    %v408 = vmul.f32 %v379, 1.442695
    %v409 = vpow.pop %v408
    %v410 = vmul.f32 %v380, 1.442695
    %v411 = vpow.pop %v410
    %v412 = vmul.f32 %v381, 1.442695
    %v413 = vpow.pop %v412
    %v414 = vld [vmem:[%s2] sm:$0xff]
    %v415 = vld [vmem:[%s2 + $0x8] sm:$0xff]
    %v416 = vld [vmem:[%s2 + $0x10] sm:$0xff]
    %v417 = vld [vmem:[%s2 + $0x18] sm:$0xff]
    %v418 = vld [vmem:[%s2 + $0x20] sm:$0xff]
    %v419 = vld [vmem:[%s2 + $0x28] sm:$0xff]
    %v420 = vld [vmem:[%s2 + $0x30] sm:$0xff]
    %v421 = vld [vmem:[%s2 + $0x38] sm:$0xff]
    %v422 = vld [vmem:[%s2 + $0x40] sm:$0xff]
    %v423 = vld [vmem:[%s2 + $0x48] sm:$0xff]
    %v424 = vld [vmem:[%s2 + $0x50] sm:$0xff]
    %v425 = vld [vmem:[%s2 + $0x58] sm:$0xff]
    %v426 = vld [vmem:[%s2 + $0x60] sm:$0xff]
    %v427 = vld [vmem:[%s2 + $0x68] sm:$0xff]
    %v428 = vld [vmem:[%s2 + $0x70] sm:$0xff]
    %v429 = vld [vmem:[%s2 + $0x78] sm:$0xff]
    %v430 = vmul.f32 %v383, %v414
    %v431 = vmul.f32 %v385, %v415
    %v432 = vmul.f32 %v387, %v416
    %v433 = vmul.f32 %v389, %v417
    %v434 = vmul.f32 %v391, %v418
    %v435 = vmul.f32 %v393, %v419
    %v436 = vmul.f32 %v395, %v420
    %v437 = vmul.f32 %v397, %v421
    %v438 = vmul.f32 %v399, %v422
    %v439 = vmul.f32 %v401, %v423
    %v440 = vmul.f32 %v403, %v424
    %v441 = vmul.f32 %v405, %v425
    %v442 = vmul.f32 %v407, %v426
    %v443 = vmul.f32 %v409, %v427
    %v444 = vmul.f32 %v411, %v428
    %v445 = vmul.f32 %v413, %v429
    %446 = vst [vmem:[#allocation2] sm:$0xff] 0.0
    %447 = vst [vmem:[#allocation2 + $0x8] sm:$0xff] 0.0
    %448 = vst [vmem:[#allocation2 + $0x10] sm:$0xff] 0.0
    %449 = vst [vmem:[#allocation2 + $0x18] sm:$0xff] 0.0
    %450 = vst [vmem:[#allocation2 + $0x20] sm:$0xff] 0.0
    %451 = vst [vmem:[#allocation2 + $0x28] sm:$0xff] 0.0
    %452 = vst [vmem:[#allocation2 + $0x30] sm:$0xff] 0.0
    %453 = vst [vmem:[#allocation2 + $0x38] sm:$0xff] 0.0
    %454 = vst [vmem:[#allocation2 + $0x40] sm:$0xff] 0.0
    %455 = vst [vmem:[#allocation2 + $0x48] sm:$0xff] 0.0
    %456 = vst [vmem:[#allocation2 + $0x50] sm:$0xff] 0.0
    %457 = vst [vmem:[#allocation2 + $0x58] sm:$0xff] 0.0
    %458 = vst [vmem:[#allocation2 + $0x60] sm:$0xff] 0.0
    %459 = vst [vmem:[#allocation2 + $0x68] sm:$0xff] 0.0
    %460 = vst [vmem:[#allocation2 + $0x70] sm:$0xff] 0.0
    %461 = vst [vmem:[#allocation2 + $0x78] sm:$0xff] 0.0
    %vm462 = vcmask 7168
    %463 = vst.msk [vmem:[#allocation3] sm:$0xff] %vm462, 0.0
    %464 = vst.msk [vmem:[#allocation3 + $0x8] sm:$0xff] %vm462, 0.0
    %465 = vst.msk [vmem:[#allocation3 + $0x10] sm:$0xff] %vm462, 0.0
    %466 = vst.msk [vmem:[#allocation3 + $0x18] sm:$0xff] %vm462, 0.0
    %467 = vst.msk [vmem:[#allocation3 + $0x20] sm:$0xff] %vm462, 0.0
    %468 = vst.msk [vmem:[#allocation3 + $0x28] sm:$0xff] %vm462, 0.0
    %469 = vst.msk [vmem:[#allocation3 + $0x30] sm:$0xff] %vm462, 0.0
    %470 = vst.msk [vmem:[#allocation3 + $0x38] sm:$0xff] %vm462, 0.0
    %471 = vst.msk [vmem:[#allocation3 + $0x40] sm:$0xff] %vm462, 0.0
    %472 = vst.msk [vmem:[#allocation3 + $0x48] sm:$0xff] %vm462, 0.0
    %473 = vst.msk [vmem:[#allocation3 + $0x50] sm:$0xff] %vm462, 0.0
    %474 = vst.msk [vmem:[#allocation3 + $0x58] sm:$0xff] %vm462, 0.0
    %475 = vst.msk [vmem:[#allocation3 + $0x60] sm:$0xff] %vm462, 0.0
    %476 = vst.msk [vmem:[#allocation3 + $0x68] sm:$0xff] %vm462, 0.0
    %477 = vst.msk [vmem:[#allocation3 + $0x70] sm:$0xff] %vm462, 0.0
    %478 = vst.msk [vmem:[#allocation3 + $0x78] sm:$0xff] %vm462, 0.0
    %s479 = smul.u32 0, 128
    %s480 = sld [smem:[#allocation5 + %s479]]
    %p481 = scmp.gt.s32.totalorder %s480, 0
    // Predicated region
    $region54: #{tpu_custom_call.1} parent=1 // pred_check
      %p482 = pneg %p481
    $region55: #{tpu_custom_call.1} parent=1 // pred_check_branch
      %484 = sbr.rel (%p482) target = $region57
    $region56: #{tpu_custom_call.1} parent=1 // pred_region
      %v485 = vld [vmem:[#allocation6] sm:$0xf]
      %v486 = vld [vmem:[#allocation6 + $0x4] sm:$0xf]
      %v487 = vld [vmem:[#allocation6 + $0x8] sm:$0xf]
      %v488 = vld [vmem:[#allocation6 + $0xc] sm:$0xf]
      %v489 = vld [vmem:[#allocation6 + $0x10] sm:$0xf]
      %v490 = vld [vmem:[#allocation6 + $0x14] sm:$0xf]
      %v491 = vld [vmem:[#allocation6 + $0x18] sm:$0xf]
      %v492 = vld [vmem:[#allocation6 + $0x1c] sm:$0xf]
      %v493 = vld [vmem:[#allocation6 + $0x20] sm:$0xf]
      %v494 = vld [vmem:[#allocation6 + $0x24] sm:$0xf]
      %v495 = vld [vmem:[#allocation6 + $0x28] sm:$0xf]
      %v496 = vld [vmem:[#allocation6 + $0x2c] sm:$0xf]
      %v497 = vld [vmem:[#allocation6 + $0x30] sm:$0xf]
      %v498 = vld [vmem:[#allocation6 + $0x34] sm:$0xf]
      %v499 = vld [vmem:[#allocation6 + $0x38] sm:$0xf]
      %v500 = vld [vmem:[#allocation6 + $0x3c] sm:$0xf]
      %v501 = vld [vmem:[%s6] sm:$0x1]
      %v503 = vlaneseq
      %v504 = vshrl.u32 %v503, 7
      %v505 = vsub.s32 0, %v504
      %v506 = vrot.slane %v501, %v505
      %v524 = vunpack.c.l.b16 %v485
      %v525 = vunpack.c.l.b16 %v486
      %v526 = vunpack.c.l.b16 %v487
      %v527 = vunpack.c.l.b16 %v488
      %v528 = vunpack.c.l.b16 %v489
      %v529 = vunpack.c.l.b16 %v490
      %v530 = vunpack.c.l.b16 %v491
      %v531 = vunpack.c.l.b16 %v492
      %v532 = vunpack.c.l.b16 %v493
      %v533 = vunpack.c.l.b16 %v494
      %v534 = vunpack.c.l.b16 %v495
      %v535 = vunpack.c.l.b16 %v496
      %v536 = vunpack.c.l.b16 %v497
      %v537 = vunpack.c.l.b16 %v498
      %v538 = vunpack.c.l.b16 %v499
      %v539 = vunpack.c.l.b16 %v500
      %v540 = vpack.c.b16 %v525, %v524
      %v541 = vpack.c.b16 %v527, %v526
      %v542 = vpack.c.b16 %v529, %v528
      %v543 = vpack.c.b16 %v531, %v530
      %v544 = vpack.c.b16 %v533, %v532
      %v545 = vpack.c.b16 %v535, %v534
      %v546 = vpack.c.b16 %v537, %v536
      %v547 = vpack.c.b16 %v539, %v538
      %556 = vmatprep.subr.bf16.mxu0 0
      %557 = vmatpush1.bf16.msra.mxu0 %v540
      %558 = vmatprep.subr.bf16.mxu0 0
      %559 = vmatpush1.bf16.msra.mxu0 %v541
      %560 = vmatprep.subr.bf16.mxu0 0
      %561 = vmatpush1.bf16.msra.mxu0 %v542
      %562 = vmatprep.subr.bf16.mxu0 0
      %563 = vmatpush1.bf16.msra.mxu0 %v543
      %564 = vmatprep.subr.bf16.mxu0 0
      %565 = vmatpush1.bf16.msra.mxu0 %v544
      %566 = vmatprep.subr.bf16.mxu0 0
      %567 = vmatpush1.bf16.msra.mxu0 %v545
      %568 = vmatprep.subr.bf16.mxu0 0
      %569 = vmatpush1.bf16.msra.mxu0 %v546
      %570 = vmatprep.subr.bf16.mxu0 0
      %571 = vmatpush1.bf16.msra.mxu0 %v547
      %572 = vmatprep.subr.bf16.mxu0 0
      %573 = vmatpush1.bf16.msra.mxu0 0
      %574 = vmatprep.subr.bf16.mxu0 0
      %575 = vmatpush1.bf16.msra.mxu0 0
      %576 = vmatprep.subr.bf16.mxu0 0
      %577 = vmatpush1.bf16.msra.mxu0 0
      %578 = vmatprep.subr.bf16.mxu0 0
      %579 = vmatpush1.bf16.msra.mxu0 0
      %580 = vmatprep.subr.bf16.mxu0 0
      %581 = vmatpush1.bf16.msra.mxu0 0
      %582 = vmatprep.subr.bf16.mxu0 0
      %583 = vmatpush1.bf16.msra.mxu0 0
      %584 = vmatprep.subr.bf16.mxu0 0
      %585 = vmatpush1.bf16.msra.mxu0 0
      %586 = vmatprep.subr.bf16.mxu0 0
      %587 = vmatpush1.bf16.msra.mxu0 0
      %588 = vmatprep.mubr.bf16.mxu0 0
      %589 = vmatmul.mubr.bf16.gmra.mrb[0].mxu0 %v156
      %v590 = vpop.f32.mrb[0].mxu0
      %v591 = vadd.f32 %v506, %v590
      %v592 = vpop.f32.mrb[0].mxu0
      %v593 = vpop.f32.mrb[0].mxu0
      %v594 = vadd.f32 %v506, %v593
      %v595 = vpop.f32.mrb[0].mxu0
      %596 = vmatprep.mubr.bf16.mxu0 0
      %597 = vmatmul.mubr.bf16.gmra.mrb[0].mxu0 %v157
      %v598 = vpop.f32.mrb[0].mxu0
      %v599 = vadd.f32 %v506, %v598
      %v600 = vpop.f32.mrb[0].mxu0
      %v601 = vpop.f32.mrb[0].mxu0
      %v602 = vadd.f32 %v506, %v601
      %v603 = vpop.f32.mrb[0].mxu0
      %604 = vmatprep.mubr.bf16.mxu0 0
      %605 = vmatmul.mubr.bf16.gmra.mrb[0].mxu0 %v158
      %v606 = vpop.f32.mrb[0].mxu0
      %v607 = vadd.f32 %v506, %v606
      %v608 = vpop.f32.mrb[0].mxu0
      %v609 = vpop.f32.mrb[0].mxu0
      %v610 = vadd.f32 %v506, %v609
      %v611 = vpop.f32.mrb[0].mxu0
      %612 = vmatprep.mubr.bf16.mxu0 0
      %613 = vmatmul.mubr.bf16.gmra.mrb[0].mxu0 %v159
      %v614 = vpop.f32.mrb[0].mxu0
      %v615 = vadd.f32 %v506, %v614
      %v616 = vpop.f32.mrb[0].mxu0
      %v617 = vpop.f32.mrb[0].mxu0
      %v618 = vadd.f32 %v506, %v617
      %v619 = vpop.f32.mrb[0].mxu0
      %620 = vmatprep.mubr.bf16.mxu0 0
      %621 = vmatmul.mubr.bf16.gmra.mrb[0].mxu0 %v160
      %v622 = vpop.f32.mrb[0].mxu0
      %v623 = vadd.f32 %v506, %v622
      %v624 = vpop.f32.mrb[0].mxu0
      %v625 = vpop.f32.mrb[0].mxu0
      %v626 = vadd.f32 %v506, %v625
      %v627 = vpop.f32.mrb[0].mxu0
      %628 = vmatprep.mubr.bf16.mxu0 0
      %629 = vmatmul.mubr.bf16.gmra.mrb[0].mxu0 %v161
      %v630 = vpop.f32.mrb[0].mxu0
      %v631 = vadd.f32 %v506, %v630
      %v632 = vpop.f32.mrb[0].mxu0
      %v633 = vpop.f32.mrb[0].mxu0
      %v634 = vadd.f32 %v506, %v633
      %v635 = vpop.f32.mrb[0].mxu0
      %636 = vmatprep.mubr.bf16.mxu0 0
      %637 = vmatmul.mubr.bf16.gmra.mrb[0].mxu0 %v162
      %v638 = vpop.f32.mrb[0].mxu0
      %v639 = vadd.f32 %v506, %v638
      %v640 = vpop.f32.mrb[0].mxu0
      %v641 = vpop.f32.mrb[0].mxu0
      %v642 = vadd.f32 %v506, %v641
      %v643 = vpop.f32.mrb[0].mxu0
      %644 = vmatprep.mubr.bf16.mxu0 0
      %645 = vmatmul.mubr.bf16.gmra.mrb[0].mxu0 %v163
      %v646 = vpop.f32.mrb[0].mxu0
      %v647 = vadd.f32 %v506, %v646
      %v648 = vpop.f32.mrb[0].mxu0
      %v649 = vpop.f32.mrb[0].mxu0
      %v650 = vadd.f32 %v506, %v649
      %v651 = vpop.f32.mrb[0].mxu0
      %652 = vdwg.mxu0
      %vm653 = vcmp.gt.f32.partialorder %v591, 0.0
      %vm654 = vcmp.gt.f32.partialorder %v594, 0.0
      %vm655 = vcmp.gt.f32.partialorder %v599, 0.0
      %vm656 = vcmp.gt.f32.partialorder %v602, 0.0
      %vm657 = vcmp.gt.f32.partialorder %v607, 0.0
      %vm658 = vcmp.gt.f32.partialorder %v610, 0.0
      %vm659 = vcmp.gt.f32.partialorder %v615, 0.0
      %vm660 = vcmp.gt.f32.partialorder %v618, 0.0
      %vm661 = vcmp.gt.f32.partialorder %v623, 0.0
      %vm662 = vcmp.gt.f32.partialorder %v626, 0.0
      %vm663 = vcmp.gt.f32.partialorder %v631, 0.0
      %vm664 = vcmp.gt.f32.partialorder %v634, 0.0
      %vm665 = vcmp.gt.f32.partialorder %v639, 0.0
      %vm666 = vcmp.gt.f32.partialorder %v642, 0.0
      %vm667 = vcmp.gt.f32.partialorder %v647, 0.0
      %vm668 = vcmp.gt.f32.partialorder %v650, 0.0
      %v669 = vmul.f32 %v591, 0.01
      %v670 = vmul.f32 %v594, 0.01
      %v671 = vmul.f32 %v599, 0.01
      %v672 = vmul.f32 %v602, 0.01
      %v673 = vmul.f32 %v607, 0.01
      %v674 = vmul.f32 %v610, 0.01
      %v675 = vmul.f32 %v615, 0.01
      %v676 = vmul.f32 %v618, 0.01
      %v677 = vmul.f32 %v623, 0.01
      %v678 = vmul.f32 %v626, 0.01
      %v679 = vmul.f32 %v631, 0.01
      %v680 = vmul.f32 %v634, 0.01
      %v681 = vmul.f32 %v639, 0.01
      %v682 = vmul.f32 %v642, 0.01
      %v683 = vmul.f32 %v647, 0.01
      %v684 = vmul.f32 %v650, 0.01
      %v685 = vsel %vm653, %v591, %v669
      %v686 = vsel %vm654, %v594, %v670
      %v687 = vsel %vm655, %v599, %v671
      %v688 = vsel %vm656, %v602, %v672
      %v689 = vsel %vm657, %v607, %v673
      %v690 = vsel %vm658, %v610, %v674
      %v691 = vsel %vm659, %v615, %v675
      %v692 = vsel %vm660, %v618, %v676
      %v693 = vsel %vm661, %v623, %v677
      %v694 = vsel %vm662, %v626, %v678
      %v695 = vsel %vm663, %v631, %v679
      %v696 = vsel %vm664, %v634, %v680
      %v697 = vsel %vm665, %v639, %v681
      %v698 = vsel %vm666, %v642, %v682
      %v699 = vsel %vm667, %v647, %v683
      %v700 = vsel %vm668, %v650, %v684
      %v701 = vpack.c.bf16 %v686, %v685
      %v702 = vpack.c.bf16 %v688, %v687
      %v703 = vpack.c.bf16 %v690, %v689
      %v704 = vpack.c.bf16 %v692, %v691
      %v705 = vpack.c.bf16 %v694, %v693
      %v706 = vpack.c.bf16 %v696, %v695
      %v707 = vpack.c.bf16 %v698, %v697
      %v708 = vpack.c.bf16 %v700, %v699
      %v709 = vld [vmem:[#allocation9] sm:$0xf]
      %v710 = vld [vmem:[#allocation9 + $0x4] sm:$0xf]
      %v711 = vld [vmem:[#allocation9 + $0x8] sm:$0xf]
      %v712 = vld [vmem:[#allocation9 + $0xc] sm:$0xf]
      %v713 = vld [vmem:[#allocation9 + $0x10] sm:$0xf]
      %v714 = vld [vmem:[#allocation9 + $0x14] sm:$0xf]
      %v715 = vld [vmem:[#allocation9 + $0x18] sm:$0xf]
      %v716 = vld [vmem:[#allocation9 + $0x1c] sm:$0xf]
      %v717 = vld [vmem:[#allocation9 + $0x20] sm:$0xf]
      %v718 = vld [vmem:[#allocation9 + $0x24] sm:$0xf]
      %v719 = vld [vmem:[#allocation9 + $0x28] sm:$0xf]
      %v720 = vld [vmem:[#allocation9 + $0x2c] sm:$0xf]
      %v721 = vld [vmem:[#allocation9 + $0x30] sm:$0xf]
      %v722 = vld [vmem:[#allocation9 + $0x34] sm:$0xf]
      %v723 = vld [vmem:[#allocation9 + $0x38] sm:$0xf]
      %v724 = vld [vmem:[#allocation9 + $0x3c] sm:$0xf]
      %v725 = vld [vmem:[%s8] sm:$0x1]
      %v727 = vlaneseq
      %v728 = vshrl.u32 %v727, 7
      %v729 = vsub.s32 0, %v728
      %v730 = vrot.slane %v725, %v729
      %v748 = vunpack.c.l.b16 %v709
      %v749 = vunpack.c.l.b16 %v710
      %v750 = vunpack.c.l.b16 %v711
      %v751 = vunpack.c.l.b16 %v712
      %v752 = vunpack.c.l.b16 %v713
      %v753 = vunpack.c.l.b16 %v714
      %v754 = vunpack.c.l.b16 %v715
      %v755 = vunpack.c.l.b16 %v716
      %v756 = vunpack.c.l.b16 %v717
      %v757 = vunpack.c.l.b16 %v718
      %v758 = vunpack.c.l.b16 %v719
      %v759 = vunpack.c.l.b16 %v720
      %v760 = vunpack.c.l.b16 %v721
      %v761 = vunpack.c.l.b16 %v722
      %v762 = vunpack.c.l.b16 %v723
      %v763 = vunpack.c.l.b16 %v724
      %v764 = vpack.c.b16 %v749, %v748
      %v765 = vpack.c.b16 %v751, %v750
      %v766 = vpack.c.b16 %v753, %v752
      %v767 = vpack.c.b16 %v755, %v754
      %v768 = vpack.c.b16 %v757, %v756
      %v769 = vpack.c.b16 %v759, %v758
      %v770 = vpack.c.b16 %v761, %v760
      %v771 = vpack.c.b16 %v763, %v762
      %780 = vmatprep.subr.bf16.mxu0 0
      %781 = vmatpush1.bf16.msra.mxu0 %v764
      %782 = vmatprep.subr.bf16.mxu0 0
      %783 = vmatpush1.bf16.msra.mxu0 %v765
      %784 = vmatprep.subr.bf16.mxu0 0
      %785 = vmatpush1.bf16.msra.mxu0 %v766
      %786 = vmatprep.subr.bf16.mxu0 0
      %787 = vmatpush1.bf16.msra.mxu0 %v767
      %788 = vmatprep.subr.bf16.mxu0 0
      %789 = vmatpush1.bf16.msra.mxu0 %v768
      %790 = vmatprep.subr.bf16.mxu0 0
      %791 = vmatpush1.bf16.msra.mxu0 %v769
      %792 = vmatprep.subr.bf16.mxu0 0
      %793 = vmatpush1.bf16.msra.mxu0 %v770
      %794 = vmatprep.subr.bf16.mxu0 0
      %795 = vmatpush1.bf16.msra.mxu0 %v771
      %796 = vmatprep.subr.bf16.mxu0 0
      %797 = vmatpush1.bf16.msra.mxu0 0
      %798 = vmatprep.subr.bf16.mxu0 0
      %799 = vmatpush1.bf16.msra.mxu0 0
      %800 = vmatprep.subr.bf16.mxu0 0
      %801 = vmatpush1.bf16.msra.mxu0 0
      %802 = vmatprep.subr.bf16.mxu0 0
      %803 = vmatpush1.bf16.msra.mxu0 0
      %804 = vmatprep.subr.bf16.mxu0 0
      %805 = vmatpush1.bf16.msra.mxu0 0
      %806 = vmatprep.subr.bf16.mxu0 0
      %807 = vmatpush1.bf16.msra.mxu0 0
      %808 = vmatprep.subr.bf16.mxu0 0
      %809 = vmatpush1.bf16.msra.mxu0 0
      %810 = vmatprep.subr.bf16.mxu0 0
      %811 = vmatpush1.bf16.msra.mxu0 0
      %812 = vmatprep.mubr.bf16.mxu0 0
      %813 = vmatmul.mubr.bf16.gmra.mrb[0].mxu0 %v701
      %v814 = vpop.f32.mrb[0].mxu0
      %v815 = vadd.f32 %v730, %v814
      %v816 = vpop.f32.mrb[0].mxu0
      %v817 = vpop.f32.mrb[0].mxu0
      %v818 = vadd.f32 %v730, %v817
      %v819 = vpop.f32.mrb[0].mxu0
      %820 = vmatprep.mubr.bf16.mxu0 0
      %821 = vmatmul.mubr.bf16.gmra.mrb[0].mxu0 %v702
      %v822 = vpop.f32.mrb[0].mxu0
      %v823 = vadd.f32 %v730, %v822
      %v824 = vpop.f32.mrb[0].mxu0
      %v825 = vpop.f32.mrb[0].mxu0
      %v826 = vadd.f32 %v730, %v825
      %v827 = vpop.f32.mrb[0].mxu0
      %828 = vmatprep.mubr.bf16.mxu0 0
      %829 = vmatmul.mubr.bf16.gmra.mrb[0].mxu0 %v703
      %v830 = vpop.f32.mrb[0].mxu0
      %v831 = vadd.f32 %v730, %v830
      %v832 = vpop.f32.mrb[0].mxu0
      %v833 = vpop.f32.mrb[0].mxu0
      %v834 = vadd.f32 %v730, %v833
      %v835 = vpop.f32.mrb[0].mxu0
      %836 = vmatprep.mubr.bf16.mxu0 0
      %837 = vmatmul.mubr.bf16.gmra.mrb[0].mxu0 %v704
      %v838 = vpop.f32.mrb[0].mxu0
      %v839 = vadd.f32 %v730, %v838
      %v840 = vpop.f32.mrb[0].mxu0
      %v841 = vpop.f32.mrb[0].mxu0
      %v842 = vadd.f32 %v730, %v841
      %v843 = vpop.f32.mrb[0].mxu0
      %844 = vmatprep.mubr.bf16.mxu0 0
      %845 = vmatmul.mubr.bf16.gmra.mrb[0].mxu0 %v705
      %v846 = vpop.f32.mrb[0].mxu0
      %v847 = vadd.f32 %v730, %v846
      %v848 = vpop.f32.mrb[0].mxu0
      %v849 = vpop.f32.mrb[0].mxu0
      %v850 = vadd.f32 %v730, %v849
      %v851 = vpop.f32.mrb[0].mxu0
      %852 = vmatprep.mubr.bf16.mxu0 0
      %853 = vmatmul.mubr.bf16.gmra.mrb[0].mxu0 %v706
      %v854 = vpop.f32.mrb[0].mxu0
      %v855 = vadd.f32 %v730, %v854
      %v856 = vpop.f32.mrb[0].mxu0
      %v857 = vpop.f32.mrb[0].mxu0
      %v858 = vadd.f32 %v730, %v857
      %v859 = vpop.f32.mrb[0].mxu0
      %860 = vmatprep.mubr.bf16.mxu0 0
      %861 = vmatmul.mubr.bf16.gmra.mrb[0].mxu0 %v707
      %v862 = vpop.f32.mrb[0].mxu0
      %v863 = vadd.f32 %v730, %v862
      %v864 = vpop.f32.mrb[0].mxu0
      %v865 = vpop.f32.mrb[0].mxu0
      %v866 = vadd.f32 %v730, %v865
      %v867 = vpop.f32.mrb[0].mxu0
      %868 = vmatprep.mubr.bf16.mxu0 0
      %869 = vmatmul.mubr.bf16.gmra.mrb[0].mxu0 %v708
      %v870 = vpop.f32.mrb[0].mxu0
      %v871 = vadd.f32 %v730, %v870
      %v872 = vpop.f32.mrb[0].mxu0
      %v873 = vpop.f32.mrb[0].mxu0
      %v874 = vadd.f32 %v730, %v873
      %v875 = vpop.f32.mrb[0].mxu0
      %876 = vdwg.mxu0
      %vm877 = vcmp.gt.f32.partialorder %v815, 0.0
      %vm878 = vcmp.gt.f32.partialorder %v818, 0.0
      %vm879 = vcmp.gt.f32.partialorder %v823, 0.0
      %vm880 = vcmp.gt.f32.partialorder %v826, 0.0
      %vm881 = vcmp.gt.f32.partialorder %v831, 0.0
      %vm882 = vcmp.gt.f32.partialorder %v834, 0.0
      %vm883 = vcmp.gt.f32.partialorder %v839, 0.0
      %vm884 = vcmp.gt.f32.partialorder %v842, 0.0
      %vm885 = vcmp.gt.f32.partialorder %v847, 0.0
      %vm886 = vcmp.gt.f32.partialorder %v850, 0.0
      %vm887 = vcmp.gt.f32.partialorder %v855, 0.0
      %vm888 = vcmp.gt.f32.partialorder %v858, 0.0
      %vm889 = vcmp.gt.f32.partialorder %v863, 0.0
      %vm890 = vcmp.gt.f32.partialorder %v866, 0.0
      %vm891 = vcmp.gt.f32.partialorder %v871, 0.0
      %vm892 = vcmp.gt.f32.partialorder %v874, 0.0
      %v893 = vmul.f32 %v815, 0.01
      %v894 = vmul.f32 %v818, 0.01
      %v895 = vmul.f32 %v823, 0.01
      %v896 = vmul.f32 %v826, 0.01
      %v897 = vmul.f32 %v831, 0.01
      %v898 = vmul.f32 %v834, 0.01
      %v899 = vmul.f32 %v839, 0.01
      %v900 = vmul.f32 %v842, 0.01
      %v901 = vmul.f32 %v847, 0.01
      %v902 = vmul.f32 %v850, 0.01
      %v903 = vmul.f32 %v855, 0.01
      %v904 = vmul.f32 %v858, 0.01
      %v905 = vmul.f32 %v863, 0.01
      %v906 = vmul.f32 %v866, 0.01
      %v907 = vmul.f32 %v871, 0.01
      %v908 = vmul.f32 %v874, 0.01
      %v909 = vsel %vm877, %v815, %v893
      %v910 = vsel %vm878, %v818, %v894
      %v911 = vsel %vm879, %v823, %v895
      %v912 = vsel %vm880, %v826, %v896
      %v913 = vsel %vm881, %v831, %v897
      %v914 = vsel %vm882, %v834, %v898
      %v915 = vsel %vm883, %v839, %v899
      %v916 = vsel %vm884, %v842, %v900
      %v917 = vsel %vm885, %v847, %v901
      %v918 = vsel %vm886, %v850, %v902
      %v919 = vsel %vm887, %v855, %v903
      %v920 = vsel %vm888, %v858, %v904
      %v921 = vsel %vm889, %v863, %v905
      %v922 = vsel %vm890, %v866, %v906
      %v923 = vsel %vm891, %v871, %v907
      %v924 = vsel %vm892, %v874, %v908
      %v925 = vpack.c.bf16 %v910, %v909
      %v926 = vpack.c.bf16 %v912, %v911
      %v927 = vpack.c.bf16 %v914, %v913
      %v928 = vpack.c.bf16 %v916, %v915
      %v929 = vpack.c.bf16 %v918, %v917
      %v930 = vpack.c.bf16 %v920, %v919
      %v931 = vpack.c.bf16 %v922, %v921
      %v932 = vpack.c.bf16 %v924, %v923
      %v933 = vld [vmem:[#allocation11] sm:$0xf]
      %v934 = vld [vmem:[#allocation11 + $0x4] sm:$0xf]
      %v935 = vld [vmem:[#allocation11 + $0x8] sm:$0xf]
      %v936 = vld [vmem:[#allocation11 + $0xc] sm:$0xf]
      %v937 = vld [vmem:[#allocation11 + $0x10] sm:$0xf]
      %v938 = vld [vmem:[#allocation11 + $0x14] sm:$0xf]
      %v939 = vld [vmem:[#allocation11 + $0x18] sm:$0xf]
      %v940 = vld [vmem:[#allocation11 + $0x1c] sm:$0xf]
      %v941 = vld [vmem:[#allocation11 + $0x20] sm:$0xf]
      %v942 = vld [vmem:[#allocation11 + $0x24] sm:$0xf]
      %v943 = vld [vmem:[#allocation11 + $0x28] sm:$0xf]
      %v944 = vld [vmem:[#allocation11 + $0x2c] sm:$0xf]
      %v945 = vld [vmem:[#allocation11 + $0x30] sm:$0xf]
      %v946 = vld [vmem:[#allocation11 + $0x34] sm:$0xf]
      %v947 = vld [vmem:[#allocation11 + $0x38] sm:$0xf]
      %v948 = vld [vmem:[#allocation11 + $0x3c] sm:$0xf]
      %v949 = vld [vmem:[%s10] sm:$0x1]
      %v951 = vlaneseq
      %v952 = vshrl.u32 %v951, 7
      %v953 = vsub.s32 0, %v952
      %v954 = vrot.slane %v949, %v953
      %v972 = vunpack.c.l.b16 %v933
      %v973 = vunpack.c.l.b16 %v934
      %v974 = vunpack.c.l.b16 %v935
      %v975 = vunpack.c.l.b16 %v936
      %v976 = vunpack.c.l.b16 %v937
      %v977 = vunpack.c.l.b16 %v938
      %v978 = vunpack.c.l.b16 %v939
      %v979 = vunpack.c.l.b16 %v940
      %v980 = vunpack.c.l.b16 %v941
      %v981 = vunpack.c.l.b16 %v942
      %v982 = vunpack.c.l.b16 %v943
      %v983 = vunpack.c.l.b16 %v944
      %v984 = vunpack.c.l.b16 %v945
      %v985 = vunpack.c.l.b16 %v946
      %v986 = vunpack.c.l.b16 %v947
      %v987 = vunpack.c.l.b16 %v948
      %v988 = vpack.c.b16 %v973, %v972
      %v989 = vpack.c.b16 %v975, %v974
      %v990 = vpack.c.b16 %v977, %v976
      %v991 = vpack.c.b16 %v979, %v978
      %v992 = vpack.c.b16 %v981, %v980
      %v993 = vpack.c.b16 %v983, %v982
      %v994 = vpack.c.b16 %v985, %v984
      %v995 = vpack.c.b16 %v987, %v986
      %1004 = vmatprep.subr.bf16.mxu0 0
      %1005 = vmatpush1.bf16.msra.mxu0 %v988
      %1006 = vmatprep.subr.bf16.mxu0 0
      %1007 = vmatpush1.bf16.msra.mxu0 %v989
      %1008 = vmatprep.subr.bf16.mxu0 0
      %1009 = vmatpush1.bf16.msra.mxu0 %v990
      %1010 = vmatprep.subr.bf16.mxu0 0
      %1011 = vmatpush1.bf16.msra.mxu0 %v991
      %1012 = vmatprep.subr.bf16.mxu0 0
      %1013 = vmatpush1.bf16.msra.mxu0 %v992
      %1014 = vmatprep.subr.bf16.mxu0 0
      %1015 = vmatpush1.bf16.msra.mxu0 %v993
      %1016 = vmatprep.subr.bf16.mxu0 0
      %1017 = vmatpush1.bf16.msra.mxu0 %v994
      %1018 = vmatprep.subr.bf16.mxu0 0
      %1019 = vmatpush1.bf16.msra.mxu0 %v995
      %1020 = vmatprep.subr.bf16.mxu0 0
      %1021 = vmatpush1.bf16.msra.mxu0 0
      %1022 = vmatprep.subr.bf16.mxu0 0
      %1023 = vmatpush1.bf16.msra.mxu0 0
      %1024 = vmatprep.subr.bf16.mxu0 0
      %1025 = vmatpush1.bf16.msra.mxu0 0
      %1026 = vmatprep.subr.bf16.mxu0 0
      %1027 = vmatpush1.bf16.msra.mxu0 0
      %1028 = vmatprep.subr.bf16.mxu0 0
      %1029 = vmatpush1.bf16.msra.mxu0 0
      %1030 = vmatprep.subr.bf16.mxu0 0
      %1031 = vmatpush1.bf16.msra.mxu0 0
      %1032 = vmatprep.subr.bf16.mxu0 0
      %1033 = vmatpush1.bf16.msra.mxu0 0
      %1034 = vmatprep.subr.bf16.mxu0 0
      %1035 = vmatpush1.bf16.msra.mxu0 0
      %1036 = vmatprep.mubr.bf16.mxu0 0
      %1037 = vmatmul.mubr.bf16.gmra.mrb[0].mxu0 %v925
      %v1038 = vpop.f32.mrb[0].mxu0
      %v1039 = vadd.f32 %v954, %v1038
      %v1040 = vpop.f32.mrb[0].mxu0
      %v1041 = vpop.f32.mrb[0].mxu0
      %v1042 = vadd.f32 %v954, %v1041
      %v1043 = vpop.f32.mrb[0].mxu0
      %1044 = vmatprep.mubr.bf16.mxu0 0
      %1045 = vmatmul.mubr.bf16.gmra.mrb[0].mxu0 %v926
      %v1046 = vpop.f32.mrb[0].mxu0
      %v1047 = vadd.f32 %v954, %v1046
      %v1048 = vpop.f32.mrb[0].mxu0
      %v1049 = vpop.f32.mrb[0].mxu0
      %v1050 = vadd.f32 %v954, %v1049
      %v1051 = vpop.f32.mrb[0].mxu0
      %1052 = vmatprep.mubr.bf16.mxu0 0
      %1053 = vmatmul.mubr.bf16.gmra.mrb[0].mxu0 %v927
      %v1054 = vpop.f32.mrb[0].mxu0
      %v1055 = vadd.f32 %v954, %v1054
      %v1056 = vpop.f32.mrb[0].mxu0
      %v1057 = vpop.f32.mrb[0].mxu0
      %v1058 = vadd.f32 %v954, %v1057
      %v1059 = vpop.f32.mrb[0].mxu0
      %1060 = vmatprep.mubr.bf16.mxu0 0
      %1061 = vmatmul.mubr.bf16.gmra.mrb[0].mxu0 %v928
      %v1062 = vpop.f32.mrb[0].mxu0
      %v1063 = vadd.f32 %v954, %v1062
      %v1064 = vpop.f32.mrb[0].mxu0
      %v1065 = vpop.f32.mrb[0].mxu0
      %v1066 = vadd.f32 %v954, %v1065
      %v1067 = vpop.f32.mrb[0].mxu0
      %1068 = vmatprep.mubr.bf16.mxu0 0
      %1069 = vmatmul.mubr.bf16.gmra.mrb[0].mxu0 %v929
      %v1070 = vpop.f32.mrb[0].mxu0
      %v1071 = vadd.f32 %v954, %v1070
      %v1072 = vpop.f32.mrb[0].mxu0
      %v1073 = vpop.f32.mrb[0].mxu0
      %v1074 = vadd.f32 %v954, %v1073
      %v1075 = vpop.f32.mrb[0].mxu0
      %1076 = vmatprep.mubr.bf16.mxu0 0
      %1077 = vmatmul.mubr.bf16.gmra.mrb[0].mxu0 %v930
      %v1078 = vpop.f32.mrb[0].mxu0
      %v1079 = vadd.f32 %v954, %v1078
      %v1080 = vpop.f32.mrb[0].mxu0
      %v1081 = vpop.f32.mrb[0].mxu0
      %v1082 = vadd.f32 %v954, %v1081
      %v1083 = vpop.f32.mrb[0].mxu0
      %1084 = vmatprep.mubr.bf16.mxu0 0
      %1085 = vmatmul.mubr.bf16.gmra.mrb[0].mxu0 %v931
      %v1086 = vpop.f32.mrb[0].mxu0
      %v1087 = vadd.f32 %v954, %v1086
      %v1088 = vpop.f32.mrb[0].mxu0
      %v1089 = vpop.f32.mrb[0].mxu0
      %v1090 = vadd.f32 %v954, %v1089
      %v1091 = vpop.f32.mrb[0].mxu0
      %1092 = vmatprep.mubr.bf16.mxu0 0
      %1093 = vmatmul.mubr.bf16.gmra.mrb[0].mxu0 %v932
      %v1094 = vpop.f32.mrb[0].mxu0
      %v1095 = vadd.f32 %v954, %v1094
      %v1096 = vpop.f32.mrb[0].mxu0
      %v1097 = vpop.f32.mrb[0].mxu0
      %v1098 = vadd.f32 %v954, %v1097
      %v1099 = vpop.f32.mrb[0].mxu0
      %1100 = vdwg.mxu0
      %v1101 = vld [vmem:[#allocation2] sm:$0xff]
      %v1102 = vld [vmem:[#allocation2 + $0x8] sm:$0xff]
      %v1103 = vld [vmem:[#allocation2 + $0x10] sm:$0xff]
      %v1104 = vld [vmem:[#allocation2 + $0x18] sm:$0xff]
      %v1105 = vld [vmem:[#allocation2 + $0x20] sm:$0xff]
      %v1106 = vld [vmem:[#allocation2 + $0x28] sm:$0xff]
      %v1107 = vld [vmem:[#allocation2 + $0x30] sm:$0xff]
      %v1108 = vld [vmem:[#allocation2 + $0x38] sm:$0xff]
      %v1109 = vld [vmem:[#allocation2 + $0x40] sm:$0xff]
      %v1110 = vld [vmem:[#allocation2 + $0x48] sm:$0xff]
      %v1111 = vld [vmem:[#allocation2 + $0x50] sm:$0xff]
      %v1112 = vld [vmem:[#allocation2 + $0x58] sm:$0xff]
      %v1113 = vld [vmem:[#allocation2 + $0x60] sm:$0xff]
      %v1114 = vld [vmem:[#allocation2 + $0x68] sm:$0xff]
      %v1115 = vld [vmem:[#allocation2 + $0x70] sm:$0xff]
      %v1116 = vld [vmem:[#allocation2 + $0x78] sm:$0xff]
      %1118 = vset.pattern.permute.xlu0 0
      %1119 = vperm.xlu0 %1118, %v430
      %v1120 = vpop.permute.xlu0 %1119
      %1123 = vset.pattern.permute.xlu0 0
      %1124 = vperm.xlu0 %1123, %v431
      %v1125 = vpop.permute.xlu0 %1124
      %1128 = vset.pattern.permute.xlu0 0
      %1129 = vperm.xlu0 %1128, %v432
      %v1130 = vpop.permute.xlu0 %1129
      %1133 = vset.pattern.permute.xlu0 0
      %1134 = vperm.xlu0 %1133, %v433
      %v1135 = vpop.permute.xlu0 %1134
      %1138 = vset.pattern.permute.xlu0 0
      %1139 = vperm.xlu0 %1138, %v434
      %v1140 = vpop.permute.xlu0 %1139
      %1143 = vset.pattern.permute.xlu0 0
      %1144 = vperm.xlu0 %1143, %v435
      %v1145 = vpop.permute.xlu0 %1144
      %1148 = vset.pattern.permute.xlu0 0
      %1149 = vperm.xlu0 %1148, %v436
      %v1150 = vpop.permute.xlu0 %1149
      %1153 = vset.pattern.permute.xlu0 0
      %1154 = vperm.xlu0 %1153, %v437
      %v1155 = vpop.permute.xlu0 %1154
      %1158 = vset.pattern.permute.xlu0 0
      %1159 = vperm.xlu0 %1158, %v438
      %v1160 = vpop.permute.xlu0 %1159
      %1163 = vset.pattern.permute.xlu0 0
      %1164 = vperm.xlu0 %1163, %v439
      %v1165 = vpop.permute.xlu0 %1164
      %1168 = vset.pattern.permute.xlu0 0
      %1169 = vperm.xlu0 %1168, %v440
      %v1170 = vpop.permute.xlu0 %1169
      %1173 = vset.pattern.permute.xlu0 0
      %1174 = vperm.xlu0 %1173, %v441
      %v1175 = vpop.permute.xlu0 %1174
      %1178 = vset.pattern.permute.xlu0 0
      %1179 = vperm.xlu0 %1178, %v442
      %v1180 = vpop.permute.xlu0 %1179
      %1183 = vset.pattern.permute.xlu0 0
      %1184 = vperm.xlu0 %1183, %v443
      %v1185 = vpop.permute.xlu0 %1184
      %1188 = vset.pattern.permute.xlu0 0
      %1189 = vperm.xlu0 %1188, %v444
      %v1190 = vpop.permute.xlu0 %1189
      %1193 = vset.pattern.permute.xlu0 0
      %1194 = vperm.xlu0 %1193, %v445
      %v1195 = vpop.permute.xlu0 %1194
      %v1197 = vmul.f32 %v1120, %v1039
      %v1198 = vmul.f32 %v1125, %v1042
      %v1199 = vmul.f32 %v1130, %v1047
      %v1200 = vmul.f32 %v1135, %v1050
      %v1201 = vmul.f32 %v1140, %v1055
      %v1202 = vmul.f32 %v1145, %v1058
      %v1203 = vmul.f32 %v1150, %v1063
      %v1204 = vmul.f32 %v1155, %v1066
      %v1205 = vmul.f32 %v1160, %v1071
      %v1206 = vmul.f32 %v1165, %v1074
      %v1207 = vmul.f32 %v1170, %v1079
      %v1208 = vmul.f32 %v1175, %v1082
      %v1209 = vmul.f32 %v1180, %v1087
      %v1210 = vmul.f32 %v1185, %v1090
      %v1211 = vmul.f32 %v1190, %v1095
      %v1212 = vmul.f32 %v1195, %v1098
      %v1213 = vadd.f32 %v1101, %v1197
      %v1214 = vadd.f32 %v1102, %v1198
      %v1215 = vadd.f32 %v1103, %v1199
      %v1216 = vadd.f32 %v1104, %v1200
      %v1217 = vadd.f32 %v1105, %v1201
      %v1218 = vadd.f32 %v1106, %v1202
      %v1219 = vadd.f32 %v1107, %v1203
      %v1220 = vadd.f32 %v1108, %v1204
      %v1221 = vadd.f32 %v1109, %v1205
      %v1222 = vadd.f32 %v1110, %v1206
      %v1223 = vadd.f32 %v1111, %v1207
      %v1224 = vadd.f32 %v1112, %v1208
      %v1225 = vadd.f32 %v1113, %v1209
      %v1226 = vadd.f32 %v1114, %v1210
      %v1227 = vadd.f32 %v1115, %v1211
      %v1228 = vadd.f32 %v1116, %v1212
      %1229 = vst [vmem:[#allocation2] sm:$0xff] %v1213
      %1230 = vst [vmem:[#allocation2 + $0x8] sm:$0xff] %v1214
      %1231 = vst [vmem:[#allocation2 + $0x10] sm:$0xff] %v1215
      %1232 = vst [vmem:[#allocation2 + $0x18] sm:$0xff] %v1216
      %1233 = vst [vmem:[#allocation2 + $0x20] sm:$0xff] %v1217
      %1234 = vst [vmem:[#allocation2 + $0x28] sm:$0xff] %v1218
      %1235 = vst [vmem:[#allocation2 + $0x30] sm:$0xff] %v1219
      %1236 = vst [vmem:[#allocation2 + $0x38] sm:$0xff] %v1220
      %1237 = vst [vmem:[#allocation2 + $0x40] sm:$0xff] %v1221
      %1238 = vst [vmem:[#allocation2 + $0x48] sm:$0xff] %v1222
      %1239 = vst [vmem:[#allocation2 + $0x50] sm:$0xff] %v1223
      %1240 = vst [vmem:[#allocation2 + $0x58] sm:$0xff] %v1224
      %1241 = vst [vmem:[#allocation2 + $0x60] sm:$0xff] %v1225
      %1242 = vst [vmem:[#allocation2 + $0x68] sm:$0xff] %v1226
      %1243 = vst [vmem:[#allocation2 + $0x70] sm:$0xff] %v1227
      %1244 = vst [vmem:[#allocation2 + $0x78] sm:$0xff] %v1228
      %v1245 = vld [vmem:[#allocation3] sm:$0xff]
      %v1246 = vld [vmem:[#allocation3 + $0x8] sm:$0xff]
      %v1247 = vld [vmem:[#allocation3 + $0x10] sm:$0xff]
      %v1248 = vld [vmem:[#allocation3 + $0x18] sm:$0xff]
      %v1249 = vld [vmem:[#allocation3 + $0x20] sm:$0xff]
      %v1250 = vld [vmem:[#allocation3 + $0x28] sm:$0xff]
      %v1251 = vld [vmem:[#allocation3 + $0x30] sm:$0xff]
      %v1252 = vld [vmem:[#allocation3 + $0x38] sm:$0xff]
      %v1253 = vld [vmem:[#allocation3 + $0x40] sm:$0xff]
      %v1254 = vld [vmem:[#allocation3 + $0x48] sm:$0xff]
      %v1255 = vld [vmem:[#allocation3 + $0x50] sm:$0xff]
      %v1256 = vld [vmem:[#allocation3 + $0x58] sm:$0xff]
      %v1257 = vld [vmem:[#allocation3 + $0x60] sm:$0xff]
      %v1258 = vld [vmem:[#allocation3 + $0x68] sm:$0xff]
      %v1259 = vld [vmem:[#allocation3 + $0x70] sm:$0xff]
      %v1260 = vld [vmem:[#allocation3 + $0x78] sm:$0xff]
      %v1261 = vadd.f32 %v1245, %v430
      %v1262 = vadd.f32 %v1246, %v431
      %v1263 = vadd.f32 %v1247, %v432
      %v1264 = vadd.f32 %v1248, %v433
      %v1265 = vadd.f32 %v1249, %v434
      %v1266 = vadd.f32 %v1250, %v435
      %v1267 = vadd.f32 %v1251, %v436
      %v1268 = vadd.f32 %v1252, %v437
      %v1269 = vadd.f32 %v1253, %v438
      %v1270 = vadd.f32 %v1254, %v439
      %v1271 = vadd.f32 %v1255, %v440
      %v1272 = vadd.f32 %v1256, %v441
      %v1273 = vadd.f32 %v1257, %v442
      %v1274 = vadd.f32 %v1258, %v443
      %v1275 = vadd.f32 %v1259, %v444
      %v1276 = vadd.f32 %v1260, %v445
      %1277 = vst.msk [vmem:[#allocation3] sm:$0xff] %vm462, %v1261
      %1278 = vst.msk [vmem:[#allocation3 + $0x8] sm:$0xff] %vm462, %v1262
      %1279 = vst.msk [vmem:[#allocation3 + $0x10] sm:$0xff] %vm462, %v1263
      %1280 = vst.msk [vmem:[#allocation3 + $0x18] sm:$0xff] %vm462, %v1264
      %1281 = vst.msk [vmem:[#allocation3 + $0x20] sm:$0xff] %vm462, %v1265
      %1282 = vst.msk [vmem:[#allocation3 + $0x28] sm:$0xff] %vm462, %v1266
      %1283 = vst.msk [vmem:[#allocation3 + $0x30] sm:$0xff] %vm462, %v1267
      %1284 = vst.msk [vmem:[#allocation3 + $0x38] sm:$0xff] %vm462, %v1268
      %1285 = vst.msk [vmem:[#allocation3 + $0x40] sm:$0xff] %vm462, %v1269
      %1286 = vst.msk [vmem:[#allocation3 + $0x48] sm:$0xff] %vm462, %v1270
      %1287 = vst.msk [vmem:[#allocation3 + $0x50] sm:$0xff] %vm462, %v1271
      %1288 = vst.msk [vmem:[#allocation3 + $0x58] sm:$0xff] %vm462, %v1272
      %1289 = vst.msk [vmem:[#allocation3 + $0x60] sm:$0xff] %vm462, %v1273
      %1290 = vst.msk [vmem:[#allocation3 + $0x68] sm:$0xff] %vm462, %v1274
      %1291 = vst.msk [vmem:[#allocation3 + $0x70] sm:$0xff] %vm462, %v1275
      %1292 = vst.msk [vmem:[#allocation3 + $0x78] sm:$0xff] %vm462, %v1276
    $region57: #{tpu_custom_call.1} parent=1 // pred_fallthru
      _
    %s1293 = sadd.s32 %s479, 1
    %s1294 = sld [smem:[#allocation5 + %s1293]]
    %p1295 = scmp.gt.s32.totalorder %s1294, 0
    // Predicated region
    $region58: #{tpu_custom_call.1} parent=1 // pred_check
      %p1296 = pneg %p1295
    $region59: #{tpu_custom_call.1} parent=1 // pred_check_branch
      %1298 = sbr.rel (%p1296) target = $region61
    $region60: #{tpu_custom_call.1} parent=1 // pred_region
      %s1299 = scalar_lea.vmem [#allocation6], 64
      %v1300 = vld [vmem:[%s1299] sm:$0xf]
      %v1301 = vld [vmem:[%s1299 + $0x4] sm:$0xf]
      %v1302 = vld [vmem:[%s1299 + $0x8] sm:$0xf]
      %v1303 = vld [vmem:[%s1299 + $0xc] sm:$0xf]
      %v1304 = vld [vmem:[%s1299 + $0x10] sm:$0xf]
      %v1305 = vld [vmem:[%s1299 + $0x14] sm:$0xf]
      %v1306 = vld [vmem:[%s1299 + $0x18] sm:$0xf]
      %v1307 = vld [vmem:[%s1299 + $0x1c] sm:$0xf]
      %v1308 = vld [vmem:[%s1299 + $0x20] sm:$0xf]
      %v1309 = vld [vmem:[%s1299 + $0x24] sm:$0xf]
      %v1310 = vld [vmem:[%s1299 + $0x28] sm:$0xf]
      %v1311 = vld [vmem:[%s1299 + $0x2c] sm:$0xf]
      %v1312 = vld [vmem:[%s1299 + $0x30] sm:$0xf]
      %v1313 = vld [vmem:[%s1299 + $0x34] sm:$0xf]
      %v1314 = vld [vmem:[%s1299 + $0x38] sm:$0xf]
      %v1315 = vld [vmem:[%s1299 + $0x3c] sm:$0xf]
      %s1316 = scalar_lea.vmem %s6, 1
      %v1317 = vld [vmem:[%s1316] sm:$0x1]
      %v1319 = vlaneseq
      %v1320 = vshrl.u32 %v1319, 7
      %v1321 = vsub.s32 0, %v1320
      %v1322 = vrot.slane %v1317, %v1321
      %v1340 = vunpack.c.l.b16 %v1300
      %v1341 = vunpack.c.l.b16 %v1301
      %v1342 = vunpack.c.l.b16 %v1302
      %v1343 = vunpack.c.l.b16 %v1303
      %v1344 = vunpack.c.l.b16 %v1304
      %v1345 = vunpack.c.l.b16 %v1305
      %v1346 = vunpack.c.l.b16 %v1306
      %v1347 = vunpack.c.l.b16 %v1307
      %v1348 = vunpack.c.l.b16 %v1308
      %v1349 = vunpack.c.l.b16 %v1309
      %v1350 = vunpack.c.l.b16 %v1310
      %v1351 = vunpack.c.l.b16 %v1311
      %v1352 = vunpack.c.l.b16 %v1312
      %v1353 = vunpack.c.l.b16 %v1313
      %v1354 = vunpack.c.l.b16 %v1314
      %v1355 = vunpack.c.l.b16 %v1315
      %v1356 = vpack.c.b16 %v1341, %v1340
      %v1357 = vpack.c.b16 %v1343, %v1342
      %v1358 = vpack.c.b16 %v1345, %v1344
      %v1359 = vpack.c.b16 %v1347, %v1346
      %v1360 = vpack.c.b16 %v1349, %v1348
      %v1361 = vpack.c.b16 %v1351, %v1350
      %v1362 = vpack.c.b16 %v1353, %v1352
      %v1363 = vpack.c.b16 %v1355, %v1354
      %1372 = vmatprep.subr.bf16.mxu0 0
      %1373 = vmatpush1.bf16.msra.mxu0 %v1356
      %1374 = vmatprep.subr.bf16.mxu0 0
      %1375 = vmatpush1.bf16.msra.mxu0 %v1357
      %1376 = vmatprep.subr.bf16.mxu0 0
      %1377 = vmatpush1.bf16.msra.mxu0 %v1358
      %1378 = vmatprep.subr.bf16.mxu0 0
      %1379 = vmatpush1.bf16.msra.mxu0 %v1359
      %1380 = vmatprep.subr.bf16.mxu0 0
      %1381 = vmatpush1.bf16.msra.mxu0 %v1360
      %1382 = vmatprep.subr.bf16.mxu0 0
      %1383 = vmatpush1.bf16.msra.mxu0 %v1361
      %1384 = vmatprep.subr.bf16.mxu0 0
      %1385 = vmatpush1.bf16.msra.mxu0 %v1362
      %1386 = vmatprep.subr.bf16.mxu0 0
      %1387 = vmatpush1.bf16.msra.mxu0 %v1363
      %1388 = vmatprep.subr.bf16.mxu0 0
      %1389 = vmatpush1.bf16.msra.mxu0 0
      %1390 = vmatprep.subr.bf16.mxu0 0
      %1391 = vmatpush1.bf16.msra.mxu0 0
      %1392 = vmatprep.subr.bf16.mxu0 0
      %1393 = vmatpush1.bf16.msra.mxu0 0
      %1394 = vmatprep.subr.bf16.mxu0 0
      %1395 = vmatpush1.bf16.msra.mxu0 0
      %1396 = vmatprep.subr.bf16.mxu0 0
      %1397 = vmatpush1.bf16.msra.mxu0 0
      %1398 = vmatprep.subr.bf16.mxu0 0
      %1399 = vmatpush1.bf16.msra.mxu0 0
      %1400 = vmatprep.subr.bf16.mxu0 0
      %1401 = vmatpush1.bf16.msra.mxu0 0
      %1402 = vmatprep.subr.bf16.mxu0 0
      %1403 = vmatpush1.bf16.msra.mxu0 0
      %1404 = vmatprep.mubr.bf16.mxu0 0
      %1405 = vmatmul.mubr.bf16.gmra.mrb[0].mxu0 %v156
      %v1406 = vpop.f32.mrb[0].mxu0
      %v1407 = vadd.f32 %v1322, %v1406
      %v1408 = vpop.f32.mrb[0].mxu0
      %v1409 = vpop.f32.mrb[0].mxu0
      %v1410 = vadd.f32 %v1322, %v1409
      %v1411 = vpop.f32.mrb[0].mxu0
      %1412 = vmatprep.mubr.bf16.mxu0 0
      %1413 = vmatmul.mubr.bf16.gmra.mrb[0].mxu0 %v157
      %v1414 = vpop.f32.mrb[0].mxu0
      %v1415 = vadd.f32 %v1322, %v1414
      %v1416 = vpop.f32.mrb[0].mxu0
      %v1417 = vpop.f32.mrb[0].mxu0
      %v1418 = vadd.f32 %v1322, %v1417
      %v1419 = vpop.f32.mrb[0].mxu0
      %1420 = vmatprep.mubr.bf16.mxu0 0
      %1421 = vmatmul.mubr.bf16.gmra.mrb[0].mxu0 %v158
      %v1422 = vpop.f32.mrb[0].mxu0
      %v1423 = vadd.f32 %v1322, %v1422
      %v1424 = vpop.f32.mrb[0].mxu0
      %v1425 = vpop.f32.mrb[0].mxu0
      %v1426 = vadd.f32 %v1322, %v1425
      %v1427 = vpop.f32.mrb[0].mxu0
      %1428 = vmatprep.mubr.bf16.mxu0 0
      %1429 = vmatmul.mubr.bf16.gmra.mrb[0].mxu0 %v159
      %v1430 = vpop.f32.mrb[0].mxu0
      %v1431 = vadd.f32 %v1322, %v1430
      %v1432 = vpop.f32.mrb[0].mxu0
      %v1433 = vpop.f32.mrb[0].mxu0
      %v1434 = vadd.f32 %v1322, %v1433
      %v1435 = vpop.f32.mrb[0].mxu0
      %1436 = vmatprep.mubr.bf16.mxu0 0
      %1437 = vmatmul.mubr.bf16.gmra.mrb[0].mxu0 %v160
      %v1438 = vpop.f32.mrb[0].mxu0
      %v1439 = vadd.f32 %v1322, %v1438
      %v1440 = vpop.f32.mrb[0].mxu0
      %v1441 = vpop.f32.mrb[0].mxu0
      %v1442 = vadd.f32 %v1322, %v1441
      %v1443 = vpop.f32.mrb[0].mxu0
      %1444 = vmatprep.mubr.bf16.mxu0 0
      %1445 = vmatmul.mubr.bf16.gmra.mrb[0].mxu0 %v161
      %v1446 = vpop.f32.mrb[0].mxu0
      %v1447 = vadd.f32 %v1322, %v1446
      %v1448 = vpop.f32.mrb[0].mxu0
      %v1449 = vpop.f32.mrb[0].mxu0
      %v1450 = vadd.f32 %v1322, %v1449
      %v1451 = vpop.f32.mrb[0].mxu0
      %1452 = vmatprep.mubr.bf16.mxu0 0
      %1453 = vmatmul.mubr.bf16.gmra.mrb[0].mxu0 %v162
      %v1454 = vpop.f32.mrb[0].mxu0
      %v1455 = vadd.f32 %v1322, %v1454
      %v1456 = vpop.f32.mrb[0].mxu0
      %v1457 = vpop.f32.mrb[0].mxu0
      %v1458 = vadd.f32 %v1322, %v1457
      %v1459 = vpop.f32.mrb[0].mxu0
      %1460 = vmatprep.mubr.bf16.mxu0 0
      %1461 = vmatmul.mubr.bf16.gmra.mrb[0].mxu0 %v163
      %v1462 = vpop.f32.mrb[0].mxu0
      %v1463 = vadd.f32 %v1322, %v1462
      %v1464 = vpop.f32.mrb[0].mxu0
      %v1465 = vpop.f32.mrb[0].mxu0
      %v1466 = vadd.f32 %v1322, %v1465
      %v1467 = vpop.f32.mrb[0].mxu0
      %1468 = vdwg.mxu0
      %vm1469 = vcmp.gt.f32.partialorder %v1407, 0.0
      %vm1470 = vcmp.gt.f32.partialorder %v1410, 0.0
      %vm1471 = vcmp.gt.f32.partialorder %v1415, 0.0
      %vm1472 = vcmp.gt.f32.partialorder %v1418, 0.0
      %vm1473 = vcmp.gt.f32.partialorder %v1423, 0.0
      %vm1474 = vcmp.gt.f32.partialorder %v1426, 0.0
      %vm1475 = vcmp.gt.f32.partialorder %v1431, 0.0
      %vm1476 = vcmp.gt.f32.partialorder %v1434, 0.0
      %vm1477 = vcmp.gt.f32.partialorder %v1439, 0.0
      %vm1478 = vcmp.gt.f32.partialorder %v1442, 0.0
      %vm1479 = vcmp.gt.f32.partialorder %v1447, 0.0
      %vm1480 = vcmp.gt.f32.partialorder %v1450, 0.0
      %vm1481 = vcmp.gt.f32.partialorder %v1455, 0.0
      %vm1482 = vcmp.gt.f32.partialorder %v1458, 0.0
      %vm1483 = vcmp.gt.f32.partialorder %v1463, 0.0
      %vm1484 = vcmp.gt.f32.partialorder %v1466, 0.0
      %v1485 = vmul.f32 %v1407, 0.01
      %v1486 = vmul.f32 %v1410, 0.01
      %v1487 = vmul.f32 %v1415, 0.01
      %v1488 = vmul.f32 %v1418, 0.01
      %v1489 = vmul.f32 %v1423, 0.01
      %v1490 = vmul.f32 %v1426, 0.01
      %v1491 = vmul.f32 %v1431, 0.01
      %v1492 = vmul.f32 %v1434, 0.01
      %v1493 = vmul.f32 %v1439, 0.01
      %v1494 = vmul.f32 %v1442, 0.01
      %v1495 = vmul.f32 %v1447, 0.01
      %v1496 = vmul.f32 %v1450, 0.01
      %v1497 = vmul.f32 %v1455, 0.01
      %v1498 = vmul.f32 %v1458, 0.01
      %v1499 = vmul.f32 %v1463, 0.01
      %v1500 = vmul.f32 %v1466, 0.01
      %v1501 = vsel %vm1469, %v1407, %v1485
      %v1502 = vsel %vm1470, %v1410, %v1486
      %v1503 = vsel %vm1471, %v1415, %v1487
      %v1504 = vsel %vm1472, %v1418, %v1488
      %v1505 = vsel %vm1473, %v1423, %v1489
      %v1506 = vsel %vm1474, %v1426, %v1490
      %v1507 = vsel %vm1475, %v1431, %v1491
      %v1508 = vsel %vm1476, %v1434, %v1492
      %v1509 = vsel %vm1477, %v1439, %v1493
      %v1510 = vsel %vm1478, %v1442, %v1494
      %v1511 = vsel %vm1479, %v1447, %v1495
      %v1512 = vsel %vm1480, %v1450, %v1496
      %v1513 = vsel %vm1481, %v1455, %v1497
      %v1514 = vsel %vm1482, %v1458, %v1498
      %v1515 = vsel %vm1483, %v1463, %v1499
      %v1516 = vsel %vm1484, %v1466, %v1500
      %v1517 = vpack.c.bf16 %v1502, %v1501
      %v1518 = vpack.c.bf16 %v1504, %v1503
      %v1519 = vpack.c.bf16 %v1506, %v1505
      %v1520 = vpack.c.bf16 %v1508, %v1507
      %v1521 = vpack.c.bf16 %v1510, %v1509
      %v1522 = vpack.c.bf16 %v1512, %v1511
      %v1523 = vpack.c.bf16 %v1514, %v1513
      %v1524 = vpack.c.bf16 %v1516, %v1515
      %s1525 = scalar_lea.vmem [#allocation9], 64
      %v1526 = vld [vmem:[%s1525] sm:$0xf]
      %v1527 = vld [vmem:[%s1525 + $0x4] sm:$0xf]
      %v1528 = vld [vmem:[%s1525 + $0x8] sm:$0xf]
      %v1529 = vld [vmem:[%s1525 + $0xc] sm:$0xf]
      %v1530 = vld [vmem:[%s1525 + $0x10] sm:$0xf]
      %v1531 = vld [vmem:[%s1525 + $0x14] sm:$0xf]
      %v1532 = vld [vmem:[%s1525 + $0x18] sm:$0xf]
      %v1533 = vld [vmem:[%s1525 + $0x1c] sm:$0xf]
      %v1534 = vld [vmem:[%s1525 + $0x20] sm:$0xf]
      %v1535 = vld [vmem:[%s1525 + $0x24] sm:$0xf]
      %v1536 = vld [vmem:[%s1525 + $0x28] sm:$0xf]
      %v1537 = vld [vmem:[%s1525 + $0x2c] sm:$0xf]
      %v1538 = vld [vmem:[%s1525 + $0x30] sm:$0xf]
      %v1539 = vld [vmem:[%s1525 + $0x34] sm:$0xf]
      %v1540 = vld [vmem:[%s1525 + $0x38] sm:$0xf]
      %v1541 = vld [vmem:[%s1525 + $0x3c] sm:$0xf]
      %s1542 = scalar_lea.vmem %s8, 1
      %v1543 = vld [vmem:[%s1542] sm:$0x1]
      %v1545 = vlaneseq
      %v1546 = vshrl.u32 %v1545, 7
      %v1547 = vsub.s32 0, %v1546
      %v1548 = vrot.slane %v1543, %v1547
      %v1566 = vunpack.c.l.b16 %v1526
      %v1567 = vunpack.c.l.b16 %v1527
      %v1568 = vunpack.c.l.b16 %v1528
      %v1569 = vunpack.c.l.b16 %v1529
      %v1570 = vunpack.c.l.b16 %v1530
      %v1571 = vunpack.c.l.b16 %v1531
      %v1572 = vunpack.c.l.b16 %v1532
      %v1573 = vunpack.c.l.b16 %v1533
      %v1574 = vunpack.c.l.b16 %v1534
      %v1575 = vunpack.c.l.b16 %v1535
      %v1576 = vunpack.c.l.b16 %v1536
      %v1577 = vunpack.c.l.b16 %v1537
      %v1578 = vunpack.c.l.b16 %v1538
      %v1579 = vunpack.c.l.b16 %v1539
      %v1580 = vunpack.c.l.b16 %v1540
      %v1581 = vunpack.c.l.b16 %v1541
      %v1582 = vpack.c.b16 %v1567, %v1566
      %v1583 = vpack.c.b16 %v1569, %v1568
      %v1584 = vpack.c.b16 %v1571, %v1570
      %v1585 = vpack.c.b16 %v1573, %v1572
      %v1586 = vpack.c.b16 %v1575, %v1574
      %v1587 = vpack.c.b16 %v1577, %v1576
      %v1588 = vpack.c.b16 %v1579, %v1578
      %v1589 = vpack.c.b16 %v1581, %v1580
      %1598 = vmatprep.subr.bf16.mxu0 0
      %1599 = vmatpush1.bf16.msra.mxu0 %v1582
      %1600 = vmatprep.subr.bf16.mxu0 0
      %1601 = vmatpush1.bf16.msra.mxu0 %v1583
      %1602 = vmatprep.subr.bf16.mxu0 0
      %1603 = vmatpush1.bf16.msra.mxu0 %v1584
      %1604 = vmatprep.subr.bf16.mxu0 0
      %1605 = vmatpush1.bf16.msra.mxu0 %v1585
      %1606 = vmatprep.subr.bf16.mxu0 0
      %1607 = vmatpush1.bf16.msra.mxu0 %v1586
      %1608 = vmatprep.subr.bf16.mxu0 0
      %1609 = vmatpush1.bf16.msra.mxu0 %v1587
      %1610 = vmatprep.subr.bf16.mxu0 0
      %1611 = vmatpush1.bf16.msra.mxu0 %v1588
      %1612 = vmatprep.subr.bf16.mxu0 0
      %1613 = vmatpush1.bf16.msra.mxu0 %v1589
      %1614 = vmatprep.subr.bf16.mxu0 0
      %1615 = vmatpush1.bf16.msra.mxu0 0
      %1616 = vmatprep.subr.bf16.mxu0 0
      %1617 = vmatpush1.bf16.msra.mxu0 0
      %1618 = vmatprep.subr.bf16.mxu0 0
      %1619 = vmatpush1.bf16.msra.mxu0 0
      %1620 = vmatprep.subr.bf16.mxu0 0
      %1621 = vmatpush1.bf16.msra.mxu0 0
      %1622 = vmatprep.subr.bf16.mxu0 0
      %1623 = vmatpush1.bf16.msra.mxu0 0
      %1624 = vmatprep.subr.bf16.mxu0 0
      %1625 = vmatpush1.bf16.msra.mxu0 0
      %1626 = vmatprep.subr.bf16.mxu0 0
      %1627 = vmatpush1.bf16.msra.mxu0 0
      %1628 = vmatprep.subr.bf16.mxu0 0
      %1629 = vmatpush1.bf16.msra.mxu0 0
      %1630 = vmatprep.mubr.bf16.mxu0 0
      %1631 = vmatmul.mubr.bf16.gmra.mrb[0].mxu0 %v1517
      %v1632 = vpop.f32.mrb[0].mxu0
      %v1633 = vadd.f32 %v1548, %v1632
      %v1634 = vpop.f32.mrb[0].mxu0
      %v1635 = vpop.f32.mrb[0].mxu0
      %v1636 = vadd.f32 %v1548, %v1635
      %v1637 = vpop.f32.mrb[0].mxu0
      %1638 = vmatprep.mubr.bf16.mxu0 0
      %1639 = vmatmul.mubr.bf16.gmra.mrb[0].mxu0 %v1518
      %v1640 = vpop.f32.mrb[0].mxu0
      %v1641 = vadd.f32 %v1548, %v1640
      %v1642 = vpop.f32.mrb[0].mxu0
      %v1643 = vpop.f32.mrb[0].mxu0
      %v1644 = vadd.f32 %v1548, %v1643
      %v1645 = vpop.f32.mrb[0].mxu0
      %1646 = vmatprep.mubr.bf16.mxu0 0
      %1647 = vmatmul.mubr.bf16.gmra.mrb[0].mxu0 %v1519
      %v1648 = vpop.f32.mrb[0].mxu0
      %v1649 = vadd.f32 %v1548, %v1648
      %v1650 = vpop.f32.mrb[0].mxu0
      %v1651 = vpop.f32.mrb[0].mxu0
      %v1652 = vadd.f32 %v1548, %v1651
      %v1653 = vpop.f32.mrb[0].mxu0
      %1654 = vmatprep.mubr.bf16.mxu0 0
      %1655 = vmatmul.mubr.bf16.gmra.mrb[0].mxu0 %v1520
      %v1656 = vpop.f32.mrb[0].mxu0
      %v1657 = vadd.f32 %v1548, %v1656
      %v1658 = vpop.f32.mrb[0].mxu0
      %v1659 = vpop.f32.mrb[0].mxu0
      %v1660 = vadd.f32 %v1548, %v1659
      %v1661 = vpop.f32.mrb[0].mxu0
      %1662 = vmatprep.mubr.bf16.mxu0 0
      %1663 = vmatmul.mubr.bf16.gmra.mrb[0].mxu0 %v1521
      %v1664 = vpop.f32.mrb[0].mxu0
      %v1665 = vadd.f32 %v1548, %v1664
      %v1666 = vpop.f32.mrb[0].mxu0
      %v1667 = vpop.f32.mrb[0].mxu0
      %v1668 = vadd.f32 %v1548, %v1667
      %v1669 = vpop.f32.mrb[0].mxu0
      %1670 = vmatprep.mubr.bf16.mxu0 0
      %1671 = vmatmul.mubr.bf16.gmra.mrb[0].mxu0 %v1522
      %v1672 = vpop.f32.mrb[0].mxu0
      %v1673 = vadd.f32 %v1548, %v1672
      %v1674 = vpop.f32.mrb[0].mxu0
      %v1675 = vpop.f32.mrb[0].mxu0
      %v1676 = vadd.f32 %v1548, %v1675
      %v1677 = vpop.f32.mrb[0].mxu0
      %1678 = vmatprep.mubr.bf16.mxu0 0
      %1679 = vmatmul.mubr.bf16.gmra.mrb[0].mxu0 %v1523
      %v1680 = vpop.f32.mrb[0].mxu0
      %v1681 = vadd.f32 %v1548, %v1680
      %v1682 = vpop.f32.mrb[0].mxu0
      %v1683 = vpop.f32.mrb[0].mxu0
      %v1684 = vadd.f32 %v1548, %v1683
      %v1685 = vpop.f32.mrb[0].mxu0
      %1686 = vmatprep.mubr.bf16.mxu0 0
      %1687 = vmatmul.mubr.bf16.gmra.mrb[0].mxu0 %v1524
      %v1688 = vpop.f32.mrb[0].mxu0
      %v1689 = vadd.f32 %v1548, %v1688
      %v1690 = vpop.f32.mrb[0].mxu0
      %v1691 = vpop.f32.mrb[0].mxu0
      %v1692 = vadd.f32 %v1548, %v1691
      %v1693 = vpop.f32.mrb[0].mxu0
      %1694 = vdwg.mxu0
      %vm1695 = vcmp.gt.f32.partialorder %v1633, 0.0
      %vm1696 = vcmp.gt.f32.partialorder %v1636, 0.0
      %vm1697 = vcmp.gt.f32.partialorder %v1641, 0.0
      %vm1698 = vcmp.gt.f32.partialorder %v1644, 0.0
      %vm1699 = vcmp.gt.f32.partialorder %v1649, 0.0
      %vm1700 = vcmp.gt.f32.partialorder %v1652, 0.0
      %vm1701 = vcmp.gt.f32.partialorder %v1657, 0.0
      %vm1702 = vcmp.gt.f32.partialorder %v1660, 0.0
      %vm1703 = vcmp.gt.f32.partialorder %v1665, 0.0
      %vm1704 = vcmp.gt.f32.partialorder %v1668, 0.0
      %vm1705 = vcmp.gt.f32.partialorder %v1673, 0.0
      %vm1706 = vcmp.gt.f32.partialorder %v1676, 0.0
      %vm1707 = vcmp.gt.f32.partialorder %v1681, 0.0
      %vm1708 = vcmp.gt.f32.partialorder %v1684, 0.0
      %vm1709 = vcmp.gt.f32.partialorder %v1689, 0.0
      %vm1710 = vcmp.gt.f32.partialorder %v1692, 0.0
      %v1711 = vmul.f32 %v1633, 0.01
      %v1712 = vmul.f32 %v1636, 0.01
      %v1713 = vmul.f32 %v1641, 0.01
      %v1714 = vmul.f32 %v1644, 0.01
      %v1715 = vmul.f32 %v1649, 0.01
      %v1716 = vmul.f32 %v1652, 0.01
      %v1717 = vmul.f32 %v1657, 0.01
      %v1718 = vmul.f32 %v1660, 0.01
      %v1719 = vmul.f32 %v1665, 0.01
      %v1720 = vmul.f32 %v1668, 0.01
      %v1721 = vmul.f32 %v1673, 0.01
      %v1722 = vmul.f32 %v1676, 0.01
      %v1723 = vmul.f32 %v1681, 0.01
      %v1724 = vmul.f32 %v1684, 0.01
      %v1725 = vmul.f32 %v1689, 0.01
      %v1726 = vmul.f32 %v1692, 0.01
      %v1727 = vsel %vm1695, %v1633, %v1711
      %v1728 = vsel %vm1696, %v1636, %v1712
      %v1729 = vsel %vm1697, %v1641, %v1713
      %v1730 = vsel %vm1698, %v1644, %v1714
      %v1731 = vsel %vm1699, %v1649, %v1715
      %v1732 = vsel %vm1700, %v1652, %v1716
      %v1733 = vsel %vm1701, %v1657, %v1717
      %v1734 = vsel %vm1702, %v1660, %v1718
      %v1735 = vsel %vm1703, %v1665, %v1719
      %v1736 = vsel %vm1704, %v1668, %v1720
      %v1737 = vsel %vm1705, %v1673, %v1721
      %v1738 = vsel %vm1706, %v1676, %v1722
      %v1739 = vsel %vm1707, %v1681, %v1723
      %v1740 = vsel %vm1708, %v1684, %v1724
      %v1741 = vsel %vm1709, %v1689, %v1725
      %v1742 = vsel %vm1710, %v1692, %v1726
      %v1743 = vpack.c.bf16 %v1728, %v1727
      %v1744 = vpack.c.bf16 %v1730, %v1729
      %v1745 = vpack.c.bf16 %v1732, %v1731
      %v1746 = vpack.c.bf16 %v1734, %v1733
      %v1747 = vpack.c.bf16 %v1736, %v1735
      %v1748 = vpack.c.bf16 %v1738, %v1737
      %v1749 = vpack.c.bf16 %v1740, %v1739
      %v1750 = vpack.c.bf16 %v1742, %v1741
      %s1751 = scalar_lea.vmem [#allocation11], 64
      %v1752 = vld [vmem:[%s1751] sm:$0xf]
      %v1753 = vld [vmem:[%s1751 + $0x4] sm:$0xf]
      %v1754 = vld [vmem:[%s1751 + $0x8] sm:$0xf]
      %v1755 = vld [vmem:[%s1751 + $0xc] sm:$0xf]
      %v1756 = vld [vmem:[%s1751 + $0x10] sm:$0xf]
      %v1757 = vld [vmem:[%s1751 + $0x14] sm:$0xf]
      %v1758 = vld [vmem:[%s1751 + $0x18] sm:$0xf]
      %v1759 = vld [vmem:[%s1751 + $0x1c] sm:$0xf]
      %v1760 = vld [vmem:[%s1751 + $0x20] sm:$0xf]
      %v1761 = vld [vmem:[%s1751 + $0x24] sm:$0xf]
      %v1762 = vld [vmem:[%s1751 + $0x28] sm:$0xf]
      %v1763 = vld [vmem:[%s1751 + $0x2c] sm:$0xf]
      %v1764 = vld [vmem:[%s1751 + $0x30] sm:$0xf]
      %v1765 = vld [vmem:[%s1751 + $0x34] sm:$0xf]
      %v1766 = vld [vmem:[%s1751 + $0x38] sm:$0xf]
      %v1767 = vld [vmem:[%s1751 + $0x3c] sm:$0xf]
      %s1768 = scalar_lea.vmem %s10, 1
      %v1769 = vld [vmem:[%s1768] sm:$0x1]
      %v1771 = vlaneseq
      %v1772 = vshrl.u32 %v1771, 7
      %v1773 = vsub.s32 0, %v1772
      %v1774 = vrot.slane %v1769, %v1773
      %v1792 = vunpack.c.l.b16 %v1752
      %v1793 = vunpack.c.l.b16 %v1753
      %v1794 = vunpack.c.l.b16 %v1754
      %v1795 = vunpack.c.l.b16 %v1755
      %v1796 = vunpack.c.l.b16 %v1756
      %v1797 = vunpack.c.l.b16 %v1757
      %v1798 = vunpack.c.l.b16 %v1758
      %v1799 = vunpack.c.l.b16 %v1759
      %v1800 = vunpack.c.l.b16 %v1760
      %v1801 = vunpack.c.l.b16 %v1761
      %v1802 = vunpack.c.l.b16 %v1762
      %v1803 = vunpack.c.l.b16 %v1763
      %v1804 = vunpack.c.l.b16 %v1764
      %v1805 = vunpack.c.l.b16 %v1765
      %v1806 = vunpack.c.l.b16 %v1766
      %v1807 = vunpack.c.l.b16 %v1767
      %v1808 = vpack.c.b16 %v1793, %v1792
      %v1809 = vpack.c.b16 %v1795, %v1794
      %v1810 = vpack.c.b16 %v1797, %v1796
      %v1811 = vpack.c.b16 %v1799, %v1798
      %v1812 = vpack.c.b16 %v1801, %v1800
      %v1813 = vpack.c.b16 %v1803, %v1802
      %v1814 = vpack.c.b16 %v1805, %v1804
      %v1815 = vpack.c.b16 %v1807, %v1806
      %1824 = vmatprep.subr.bf16.mxu0 0
      %1825 = vmatpush1.bf16.msra.mxu0 %v1808
      %1826 = vmatprep.subr.bf16.mxu0 0
      %1827 = vmatpush1.bf16.msra.mxu0 %v1809
      %1828 = vmatprep.subr.bf16.mxu0 0
      %1829 = vmatpush1.bf16.msra.mxu0 %v1810
      %1830 = vmatprep.subr.bf16.mxu0 0
      %1831 = vmatpush1.bf16.msra.mxu0 %v1811
      %1832 = vmatprep.subr.bf16.mxu0 0
      %1833 = vmatpush1.bf16.msra.mxu0 %v1812
      %1834 = vmatprep.subr.bf16.mxu0 0
      %1835 = vmatpush1.bf16.msra.mxu0 %v1813
      %1836 = vmatprep.subr.bf16.mxu0 0
      %1837 = vmatpush1.bf16.msra.mxu0 %v1814
      %1838 = vmatprep.subr.bf16.mxu0 0
      %1839 = vmatpush1.bf16.msra.mxu0 %v1815
      %1840 = vmatprep.subr.bf16.mxu0 0
      %1841 = vmatpush1.bf16.msra.mxu0 0
      %1842 = vmatprep.subr.bf16.mxu0 0
      %1843 = vmatpush1.bf16.msra.mxu0 0
      %1844 = vmatprep.subr.bf16.mxu0 0
      %1845 = vmatpush1.bf16.msra.mxu0 0
      %1846 = vmatprep.subr.bf16.mxu0 0
      %1847 = vmatpush1.bf16.msra.mxu0 0
      %1848 = vmatprep.subr.bf16.mxu0 0
      %1849 = vmatpush1.bf16.msra.mxu0 0
      %1850 = vmatprep.subr.bf16.mxu0 0
      %1851 = vmatpush1.bf16.msra.mxu0 0
      %1852 = vmatprep.subr.bf16.mxu0 0
      %1853 = vmatpush1.bf16.msra.mxu0 0
      %1854 = vmatprep.subr.bf16.mxu0 0
      %1855 = vmatpush1.bf16.msra.mxu0 0
      %1856 = vmatprep.mubr.bf16.mxu0 0
      %1857 = vmatmul.mubr.bf16.gmra.mrb[0].mxu0 %v1743
      %v1858 = vpop.f32.mrb[0].mxu0
      %v1859 = vadd.f32 %v1774, %v1858
      %v1860 = vpop.f32.mrb[0].mxu0
      %v1861 = vpop.f32.mrb[0].mxu0
      %v1862 = vadd.f32 %v1774, %v1861
      %v1863 = vpop.f32.mrb[0].mxu0
      %1864 = vmatprep.mubr.bf16.mxu0 0
      %1865 = vmatmul.mubr.bf16.gmra.mrb[0].mxu0 %v1744
      %v1866 = vpop.f32.mrb[0].mxu0
      %v1867 = vadd.f32 %v1774, %v1866
      %v1868 = vpop.f32.mrb[0].mxu0
      %v1869 = vpop.f32.mrb[0].mxu0
      %v1870 = vadd.f32 %v1774, %v1869
      %v1871 = vpop.f32.mrb[0].mxu0
      %1872 = vmatprep.mubr.bf16.mxu0 0
      %1873 = vmatmul.mubr.bf16.gmra.mrb[0].mxu0 %v1745
      %v1874 = vpop.f32.mrb[0].mxu0
      %v1875 = vadd.f32 %v1774, %v1874
      %v1876 = vpop.f32.mrb[0].mxu0
      %v1877 = vpop.f32.mrb[0].mxu0
      %v1878 = vadd.f32 %v1774, %v1877
      %v1879 = vpop.f32.mrb[0].mxu0
      %1880 = vmatprep.mubr.bf16.mxu0 0
      %1881 = vmatmul.mubr.bf16.gmra.mrb[0].mxu0 %v1746
      %v1882 = vpop.f32.mrb[0].mxu0
      %v1883 = vadd.f32 %v1774, %v1882
      %v1884 = vpop.f32.mrb[0].mxu0
      %v1885 = vpop.f32.mrb[0].mxu0
      %v1886 = vadd.f32 %v1774, %v1885
      %v1887 = vpop.f32.mrb[0].mxu0
      %1888 = vmatprep.mubr.bf16.mxu0 0
      %1889 = vmatmul.mubr.bf16.gmra.mrb[0].mxu0 %v1747
      %v1890 = vpop.f32.mrb[0].mxu0
      %v1891 = vadd.f32 %v1774, %v1890
      %v1892 = vpop.f32.mrb[0].mxu0
      %v1893 = vpop.f32.mrb[0].mxu0
      %v1894 = vadd.f32 %v1774, %v1893
      %v1895 = vpop.f32.mrb[0].mxu0
      %1896 = vmatprep.mubr.bf16.mxu0 0
      %1897 = vmatmul.mubr.bf16.gmra.mrb[0].mxu0 %v1748
      %v1898 = vpop.f32.mrb[0].mxu0
      %v1899 = vadd.f32 %v1774, %v1898
      %v1900 = vpop.f32.mrb[0].mxu0
      %v1901 = vpop.f32.mrb[0].mxu0
      %v1902 = vadd.f32 %v1774, %v1901
      %v1903 = vpop.f32.mrb[0].mxu0
      %1904 = vmatprep.mubr.bf16.mxu0 0
      %1905 = vmatmul.mubr.bf16.gmra.mrb[0].mxu0 %v1749
      %v1906 = vpop.f32.mrb[0].mxu0
      %v1907 = vadd.f32 %v1774, %v1906
      %v1908 = vpop.f32.mrb[0].mxu0
      %v1909 = vpop.f32.mrb[0].mxu0
      %v1910 = vadd.f32 %v1774, %v1909
      %v1911 = vpop.f32.mrb[0].mxu0
      %1912 = vmatprep.mubr.bf16.mxu0 0
      %1913 = vmatmul.mubr.bf16.gmra.mrb[0].mxu0 %v1750
      %v1914 = vpop.f32.mrb[0].mxu0
      %v1915 = vadd.f32 %v1774, %v1914
      %v1916 = vpop.f32.mrb[0].mxu0
      %v1917 = vpop.f32.mrb[0].mxu0
      %v1918 = vadd.f32 %v1774, %v1917
      %v1919 = vpop.f32.mrb[0].mxu0
      %1920 = vdwg.mxu0
      %v1921 = vld [vmem:[#allocation2] sm:$0xff]
      %v1922 = vld [vmem:[#allocation2 + $0x8] sm:$0xff]
      %v1923 = vld [vmem:[#allocation2 + $0x10] sm:$0xff]
      %v1924 = vld [vmem:[#allocation2 + $0x18] sm:$0xff]
      %v1925 = vld [vmem:[#allocation2 + $0x20] sm:$0xff]
      %v1926 = vld [vmem:[#allocation2 + $0x28] sm:$0xff]
      %v1927 = vld [vmem:[#allocation2 + $0x30] sm:$0xff]
      %v1928 = vld [vmem:[#allocation2 + $0x38] sm:$0xff]
      %v1929 = vld [vmem:[#allocation2 + $0x40] sm:$0xff]
      %v1930 = vld [vmem:[#allocation2 + $0x48] sm:$0xff]
      %v1931 = vld [vmem:[#allocation2 + $0x50] sm:$0xff]
      %v1932 = vld [vmem:[#allocation2 + $0x58] sm:$0xff]
      %v1933 = vld [vmem:[#allocation2 + $0x60] sm:$0xff]
      %v1934 = vld [vmem:[#allocation2 + $0x68] sm:$0xff]
      %v1935 = vld [vmem:[#allocation2 + $0x70] sm:$0xff]
      %v1936 = vld [vmem:[#allocation2 + $0x78] sm:$0xff]
      %1938 = vset.pattern.permute.xlu0 1
      %1939 = vperm.xlu0 %1938, %v430
      %v1940 = vpop.permute.xlu0 %1939
      %1943 = vset.pattern.permute.xlu0 1
      %1944 = vperm.xlu0 %1943, %v431
      %v1945 = vpop.permute.xlu0 %1944
      %1948 = vset.pattern.permute.xlu0 1
      %1949 = vperm.xlu0 %1948, %v432
      %v1950 = vpop.permute.xlu0 %1949
      %1953 = vset.pattern.permute.xlu0 1
      %1954 = vperm.xlu0 %1953, %v433
      %v1955 = vpop.permute.xlu0 %1954
      %1958 = vset.pattern.permute.xlu0 1
      %1959 = vperm.xlu0 %1958, %v434
      %v1960 = vpop.permute.xlu0 %1959
      %1963 = vset.pattern.permute.xlu0 1
      %1964 = vperm.xlu0 %1963, %v435
      %v1965 = vpop.permute.xlu0 %1964
      %1968 = vset.pattern.permute.xlu0 1
      %1969 = vperm.xlu0 %1968, %v436
      %v1970 = vpop.permute.xlu0 %1969
      %1973 = vset.pattern.permute.xlu0 1
      %1974 = vperm.xlu0 %1973, %v437
      %v1975 = vpop.permute.xlu0 %1974
      %1978 = vset.pattern.permute.xlu0 1
      %1979 = vperm.xlu0 %1978, %v438
      %v1980 = vpop.permute.xlu0 %1979
      %1983 = vset.pattern.permute.xlu0 1
      %1984 = vperm.xlu0 %1983, %v439
      %v1985 = vpop.permute.xlu0 %1984
      %1988 = vset.pattern.permute.xlu0 1
      %1989 = vperm.xlu0 %1988, %v440
      %v1990 = vpop.permute.xlu0 %1989
      %1993 = vset.pattern.permute.xlu0 1
      %1994 = vperm.xlu0 %1993, %v441
      %v1995 = vpop.permute.xlu0 %1994
      %1998 = vset.pattern.permute.xlu0 1
      %1999 = vperm.xlu0 %1998, %v442
      %v2000 = vpop.permute.xlu0 %1999
      %2003 = vset.pattern.permute.xlu0 1
      %2004 = vperm.xlu0 %2003, %v443
      %v2005 = vpop.permute.xlu0 %2004
      %2008 = vset.pattern.permute.xlu0 1
      %2009 = vperm.xlu0 %2008, %v444
      %v2010 = vpop.permute.xlu0 %2009
      %2013 = vset.pattern.permute.xlu0 1
      %2014 = vperm.xlu0 %2013, %v445
      %v2015 = vpop.permute.xlu0 %2014
      %v2017 = vmul.f32 %v1940, %v1859
      %v2018 = vmul.f32 %v1945, %v1862
      %v2019 = vmul.f32 %v1950, %v1867
      %v2020 = vmul.f32 %v1955, %v1870
      %v2021 = vmul.f32 %v1960, %v1875
      %v2022 = vmul.f32 %v1965, %v1878
      %v2023 = vmul.f32 %v1970, %v1883
      %v2024 = vmul.f32 %v1975, %v1886
      %v2025 = vmul.f32 %v1980, %v1891
      %v2026 = vmul.f32 %v1985, %v1894
      %v2027 = vmul.f32 %v1990, %v1899
      %v2028 = vmul.f32 %v1995, %v1902
      %v2029 = vmul.f32 %v2000, %v1907
      %v2030 = vmul.f32 %v2005, %v1910
      %v2031 = vmul.f32 %v2010, %v1915
      %v2032 = vmul.f32 %v2015, %v1918
      %v2033 = vadd.f32 %v1921, %v2017
      %v2034 = vadd.f32 %v1922, %v2018
      %v2035 = vadd.f32 %v1923, %v2019
      %v2036 = vadd.f32 %v1924, %v2020
      %v2037 = vadd.f32 %v1925, %v2021
      %v2038 = vadd.f32 %v1926, %v2022
      %v2039 = vadd.f32 %v1927, %v2023
      %v2040 = vadd.f32 %v1928, %v2024
      %v2041 = vadd.f32 %v1929, %v2025
      %v2042 = vadd.f32 %v1930, %v2026
      %v2043 = vadd.f32 %v1931, %v2027
      %v2044 = vadd.f32 %v1932, %v2028
      %v2045 = vadd.f32 %v1933, %v2029
      %v2046 = vadd.f32 %v1934, %v2030
      %v2047 = vadd.f32 %v1935, %v2031
      %v2048 = vadd.f32 %v1936, %v2032
      %2049 = vst [vmem:[#allocation2] sm:$0xff] %v2033
      %2050 = vst [vmem:[#allocation2 + $0x8] sm:$0xff] %v2034
      %2051 = vst [vmem:[#allocation2 + $0x10] sm:$0xff] %v2035
      %2052 = vst [vmem:[#allocation2 + $0x18] sm:$0xff] %v2036
      %2053 = vst [vmem:[#allocation2 + $0x20] sm:$0xff] %v2037
      %2054 = vst [vmem:[#allocation2 + $0x28] sm:$0xff] %v2038
      %2055 = vst [vmem:[#allocation2 + $0x30] sm:$0xff] %v2039
      %2056 = vst [vmem:[#allocation2 + $0x38] sm:$0xff] %v2040
      %2057 = vst [vmem:[#allocation2 + $0x40] sm:$0xff] %v2041
      %2058 = vst [vmem:[#allocation2 + $0x48] sm:$0xff] %v2042
      %2059 = vst [vmem:[#allocation2 + $0x50] sm:$0xff] %v2043
      %2060 = vst [vmem:[#allocation2 + $0x58] sm:$0xff] %v2044
      %2061 = vst [vmem:[#allocation2 + $0x60] sm:$0xff] %v2045
      %2062 = vst [vmem:[#allocation2 + $0x68] sm:$0xff] %v2046
      %2063 = vst [vmem:[#allocation2 + $0x70] sm:$0xff] %v2047
      %2064 = vst [vmem:[#allocation2 + $0x78] sm:$0xff] %v2048
      %v2065 = vld [vmem:[#allocation3] sm:$0xff]
      %v2066 = vld [vmem:[#allocation3 + $0x8] sm:$0xff]
      %v2067 = vld [vmem:[#allocation3 + $0x10] sm:$0xff]
      %v2068 = vld [vmem:[#allocation3 + $0x18] sm:$0xff]
      %v2069 = vld [vmem:[#allocation3 + $0x20] sm:$0xff]
      %v2070 = vld [vmem:[#allocation3 + $0x28] sm:$0xff]
      %v2071 = vld [vmem:[#allocation3 + $0x30] sm:$0xff]
      %v2072 = vld [vmem:[#allocation3 + $0x38] sm:$0xff]
      %v2073 = vld [vmem:[#allocation3 + $0x40] sm:$0xff]
      %v2074 = vld [vmem:[#allocation3 + $0x48] sm:$0xff]
      %v2075 = vld [vmem:[#allocation3 + $0x50] sm:$0xff]
      %v2076 = vld [vmem:[#allocation3 + $0x58] sm:$0xff]
      %v2077 = vld [vmem:[#allocation3 + $0x60] sm:$0xff]
      %v2078 = vld [vmem:[#allocation3 + $0x68] sm:$0xff]
      %v2079 = vld [vmem:[#allocation3 + $0x70] sm:$0xff]
      %v2080 = vld [vmem:[#allocation3 + $0x78] sm:$0xff]
      %2081 = vrot.lane.b32.xlu0 %v430, 127
      %v2082 = vpop.permute.xlu0 %2081
      %2083 = vrot.lane.b32.xlu0 %v431, 127
      %v2084 = vpop.permute.xlu0 %2083
      %2085 = vrot.lane.b32.xlu0 %v432, 127
      %v2086 = vpop.permute.xlu0 %2085
      %2087 = vrot.lane.b32.xlu0 %v433, 127
      %v2088 = vpop.permute.xlu0 %2087
      %2089 = vrot.lane.b32.xlu0 %v434, 127
      %v2090 = vpop.permute.xlu0 %2089
      %2091 = vrot.lane.b32.xlu0 %v435, 127
      %v2092 = vpop.permute.xlu0 %2091
      %2093 = vrot.lane.b32.xlu0 %v436, 127
      %v2094 = vpop.permute.xlu0 %2093
      %2095 = vrot.lane.b32.xlu0 %v437, 127
      %v2096 = vpop.permute.xlu0 %2095
      %2097 = vrot.lane.b32.xlu0 %v438, 127
      %v2098 = vpop.permute.xlu0 %2097
      %2099 = vrot.lane.b32.xlu0 %v439, 127
      %v2100 = vpop.permute.xlu0 %2099
      %2101 = vrot.lane.b32.xlu0 %v440, 127
      %v2102 = vpop.permute.xlu0 %2101
      %2103 = vrot.lane.b32.xlu0 %v441, 127
      %v2104 = vpop.permute.xlu0 %2103
      %2105 = vrot.lane.b32.xlu0 %v442, 127
      %v2106 = vpop.permute.xlu0 %2105
      %2107 = vrot.lane.b32.xlu0 %v443, 127
      %v2108 = vpop.permute.xlu0 %2107
      %2109 = vrot.lane.b32.xlu0 %v444, 127
      %v2110 = vpop.permute.xlu0 %2109
      %2111 = vrot.lane.b32.xlu0 %v445, 127
      %v2112 = vpop.permute.xlu0 %2111
      %v2129 = vadd.f32 %v2065, %v2082
      %v2130 = vadd.f32 %v2066, %v2084
      %v2131 = vadd.f32 %v2067, %v2086
      %v2132 = vadd.f32 %v2068, %v2088
      %v2133 = vadd.f32 %v2069, %v2090
      %v2134 = vadd.f32 %v2070, %v2092
      %v2135 = vadd.f32 %v2071, %v2094
      %v2136 = vadd.f32 %v2072, %v2096
      %v2137 = vadd.f32 %v2073, %v2098
      %v2138 = vadd.f32 %v2074, %v2100
      %v2139 = vadd.f32 %v2075, %v2102
      %v2140 = vadd.f32 %v2076, %v2104
      %v2141 = vadd.f32 %v2077, %v2106
      %v2142 = vadd.f32 %v2078, %v2108
      %v2143 = vadd.f32 %v2079, %v2110
      %v2144 = vadd.f32 %v2080, %v2112
      %2145 = vst.msk [vmem:[#allocation3] sm:$0xff] %vm462, %v2129
      %2146 = vst.msk [vmem:[#allocation3 + $0x8] sm:$0xff] %vm462, %v2130
      %2147 = vst.msk [vmem:[#allocation3 + $0x10] sm:$0xff] %vm462, %v2131
      %2148 = vst.msk [vmem:[#allocation3 + $0x18] sm:$0xff] %vm462, %v2132
      %2149 = vst.msk [vmem:[#allocation3 + $0x20] sm:$0xff] %vm462, %v2133
      %2150 = vst.msk [vmem:[#allocation3 + $0x28] sm:$0xff] %vm462, %v2134
      %2151 = vst.msk [vmem:[#allocation3 + $0x30] sm:$0xff] %vm462, %v2135
      %2152 = vst.msk [vmem:[#allocation3 + $0x38] sm:$0xff] %vm462, %v2136
      %2153 = vst.msk [vmem:[#allocation3 + $0x40] sm:$0xff] %vm462, %v2137
      %2154 = vst.msk [vmem:[#allocation3 + $0x48] sm:$0xff] %vm462, %v2138
      %2155 = vst.msk [vmem:[#allocation3 + $0x50] sm:$0xff] %vm462, %v2139
      %2156 = vst.msk [vmem:[#allocation3 + $0x58] sm:$0xff] %vm462, %v2140
      %2157 = vst.msk [vmem:[#allocation3 + $0x60] sm:$0xff] %vm462, %v2141
      %2158 = vst.msk [vmem:[#allocation3 + $0x68] sm:$0xff] %vm462, %v2142
      %2159 = vst.msk [vmem:[#allocation3 + $0x70] sm:$0xff] %vm462, %v2143
      %2160 = vst.msk [vmem:[#allocation3 + $0x78] sm:$0xff] %vm462, %v2144
    $region61: #{tpu_custom_call.1} parent=1 // pred_fallthru
      _
    %s2161 = sadd.s32 %s479, 2
    %s2162 = sld [smem:[#allocation5 + %s2161]]
    %p2163 = scmp.gt.s32.totalorder %s2162, 0
    // Predicated region
    $region62: #{tpu_custom_call.1} parent=1 // pred_check
      %p2164 = pneg %p2163
    $region63: #{tpu_custom_call.1} parent=1 // pred_check_branch
      %2166 = sbr.rel (%p2164) target = $region65
    $region64: #{tpu_custom_call.1} parent=1 // pred_region
      %s2167 = scalar_lea.vmem [#allocation6], 128
      %v2168 = vld [vmem:[%s2167] sm:$0xf]
      %v2169 = vld [vmem:[%s2167 + $0x4] sm:$0xf]
      %v2170 = vld [vmem:[%s2167 + $0x8] sm:$0xf]
      %v2171 = vld [vmem:[%s2167 + $0xc] sm:$0xf]
      %v2172 = vld [vmem:[%s2167 + $0x10] sm:$0xf]
      %v2173 = vld [vmem:[%s2167 + $0x14] sm:$0xf]
      %v2174 = vld [vmem:[%s2167 + $0x18] sm:$0xf]
      %v2175 = vld [vmem:[%s2167 + $0x1c] sm:$0xf]
      %v2176 = vld [vmem:[%s2167 + $0x20] sm:$0xf]
      %v2177 = vld [vmem:[%s2167 + $0x24] sm:$0xf]
      %v2178 = vld [vmem:[%s2167 + $0x28] sm:$0xf]
      %v2179 = vld [vmem:[%s2167 + $0x2c] sm:$0xf]
      %v2180 = vld [vmem:[%s2167 + $0x30] sm:$0xf]
      %v2181 = vld [vmem:[%s2167 + $0x34] sm:$0xf]
      %v2182 = vld [vmem:[%s2167 + $0x38] sm:$0xf]
      %v2183 = vld [vmem:[%s2167 + $0x3c] sm:$0xf]
      %s2184 = scalar_lea.vmem %s6, 2
      %v2185 = vld [vmem:[%s2184] sm:$0x1]
      %v2187 = vlaneseq
      %v2188 = vshrl.u32 %v2187, 7
      %v2189 = vsub.s32 0, %v2188
      %v2190 = vrot.slane %v2185, %v2189
      %v2208 = vunpack.c.l.b16 %v2168
      %v2209 = vunpack.c.l.b16 %v2169
      %v2210 = vunpack.c.l.b16 %v2170
      %v2211 = vunpack.c.l.b16 %v2171
      %v2212 = vunpack.c.l.b16 %v2172
      %v2213 = vunpack.c.l.b16 %v2173
      %v2214 = vunpack.c.l.b16 %v2174
      %v2215 = vunpack.c.l.b16 %v2175
      %v2216 = vunpack.c.l.b16 %v2176
      %v2217 = vunpack.c.l.b16 %v2177
      %v2218 = vunpack.c.l.b16 %v2178
      %v2219 = vunpack.c.l.b16 %v2179
      %v2220 = vunpack.c.l.b16 %v2180
      %v2221 = vunpack.c.l.b16 %v2181
      %v2222 = vunpack.c.l.b16 %v2182
      %v2223 = vunpack.c.l.b16 %v2183
      %v2224 = vpack.c.b16 %v2209, %v2208
      %v2225 = vpack.c.b16 %v2211, %v2210
      %v2226 = vpack.c.b16 %v2213, %v2212
      %v2227 = vpack.c.b16 %v2215, %v2214
      %v2228 = vpack.c.b16 %v2217, %v2216
      %v2229 = vpack.c.b16 %v2219, %v2218
      %v2230 = vpack.c.b16 %v2221, %v2220
      %v2231 = vpack.c.b16 %v2223, %v2222
      %2240 = vmatprep.subr.bf16.mxu0 0
      %2241 = vmatpush1.bf16.msra.mxu0 %v2224
      %2242 = vmatprep.subr.bf16.mxu0 0
      %2243 = vmatpush1.bf16.msra.mxu0 %v2225
      %2244 = vmatprep.subr.bf16.mxu0 0
      %2245 = vmatpush1.bf16.msra.mxu0 %v2226
      %2246 = vmatprep.subr.bf16.mxu0 0
      %2247 = vmatpush1.bf16.msra.mxu0 %v2227
      %2248 = vmatprep.subr.bf16.mxu0 0
      %2249 = vmatpush1.bf16.msra.mxu0 %v2228
      %2250 = vmatprep.subr.bf16.mxu0 0
      %2251 = vmatpush1.bf16.msra.mxu0 %v2229
      %2252 = vmatprep.subr.bf16.mxu0 0
      %2253 = vmatpush1.bf16.msra.mxu0 %v2230
      %2254 = vmatprep.subr.bf16.mxu0 0
      %2255 = vmatpush1.bf16.msra.mxu0 %v2231
      %2256 = vmatprep.subr.bf16.mxu0 0
      %2257 = vmatpush1.bf16.msra.mxu0 0
      %2258 = vmatprep.subr.bf16.mxu0 0
      %2259 = vmatpush1.bf16.msra.mxu0 0
      %2260 = vmatprep.subr.bf16.mxu0 0
      %2261 = vmatpush1.bf16.msra.mxu0 0
      %2262 = vmatprep.subr.bf16.mxu0 0
      %2263 = vmatpush1.bf16.msra.mxu0 0
      %2264 = vmatprep.subr.bf16.mxu0 0
      %2265 = vmatpush1.bf16.msra.mxu0 0
      %2266 = vmatprep.subr.bf16.mxu0 0
      %2267 = vmatpush1.bf16.msra.mxu0 0
      %2268 = vmatprep.subr.bf16.mxu0 0
      %2269 = vmatpush1.bf16.msra.mxu0 0
      %2270 = vmatprep.subr.bf16.mxu0 0
      %2271 = vmatpush1.bf16.msra.mxu0 0
      %2272 = vmatprep.mubr.bf16.mxu0 0
      %2273 = vmatmul.mubr.bf16.gmra.mrb[0].mxu0 %v156
      %v2274 = vpop.f32.mrb[0].mxu0
      %v2275 = vadd.f32 %v2190, %v2274
      %v2276 = vpop.f32.mrb[0].mxu0
      %v2277 = vpop.f32.mrb[0].mxu0
      %v2278 = vadd.f32 %v2190, %v2277
      %v2279 = vpop.f32.mrb[0].mxu0
      %2280 = vmatprep.mubr.bf16.mxu0 0
      %2281 = vmatmul.mubr.bf16.gmra.mrb[0].mxu0 %v157
      %v2282 = vpop.f32.mrb[0].mxu0
      %v2283 = vadd.f32 %v2190, %v2282
      %v2284 = vpop.f32.mrb[0].mxu0
      %v2285 = vpop.f32.mrb[0].mxu0
      %v2286 = vadd.f32 %v2190, %v2285
      %v2287 = vpop.f32.mrb[0].mxu0
      %2288 = vmatprep.mubr.bf16.mxu0 0
      %2289 = vmatmul.mubr.bf16.gmra.mrb[0].mxu0 %v158
      %v2290 = vpop.f32.mrb[0].mxu0
      %v2291 = vadd.f32 %v2190, %v2290
      %v2292 = vpop.f32.mrb[0].mxu0
      %v2293 = vpop.f32.mrb[0].mxu0
      %v2294 = vadd.f32 %v2190, %v2293
      %v2295 = vpop.f32.mrb[0].mxu0
      %2296 = vmatprep.mubr.bf16.mxu0 0
      %2297 = vmatmul.mubr.bf16.gmra.mrb[0].mxu0 %v159
      %v2298 = vpop.f32.mrb[0].mxu0
      %v2299 = vadd.f32 %v2190, %v2298
      %v2300 = vpop.f32.mrb[0].mxu0
      %v2301 = vpop.f32.mrb[0].mxu0
      %v2302 = vadd.f32 %v2190, %v2301
      %v2303 = vpop.f32.mrb[0].mxu0
      %2304 = vmatprep.mubr.bf16.mxu0 0
      %2305 = vmatmul.mubr.bf16.gmra.mrb[0].mxu0 %v160
      %v2306 = vpop.f32.mrb[0].mxu0
      %v2307 = vadd.f32 %v2190, %v2306
      %v2308 = vpop.f32.mrb[0].mxu0
      %v2309 = vpop.f32.mrb[0].mxu0
      %v2310 = vadd.f32 %v2190, %v2309
      %v2311 = vpop.f32.mrb[0].mxu0
      %2312 = vmatprep.mubr.bf16.mxu0 0
      %2313 = vmatmul.mubr.bf16.gmra.mrb[0].mxu0 %v161
      %v2314 = vpop.f32.mrb[0].mxu0
      %v2315 = vadd.f32 %v2190, %v2314
      %v2316 = vpop.f32.mrb[0].mxu0
      %v2317 = vpop.f32.mrb[0].mxu0
      %v2318 = vadd.f32 %v2190, %v2317
      %v2319 = vpop.f32.mrb[0].mxu0
      %2320 = vmatprep.mubr.bf16.mxu0 0
      %2321 = vmatmul.mubr.bf16.gmra.mrb[0].mxu0 %v162
      %v2322 = vpop.f32.mrb[0].mxu0
      %v2323 = vadd.f32 %v2190, %v2322
      %v2324 = vpop.f32.mrb[0].mxu0
      %v2325 = vpop.f32.mrb[0].mxu0
      %v2326 = vadd.f32 %v2190, %v2325
      %v2327 = vpop.f32.mrb[0].mxu0
      %2328 = vmatprep.mubr.bf16.mxu0 0
      %2329 = vmatmul.mubr.bf16.gmra.mrb[0].mxu0 %v163
      %v2330 = vpop.f32.mrb[0].mxu0
      %v2331 = vadd.f32 %v2190, %v2330
      %v2332 = vpop.f32.mrb[0].mxu0
      %v2333 = vpop.f32.mrb[0].mxu0
      %v2334 = vadd.f32 %v2190, %v2333
      %v2335 = vpop.f32.mrb[0].mxu0
      %2336 = vdwg.mxu0
      %vm2337 = vcmp.gt.f32.partialorder %v2275, 0.0
      %vm2338 = vcmp.gt.f32.partialorder %v2278, 0.0
      %vm2339 = vcmp.gt.f32.partialorder %v2283, 0.0
      %vm2340 = vcmp.gt.f32.partialorder %v2286, 0.0
      %vm2341 = vcmp.gt.f32.partialorder %v2291, 0.0
      %vm2342 = vcmp.gt.f32.partialorder %v2294, 0.0
      %vm2343 = vcmp.gt.f32.partialorder %v2299, 0.0
      %vm2344 = vcmp.gt.f32.partialorder %v2302, 0.0
      %vm2345 = vcmp.gt.f32.partialorder %v2307, 0.0
      %vm2346 = vcmp.gt.f32.partialorder %v2310, 0.0
      %vm2347 = vcmp.gt.f32.partialorder %v2315, 0.0
      %vm2348 = vcmp.gt.f32.partialorder %v2318, 0.0
      %vm2349 = vcmp.gt.f32.partialorder %v2323, 0.0
      %vm2350 = vcmp.gt.f32.partialorder %v2326, 0.0
      %vm2351 = vcmp.gt.f32.partialorder %v2331, 0.0
      %vm2352 = vcmp.gt.f32.partialorder %v2334, 0.0
      %v2353 = vmul.f32 %v2275, 0.01
      %v2354 = vmul.f32 %v2278, 0.01
      %v2355 = vmul.f32 %v2283, 0.01
      %v2356 = vmul.f32 %v2286, 0.01
      %v2357 = vmul.f32 %v2291, 0.01
      %v2358 = vmul.f32 %v2294, 0.01
      %v2359 = vmul.f32 %v2299, 0.01
      %v2360 = vmul.f32 %v2302, 0.01
      %v2361 = vmul.f32 %v2307, 0.01
      %v2362 = vmul.f32 %v2310, 0.01
      %v2363 = vmul.f32 %v2315, 0.01
      %v2364 = vmul.f32 %v2318, 0.01
      %v2365 = vmul.f32 %v2323, 0.01
      %v2366 = vmul.f32 %v2326, 0.01
      %v2367 = vmul.f32 %v2331, 0.01
      %v2368 = vmul.f32 %v2334, 0.01
      %v2369 = vsel %vm2337, %v2275, %v2353
      %v2370 = vsel %vm2338, %v2278, %v2354
      %v2371 = vsel %vm2339, %v2283, %v2355
      %v2372 = vsel %vm2340, %v2286, %v2356
      %v2373 = vsel %vm2341, %v2291, %v2357
      %v2374 = vsel %vm2342, %v2294, %v2358
      %v2375 = vsel %vm2343, %v2299, %v2359
      %v2376 = vsel %vm2344, %v2302, %v2360
      %v2377 = vsel %vm2345, %v2307, %v2361
      %v2378 = vsel %vm2346, %v2310, %v2362
      %v2379 = vsel %vm2347, %v2315, %v2363
      %v2380 = vsel %vm2348, %v2318, %v2364
      %v2381 = vsel %vm2349, %v2323, %v2365
      %v2382 = vsel %vm2350, %v2326, %v2366
      %v2383 = vsel %vm2351, %v2331, %v2367
      %v2384 = vsel %vm2352, %v2334, %v2368
      %v2385 = vpack.c.bf16 %v2370, %v2369
      %v2386 = vpack.c.bf16 %v2372, %v2371
      %v2387 = vpack.c.bf16 %v2374, %v2373
      %v2388 = vpack.c.bf16 %v2376, %v2375
      %v2389 = vpack.c.bf16 %v2378, %v2377
      %v2390 = vpack.c.bf16 %v2380, %v2379
      %v2391 = vpack.c.bf16 %v2382, %v2381
      %v2392 = vpack.c.bf16 %v2384, %v2383
      %s2393 = scalar_lea.vmem [#allocation9], 128
      %v2394 = vld [vmem:[%s2393] sm:$0xf]
      %v2395 = vld [vmem:[%s2393 + $0x4] sm:$0xf]
      %v2396 = vld [vmem:[%s2393 + $0x8] sm:$0xf]
      %v2397 = vld [vmem:[%s2393 + $0xc] sm:$0xf]
      %v2398 = vld [vmem:[%s2393 + $0x10] sm:$0xf]
      %v2399 = vld [vmem:[%s2393 + $0x14] sm:$0xf]
      %v2400 = vld [vmem:[%s2393 + $0x18] sm:$0xf]
      %v2401 = vld [vmem:[%s2393 + $0x1c] sm:$0xf]
      %v2402 = vld [vmem:[%s2393 + $0x20] sm:$0xf]
      %v2403 = vld [vmem:[%s2393 + $0x24] sm:$0xf]
      %v2404 = vld [vmem:[%s2393 + $0x28] sm:$0xf]
      %v2405 = vld [vmem:[%s2393 + $0x2c] sm:$0xf]
      %v2406 = vld [vmem:[%s2393 + $0x30] sm:$0xf]
      %v2407 = vld [vmem:[%s2393 + $0x34] sm:$0xf]
      %v2408 = vld [vmem:[%s2393 + $0x38] sm:$0xf]
      %v2409 = vld [vmem:[%s2393 + $0x3c] sm:$0xf]
      %s2410 = scalar_lea.vmem %s8, 2
      %v2411 = vld [vmem:[%s2410] sm:$0x1]
      %v2413 = vlaneseq
      %v2414 = vshrl.u32 %v2413, 7
      %v2415 = vsub.s32 0, %v2414
      %v2416 = vrot.slane %v2411, %v2415
      %v2434 = vunpack.c.l.b16 %v2394
      %v2435 = vunpack.c.l.b16 %v2395
      %v2436 = vunpack.c.l.b16 %v2396
      %v2437 = vunpack.c.l.b16 %v2397
      %v2438 = vunpack.c.l.b16 %v2398
      %v2439 = vunpack.c.l.b16 %v2399
      %v2440 = vunpack.c.l.b16 %v2400
      %v2441 = vunpack.c.l.b16 %v2401
      %v2442 = vunpack.c.l.b16 %v2402
      %v2443 = vunpack.c.l.b16 %v2403
      %v2444 = vunpack.c.l.b16 %v2404
      %v2445 = vunpack.c.l.b16 %v2405
      %v2446 = vunpack.c.l.b16 %v2406
      %v2447 = vunpack.c.l.b16 %v2407
      %v2448 = vunpack.c.l.b16 %v2408
      %v2449 = vunpack.c.l.b16 %v2409
      %v2450 = vpack.c.b16 %v2435, %v2434
      %v2451 = vpack.c.b16 %v2437, %v2436
      %v2452 = vpack.c.b16 %v2439, %v2438
      %v2453 = vpack.c.b16 %v2441, %v2440
      %v2454 = vpack.c.b16 %v2443, %v2442
      %v2455 = vpack.c.b16 %v2445, %v2444
      %v2456 = vpack.c.b16 %v2447, %v2446
      %v2457 = vpack.c.b16 %v2449, %v2448
      %2466 = vmatprep.subr.bf16.mxu0 0
      %2467 = vmatpush1.bf16.msra.mxu0 %v2450
      %2468 = vmatprep.subr.bf16.mxu0 0
      %2469 = vmatpush1.bf16.msra.mxu0 %v2451
      %2470 = vmatprep.subr.bf16.mxu0 0
      %2471 = vmatpush1.bf16.msra.mxu0 %v2452
      %2472 = vmatprep.subr.bf16.mxu0 0
      %2473 = vmatpush1.bf16.msra.mxu0 %v2453
      %2474 = vmatprep.subr.bf16.mxu0 0
      %2475 = vmatpush1.bf16.msra.mxu0 %v2454
      %2476 = vmatprep.subr.bf16.mxu0 0
      %2477 = vmatpush1.bf16.msra.mxu0 %v2455
      %2478 = vmatprep.subr.bf16.mxu0 0
      %2479 = vmatpush1.bf16.msra.mxu0 %v2456
      %2480 = vmatprep.subr.bf16.mxu0 0
      %2481 = vmatpush1.bf16.msra.mxu0 %v2457
      %2482 = vmatprep.subr.bf16.mxu0 0
      %2483 = vmatpush1.bf16.msra.mxu0 0
      %2484 = vmatprep.subr.bf16.mxu0 0
      %2485 = vmatpush1.bf16.msra.mxu0 0
      %2486 = vmatprep.subr.bf16.mxu0 0
      %2487 = vmatpush1.bf16.msra.mxu0 0
      %2488 = vmatprep.subr.bf16.mxu0 0
      %2489 = vmatpush1.bf16.msra.mxu0 0
      %2490 = vmatprep.subr.bf16.mxu0 0
      %2491 = vmatpush1.bf16.msra.mxu0 0
      %2492 = vmatprep.subr.bf16.mxu0 0
      %2493 = vmatpush1.bf16.msra.mxu0 0
      %2494 = vmatprep.subr.bf16.mxu0 0
      %2495 = vmatpush1.bf16.msra.mxu0 0
      %2496 = vmatprep.subr.bf16.mxu0 0
      %2497 = vmatpush1.bf16.msra.mxu0 0
      %2498 = vmatprep.mubr.bf16.mxu0 0
      %2499 = vmatmul.mubr.bf16.gmra.mrb[0].mxu0 %v2385
      %v2500 = vpop.f32.mrb[0].mxu0
      %v2501 = vadd.f32 %v2416, %v2500
      %v2502 = vpop.f32.mrb[0].mxu0
      %v2503 = vpop.f32.mrb[0].mxu0
      %v2504 = vadd.f32 %v2416, %v2503
      %v2505 = vpop.f32.mrb[0].mxu0
      %2506 = vmatprep.mubr.bf16.mxu0 0
      %2507 = vmatmul.mubr.bf16.gmra.mrb[0].mxu0 %v2386
      %v2508 = vpop.f32.mrb[0].mxu0
      %v2509 = vadd.f32 %v2416, %v2508
      %v2510 = vpop.f32.mrb[0].mxu0
      %v2511 = vpop.f32.mrb[0].mxu0
      %v2512 = vadd.f32 %v2416, %v2511
      %v2513 = vpop.f32.mrb[0].mxu0
      %2514 = vmatprep.mubr.bf16.mxu0 0
      %2515 = vmatmul.mubr.bf16.gmra.mrb[0].mxu0 %v2387
      %v2516 = vpop.f32.mrb[0].mxu0
      %v2517 = vadd.f32 %v2416, %v2516
      %v2518 = vpop.f32.mrb[0].mxu0
      %v2519 = vpop.f32.mrb[0].mxu0
      %v2520 = vadd.f32 %v2416, %v2519
      %v2521 = vpop.f32.mrb[0].mxu0
      %2522 = vmatprep.mubr.bf16.mxu0 0
      %2523 = vmatmul.mubr.bf16.gmra.mrb[0].mxu0 %v2388
      %v2524 = vpop.f32.mrb[0].mxu0
      %v2525 = vadd.f32 %v2416, %v2524
      %v2526 = vpop.f32.mrb[0].mxu0
      %v2527 = vpop.f32.mrb[0].mxu0
      %v2528 = vadd.f32 %v2416, %v2527
      %v2529 = vpop.f32.mrb[0].mxu0
      %2530 = vmatprep.mubr.bf16.mxu0 0
      %2531 = vmatmul.mubr.bf16.gmra.mrb[0].mxu0 %v2389
      %v2532 = vpop.f32.mrb[0].mxu0
      %v2533 = vadd.f32 %v2416, %v2532
      %v2534 = vpop.f32.mrb[0].mxu0
      %v2535 = vpop.f32.mrb[0].mxu0
      %v2536 = vadd.f32 %v2416, %v2535
      %v2537 = vpop.f32.mrb[0].mxu0
      %2538 = vmatprep.mubr.bf16.mxu0 0
      %2539 = vmatmul.mubr.bf16.gmra.mrb[0].mxu0 %v2390
      %v2540 = vpop.f32.mrb[0].mxu0
      %v2541 = vadd.f32 %v2416, %v2540
      %v2542 = vpop.f32.mrb[0].mxu0
      %v2543 = vpop.f32.mrb[0].mxu0
      %v2544 = vadd.f32 %v2416, %v2543
      %v2545 = vpop.f32.mrb[0].mxu0
      %2546 = vmatprep.mubr.bf16.mxu0 0
      %2547 = vmatmul.mubr.bf16.gmra.mrb[0].mxu0 %v2391
      %v2548 = vpop.f32.mrb[0].mxu0
      %v2549 = vadd.f32 %v2416, %v2548
      %v2550 = vpop.f32.mrb[0].mxu0
      %v2551 = vpop.f32.mrb[0].mxu0
      %v2552 = vadd.f32 %v2416, %v2551
      %v2553 = vpop.f32.mrb[0].mxu0
      %2554 = vmatprep.mubr.bf16.mxu0 0
      %2555 = vmatmul.mubr.bf16.gmra.mrb[0].mxu0 %v2392
      %v2556 = vpop.f32.mrb[0].mxu0
      %v2557 = vadd.f32 %v2416, %v2556
      %v2558 = vpop.f32.mrb[0].mxu0
      %v2559 = vpop.f32.mrb[0].mxu0
      %v2560 = vadd.f32 %v2416, %v2559
      %v2561 = vpop.f32.mrb[0].mxu0
      %2562 = vdwg.mxu0
      %vm2563 = vcmp.gt.f32.partialorder %v2501, 0.0
      %vm2564 = vcmp.gt.f32.partialorder %v2504, 0.0
      %vm2565 = vcmp.gt.f32.partialorder %v2509, 0.0
      %vm2566 = vcmp.gt.f32.partialorder %v2512, 0.0
      %vm2567 = vcmp.gt.f32.partialorder %v2517, 0.0
      %vm2568 = vcmp.gt.f32.partialorder %v2520, 0.0
      %vm2569 = vcmp.gt.f32.partialorder %v2525, 0.0
      %vm2570 = vcmp.gt.f32.partialorder %v2528, 0.0
      %vm2571 = vcmp.gt.f32.partialorder %v2533, 0.0
      %vm2572 = vcmp.gt.f32.partialorder %v2536, 0.0
      %vm2573 = vcmp.gt.f32.partialorder %v2541, 0.0
      %vm2574 = vcmp.gt.f32.partialorder %v2544, 0.0
      %vm2575 = vcmp.gt.f32.partialorder %v2549, 0.0
      %vm2576 = vcmp.gt.f32.partialorder %v2552, 0.0
      %vm2577 = vcmp.gt.f32.partialorder %v2557, 0.0
      %vm2578 = vcmp.gt.f32.partialorder %v2560, 0.0
      %v2579 = vmul.f32 %v2501, 0.01
      %v2580 = vmul.f32 %v2504, 0.01
      %v2581 = vmul.f32 %v2509, 0.01
      %v2582 = vmul.f32 %v2512, 0.01
      %v2583 = vmul.f32 %v2517, 0.01
      %v2584 = vmul.f32 %v2520, 0.01
      %v2585 = vmul.f32 %v2525, 0.01
      %v2586 = vmul.f32 %v2528, 0.01
      %v2587 = vmul.f32 %v2533, 0.01
      %v2588 = vmul.f32 %v2536, 0.01
      %v2589 = vmul.f32 %v2541, 0.01
      %v2590 = vmul.f32 %v2544, 0.01
      %v2591 = vmul.f32 %v2549, 0.01
      %v2592 = vmul.f32 %v2552, 0.01
      %v2593 = vmul.f32 %v2557, 0.01
      %v2594 = vmul.f32 %v2560, 0.01
      %v2595 = vsel %vm2563, %v2501, %v2579
      %v2596 = vsel %vm2564, %v2504, %v2580
      %v2597 = vsel %vm2565, %v2509, %v2581
      %v2598 = vsel %vm2566, %v2512, %v2582
      %v2599 = vsel %vm2567, %v2517, %v2583
      %v2600 = vsel %vm2568, %v2520, %v2584
      %v2601 = vsel %vm2569, %v2525, %v2585
      %v2602 = vsel %vm2570, %v2528, %v2586
      %v2603 = vsel %vm2571, %v2533, %v2587
      %v2604 = vsel %vm2572, %v2536, %v2588
      %v2605 = vsel %vm2573, %v2541, %v2589
      %v2606 = vsel %vm2574, %v2544, %v2590
      %v2607 = vsel %vm2575, %v2549, %v2591
      %v2608 = vsel %vm2576, %v2552, %v2592
      %v2609 = vsel %vm2577, %v2557, %v2593
      %v2610 = vsel %vm2578, %v2560, %v2594
      %v2611 = vpack.c.bf16 %v2596, %v2595
      %v2612 = vpack.c.bf16 %v2598, %v2597
      %v2613 = vpack.c.bf16 %v2600, %v2599
      %v2614 = vpack.c.bf16 %v2602, %v2601
      %v2615 = vpack.c.bf16 %v2604, %v2603
      %v2616 = vpack.c.bf16 %v2606, %v2605
      %v2617 = vpack.c.bf16 %v2608, %v2607
      %v2618 = vpack.c.bf16 %v2610, %v2609
      %s2619 = scalar_lea.vmem [#allocation11], 128
      %v2620 = vld [vmem:[%s2619] sm:$0xf]
      %v2621 = vld [vmem:[%s2619 + $0x4] sm:$0xf]
      %v2622 = vld [vmem:[%s2619 + $0x8] sm:$0xf]
      %v2623 = vld [vmem:[%s2619 + $0xc] sm:$0xf]
      %v2624 = vld [vmem:[%s2619 + $0x10] sm:$0xf]
      %v2625 = vld [vmem:[%s2619 + $0x14] sm:$0xf]
      %v2626 = vld [vmem:[%s2619 + $0x18] sm:$0xf]
      %v2627 = vld [vmem:[%s2619 + $0x1c] sm:$0xf]
      %v2628 = vld [vmem:[%s2619 + $0x20] sm:$0xf]
      %v2629 = vld [vmem:[%s2619 + $0x24] sm:$0xf]
      %v2630 = vld [vmem:[%s2619 + $0x28] sm:$0xf]
      %v2631 = vld [vmem:[%s2619 + $0x2c] sm:$0xf]
      %v2632 = vld [vmem:[%s2619 + $0x30] sm:$0xf]
      %v2633 = vld [vmem:[%s2619 + $0x34] sm:$0xf]
      %v2634 = vld [vmem:[%s2619 + $0x38] sm:$0xf]
      %v2635 = vld [vmem:[%s2619 + $0x3c] sm:$0xf]
      %s2636 = scalar_lea.vmem %s10, 2
      %v2637 = vld [vmem:[%s2636] sm:$0x1]
      %v2639 = vlaneseq
      %v2640 = vshrl.u32 %v2639, 7
      %v2641 = vsub.s32 0, %v2640
      %v2642 = vrot.slane %v2637, %v2641
      %v2660 = vunpack.c.l.b16 %v2620
      %v2661 = vunpack.c.l.b16 %v2621
      %v2662 = vunpack.c.l.b16 %v2622
      %v2663 = vunpack.c.l.b16 %v2623
      %v2664 = vunpack.c.l.b16 %v2624
      %v2665 = vunpack.c.l.b16 %v2625
      %v2666 = vunpack.c.l.b16 %v2626
      %v2667 = vunpack.c.l.b16 %v2627
      %v2668 = vunpack.c.l.b16 %v2628
      %v2669 = vunpack.c.l.b16 %v2629
      %v2670 = vunpack.c.l.b16 %v2630
      %v2671 = vunpack.c.l.b16 %v2631
      %v2672 = vunpack.c.l.b16 %v2632
      %v2673 = vunpack.c.l.b16 %v2633
      %v2674 = vunpack.c.l.b16 %v2634
      %v2675 = vunpack.c.l.b16 %v2635
      %v2676 = vpack.c.b16 %v2661, %v2660
      %v2677 = vpack.c.b16 %v2663, %v2662
      %v2678 = vpack.c.b16 %v2665, %v2664
      %v2679 = vpack.c.b16 %v2667, %v2666
      %v2680 = vpack.c.b16 %v2669, %v2668
      %v2681 = vpack.c.b16 %v2671, %v2670
      %v2682 = vpack.c.b16 %v2673, %v2672
      %v2683 = vpack.c.b16 %v2675, %v2674
      %2692 = vmatprep.subr.bf16.mxu0 0
      %2693 = vmatpush1.bf16.msra.mxu0 %v2676
      %2694 = vmatprep.subr.bf16.mxu0 0
      %2695 = vmatpush1.bf16.msra.mxu0 %v2677
      %2696 = vmatprep.subr.bf16.mxu0 0
      %2697 = vmatpush1.bf16.msra.mxu0 %v2678
      %2698 = vmatprep.subr.bf16.mxu0 0
      %2699 = vmatpush1.bf16.msra.mxu0 %v2679
      %2700 = vmatprep.subr.bf16.mxu0 0
      %2701 = vmatpush1.bf16.msra.mxu0 %v2680
      %2702 = vmatprep.subr.bf16.mxu0 0
      %2703 = vmatpush1.bf16.msra.mxu0 %v2681
      %2704 = vmatprep.subr.bf16.mxu0 0
      %2705 = vmatpush1.bf16.msra.mxu0 %v2682
      %2706 = vmatprep.subr.bf16.mxu0 0
      %2707 = vmatpush1.bf16.msra.mxu0 %v2683
      %2708 = vmatprep.subr.bf16.mxu0 0
      %2709 = vmatpush1.bf16.msra.mxu0 0
      %2710 = vmatprep.subr.bf16.mxu0 0
      %2711 = vmatpush1.bf16.msra.mxu0 0
      %2712 = vmatprep.subr.bf16.mxu0 0
      %2713 = vmatpush1.bf16.msra.mxu0 0
      %2714 = vmatprep.subr.bf16.mxu0 0
      %2715 = vmatpush1.bf16.msra.mxu0 0
      %2716 = vmatprep.subr.bf16.mxu0 0
      %2717 = vmatpush1.bf16.msra.mxu0 0
      %2718 = vmatprep.subr.bf16.mxu0 0
      %2719 = vmatpush1.bf16.msra.mxu0 0
      %2720 = vmatprep.subr.bf16.mxu0 0
      %2721 = vmatpush1.bf16.msra.mxu0 0
      %2722 = vmatprep.subr.bf16.mxu0 0
      %2723 = vmatpush1.bf16.msra.mxu0 0
      %2724 = vmatprep.mubr.bf16.mxu0 0
      %2725 = vmatmul.mubr.bf16.gmra.mrb[0].mxu0 %v2611
      %v2726 = vpop.f32.mrb[0].mxu0
      %v2727 = vadd.f32 %v2642, %v2726
      %v2728 = vpop.f32.mrb[0].mxu0
      %v2729 = vpop.f32.mrb[0].mxu0
      %v2730 = vadd.f32 %v2642, %v2729
      %v2731 = vpop.f32.mrb[0].mxu0
      %2732 = vmatprep.mubr.bf16.mxu0 0
      %2733 = vmatmul.mubr.bf16.gmra.mrb[0].mxu0 %v2612
      %v2734 = vpop.f32.mrb[0].mxu0
      %v2735 = vadd.f32 %v2642, %v2734
      %v2736 = vpop.f32.mrb[0].mxu0
      %v2737 = vpop.f32.mrb[0].mxu0
      %v2738 = vadd.f32 %v2642, %v2737
      %v2739 = vpop.f32.mrb[0].mxu0
      %2740 = vmatprep.mubr.bf16.mxu0 0
      %2741 = vmatmul.mubr.bf16.gmra.mrb[0].mxu0 %v2613
      %v2742 = vpop.f32.mrb[0].mxu0
      %v2743 = vadd.f32 %v2642, %v2742
      %v2744 = vpop.f32.mrb[0].mxu0
      %v2745 = vpop.f32.mrb[0].mxu0
      %v2746 = vadd.f32 %v2642, %v2745
      %v2747 = vpop.f32.mrb[0].mxu0
      %2748 = vmatprep.mubr.bf16.mxu0 0
      %2749 = vmatmul.mubr.bf16.gmra.mrb[0].mxu0 %v2614
      %v2750 = vpop.f32.mrb[0].mxu0
      %v2751 = vadd.f32 %v2642, %v2750
      %v2752 = vpop.f32.mrb[0].mxu0
      %v2753 = vpop.f32.mrb[0].mxu0
      %v2754 = vadd.f32 %v2642, %v2753
      %v2755 = vpop.f32.mrb[0].mxu0
      %2756 = vmatprep.mubr.bf16.mxu0 0
      %2757 = vmatmul.mubr.bf16.gmra.mrb[0].mxu0 %v2615
      %v2758 = vpop.f32.mrb[0].mxu0
      %v2759 = vadd.f32 %v2642, %v2758
      %v2760 = vpop.f32.mrb[0].mxu0
      %v2761 = vpop.f32.mrb[0].mxu0
      %v2762 = vadd.f32 %v2642, %v2761
      %v2763 = vpop.f32.mrb[0].mxu0
      %2764 = vmatprep.mubr.bf16.mxu0 0
      %2765 = vmatmul.mubr.bf16.gmra.mrb[0].mxu0 %v2616
      %v2766 = vpop.f32.mrb[0].mxu0
      %v2767 = vadd.f32 %v2642, %v2766
      %v2768 = vpop.f32.mrb[0].mxu0
      %v2769 = vpop.f32.mrb[0].mxu0
      %v2770 = vadd.f32 %v2642, %v2769
      %v2771 = vpop.f32.mrb[0].mxu0
      %2772 = vmatprep.mubr.bf16.mxu0 0
      %2773 = vmatmul.mubr.bf16.gmra.mrb[0].mxu0 %v2617
      %v2774 = vpop.f32.mrb[0].mxu0
      %v2775 = vadd.f32 %v2642, %v2774
      %v2776 = vpop.f32.mrb[0].mxu0
      %v2777 = vpop.f32.mrb[0].mxu0
      %v2778 = vadd.f32 %v2642, %v2777
      %v2779 = vpop.f32.mrb[0].mxu0
      %2780 = vmatprep.mubr.bf16.mxu0 0
      %2781 = vmatmul.mubr.bf16.gmra.mrb[0].mxu0 %v2618
      %v2782 = vpop.f32.mrb[0].mxu0
      %v2783 = vadd.f32 %v2642, %v2782
      %v2784 = vpop.f32.mrb[0].mxu0
      %v2785 = vpop.f32.mrb[0].mxu0
      %v2786 = vadd.f32 %v2642, %v2785
      %v2787 = vpop.f32.mrb[0].mxu0
      %2788 = vdwg.mxu0
      %v2789 = vld [vmem:[#allocation2] sm:$0xff]
      %v2790 = vld [vmem:[#allocation2 + $0x8] sm:$0xff]
      %v2791 = vld [vmem:[#allocation2 + $0x10] sm:$0xff]
      %v2792 = vld [vmem:[#allocation2 + $0x18] sm:$0xff]
      %v2793 = vld [vmem:[#allocation2 + $0x20] sm:$0xff]
      %v2794 = vld [vmem:[#allocation2 + $0x28] sm:$0xff]
      %v2795 = vld [vmem:[#allocation2 + $0x30] sm:$0xff]
      %v2796 = vld [vmem:[#allocation2 + $0x38] sm:$0xff]
      %v2797 = vld [vmem:[#allocation2 + $0x40] sm:$0xff]
      %v2798 = vld [vmem:[#allocation2 + $0x48] sm:$0xff]
      %v2799 = vld [vmem:[#allocation2 + $0x50] sm:$0xff]
      %v2800 = vld [vmem:[#allocation2 + $0x58] sm:$0xff]
      %v2801 = vld [vmem:[#allocation2 + $0x60] sm:$0xff]
      %v2802 = vld [vmem:[#allocation2 + $0x68] sm:$0xff]
      %v2803 = vld [vmem:[#allocation2 + $0x70] sm:$0xff]
      %v2804 = vld [vmem:[#allocation2 + $0x78] sm:$0xff]
      %2806 = vset.pattern.permute.xlu0 2
      %2807 = vperm.xlu0 %2806, %v430
      %v2808 = vpop.permute.xlu0 %2807
      %2811 = vset.pattern.permute.xlu0 2
      %2812 = vperm.xlu0 %2811, %v431
      %v2813 = vpop.permute.xlu0 %2812
      %2816 = vset.pattern.permute.xlu0 2
      %2817 = vperm.xlu0 %2816, %v432
      %v2818 = vpop.permute.xlu0 %2817
      %2821 = vset.pattern.permute.xlu0 2
      %2822 = vperm.xlu0 %2821, %v433
      %v2823 = vpop.permute.xlu0 %2822
      %2826 = vset.pattern.permute.xlu0 2
      %2827 = vperm.xlu0 %2826, %v434
      %v2828 = vpop.permute.xlu0 %2827
      %2831 = vset.pattern.permute.xlu0 2
      %2832 = vperm.xlu0 %2831, %v435
      %v2833 = vpop.permute.xlu0 %2832
      %2836 = vset.pattern.permute.xlu0 2
      %2837 = vperm.xlu0 %2836, %v436
      %v2838 = vpop.permute.xlu0 %2837
      %2841 = vset.pattern.permute.xlu0 2
      %2842 = vperm.xlu0 %2841, %v437
      %v2843 = vpop.permute.xlu0 %2842
      %2846 = vset.pattern.permute.xlu0 2
      %2847 = vperm.xlu0 %2846, %v438
      %v2848 = vpop.permute.xlu0 %2847
      %2851 = vset.pattern.permute.xlu0 2
      %2852 = vperm.xlu0 %2851, %v439
      %v2853 = vpop.permute.xlu0 %2852
      %2856 = vset.pattern.permute.xlu0 2
      %2857 = vperm.xlu0 %2856, %v440
      %v2858 = vpop.permute.xlu0 %2857
      %2861 = vset.pattern.permute.xlu0 2
      %2862 = vperm.xlu0 %2861, %v441
      %v2863 = vpop.permute.xlu0 %2862
      %2866 = vset.pattern.permute.xlu0 2
      %2867 = vperm.xlu0 %2866, %v442
      %v2868 = vpop.permute.xlu0 %2867
      %2871 = vset.pattern.permute.xlu0 2
      %2872 = vperm.xlu0 %2871, %v443
      %v2873 = vpop.permute.xlu0 %2872
      %2876 = vset.pattern.permute.xlu0 2
      %2877 = vperm.xlu0 %2876, %v444
      %v2878 = vpop.permute.xlu0 %2877
      %2881 = vset.pattern.permute.xlu0 2
      %2882 = vperm.xlu0 %2881, %v445
      %v2883 = vpop.permute.xlu0 %2882
      %v2885 = vmul.f32 %v2808, %v2727
      %v2886 = vmul.f32 %v2813, %v2730
      %v2887 = vmul.f32 %v2818, %v2735
      %v2888 = vmul.f32 %v2823, %v2738
      %v2889 = vmul.f32 %v2828, %v2743
      %v2890 = vmul.f32 %v2833, %v2746
      %v2891 = vmul.f32 %v2838, %v2751
      %v2892 = vmul.f32 %v2843, %v2754
      %v2893 = vmul.f32 %v2848, %v2759
      %v2894 = vmul.f32 %v2853, %v2762
      %v2895 = vmul.f32 %v2858, %v2767
      %v2896 = vmul.f32 %v2863, %v2770
      %v2897 = vmul.f32 %v2868, %v2775
      %v2898 = vmul.f32 %v2873, %v2778
      %v2899 = vmul.f32 %v2878, %v2783
      %v2900 = vmul.f32 %v2883, %v2786
      %v2901 = vadd.f32 %v2789, %v2885
      %v2902 = vadd.f32 %v2790, %v2886
      %v2903 = vadd.f32 %v2791, %v2887
      %v2904 = vadd.f32 %v2792, %v2888
      %v2905 = vadd.f32 %v2793, %v2889
      %v2906 = vadd.f32 %v2794, %v2890
      %v2907 = vadd.f32 %v2795, %v2891
      %v2908 = vadd.f32 %v2796, %v2892
      %v2909 = vadd.f32 %v2797, %v2893
      %v2910 = vadd.f32 %v2798, %v2894
      %v2911 = vadd.f32 %v2799, %v2895
      %v2912 = vadd.f32 %v2800, %v2896
      %v2913 = vadd.f32 %v2801, %v2897
      %v2914 = vadd.f32 %v2802, %v2898
      %v2915 = vadd.f32 %v2803, %v2899
      %v2916 = vadd.f32 %v2804, %v2900
      %2917 = vst [vmem:[#allocation2] sm:$0xff] %v2901
      %2918 = vst [vmem:[#allocation2 + $0x8] sm:$0xff] %v2902
      %2919 = vst [vmem:[#allocation2 + $0x10] sm:$0xff] %v2903
      %2920 = vst [vmem:[#allocation2 + $0x18] sm:$0xff] %v2904
      %2921 = vst [vmem:[#allocation2 + $0x20] sm:$0xff] %v2905
      %2922 = vst [vmem:[#allocation2 + $0x28] sm:$0xff] %v2906
      %2923 = vst [vmem:[#allocation2 + $0x30] sm:$0xff] %v2907
      %2924 = vst [vmem:[#allocation2 + $0x38] sm:$0xff] %v2908
      %2925 = vst [vmem:[#allocation2 + $0x40] sm:$0xff] %v2909
      %2926 = vst [vmem:[#allocation2 + $0x48] sm:$0xff] %v2910
      %2927 = vst [vmem:[#allocation2 + $0x50] sm:$0xff] %v2911
      %2928 = vst [vmem:[#allocation2 + $0x58] sm:$0xff] %v2912
      %2929 = vst [vmem:[#allocation2 + $0x60] sm:$0xff] %v2913
      %2930 = vst [vmem:[#allocation2 + $0x68] sm:$0xff] %v2914
      %2931 = vst [vmem:[#allocation2 + $0x70] sm:$0xff] %v2915
      %2932 = vst [vmem:[#allocation2 + $0x78] sm:$0xff] %v2916
      %v2933 = vld [vmem:[#allocation3] sm:$0xff]
      %v2934 = vld [vmem:[#allocation3 + $0x8] sm:$0xff]
      %v2935 = vld [vmem:[#allocation3 + $0x10] sm:$0xff]
      %v2936 = vld [vmem:[#allocation3 + $0x18] sm:$0xff]
      %v2937 = vld [vmem:[#allocation3 + $0x20] sm:$0xff]
      %v2938 = vld [vmem:[#allocation3 + $0x28] sm:$0xff]
      %v2939 = vld [vmem:[#allocation3 + $0x30] sm:$0xff]
      %v2940 = vld [vmem:[#allocation3 + $0x38] sm:$0xff]
      %v2941 = vld [vmem:[#allocation3 + $0x40] sm:$0xff]
      %v2942 = vld [vmem:[#allocation3 + $0x48] sm:$0xff]
      %v2943 = vld [vmem:[#allocation3 + $0x50] sm:$0xff]
      %v2944 = vld [vmem:[#allocation3 + $0x58] sm:$0xff]
      %v2945 = vld [vmem:[#allocation3 + $0x60] sm:$0xff]
      %v2946 = vld [vmem:[#allocation3 + $0x68] sm:$0xff]
      %v2947 = vld [vmem:[#allocation3 + $0x70] sm:$0xff]
      %v2948 = vld [vmem:[#allocation3 + $0x78] sm:$0xff]
      %2949 = vrot.lane.b32.xlu0 %v430, 126
      %v2950 = vpop.permute.xlu0 %2949
      %2951 = vrot.lane.b32.xlu0 %v431, 126
      %v2952 = vpop.permute.xlu0 %2951
      %2953 = vrot.lane.b32.xlu0 %v432, 126
      %v2954 = vpop.permute.xlu0 %2953
      %2955 = vrot.lane.b32.xlu0 %v433, 126
      %v2956 = vpop.permute.xlu0 %2955
      %2957 = vrot.lane.b32.xlu0 %v434, 126
      %v2958 = vpop.permute.xlu0 %2957
      %2959 = vrot.lane.b32.xlu0 %v435, 126
      %v2960 = vpop.permute.xlu0 %2959
      %2961 = vrot.lane.b32.xlu0 %v436, 126
      %v2962 = vpop.permute.xlu0 %2961
      %2963 = vrot.lane.b32.xlu0 %v437, 126
      %v2964 = vpop.permute.xlu0 %2963
      %2965 = vrot.lane.b32.xlu0 %v438, 126
      %v2966 = vpop.permute.xlu0 %2965
      %2967 = vrot.lane.b32.xlu0 %v439, 126
      %v2968 = vpop.permute.xlu0 %2967
      %2969 = vrot.lane.b32.xlu0 %v440, 126
      %v2970 = vpop.permute.xlu0 %2969
      %2971 = vrot.lane.b32.xlu0 %v441, 126
      %v2972 = vpop.permute.xlu0 %2971
      %2973 = vrot.lane.b32.xlu0 %v442, 126
      %v2974 = vpop.permute.xlu0 %2973
      %2975 = vrot.lane.b32.xlu0 %v443, 126
      %v2976 = vpop.permute.xlu0 %2975
      %2977 = vrot.lane.b32.xlu0 %v444, 126
      %v2978 = vpop.permute.xlu0 %2977
      %2979 = vrot.lane.b32.xlu0 %v445, 126
      %v2980 = vpop.permute.xlu0 %2979
      %v2997 = vadd.f32 %v2933, %v2950
      %v2998 = vadd.f32 %v2934, %v2952
      %v2999 = vadd.f32 %v2935, %v2954
      %v3000 = vadd.f32 %v2936, %v2956
      %v3001 = vadd.f32 %v2937, %v2958
      %v3002 = vadd.f32 %v2938, %v2960
      %v3003 = vadd.f32 %v2939, %v2962
      %v3004 = vadd.f32 %v2940, %v2964
      %v3005 = vadd.f32 %v2941, %v2966
      %v3006 = vadd.f32 %v2942, %v2968
      %v3007 = vadd.f32 %v2943, %v2970
      %v3008 = vadd.f32 %v2944, %v2972
      %v3009 = vadd.f32 %v2945, %v2974
      %v3010 = vadd.f32 %v2946, %v2976
      %v3011 = vadd.f32 %v2947, %v2978
      %v3012 = vadd.f32 %v2948, %v2980
      %3013 = vst.msk [vmem:[#allocation3] sm:$0xff] %vm462, %v2997
      %3014 = vst.msk [vmem:[#allocation3 + $0x8] sm:$0xff] %vm462, %v2998
      %3015 = vst.msk [vmem:[#allocation3 + $0x10] sm:$0xff] %vm462, %v2999
      %3016 = vst.msk [vmem:[#allocation3 + $0x18] sm:$0xff] %vm462, %v3000
      %3017 = vst.msk [vmem:[#allocation3 + $0x20] sm:$0xff] %vm462, %v3001
      %3018 = vst.msk [vmem:[#allocation3 + $0x28] sm:$0xff] %vm462, %v3002
      %3019 = vst.msk [vmem:[#allocation3 + $0x30] sm:$0xff] %vm462, %v3003
      %3020 = vst.msk [vmem:[#allocation3 + $0x38] sm:$0xff] %vm462, %v3004
      %3021 = vst.msk [vmem:[#allocation3 + $0x40] sm:$0xff] %vm462, %v3005
      %3022 = vst.msk [vmem:[#allocation3 + $0x48] sm:$0xff] %vm462, %v3006
      %3023 = vst.msk [vmem:[#allocation3 + $0x50] sm:$0xff] %vm462, %v3007
      %3024 = vst.msk [vmem:[#allocation3 + $0x58] sm:$0xff] %vm462, %v3008
      %3025 = vst.msk [vmem:[#allocation3 + $0x60] sm:$0xff] %vm462, %v3009
      %3026 = vst.msk [vmem:[#allocation3 + $0x68] sm:$0xff] %vm462, %v3010
      %3027 = vst.msk [vmem:[#allocation3 + $0x70] sm:$0xff] %vm462, %v3011
      %3028 = vst.msk [vmem:[#allocation3 + $0x78] sm:$0xff] %vm462, %v3012
    $region65: #{tpu_custom_call.1} parent=1 // pred_fallthru
      _
    %s3029 = sadd.s32 %s479, 3
    %s3030 = sld [smem:[#allocation5 + %s3029]]
    %p3031 = scmp.gt.s32.totalorder %s3030, 0
    // Predicated region
    $region66: #{tpu_custom_call.1} parent=1 // pred_check
      %p3032 = pneg %p3031
    $region67: #{tpu_custom_call.1} parent=1 // pred_check_branch
      %3034 = sbr.rel (%p3032) target = $region69
    $region68: #{tpu_custom_call.1} parent=1 // pred_region
      %s3035 = scalar_lea.vmem [#allocation6], 192
      %v3036 = vld [vmem:[%s3035] sm:$0xf]
      %v3037 = vld [vmem:[%s3035 + $0x4] sm:$0xf]
      %v3038 = vld [vmem:[%s3035 + $0x8] sm:$0xf]
      %v3039 = vld [vmem:[%s3035 + $0xc] sm:$0xf]
      %v3040 = vld [vmem:[%s3035 + $0x10] sm:$0xf]
      %v3041 = vld [vmem:[%s3035 + $0x14] sm:$0xf]
      %v3042 = vld [vmem:[%s3035 + $0x18] sm:$0xf]
      %v3043 = vld [vmem:[%s3035 + $0x1c] sm:$0xf]
      %v3044 = vld [vmem:[%s3035 + $0x20] sm:$0xf]
      %v3045 = vld [vmem:[%s3035 + $0x24] sm:$0xf]
      %v3046 = vld [vmem:[%s3035 + $0x28] sm:$0xf]
      %v3047 = vld [vmem:[%s3035 + $0x2c] sm:$0xf]
      %v3048 = vld [vmem:[%s3035 + $0x30] sm:$0xf]
      %v3049 = vld [vmem:[%s3035 + $0x34] sm:$0xf]
      %v3050 = vld [vmem:[%s3035 + $0x38] sm:$0xf]
      %v3051 = vld [vmem:[%s3035 + $0x3c] sm:$0xf]
      %s3052 = scalar_lea.vmem %s6, 3
      %v3053 = vld [vmem:[%s3052] sm:$0x1]
      %v3055 = vlaneseq
      %v3056 = vshrl.u32 %v3055, 7
      %v3057 = vsub.s32 0, %v3056
      %v3058 = vrot.slane %v3053, %v3057
      %v3076 = vunpack.c.l.b16 %v3036
      %v3077 = vunpack.c.l.b16 %v3037
      %v3078 = vunpack.c.l.b16 %v3038
      %v3079 = vunpack.c.l.b16 %v3039
      %v3080 = vunpack.c.l.b16 %v3040
      %v3081 = vunpack.c.l.b16 %v3041
      %v3082 = vunpack.c.l.b16 %v3042
      %v3083 = vunpack.c.l.b16 %v3043
      %v3084 = vunpack.c.l.b16 %v3044
      %v3085 = vunpack.c.l.b16 %v3045
      %v3086 = vunpack.c.l.b16 %v3046
      %v3087 = vunpack.c.l.b16 %v3047
      %v3088 = vunpack.c.l.b16 %v3048
      %v3089 = vunpack.c.l.b16 %v3049
      %v3090 = vunpack.c.l.b16 %v3050
      %v3091 = vunpack.c.l.b16 %v3051
      %v3092 = vpack.c.b16 %v3077, %v3076
      %v3093 = vpack.c.b16 %v3079, %v3078
      %v3094 = vpack.c.b16 %v3081, %v3080
      %v3095 = vpack.c.b16 %v3083, %v3082
      %v3096 = vpack.c.b16 %v3085, %v3084
      %v3097 = vpack.c.b16 %v3087, %v3086
      %v3098 = vpack.c.b16 %v3089, %v3088
      %v3099 = vpack.c.b16 %v3091, %v3090
      %3108 = vmatprep.subr.bf16.mxu0 0
      %3109 = vmatpush1.bf16.msra.mxu0 %v3092
      %3110 = vmatprep.subr.bf16.mxu0 0
      %3111 = vmatpush1.bf16.msra.mxu0 %v3093
      %3112 = vmatprep.subr.bf16.mxu0 0
      %3113 = vmatpush1.bf16.msra.mxu0 %v3094
      %3114 = vmatprep.subr.bf16.mxu0 0
      %3115 = vmatpush1.bf16.msra.mxu0 %v3095
      %3116 = vmatprep.subr.bf16.mxu0 0
      %3117 = vmatpush1.bf16.msra.mxu0 %v3096
      %3118 = vmatprep.subr.bf16.mxu0 0
      %3119 = vmatpush1.bf16.msra.mxu0 %v3097
      %3120 = vmatprep.subr.bf16.mxu0 0
      %3121 = vmatpush1.bf16.msra.mxu0 %v3098
      %3122 = vmatprep.subr.bf16.mxu0 0
      %3123 = vmatpush1.bf16.msra.mxu0 %v3099
      %3124 = vmatprep.subr.bf16.mxu0 0
      %3125 = vmatpush1.bf16.msra.mxu0 0
      %3126 = vmatprep.subr.bf16.mxu0 0
      %3127 = vmatpush1.bf16.msra.mxu0 0
      %3128 = vmatprep.subr.bf16.mxu0 0
      %3129 = vmatpush1.bf16.msra.mxu0 0
      %3130 = vmatprep.subr.bf16.mxu0 0
      %3131 = vmatpush1.bf16.msra.mxu0 0
      %3132 = vmatprep.subr.bf16.mxu0 0
      %3133 = vmatpush1.bf16.msra.mxu0 0
      %3134 = vmatprep.subr.bf16.mxu0 0
      %3135 = vmatpush1.bf16.msra.mxu0 0
      %3136 = vmatprep.subr.bf16.mxu0 0
      %3137 = vmatpush1.bf16.msra.mxu0 0
      %3138 = vmatprep.subr.bf16.mxu0 0
      %3139 = vmatpush1.bf16.msra.mxu0 0
      %3140 = vmatprep.mubr.bf16.mxu0 0
      %3141 = vmatmul.mubr.bf16.gmra.mrb[0].mxu0 %v156
      %v3142 = vpop.f32.mrb[0].mxu0
      %v3143 = vadd.f32 %v3058, %v3142
      %v3144 = vpop.f32.mrb[0].mxu0
      %v3145 = vpop.f32.mrb[0].mxu0
      %v3146 = vadd.f32 %v3058, %v3145
      %v3147 = vpop.f32.mrb[0].mxu0
      %3148 = vmatprep.mubr.bf16.mxu0 0
      %3149 = vmatmul.mubr.bf16.gmra.mrb[0].mxu0 %v157
      %v3150 = vpop.f32.mrb[0].mxu0
      %v3151 = vadd.f32 %v3058, %v3150
      %v3152 = vpop.f32.mrb[0].mxu0
      %v3153 = vpop.f32.mrb[0].mxu0
      %v3154 = vadd.f32 %v3058, %v3153
      %v3155 = vpop.f32.mrb[0].mxu0
      %3156 = vmatprep.mubr.bf16.mxu0 0
      %3157 = vmatmul.mubr.bf16.gmra.mrb[0].mxu0 %v158
      %v3158 = vpop.f32.mrb[0].mxu0
      %v3159 = vadd.f32 %v3058, %v3158
      %v3160 = vpop.f32.mrb[0].mxu0
      %v3161 = vpop.f32.mrb[0].mxu0
      %v3162 = vadd.f32 %v3058, %v3161
      %v3163 = vpop.f32.mrb[0].mxu0
      %3164 = vmatprep.mubr.bf16.mxu0 0
      %3165 = vmatmul.mubr.bf16.gmra.mrb[0].mxu0 %v159
      %v3166 = vpop.f32.mrb[0].mxu0
      %v3167 = vadd.f32 %v3058, %v3166
      %v3168 = vpop.f32.mrb[0].mxu0
      %v3169 = vpop.f32.mrb[0].mxu0
      %v3170 = vadd.f32 %v3058, %v3169
      %v3171 = vpop.f32.mrb[0].mxu0
      %3172 = vmatprep.mubr.bf16.mxu0 0
      %3173 = vmatmul.mubr.bf16.gmra.mrb[0].mxu0 %v160
      %v3174 = vpop.f32.mrb[0].mxu0
      %v3175 = vadd.f32 %v3058, %v3174
      %v3176 = vpop.f32.mrb[0].mxu0
      %v3177 = vpop.f32.mrb[0].mxu0
      %v3178 = vadd.f32 %v3058, %v3177
      %v3179 = vpop.f32.mrb[0].mxu0
      %3180 = vmatprep.mubr.bf16.mxu0 0
      %3181 = vmatmul.mubr.bf16.gmra.mrb[0].mxu0 %v161
      %v3182 = vpop.f32.mrb[0].mxu0
      %v3183 = vadd.f32 %v3058, %v3182
      %v3184 = vpop.f32.mrb[0].mxu0
      %v3185 = vpop.f32.mrb[0].mxu0
      %v3186 = vadd.f32 %v3058, %v3185
      %v3187 = vpop.f32.mrb[0].mxu0
      %3188 = vmatprep.mubr.bf16.mxu0 0
      %3189 = vmatmul.mubr.bf16.gmra.mrb[0].mxu0 %v162
      %v3190 = vpop.f32.mrb[0].mxu0
      %v3191 = vadd.f32 %v3058, %v3190
      %v3192 = vpop.f32.mrb[0].mxu0
      %v3193 = vpop.f32.mrb[0].mxu0
      %v3194 = vadd.f32 %v3058, %v3193
      %v3195 = vpop.f32.mrb[0].mxu0
      %3196 = vmatprep.mubr.bf16.mxu0 0
      %3197 = vmatmul.mubr.bf16.gmra.mrb[0].mxu0 %v163
      %v3198 = vpop.f32.mrb[0].mxu0
      %v3199 = vadd.f32 %v3058, %v3198
      %v3200 = vpop.f32.mrb[0].mxu0
      %v3201 = vpop.f32.mrb[0].mxu0
      %v3202 = vadd.f32 %v3058, %v3201
      %v3203 = vpop.f32.mrb[0].mxu0
      %3204 = vdwg.mxu0
      %vm3205 = vcmp.gt.f32.partialorder %v3143, 0.0
      %vm3206 = vcmp.gt.f32.partialorder %v3146, 0.0
      %vm3207 = vcmp.gt.f32.partialorder %v3151, 0.0
      %vm3208 = vcmp.gt.f32.partialorder %v3154, 0.0
      %vm3209 = vcmp.gt.f32.partialorder %v3159, 0.0
      %vm3210 = vcmp.gt.f32.partialorder %v3162, 0.0
      %vm3211 = vcmp.gt.f32.partialorder %v3167, 0.0
      %vm3212 = vcmp.gt.f32.partialorder %v3170, 0.0
      %vm3213 = vcmp.gt.f32.partialorder %v3175, 0.0
      %vm3214 = vcmp.gt.f32.partialorder %v3178, 0.0
      %vm3215 = vcmp.gt.f32.partialorder %v3183, 0.0
      %vm3216 = vcmp.gt.f32.partialorder %v3186, 0.0
      %vm3217 = vcmp.gt.f32.partialorder %v3191, 0.0
      %vm3218 = vcmp.gt.f32.partialorder %v3194, 0.0
      %vm3219 = vcmp.gt.f32.partialorder %v3199, 0.0
      %vm3220 = vcmp.gt.f32.partialorder %v3202, 0.0
      %v3221 = vmul.f32 %v3143, 0.01
      %v3222 = vmul.f32 %v3146, 0.01
      %v3223 = vmul.f32 %v3151, 0.01
      %v3224 = vmul.f32 %v3154, 0.01
      %v3225 = vmul.f32 %v3159, 0.01
      %v3226 = vmul.f32 %v3162, 0.01
      %v3227 = vmul.f32 %v3167, 0.01
      %v3228 = vmul.f32 %v3170, 0.01
      %v3229 = vmul.f32 %v3175, 0.01
      %v3230 = vmul.f32 %v3178, 0.01
      %v3231 = vmul.f32 %v3183, 0.01
      %v3232 = vmul.f32 %v3186, 0.01
      %v3233 = vmul.f32 %v3191, 0.01
      %v3234 = vmul.f32 %v3194, 0.01
      %v3235 = vmul.f32 %v3199, 0.01
      %v3236 = vmul.f32 %v3202, 0.01
      %v3237 = vsel %vm3205, %v3143, %v3221
      %v3238 = vsel %vm3206, %v3146, %v3222
      %v3239 = vsel %vm3207, %v3151, %v3223
      %v3240 = vsel %vm3208, %v3154, %v3224
      %v3241 = vsel %vm3209, %v3159, %v3225
      %v3242 = vsel %vm3210, %v3162, %v3226
      %v3243 = vsel %vm3211, %v3167, %v3227
      %v3244 = vsel %vm3212, %v3170, %v3228
      %v3245 = vsel %vm3213, %v3175, %v3229
      %v3246 = vsel %vm3214, %v3178, %v3230
      %v3247 = vsel %vm3215, %v3183, %v3231
      %v3248 = vsel %vm3216, %v3186, %v3232
      %v3249 = vsel %vm3217, %v3191, %v3233
      %v3250 = vsel %vm3218, %v3194, %v3234
      %v3251 = vsel %vm3219, %v3199, %v3235
      %v3252 = vsel %vm3220, %v3202, %v3236
      %v3253 = vpack.c.bf16 %v3238, %v3237
      %v3254 = vpack.c.bf16 %v3240, %v3239
      %v3255 = vpack.c.bf16 %v3242, %v3241
      %v3256 = vpack.c.bf16 %v3244, %v3243
      %v3257 = vpack.c.bf16 %v3246, %v3245
      %v3258 = vpack.c.bf16 %v3248, %v3247
      %v3259 = vpack.c.bf16 %v3250, %v3249
      %v3260 = vpack.c.bf16 %v3252, %v3251
      %s3261 = scalar_lea.vmem [#allocation9], 192
      %v3262 = vld [vmem:[%s3261] sm:$0xf]
      %v3263 = vld [vmem:[%s3261 + $0x4] sm:$0xf]
      %v3264 = vld [vmem:[%s3261 + $0x8] sm:$0xf]
      %v3265 = vld [vmem:[%s3261 + $0xc] sm:$0xf]
      %v3266 = vld [vmem:[%s3261 + $0x10] sm:$0xf]
      %v3267 = vld [vmem:[%s3261 + $0x14] sm:$0xf]
      %v3268 = vld [vmem:[%s3261 + $0x18] sm:$0xf]
      %v3269 = vld [vmem:[%s3261 + $0x1c] sm:$0xf]
      %v3270 = vld [vmem:[%s3261 + $0x20] sm:$0xf]
      %v3271 = vld [vmem:[%s3261 + $0x24] sm:$0xf]
      %v3272 = vld [vmem:[%s3261 + $0x28] sm:$0xf]
      %v3273 = vld [vmem:[%s3261 + $0x2c] sm:$0xf]
      %v3274 = vld [vmem:[%s3261 + $0x30] sm:$0xf]
      %v3275 = vld [vmem:[%s3261 + $0x34] sm:$0xf]
      %v3276 = vld [vmem:[%s3261 + $0x38] sm:$0xf]
      %v3277 = vld [vmem:[%s3261 + $0x3c] sm:$0xf]
      %s3278 = scalar_lea.vmem %s8, 3
      %v3279 = vld [vmem:[%s3278] sm:$0x1]
      %v3281 = vlaneseq
      %v3282 = vshrl.u32 %v3281, 7
      %v3283 = vsub.s32 0, %v3282
      %v3284 = vrot.slane %v3279, %v3283
      %v3302 = vunpack.c.l.b16 %v3262
      %v3303 = vunpack.c.l.b16 %v3263
      %v3304 = vunpack.c.l.b16 %v3264
      %v3305 = vunpack.c.l.b16 %v3265
      %v3306 = vunpack.c.l.b16 %v3266
      %v3307 = vunpack.c.l.b16 %v3267
      %v3308 = vunpack.c.l.b16 %v3268
      %v3309 = vunpack.c.l.b16 %v3269
      %v3310 = vunpack.c.l.b16 %v3270
      %v3311 = vunpack.c.l.b16 %v3271
      %v3312 = vunpack.c.l.b16 %v3272
      %v3313 = vunpack.c.l.b16 %v3273
      %v3314 = vunpack.c.l.b16 %v3274
      %v3315 = vunpack.c.l.b16 %v3275
      %v3316 = vunpack.c.l.b16 %v3276
      %v3317 = vunpack.c.l.b16 %v3277
      %v3318 = vpack.c.b16 %v3303, %v3302
      %v3319 = vpack.c.b16 %v3305, %v3304
      %v3320 = vpack.c.b16 %v3307, %v3306
      %v3321 = vpack.c.b16 %v3309, %v3308
      %v3322 = vpack.c.b16 %v3311, %v3310
      %v3323 = vpack.c.b16 %v3313, %v3312
      %v3324 = vpack.c.b16 %v3315, %v3314
      %v3325 = vpack.c.b16 %v3317, %v3316
      %3334 = vmatprep.subr.bf16.mxu0 0
      %3335 = vmatpush1.bf16.msra.mxu0 %v3318
      %3336 = vmatprep.subr.bf16.mxu0 0
      %3337 = vmatpush1.bf16.msra.mxu0 %v3319
      %3338 = vmatprep.subr.bf16.mxu0 0
      %3339 = vmatpush1.bf16.msra.mxu0 %v3320
      %3340 = vmatprep.subr.bf16.mxu0 0
      %3341 = vmatpush1.bf16.msra.mxu0 %v3321
      %3342 = vmatprep.subr.bf16.mxu0 0
      %3343 = vmatpush1.bf16.msra.mxu0 %v3322
      %3344 = vmatprep.subr.bf16.mxu0 0
      %3345 = vmatpush1.bf16.msra.mxu0 %v3323
      %3346 = vmatprep.subr.bf16.mxu0 0
      %3347 = vmatpush1.bf16.msra.mxu0 %v3324
      %3348 = vmatprep.subr.bf16.mxu0 0
      %3349 = vmatpush1.bf16.msra.mxu0 %v3325
      %3350 = vmatprep.subr.bf16.mxu0 0
      %3351 = vmatpush1.bf16.msra.mxu0 0
      %3352 = vmatprep.subr.bf16.mxu0 0
      %3353 = vmatpush1.bf16.msra.mxu0 0
      %3354 = vmatprep.subr.bf16.mxu0 0
      %3355 = vmatpush1.bf16.msra.mxu0 0
      %3356 = vmatprep.subr.bf16.mxu0 0
      %3357 = vmatpush1.bf16.msra.mxu0 0
      %3358 = vmatprep.subr.bf16.mxu0 0
      %3359 = vmatpush1.bf16.msra.mxu0 0
      %3360 = vmatprep.subr.bf16.mxu0 0
      %3361 = vmatpush1.bf16.msra.mxu0 0
      %3362 = vmatprep.subr.bf16.mxu0 0
      %3363 = vmatpush1.bf16.msra.mxu0 0
      %3364 = vmatprep.subr.bf16.mxu0 0
      %3365 = vmatpush1.bf16.msra.mxu0 0
      %3366 = vmatprep.mubr.bf16.mxu0 0
      %3367 = vmatmul.mubr.bf16.gmra.mrb[0].mxu0 %v3253
      %v3368 = vpop.f32.mrb[0].mxu0
      %v3369 = vadd.f32 %v3284, %v3368
      %v3370 = vpop.f32.mrb[0].mxu0
      %v3371 = vpop.f32.mrb[0].mxu0
      %v3372 = vadd.f32 %v3284, %v3371
      %v3373 = vpop.f32.mrb[0].mxu0
      %3374 = vmatprep.mubr.bf16.mxu0 0
      %3375 = vmatmul.mubr.bf16.gmra.mrb[0].mxu0 %v3254
      %v3376 = vpop.f32.mrb[0].mxu0
      %v3377 = vadd.f32 %v3284, %v3376
      %v3378 = vpop.f32.mrb[0].mxu0
      %v3379 = vpop.f32.mrb[0].mxu0
      %v3380 = vadd.f32 %v3284, %v3379
      %v3381 = vpop.f32.mrb[0].mxu0
      %3382 = vmatprep.mubr.bf16.mxu0 0
      %3383 = vmatmul.mubr.bf16.gmra.mrb[0].mxu0 %v3255
      %v3384 = vpop.f32.mrb[0].mxu0
      %v3385 = vadd.f32 %v3284, %v3384
      %v3386 = vpop.f32.mrb[0].mxu0
      %v3387 = vpop.f32.mrb[0].mxu0
      %v3388 = vadd.f32 %v3284, %v3387
      %v3389 = vpop.f32.mrb[0].mxu0
      %3390 = vmatprep.mubr.bf16.mxu0 0
      %3391 = vmatmul.mubr.bf16.gmra.mrb[0].mxu0 %v3256
      %v3392 = vpop.f32.mrb[0].mxu0
      %v3393 = vadd.f32 %v3284, %v3392
      %v3394 = vpop.f32.mrb[0].mxu0
      %v3395 = vpop.f32.mrb[0].mxu0
      %v3396 = vadd.f32 %v3284, %v3395
      %v3397 = vpop.f32.mrb[0].mxu0
      %3398 = vmatprep.mubr.bf16.mxu0 0
      %3399 = vmatmul.mubr.bf16.gmra.mrb[0].mxu0 %v3257
      %v3400 = vpop.f32.mrb[0].mxu0
      %v3401 = vadd.f32 %v3284, %v3400
      %v3402 = vpop.f32.mrb[0].mxu0
      %v3403 = vpop.f32.mrb[0].mxu0
      %v3404 = vadd.f32 %v3284, %v3403
      %v3405 = vpop.f32.mrb[0].mxu0
      %3406 = vmatprep.mubr.bf16.mxu0 0
      %3407 = vmatmul.mubr.bf16.gmra.mrb[0].mxu0 %v3258
      %v3408 = vpop.f32.mrb[0].mxu0
      %v3409 = vadd.f32 %v3284, %v3408
      %v3410 = vpop.f32.mrb[0].mxu0
      %v3411 = vpop.f32.mrb[0].mxu0
      %v3412 = vadd.f32 %v3284, %v3411
      %v3413 = vpop.f32.mrb[0].mxu0
      %3414 = vmatprep.mubr.bf16.mxu0 0
      %3415 = vmatmul.mubr.bf16.gmra.mrb[0].mxu0 %v3259
      %v3416 = vpop.f32.mrb[0].mxu0
      %v3417 = vadd.f32 %v3284, %v3416
      %v3418 = vpop.f32.mrb[0].mxu0
      %v3419 = vpop.f32.mrb[0].mxu0
      %v3420 = vadd.f32 %v3284, %v3419
      %v3421 = vpop.f32.mrb[0].mxu0
      %3422 = vmatprep.mubr.bf16.mxu0 0
      %3423 = vmatmul.mubr.bf16.gmra.mrb[0].mxu0 %v3260
      %v3424 = vpop.f32.mrb[0].mxu0
      %v3425 = vadd.f32 %v3284, %v3424
      %v3426 = vpop.f32.mrb[0].mxu0
      %v3427 = vpop.f32.mrb[0].mxu0
      %v3428 = vadd.f32 %v3284, %v3427
      %v3429 = vpop.f32.mrb[0].mxu0
      %3430 = vdwg.mxu0
      %vm3431 = vcmp.gt.f32.partialorder %v3369, 0.0
      %vm3432 = vcmp.gt.f32.partialorder %v3372, 0.0
      %vm3433 = vcmp.gt.f32.partialorder %v3377, 0.0
      %vm3434 = vcmp.gt.f32.partialorder %v3380, 0.0
      %vm3435 = vcmp.gt.f32.partialorder %v3385, 0.0
      %vm3436 = vcmp.gt.f32.partialorder %v3388, 0.0
      %vm3437 = vcmp.gt.f32.partialorder %v3393, 0.0
      %vm3438 = vcmp.gt.f32.partialorder %v3396, 0.0
      %vm3439 = vcmp.gt.f32.partialorder %v3401, 0.0
      %vm3440 = vcmp.gt.f32.partialorder %v3404, 0.0
      %vm3441 = vcmp.gt.f32.partialorder %v3409, 0.0
      %vm3442 = vcmp.gt.f32.partialorder %v3412, 0.0
      %vm3443 = vcmp.gt.f32.partialorder %v3417, 0.0
      %vm3444 = vcmp.gt.f32.partialorder %v3420, 0.0
      %vm3445 = vcmp.gt.f32.partialorder %v3425, 0.0
      %vm3446 = vcmp.gt.f32.partialorder %v3428, 0.0
      %v3447 = vmul.f32 %v3369, 0.01
      %v3448 = vmul.f32 %v3372, 0.01
      %v3449 = vmul.f32 %v3377, 0.01
      %v3450 = vmul.f32 %v3380, 0.01
      %v3451 = vmul.f32 %v3385, 0.01
      %v3452 = vmul.f32 %v3388, 0.01
      %v3453 = vmul.f32 %v3393, 0.01
      %v3454 = vmul.f32 %v3396, 0.01
      %v3455 = vmul.f32 %v3401, 0.01
      %v3456 = vmul.f32 %v3404, 0.01
      %v3457 = vmul.f32 %v3409, 0.01
      %v3458 = vmul.f32 %v3412, 0.01
      %v3459 = vmul.f32 %v3417, 0.01
      %v3460 = vmul.f32 %v3420, 0.01
      %v3461 = vmul.f32 %v3425, 0.01
      %v3462 = vmul.f32 %v3428, 0.01
      %v3463 = vsel %vm3431, %v3369, %v3447
      %v3464 = vsel %vm3432, %v3372, %v3448
      %v3465 = vsel %vm3433, %v3377, %v3449
      %v3466 = vsel %vm3434, %v3380, %v3450
      %v3467 = vsel %vm3435, %v3385, %v3451
      %v3468 = vsel %vm3436, %v3388, %v3452
      %v3469 = vsel %vm3437, %v3393, %v3453
      %v3470 = vsel %vm3438, %v3396, %v3454
      %v3471 = vsel %vm3439, %v3401, %v3455
      %v3472 = vsel %vm3440, %v3404, %v3456
      %v3473 = vsel %vm3441, %v3409, %v3457
      %v3474 = vsel %vm3442, %v3412, %v3458
      %v3475 = vsel %vm3443, %v3417, %v3459
      %v3476 = vsel %vm3444, %v3420, %v3460
      %v3477 = vsel %vm3445, %v3425, %v3461
      %v3478 = vsel %vm3446, %v3428, %v3462
      %v3479 = vpack.c.bf16 %v3464, %v3463
      %v3480 = vpack.c.bf16 %v3466, %v3465
      %v3481 = vpack.c.bf16 %v3468, %v3467
      %v3482 = vpack.c.bf16 %v3470, %v3469
      %v3483 = vpack.c.bf16 %v3472, %v3471
      %v3484 = vpack.c.bf16 %v3474, %v3473
      %v3485 = vpack.c.bf16 %v3476, %v3475
      %v3486 = vpack.c.bf16 %v3478, %v3477
      %s3487 = scalar_lea.vmem [#allocation11], 192
      %v3488 = vld [vmem:[%s3487] sm:$0xf]
      %v3489 = vld [vmem:[%s3487 + $0x4] sm:$0xf]
      %v3490 = vld [vmem:[%s3487 + $0x8] sm:$0xf]
      %v3491 = vld [vmem:[%s3487 + $0xc] sm:$0xf]
      %v3492 = vld [vmem:[%s3487 + $0x10] sm:$0xf]
      %v3493 = vld [vmem:[%s3487 + $0x14] sm:$0xf]
      %v3494 = vld [vmem:[%s3487 + $0x18] sm:$0xf]
      %v3495 = vld [vmem:[%s3487 + $0x1c] sm:$0xf]
      %v3496 = vld [vmem:[%s3487 + $0x20] sm:$0xf]
      %v3497 = vld [vmem:[%s3487 + $0x24] sm:$0xf]
      %v3498 = vld [vmem:[%s3487 + $0x28] sm:$0xf]
      %v3499 = vld [vmem:[%s3487 + $0x2c] sm:$0xf]
      %v3500 = vld [vmem:[%s3487 + $0x30] sm:$0xf]
      %v3501 = vld [vmem:[%s3487 + $0x34] sm:$0xf]
      %v3502 = vld [vmem:[%s3487 + $0x38] sm:$0xf]
      %v3503 = vld [vmem:[%s3487 + $0x3c] sm:$0xf]
      %s3504 = scalar_lea.vmem %s10, 3
      %v3505 = vld [vmem:[%s3504] sm:$0x1]
      %v3507 = vlaneseq
      %v3508 = vshrl.u32 %v3507, 7
      %v3509 = vsub.s32 0, %v3508
      %v3510 = vrot.slane %v3505, %v3509
      %v3528 = vunpack.c.l.b16 %v3488
      %v3529 = vunpack.c.l.b16 %v3489
      %v3530 = vunpack.c.l.b16 %v3490
      %v3531 = vunpack.c.l.b16 %v3491
      %v3532 = vunpack.c.l.b16 %v3492
      %v3533 = vunpack.c.l.b16 %v3493
      %v3534 = vunpack.c.l.b16 %v3494
      %v3535 = vunpack.c.l.b16 %v3495
      %v3536 = vunpack.c.l.b16 %v3496
      %v3537 = vunpack.c.l.b16 %v3497
      %v3538 = vunpack.c.l.b16 %v3498
      %v3539 = vunpack.c.l.b16 %v3499
      %v3540 = vunpack.c.l.b16 %v3500
      %v3541 = vunpack.c.l.b16 %v3501
      %v3542 = vunpack.c.l.b16 %v3502
      %v3543 = vunpack.c.l.b16 %v3503
      %v3544 = vpack.c.b16 %v3529, %v3528
      %v3545 = vpack.c.b16 %v3531, %v3530
      %v3546 = vpack.c.b16 %v3533, %v3532
      %v3547 = vpack.c.b16 %v3535, %v3534
      %v3548 = vpack.c.b16 %v3537, %v3536
      %v3549 = vpack.c.b16 %v3539, %v3538
      %v3550 = vpack.c.b16 %v3541, %v3540
      %v3551 = vpack.c.b16 %v3543, %v3542
      %3560 = vmatprep.subr.bf16.mxu0 0
      %3561 = vmatpush1.bf16.msra.mxu0 %v3544
      %3562 = vmatprep.subr.bf16.mxu0 0
      %3563 = vmatpush1.bf16.msra.mxu0 %v3545
      %3564 = vmatprep.subr.bf16.mxu0 0
      %3565 = vmatpush1.bf16.msra.mxu0 %v3546
      %3566 = vmatprep.subr.bf16.mxu0 0
      %3567 = vmatpush1.bf16.msra.mxu0 %v3547
      %3568 = vmatprep.subr.bf16.mxu0 0
      %3569 = vmatpush1.bf16.msra.mxu0 %v3548
      %3570 = vmatprep.subr.bf16.mxu0 0
      %3571 = vmatpush1.bf16.msra.mxu0 %v3549
      %3572 = vmatprep.subr.bf16.mxu0 0
      %3573 = vmatpush1.bf16.msra.mxu0 %v3550
      %3574 = vmatprep.subr.bf16.mxu0 0
      %3575 = vmatpush1.bf16.msra.mxu0 %v3551
      %3576 = vmatprep.subr.bf16.mxu0 0
      %3577 = vmatpush1.bf16.msra.mxu0 0
      %3578 = vmatprep.subr.bf16.mxu0 0
      %3579 = vmatpush1.bf16.msra.mxu0 0
      %3580 = vmatprep.subr.bf16.mxu0 0
      %3581 = vmatpush1.bf16.msra.mxu0 0
      %3582 = vmatprep.subr.bf16.mxu0 0
      %3583 = vmatpush1.bf16.msra.mxu0 0
      %3584 = vmatprep.subr.bf16.mxu0 0
      %3585 = vmatpush1.bf16.msra.mxu0 0
      %3586 = vmatprep.subr.bf16.mxu0 0
      %3587 = vmatpush1.bf16.msra.mxu0 0
      %3588 = vmatprep.subr.bf16.mxu0 0
      %3589 = vmatpush1.bf16.msra.mxu0 0
      %3590 = vmatprep.subr.bf16.mxu0 0
      %3591 = vmatpush1.bf16.msra.mxu0 0
      %3592 = vmatprep.mubr.bf16.mxu0 0
      %3593 = vmatmul.mubr.bf16.gmra.mrb[0].mxu0 %v3479
      %v3594 = vpop.f32.mrb[0].mxu0
      %v3595 = vadd.f32 %v3510, %v3594
      %v3596 = vpop.f32.mrb[0].mxu0
      %v3597 = vpop.f32.mrb[0].mxu0
      %v3598 = vadd.f32 %v3510, %v3597
      %v3599 = vpop.f32.mrb[0].mxu0
      %3600 = vmatprep.mubr.bf16.mxu0 0
      %3601 = vmatmul.mubr.bf16.gmra.mrb[0].mxu0 %v3480
      %v3602 = vpop.f32.mrb[0].mxu0
      %v3603 = vadd.f32 %v3510, %v3602
      %v3604 = vpop.f32.mrb[0].mxu0
      %v3605 = vpop.f32.mrb[0].mxu0
      %v3606 = vadd.f32 %v3510, %v3605
      %v3607 = vpop.f32.mrb[0].mxu0
      %3608 = vmatprep.mubr.bf16.mxu0 0
      %3609 = vmatmul.mubr.bf16.gmra.mrb[0].mxu0 %v3481
      %v3610 = vpop.f32.mrb[0].mxu0
      %v3611 = vadd.f32 %v3510, %v3610
      %v3612 = vpop.f32.mrb[0].mxu0
      %v3613 = vpop.f32.mrb[0].mxu0
      %v3614 = vadd.f32 %v3510, %v3613
      %v3615 = vpop.f32.mrb[0].mxu0
      %3616 = vmatprep.mubr.bf16.mxu0 0
      %3617 = vmatmul.mubr.bf16.gmra.mrb[0].mxu0 %v3482
      %v3618 = vpop.f32.mrb[0].mxu0
      %v3619 = vadd.f32 %v3510, %v3618
      %v3620 = vpop.f32.mrb[0].mxu0
      %v3621 = vpop.f32.mrb[0].mxu0
      %v3622 = vadd.f32 %v3510, %v3621
      %v3623 = vpop.f32.mrb[0].mxu0
      %3624 = vmatprep.mubr.bf16.mxu0 0
      %3625 = vmatmul.mubr.bf16.gmra.mrb[0].mxu0 %v3483
      %v3626 = vpop.f32.mrb[0].mxu0
      %v3627 = vadd.f32 %v3510, %v3626
      %v3628 = vpop.f32.mrb[0].mxu0
      %v3629 = vpop.f32.mrb[0].mxu0
      %v3630 = vadd.f32 %v3510, %v3629
      %v3631 = vpop.f32.mrb[0].mxu0
      %3632 = vmatprep.mubr.bf16.mxu0 0
      %3633 = vmatmul.mubr.bf16.gmra.mrb[0].mxu0 %v3484
      %v3634 = vpop.f32.mrb[0].mxu0
      %v3635 = vadd.f32 %v3510, %v3634
      %v3636 = vpop.f32.mrb[0].mxu0
      %v3637 = vpop.f32.mrb[0].mxu0
      %v3638 = vadd.f32 %v3510, %v3637
      %v3639 = vpop.f32.mrb[0].mxu0
      %3640 = vmatprep.mubr.bf16.mxu0 0
      %3641 = vmatmul.mubr.bf16.gmra.mrb[0].mxu0 %v3485
      %v3642 = vpop.f32.mrb[0].mxu0
      %v3643 = vadd.f32 %v3510, %v3642
      %v3644 = vpop.f32.mrb[0].mxu0
      %v3645 = vpop.f32.mrb[0].mxu0
      %v3646 = vadd.f32 %v3510, %v3645
      %v3647 = vpop.f32.mrb[0].mxu0
      %3648 = vmatprep.mubr.bf16.mxu0 0
      %3649 = vmatmul.mubr.bf16.gmra.mrb[0].mxu0 %v3486
      %v3650 = vpop.f32.mrb[0].mxu0
      %v3651 = vadd.f32 %v3510, %v3650
      %v3652 = vpop.f32.mrb[0].mxu0
      %v3653 = vpop.f32.mrb[0].mxu0
      %v3654 = vadd.f32 %v3510, %v3653
      %v3655 = vpop.f32.mrb[0].mxu0
      %3656 = vdwg.mxu0
      %v3657 = vld [vmem:[#allocation2] sm:$0xff]
      %v3658 = vld [vmem:[#allocation2 + $0x8] sm:$0xff]
      %v3659 = vld [vmem:[#allocation2 + $0x10] sm:$0xff]
      %v3660 = vld [vmem:[#allocation2 + $0x18] sm:$0xff]
      %v3661 = vld [vmem:[#allocation2 + $0x20] sm:$0xff]
      %v3662 = vld [vmem:[#allocation2 + $0x28] sm:$0xff]
      %v3663 = vld [vmem:[#allocation2 + $0x30] sm:$0xff]
      %v3664 = vld [vmem:[#allocation2 + $0x38] sm:$0xff]
      %v3665 = vld [vmem:[#allocation2 + $0x40] sm:$0xff]
      %v3666 = vld [vmem:[#allocation2 + $0x48] sm:$0xff]
      %v3667 = vld [vmem:[#allocation2 + $0x50] sm:$0xff]
      %v3668 = vld [vmem:[#allocation2 + $0x58] sm:$0xff]
      %v3669 = vld [vmem:[#allocation2 + $0x60] sm:$0xff]
      %v3670 = vld [vmem:[#allocation2 + $0x68] sm:$0xff]
      %v3671 = vld [vmem:[#allocation2 + $0x70] sm:$0xff]
      %v3672 = vld [vmem:[#allocation2 + $0x78] sm:$0xff]
      %3674 = vset.pattern.permute.xlu0 3
      %3675 = vperm.xlu0 %3674, %v430
      %v3676 = vpop.permute.xlu0 %3675
      %3679 = vset.pattern.permute.xlu0 3
      %3680 = vperm.xlu0 %3679, %v431
      %v3681 = vpop.permute.xlu0 %3680
      %3684 = vset.pattern.permute.xlu0 3
      %3685 = vperm.xlu0 %3684, %v432
      %v3686 = vpop.permute.xlu0 %3685
      %3689 = vset.pattern.permute.xlu0 3
      %3690 = vperm.xlu0 %3689, %v433
      %v3691 = vpop.permute.xlu0 %3690
      %3694 = vset.pattern.permute.xlu0 3
      %3695 = vperm.xlu0 %3694, %v434
      %v3696 = vpop.permute.xlu0 %3695
      %3699 = vset.pattern.permute.xlu0 3
      %3700 = vperm.xlu0 %3699, %v435
      %v3701 = vpop.permute.xlu0 %3700
      %3704 = vset.pattern.permute.xlu0 3
      %3705 = vperm.xlu0 %3704, %v436
      %v3706 = vpop.permute.xlu0 %3705
      %3709 = vset.pattern.permute.xlu0 3
      %3710 = vperm.xlu0 %3709, %v437
      %v3711 = vpop.permute.xlu0 %3710
      %3714 = vset.pattern.permute.xlu0 3
      %3715 = vperm.xlu0 %3714, %v438
      %v3716 = vpop.permute.xlu0 %3715
      %3719 = vset.pattern.permute.xlu0 3
      %3720 = vperm.xlu0 %3719, %v439
      %v3721 = vpop.permute.xlu0 %3720
      %3724 = vset.pattern.permute.xlu0 3
      %3725 = vperm.xlu0 %3724, %v440
      %v3726 = vpop.permute.xlu0 %3725
      %3729 = vset.pattern.permute.xlu0 3
      %3730 = vperm.xlu0 %3729, %v441
      %v3731 = vpop.permute.xlu0 %3730
      %3734 = vset.pattern.permute.xlu0 3
      %3735 = vperm.xlu0 %3734, %v442
      %v3736 = vpop.permute.xlu0 %3735
      %3739 = vset.pattern.permute.xlu0 3
      %3740 = vperm.xlu0 %3739, %v443
      %v3741 = vpop.permute.xlu0 %3740
      %3744 = vset.pattern.permute.xlu0 3
      %3745 = vperm.xlu0 %3744, %v444
      %v3746 = vpop.permute.xlu0 %3745
      %3749 = vset.pattern.permute.xlu0 3
      %3750 = vperm.xlu0 %3749, %v445
      %v3751 = vpop.permute.xlu0 %3750
      %v3753 = vmul.f32 %v3676, %v3595
      %v3754 = vmul.f32 %v3681, %v3598
      %v3755 = vmul.f32 %v3686, %v3603
      %v3756 = vmul.f32 %v3691, %v3606
      %v3757 = vmul.f32 %v3696, %v3611
      %v3758 = vmul.f32 %v3701, %v3614
      %v3759 = vmul.f32 %v3706, %v3619
      %v3760 = vmul.f32 %v3711, %v3622
      %v3761 = vmul.f32 %v3716, %v3627
      %v3762 = vmul.f32 %v3721, %v3630
      %v3763 = vmul.f32 %v3726, %v3635
      %v3764 = vmul.f32 %v3731, %v3638
      %v3765 = vmul.f32 %v3736, %v3643
      %v3766 = vmul.f32 %v3741, %v3646
      %v3767 = vmul.f32 %v3746, %v3651
      %v3768 = vmul.f32 %v3751, %v3654
      %v3769 = vadd.f32 %v3657, %v3753
      %v3770 = vadd.f32 %v3658, %v3754
      %v3771 = vadd.f32 %v3659, %v3755
      %v3772 = vadd.f32 %v3660, %v3756
      %v3773 = vadd.f32 %v3661, %v3757
      %v3774 = vadd.f32 %v3662, %v3758
      %v3775 = vadd.f32 %v3663, %v3759
      %v3776 = vadd.f32 %v3664, %v3760
      %v3777 = vadd.f32 %v3665, %v3761
      %v3778 = vadd.f32 %v3666, %v3762
      %v3779 = vadd.f32 %v3667, %v3763
      %v3780 = vadd.f32 %v3668, %v3764
      %v3781 = vadd.f32 %v3669, %v3765
      %v3782 = vadd.f32 %v3670, %v3766
      %v3783 = vadd.f32 %v3671, %v3767
      %v3784 = vadd.f32 %v3672, %v3768
      %3785 = vst [vmem:[#allocation2] sm:$0xff] %v3769
      %3786 = vst [vmem:[#allocation2 + $0x8] sm:$0xff] %v3770
      %3787 = vst [vmem:[#allocation2 + $0x10] sm:$0xff] %v3771
      %3788 = vst [vmem:[#allocation2 + $0x18] sm:$0xff] %v3772
      %3789 = vst [vmem:[#allocation2 + $0x20] sm:$0xff] %v3773
      %3790 = vst [vmem:[#allocation2 + $0x28] sm:$0xff] %v3774
      %3791 = vst [vmem:[#allocation2 + $0x30] sm:$0xff] %v3775
      %3792 = vst [vmem:[#allocation2 + $0x38] sm:$0xff] %v3776
      %3793 = vst [vmem:[#allocation2 + $0x40] sm:$0xff] %v3777
      %3794 = vst [vmem:[#allocation2 + $0x48] sm:$0xff] %v3778
      %3795 = vst [vmem:[#allocation2 + $0x50] sm:$0xff] %v3779
      %3796 = vst [vmem:[#allocation2 + $0x58] sm:$0xff] %v3780
      %3797 = vst [vmem:[#allocation2 + $0x60] sm:$0xff] %v3781
      %3798 = vst [vmem:[#allocation2 + $0x68] sm:$0xff] %v3782
      %3799 = vst [vmem:[#allocation2 + $0x70] sm:$0xff] %v3783
      %3800 = vst [vmem:[#allocation2 + $0x78] sm:$0xff] %v3784
      %v3801 = vld [vmem:[#allocation3] sm:$0xff]
      %v3802 = vld [vmem:[#allocation3 + $0x8] sm:$0xff]
      %v3803 = vld [vmem:[#allocation3 + $0x10] sm:$0xff]
      %v3804 = vld [vmem:[#allocation3 + $0x18] sm:$0xff]
      %v3805 = vld [vmem:[#allocation3 + $0x20] sm:$0xff]
      %v3806 = vld [vmem:[#allocation3 + $0x28] sm:$0xff]
      %v3807 = vld [vmem:[#allocation3 + $0x30] sm:$0xff]
      %v3808 = vld [vmem:[#allocation3 + $0x38] sm:$0xff]
      %v3809 = vld [vmem:[#allocation3 + $0x40] sm:$0xff]
      %v3810 = vld [vmem:[#allocation3 + $0x48] sm:$0xff]
      %v3811 = vld [vmem:[#allocation3 + $0x50] sm:$0xff]
      %v3812 = vld [vmem:[#allocation3 + $0x58] sm:$0xff]
      %v3813 = vld [vmem:[#allocation3 + $0x60] sm:$0xff]
      %v3814 = vld [vmem:[#allocation3 + $0x68] sm:$0xff]
      %v3815 = vld [vmem:[#allocation3 + $0x70] sm:$0xff]
      %v3816 = vld [vmem:[#allocation3 + $0x78] sm:$0xff]
      %3817 = vrot.lane.b32.xlu0 %v430, 125
      %v3818 = vpop.permute.xlu0 %3817
      %3819 = vrot.lane.b32.xlu0 %v431, 125
      %v3820 = vpop.permute.xlu0 %3819
      %3821 = vrot.lane.b32.xlu0 %v432, 125
      %v3822 = vpop.permute.xlu0 %3821
      %3823 = vrot.lane.b32.xlu0 %v433, 125
      %v3824 = vpop.permute.xlu0 %3823
      %3825 = vrot.lane.b32.xlu0 %v434, 125
      %v3826 = vpop.permute.xlu0 %3825
      %3827 = vrot.lane.b32.xlu0 %v435, 125
      %v3828 = vpop.permute.xlu0 %3827
      %3829 = vrot.lane.b32.xlu0 %v436, 125
      %v3830 = vpop.permute.xlu0 %3829
      %3831 = vrot.lane.b32.xlu0 %v437, 125
      %v3832 = vpop.permute.xlu0 %3831
      %3833 = vrot.lane.b32.xlu0 %v438, 125
      %v3834 = vpop.permute.xlu0 %3833
      %3835 = vrot.lane.b32.xlu0 %v439, 125
      %v3836 = vpop.permute.xlu0 %3835
      %3837 = vrot.lane.b32.xlu0 %v440, 125
      %v3838 = vpop.permute.xlu0 %3837
      %3839 = vrot.lane.b32.xlu0 %v441, 125
      %v3840 = vpop.permute.xlu0 %3839
      %3841 = vrot.lane.b32.xlu0 %v442, 125
      %v3842 = vpop.permute.xlu0 %3841
      %3843 = vrot.lane.b32.xlu0 %v443, 125
      %v3844 = vpop.permute.xlu0 %3843
      %3845 = vrot.lane.b32.xlu0 %v444, 125
      %v3846 = vpop.permute.xlu0 %3845
      %3847 = vrot.lane.b32.xlu0 %v445, 125
      %v3848 = vpop.permute.xlu0 %3847
      %v3865 = vadd.f32 %v3801, %v3818
      %v3866 = vadd.f32 %v3802, %v3820
      %v3867 = vadd.f32 %v3803, %v3822
      %v3868 = vadd.f32 %v3804, %v3824
      %v3869 = vadd.f32 %v3805, %v3826
      %v3870 = vadd.f32 %v3806, %v3828
      %v3871 = vadd.f32 %v3807, %v3830
      %v3872 = vadd.f32 %v3808, %v3832
      %v3873 = vadd.f32 %v3809, %v3834
      %v3874 = vadd.f32 %v3810, %v3836
      %v3875 = vadd.f32 %v3811, %v3838
      %v3876 = vadd.f32 %v3812, %v3840
      %v3877 = vadd.f32 %v3813, %v3842
      %v3878 = vadd.f32 %v3814, %v3844
      %v3879 = vadd.f32 %v3815, %v3846
      %v3880 = vadd.f32 %v3816, %v3848
      %3881 = vst.msk [vmem:[#allocation3] sm:$0xff] %vm462, %v3865
      %3882 = vst.msk [vmem:[#allocation3 + $0x8] sm:$0xff] %vm462, %v3866
      %3883 = vst.msk [vmem:[#allocation3 + $0x10] sm:$0xff] %vm462, %v3867
      %3884 = vst.msk [vmem:[#allocation3 + $0x18] sm:$0xff] %vm462, %v3868
      %3885 = vst.msk [vmem:[#allocation3 + $0x20] sm:$0xff] %vm462, %v3869
      %3886 = vst.msk [vmem:[#allocation3 + $0x28] sm:$0xff] %vm462, %v3870
      %3887 = vst.msk [vmem:[#allocation3 + $0x30] sm:$0xff] %vm462, %v3871
      %3888 = vst.msk [vmem:[#allocation3 + $0x38] sm:$0xff] %vm462, %v3872
      %3889 = vst.msk [vmem:[#allocation3 + $0x40] sm:$0xff] %vm462, %v3873
      %3890 = vst.msk [vmem:[#allocation3 + $0x48] sm:$0xff] %vm462, %v3874
      %3891 = vst.msk [vmem:[#allocation3 + $0x50] sm:$0xff] %vm462, %v3875
      %3892 = vst.msk [vmem:[#allocation3 + $0x58] sm:$0xff] %vm462, %v3876
      %3893 = vst.msk [vmem:[#allocation3 + $0x60] sm:$0xff] %vm462, %v3877
      %3894 = vst.msk [vmem:[#allocation3 + $0x68] sm:$0xff] %vm462, %v3878
      %3895 = vst.msk [vmem:[#allocation3 + $0x70] sm:$0xff] %vm462, %v3879
      %3896 = vst.msk [vmem:[#allocation3 + $0x78] sm:$0xff] %vm462, %v3880
    $region69: #{tpu_custom_call.1} parent=1 // pred_fallthru
      _
    %v3897 = vld [vmem:[#allocation3] sm:$0xff]
    %v3898 = vld [vmem:[#allocation3 + $0x8] sm:$0xff]
    %v3899 = vld [vmem:[#allocation3 + $0x10] sm:$0xff]
    %v3900 = vld [vmem:[#allocation3 + $0x18] sm:$0xff]
    %v3901 = vld [vmem:[#allocation3 + $0x20] sm:$0xff]
    %v3902 = vld [vmem:[#allocation3 + $0x28] sm:$0xff]
    %v3903 = vld [vmem:[#allocation3 + $0x30] sm:$0xff]
    %v3904 = vld [vmem:[#allocation3 + $0x38] sm:$0xff]
    %v3905 = vld [vmem:[#allocation3 + $0x40] sm:$0xff]
    %v3906 = vld [vmem:[#allocation3 + $0x48] sm:$0xff]
    %v3907 = vld [vmem:[#allocation3 + $0x50] sm:$0xff]
    %v3908 = vld [vmem:[#allocation3 + $0x58] sm:$0xff]
    %v3909 = vld [vmem:[#allocation3 + $0x60] sm:$0xff]
    %v3910 = vld [vmem:[#allocation3 + $0x68] sm:$0xff]
    %v3911 = vld [vmem:[#allocation3 + $0x70] sm:$0xff]
    %v3912 = vld [vmem:[#allocation3 + $0x78] sm:$0xff]
    %v3913 = vmax.f32 %v3897, 1e-12
    %v3914 = vmax.f32 %v3898, 1e-12
    %v3915 = vmax.f32 %v3899, 1e-12
    %v3916 = vmax.f32 %v3900, 1e-12
    %v3917 = vmax.f32 %v3901, 1e-12
    %v3918 = vmax.f32 %v3902, 1e-12
    %v3919 = vmax.f32 %v3903, 1e-12
    %v3920 = vmax.f32 %v3904, 1e-12
    %v3921 = vmax.f32 %v3905, 1e-12
    %v3922 = vmax.f32 %v3906, 1e-12
    %v3923 = vmax.f32 %v3907, 1e-12
    %v3924 = vmax.f32 %v3908, 1e-12
    %v3925 = vmax.f32 %v3909, 1e-12
    %v3926 = vmax.f32 %v3910, 1e-12
    %v3927 = vmax.f32 %v3911, 1e-12
    %v3928 = vmax.f32 %v3912, 1e-12
    %v3929 = vrcp.pop %v3913
    %v3930 = vrcp.pop %v3914
    %v3931 = vrcp.pop %v3915
    %v3932 = vrcp.pop %v3916
    %v3933 = vrcp.pop %v3917
    %v3934 = vrcp.pop %v3918
    %v3935 = vrcp.pop %v3919
    %v3936 = vrcp.pop %v3920
    %v3937 = vrcp.pop %v3921
    %v3938 = vrcp.pop %v3922
    %v3939 = vrcp.pop %v3923
    %v3940 = vrcp.pop %v3924
    %v3941 = vrcp.pop %v3925
    %v3942 = vrcp.pop %v3926
    %v3943 = vrcp.pop %v3927
    %v3944 = vrcp.pop %v3928
    %v3945 = vld [vmem:[#allocation2] sm:$0xff]
    %v3946 = vld [vmem:[#allocation2 + $0x8] sm:$0xff]
    %v3947 = vld [vmem:[#allocation2 + $0x10] sm:$0xff]
    %v3948 = vld [vmem:[#allocation2 + $0x18] sm:$0xff]
    %v3949 = vld [vmem:[#allocation2 + $0x20] sm:$0xff]
    %v3950 = vld [vmem:[#allocation2 + $0x28] sm:$0xff]
    %v3951 = vld [vmem:[#allocation2 + $0x30] sm:$0xff]
    %v3952 = vld [vmem:[#allocation2 + $0x38] sm:$0xff]
    %v3953 = vld [vmem:[#allocation2 + $0x40] sm:$0xff]
    %v3954 = vld [vmem:[#allocation2 + $0x48] sm:$0xff]
    %v3955 = vld [vmem:[#allocation2 + $0x50] sm:$0xff]
    %v3956 = vld [vmem:[#allocation2 + $0x58] sm:$0xff]
    %v3957 = vld [vmem:[#allocation2 + $0x60] sm:$0xff]
    %v3958 = vld [vmem:[#allocation2 + $0x68] sm:$0xff]
    %v3959 = vld [vmem:[#allocation2 + $0x70] sm:$0xff]
    %v3960 = vld [vmem:[#allocation2 + $0x78] sm:$0xff]
    %3962 = vset.pattern.permute.xlu0 0
    %3963 = vperm.xlu0 %3962, %v3929
    %v3964 = vpop.permute.xlu0 %3963
    %3967 = vset.pattern.permute.xlu0 0
    %3968 = vperm.xlu0 %3967, %v3930
    %v3969 = vpop.permute.xlu0 %3968
    %3972 = vset.pattern.permute.xlu0 0
    %3973 = vperm.xlu0 %3972, %v3931
    %v3974 = vpop.permute.xlu0 %3973
    %3977 = vset.pattern.permute.xlu0 0
    %3978 = vperm.xlu0 %3977, %v3932
    %v3979 = vpop.permute.xlu0 %3978
    %3982 = vset.pattern.permute.xlu0 0
    %3983 = vperm.xlu0 %3982, %v3933
    %v3984 = vpop.permute.xlu0 %3983
    %3987 = vset.pattern.permute.xlu0 0
    %3988 = vperm.xlu0 %3987, %v3934
    %v3989 = vpop.permute.xlu0 %3988
    %3992 = vset.pattern.permute.xlu0 0
    %3993 = vperm.xlu0 %3992, %v3935
    %v3994 = vpop.permute.xlu0 %3993
    %3997 = vset.pattern.permute.xlu0 0
    %3998 = vperm.xlu0 %3997, %v3936
    %v3999 = vpop.permute.xlu0 %3998
    %4002 = vset.pattern.permute.xlu0 0
    %4003 = vperm.xlu0 %4002, %v3937
    %v4004 = vpop.permute.xlu0 %4003
    %4007 = vset.pattern.permute.xlu0 0
    %4008 = vperm.xlu0 %4007, %v3938
    %v4009 = vpop.permute.xlu0 %4008
    %4012 = vset.pattern.permute.xlu0 0
    %4013 = vperm.xlu0 %4012, %v3939
    %v4014 = vpop.permute.xlu0 %4013
    %4017 = vset.pattern.permute.xlu0 0
    %4018 = vperm.xlu0 %4017, %v3940
    %v4019 = vpop.permute.xlu0 %4018
    %4022 = vset.pattern.permute.xlu0 0
    %4023 = vperm.xlu0 %4022, %v3941
    %v4024 = vpop.permute.xlu0 %4023
    %4027 = vset.pattern.permute.xlu0 0
    %4028 = vperm.xlu0 %4027, %v3942
    %v4029 = vpop.permute.xlu0 %4028
    %4032 = vset.pattern.permute.xlu0 0
    %4033 = vperm.xlu0 %4032, %v3943
    %v4034 = vpop.permute.xlu0 %4033
    %4037 = vset.pattern.permute.xlu0 0
    %4038 = vperm.xlu0 %4037, %v3944
    %v4039 = vpop.permute.xlu0 %4038
    %v4041 = vmul.f32 %v3945, %v3964
    %v4042 = vmul.f32 %v3946, %v3969
    %v4043 = vmul.f32 %v3947, %v3974
    %v4044 = vmul.f32 %v3948, %v3979
    %v4045 = vmul.f32 %v3949, %v3984
    %v4046 = vmul.f32 %v3950, %v3989
    %v4047 = vmul.f32 %v3951, %v3994
    %v4048 = vmul.f32 %v3952, %v3999
    %v4049 = vmul.f32 %v3953, %v4004
    %v4050 = vmul.f32 %v3954, %v4009
    %v4051 = vmul.f32 %v3955, %v4014
    %v4052 = vmul.f32 %v3956, %v4019
    %v4053 = vmul.f32 %v3957, %v4024
    %v4054 = vmul.f32 %v3958, %v4029
    %v4055 = vmul.f32 %v3959, %v4034
    %v4056 = vmul.f32 %v3960, %v4039
    %4057 = vst [vmem:[#allocation12] sm:$0xff] %v4041
    %4058 = vst [vmem:[#allocation12 + $0x8] sm:$0xff] %v4042
    %4059 = vst [vmem:[#allocation12 + $0x10] sm:$0xff] %v4043
    %4060 = vst [vmem:[#allocation12 + $0x18] sm:$0xff] %v4044
    %4061 = vst [vmem:[#allocation12 + $0x20] sm:$0xff] %v4045
    %4062 = vst [vmem:[#allocation12 + $0x28] sm:$0xff] %v4046
    %4063 = vst [vmem:[#allocation12 + $0x30] sm:$0xff] %v4047
    %4064 = vst [vmem:[#allocation12 + $0x38] sm:$0xff] %v4048
    %4065 = vst [vmem:[#allocation12 + $0x40] sm:$0xff] %v4049
    %4066 = vst [vmem:[#allocation12 + $0x48] sm:$0xff] %v4050
    %4067 = vst [vmem:[#allocation12 + $0x50] sm:$0xff] %v4051
    %4068 = vst [vmem:[#allocation12 + $0x58] sm:$0xff] %v4052
    %4069 = vst [vmem:[#allocation12 + $0x60] sm:$0xff] %v4053
    %4070 = vst [vmem:[#allocation12 + $0x68] sm:$0xff] %v4054
    %4071 = vst [vmem:[#allocation12 + $0x70] sm:$0xff] %v4055
    %4072 = vst [vmem:[#allocation12 + $0x78] sm:$0xff] %v4056
    // Predicated region
    $region70: #{tpu_custom_call.1} parent=1 // pred_check
      _
    $region71: #{tpu_custom_call.1} parent=1 // pred_check_branch
      %4074 = sbr.rel (0) target = $region73
    $region72: #{tpu_custom_call.1} parent=1 // pred_region
      %s4076 = ssub.s32 2048, 2048
      %4077 = vsyncadd [#allocation8], %s4076
      %s4078 = sshll.u32 [#allocation12], 4
      %s4079 = int_to_ptr.vmem [resolvable:$true] %s4078
      %4084 = dma.vmem_to_hbm [thread:$0]  %s4079, 2048, %s11, [#allocation8], 128, 128, 8
    $region73: #{tpu_custom_call.1} parent=1 // pred_fallthru
      _
    // Predicated region
    $region74: #{tpu_custom_call.1} parent=1 // pred_check
      _
    $region75: #{tpu_custom_call.1} parent=1 // pred_check_branch
      %4086 = sbr.rel (0) target = $region77
    $region76: #{tpu_custom_call.1} parent=1 // pred_region
      %4087 = dma.done [#allocation8], 2048
    $region77: #{tpu_custom_call.1} parent=1 // pred_fallthru
      _
    %4088 = vsyncpa [#allocation7], 1
    %4089 = vsyncpa [#allocation10], 1
    %4090 = vsyncpa [#allocation8], 1

// kernel: tpu_custom_call.1
$region0: #{tpu_custom_call.1}
  #allocation0 [shape = 'u32[]', space=smem, size = 0x4, offset = 0x4, fixed_abs, tag = 'smem constant byte address 0x4 - core index']
  #allocation1 [shape = 'u32[144,128]{1,0:T(1,128)}', space=vmem, size = 0x12000, scoped, tag = 'internal scratch']
  #allocation2 [shape = 'f32[128,128]{1,0:T(8,128)}', space=vmem, size = 0x10000, scoped, tag = 'scratch operand']
  #allocation3 [shape = 'f32[128,1]{1,0:T(8,128)}', space=vmem, size = 0x10000, scoped, tag = 'scratch operand']
  #allocation4 [shape = 's32[1]{0}', space=sflag, size = 0x4, scoped, tag = 'scoped memory for tpu_custom_call.1']
  #allocation5 [shape = 'u8[512]{0}', space=smem, size = 0x200, scoped, tag = 'prefetched SMEM operand 0']
  %s0 = inlined_call_operand.vmem [shape: s32[1,4], index: 0, kind: input, shape index: {}]
  %s1 = inlined_call_operand.vmem [shape: bf16[128,128], index: 1, kind: input, shape index: {}]
  %s2 = inlined_call_operand.vmem [shape: f32[128,4], index: 2, kind: input, shape index: {}]
  %s3 = inlined_call_operand.vmem [shape: bf16[128,4], index: 3, kind: input, shape index: {}]
  %s4 = inlined_call_operand.vmem [shape: f32[1,4], index: 4, kind: input, shape index: {}]
  %s5 = inlined_call_operand.hbm [shape: bf16[4,128,128], index: 5, kind: input, shape index: {}]
  %s6 = inlined_call_operand.vmem [shape: f32[4,1,128], index: 6, kind: input, shape index: {}]
  %s7 = inlined_call_operand.hbm [shape: bf16[4,128,128], index: 7, kind: input, shape index: {}]
  %s8 = inlined_call_operand.vmem [shape: f32[4,1,128], index: 8, kind: input, shape index: {}]
  %s9 = inlined_call_operand.hbm [shape: bf16[4,128,128], index: 9, kind: input, shape index: {}]
  %s10 = inlined_call_operand.vmem [shape: f32[4,1,128], index: 10, kind: input, shape index: {}]
  %s11 = inlined_call_operand.hbm [shape: f32[128,128], index: 11, kind: output, shape index: {}]
  %s12 = sld [smem:[#allocation0]]
  $region78: #{tpu_custom_call.1} parent=0
    _
  %s14 = ssub.s32 1, %s12
  %s15 = scalar_select 0, %s14, %s12
  %s16 = sshll.u32 %s0, 4
  %s17 = int_to_ptr.vmem [resolvable:$true] %s16
  %19 = dma.vmem_to_smem %s17, 16, [#allocation5], [#allocation4]
  %20 = dma.done [#allocation4], 16
  %21 = sfence
  $region1: #{tpu_custom_call.1} parent=0
    #allocation6 [shape = 'u8[131072]{0}', space=vmem, size = 0x20000, scoped, tag = 'input window, operand 5, single buffered']
    #allocation7 [shape = 's32[1]{0}', space=sflag, size = 0x4, scoped, tag = 'scoped memory for tpu_custom_call.1']
    #allocation8 [shape = 's32[1]{0}', space=sflag, size = 0x4, scoped, tag = 'scoped memory for tpu_custom_call.1']
    #allocation9 [shape = 'u8[131072]{0}', space=vmem, size = 0x20000, scoped, tag = 'input window, operand 7, single buffered']
    #allocation10 [shape = 's32[1]{0}', space=sflag, size = 0x4, scoped, tag = 'scoped memory for tpu_custom_call.1']
    #allocation11 [shape = 'u8[131072]{0}', space=vmem, size = 0x20000, scoped, tag = 'input window, operand 9, single buffered']
    #allocation12 [shape = 'u8[65536]{0}', space=vmem, size = 0x10000, scoped, tag = 'output window, operand 0, single buffered']
    %22 = vsyncpa [#allocation7], 0
    %23 = vsyncpa [#allocation10], 0
    %24 = vsyncpa [#allocation8], 0
    // Predicated region
    $region2: #{tpu_custom_call.1} parent=1 // pred_check
      _
    $region3: #{tpu_custom_call.1} parent=1 // pred_check_branch
      %26 = sbr.rel (0) target = $region5
    $region4: #{tpu_custom_call.1} parent=1 // pred_region
      _
    $region5: #{tpu_custom_call.1} parent=1 // pred_fallthru
      _
    // Predicated region
    $region6: #{tpu_custom_call.1} parent=1 // pred_check
      _
    $region7: #{tpu_custom_call.1} parent=1 // pred_check_branch
      %28 = sbr.rel (0) target = $region9
    $region8: #{tpu_custom_call.1} parent=1 // pred_region
      _
    $region9: #{tpu_custom_call.1} parent=1 // pred_fallthru
      _
    // Predicated region
    $region10: #{tpu_custom_call.1} parent=1 // pred_check
      _
    $region11: #{tpu_custom_call.1} parent=1 // pred_check_branch
      %30 = sbr.rel (0) target = $region13
    $region12: #{tpu_custom_call.1} parent=1 // pred_region
      _
    $region13: #{tpu_custom_call.1} parent=1 // pred_fallthru
      _
    // Predicated region
    $region14: #{tpu_custom_call.1} parent=1 // pred_check
      _
    $region15: #{tpu_custom_call.1} parent=1 // pred_check_branch
      %32 = sbr.rel (0) target = $region17
    $region16: #{tpu_custom_call.1} parent=1 // pred_region
      _
    $region17: #{tpu_custom_call.1} parent=1 // pred_fallthru
      _
    // Predicated region
    $region18: #{tpu_custom_call.1} parent=1 // pred_check
      _
    $region19: #{tpu_custom_call.1} parent=1 // pred_check_branch
      %34 = sbr.rel (0) target = $region21
    $region20: #{tpu_custom_call.1} parent=1 // pred_region
      %s36 = ssub.s32 4096, 4096
      %37 = vsyncadd [#allocation7], %s36
      %s38 = sshll.u32 [#allocation6], 4
      %s39 = int_to_ptr.vmem [resolvable:$true] %s38
      %44 = dma.hbm_to_vmem [thread:$0]  %s5, 4096, %s39, [#allocation7], 64, 64, 4
    $region21: #{tpu_custom_call.1} parent=1 // pred_fallthru
      _
    // Predicated region
    $region22: #{tpu_custom_call.1} parent=1 // pred_check
      _
    $region23: #{tpu_custom_call.1} parent=1 // pred_check_branch
      %46 = sbr.rel (0) target = $region25
    $region24: #{tpu_custom_call.1} parent=1 // pred_region
      _
    $region25: #{tpu_custom_call.1} parent=1 // pred_fallthru
      _
    // Predicated region
    $region26: #{tpu_custom_call.1} parent=1 // pred_check
      _
    $region27: #{tpu_custom_call.1} parent=1 // pred_check_branch
      %48 = sbr.rel (0) target = $region29
    $region28: #{tpu_custom_call.1} parent=1 // pred_region
      %s50 = ssub.s32 4096, 4096
      %51 = vsyncadd [#allocation10], %s50
      %s52 = sshll.u32 [#allocation9], 4
      %s53 = int_to_ptr.vmem [resolvable:$true] %s52
      %58 = dma.hbm_to_vmem [thread:$0]  %s7, 4096, %s53, [#allocation10], 64, 64, 4
    $region29: #{tpu_custom_call.1} parent=1 // pred_fallthru
      _
    // Predicated region
    $region30: #{tpu_custom_call.1} parent=1 // pred_check
      _
    $region31: #{tpu_custom_call.1} parent=1 // pred_check_branch
      %60 = sbr.rel (0) target = $region33
    $region32: #{tpu_custom_call.1} parent=1 // pred_region
      _
    $region33: #{tpu_custom_call.1} parent=1 // pred_fallthru
      _
    // Predicated region
    $region34: #{tpu_custom_call.1} parent=1 // pred_check
      _
    $region35: #{tpu_custom_call.1} parent=1 // pred_check_branch
      %62 = sbr.rel (0) target = $region37
    $region36: #{tpu_custom_call.1} parent=1 // pred_region
      %s64 = ssub.s32 4096, 4096
      %65 = vsyncadd [#allocation10], %s64
      %s66 = sshll.u32 [#allocation11], 4
      %s67 = int_to_ptr.vmem [resolvable:$true] %s66
      %72 = dma.hbm_to_vmem [thread:$0]  %s9, 4096, %s67, [#allocation10], 64, 64, 4
    $region37: #{tpu_custom_call.1} parent=1 // pred_fallthru
      _
    // Predicated region
    $region38: #{tpu_custom_call.1} parent=1 // pred_check
      _
    $region39: #{tpu_custom_call.1} parent=1 // pred_check_branch
      %74 = sbr.rel (0) target = $region41
    $region40: #{tpu_custom_call.1} parent=1 // pred_region
      _
    $region41: #{tpu_custom_call.1} parent=1 // pred_fallthru
      _
    // Predicated region
    $region42: #{tpu_custom_call.1} parent=1 // pred_check
      _
    $region43: #{tpu_custom_call.1} parent=1 // pred_check_branch
      %76 = sbr.rel (0) target = $region45
    $region44: #{tpu_custom_call.1} parent=1 // pred_region
      %77 = dma.done [#allocation7], 4096
    $region45: #{tpu_custom_call.1} parent=1 // pred_fallthru
      _
    // Predicated region
    $region46: #{tpu_custom_call.1} parent=1 // pred_check
      _
    $region47: #{tpu_custom_call.1} parent=1 // pred_check_branch
      %79 = sbr.rel (0) target = $region49
    $region48: #{tpu_custom_call.1} parent=1 // pred_region
      %80 = dma.done [#allocation10], 4096
    $region49: #{tpu_custom_call.1} parent=1 // pred_fallthru
      _
    // Predicated region
    $region50: #{tpu_custom_call.1} parent=1 // pred_check
      _
    $region51: #{tpu_custom_call.1} parent=1 // pred_check_branch
      %82 = sbr.rel (0) target = $region53
    $region52: #{tpu_custom_call.1} parent=1 // pred_region
      %83 = dma.done [#allocation10], 4096
    $region53: #{tpu_custom_call.1} parent=1 // pred_fallthru
      _
    %v85 = vld [vmem:[%s1] sm:$0xf]
    %v86 = vld [vmem:[%s1 + $0x4] sm:$0xf]
    %v87 = vld [vmem:[%s1 + $0x8] sm:$0xf]
    %v88 = vld [vmem:[%s1 + $0xc] sm:$0xf]
    %v89 = vld [vmem:[%s1 + $0x10] sm:$0xf]
    %v90 = vld [vmem:[%s1 + $0x14] sm:$0xf]
    %v91 = vld [vmem:[%s1 + $0x18] sm:$0xf]
    %v92 = vld [vmem:[%s1 + $0x1c] sm:$0xf]
    %v93 = vld [vmem:[%s1 + $0x20] sm:$0xf]
    %v94 = vld [vmem:[%s1 + $0x24] sm:$0xf]
    %v95 = vld [vmem:[%s1 + $0x28] sm:$0xf]
    %v96 = vld [vmem:[%s1 + $0x2c] sm:$0xf]
    %v97 = vld [vmem:[%s1 + $0x30] sm:$0xf]
    %v98 = vld [vmem:[%s1 + $0x34] sm:$0xf]
    %v99 = vld [vmem:[%s1 + $0x38] sm:$0xf]
    %v100 = vld [vmem:[%s1 + $0x3c] sm:$0xf]
    %v101 = vld [vmem:[%s3] sm:$0xf]
    %v102 = vld [vmem:[%s3 + $0x4] sm:$0xf]
    %v103 = vld [vmem:[%s3 + $0x8] sm:$0xf]
    %v104 = vld [vmem:[%s3 + $0xc] sm:$0xf]
    %v105 = vld [vmem:[%s3 + $0x10] sm:$0xf]
    %v106 = vld [vmem:[%s3 + $0x14] sm:$0xf]
    %v107 = vld [vmem:[%s3 + $0x18] sm:$0xf]
    %v108 = vld [vmem:[%s3 + $0x1c] sm:$0xf]
    %v109 = vld [vmem:[%s3 + $0x20] sm:$0xf]
    %v110 = vld [vmem:[%s3 + $0x24] sm:$0xf]
    %v111 = vld [vmem:[%s3 + $0x28] sm:$0xf]
    %v112 = vld [vmem:[%s3 + $0x2c] sm:$0xf]
    %v113 = vld [vmem:[%s3 + $0x30] sm:$0xf]
    %v114 = vld [vmem:[%s3 + $0x34] sm:$0xf]
    %v115 = vld [vmem:[%s3 + $0x38] sm:$0xf]
    %v116 = vld [vmem:[%s3 + $0x3c] sm:$0xf]
    %v117 = vld [vmem:[%s4] sm:$0x1]
    %v119 = vlaneseq
    %v120 = vshrl.u32 %v119, 7
    %v121 = vsub.s32 0, %v120
    %v122 = vrot.slane %v117, %v121
    %v140 = vunpack.c.l.b16 %v85
    %v141 = vunpack.c.l.b16 %v86
    %v142 = vunpack.c.l.b16 %v87
    %v143 = vunpack.c.l.b16 %v88
    %v144 = vunpack.c.l.b16 %v89
    %v145 = vunpack.c.l.b16 %v90
    %v146 = vunpack.c.l.b16 %v91
    %v147 = vunpack.c.l.b16 %v92
    %v148 = vunpack.c.l.b16 %v93
    %v149 = vunpack.c.l.b16 %v94
    %v150 = vunpack.c.l.b16 %v95
    %v151 = vunpack.c.l.b16 %v96
    %v152 = vunpack.c.l.b16 %v97
    %v153 = vunpack.c.l.b16 %v98
    %v154 = vunpack.c.l.b16 %v99
    %v155 = vunpack.c.l.b16 %v100
    %v156 = vpack.c.b16 %v141, %v140
    %v157 = vpack.c.b16 %v143, %v142
    %v158 = vpack.c.b16 %v145, %v144
    %v159 = vpack.c.b16 %v147, %v146
    %v160 = vpack.c.b16 %v149, %v148
    %v161 = vpack.c.b16 %v151, %v150
    %v162 = vpack.c.b16 %v153, %v152
    %v163 = vpack.c.b16 %v155, %v154
    %v188 = vunpack.c.l.b16 %v101
    %v189 = vunpack.c.l.b16 %v102
    %v190 = vunpack.c.l.b16 %v103
    %v191 = vunpack.c.l.b16 %v104
    %v192 = vunpack.c.l.b16 %v105
    %v193 = vunpack.c.l.b16 %v106
    %v194 = vunpack.c.l.b16 %v107
    %v195 = vunpack.c.l.b16 %v108
    %v196 = vunpack.c.l.b16 %v109
    %v197 = vunpack.c.l.b16 %v110
    %v198 = vunpack.c.l.b16 %v111
    %v199 = vunpack.c.l.b16 %v112
    %v200 = vunpack.c.l.b16 %v113
    %v201 = vunpack.c.l.b16 %v114
    %v202 = vunpack.c.l.b16 %v115
    %v203 = vunpack.c.l.b16 %v116
    %v204 = vpack.c.b16 %v189, %v188
    %v205 = vpack.c.b16 %v191, %v190
    %v206 = vpack.c.b16 %v193, %v192
    %v207 = vpack.c.b16 %v195, %v194
    %v208 = vpack.c.b16 %v197, %v196
    %v209 = vpack.c.b16 %v199, %v198
    %v210 = vpack.c.b16 %v201, %v200
    %v211 = vpack.c.b16 %v203, %v202
    %220 = vmatprep.subr.bf16.mxu0 0
    %221 = vmatpush1.bf16.msra.mxu0 %v204
    %222 = vmatprep.subr.bf16.mxu0 0
    %223 = vmatpush1.bf16.msra.mxu0 %v205
    %224 = vmatprep.subr.bf16.mxu0 0
    %225 = vmatpush1.bf16.msra.mxu0 %v206
    %226 = vmatprep.subr.bf16.mxu0 0
    %227 = vmatpush1.bf16.msra.mxu0 %v207
    %228 = vmatprep.subr.bf16.mxu0 0
    %229 = vmatpush1.bf16.msra.mxu0 %v208
    %230 = vmatprep.subr.bf16.mxu0 0
    %231 = vmatpush1.bf16.msra.mxu0 %v209
    %232 = vmatprep.subr.bf16.mxu0 0
    %233 = vmatpush1.bf16.msra.mxu0 %v210
    %234 = vmatprep.subr.bf16.mxu0 0
    %235 = vmatpush1.bf16.msra.mxu0 %v211
    %236 = vmatprep.subr.bf16.mxu0 0
    %237 = vmatpush1.bf16.msra.mxu0 0
    %238 = vmatprep.subr.bf16.mxu0 0
    %239 = vmatpush1.bf16.msra.mxu0 0
    %240 = vmatprep.subr.bf16.mxu0 0
    %241 = vmatpush1.bf16.msra.mxu0 0
    %242 = vmatprep.subr.bf16.mxu0 0
    %243 = vmatpush1.bf16.msra.mxu0 0
    %244 = vmatprep.subr.bf16.mxu0 0
    %245 = vmatpush1.bf16.msra.mxu0 0
    %246 = vmatprep.subr.bf16.mxu0 0
    %247 = vmatpush1.bf16.msra.mxu0 0
    %248 = vmatprep.subr.bf16.mxu0 0
    %249 = vmatpush1.bf16.msra.mxu0 0
    %250 = vmatprep.subr.bf16.mxu0 0
    %251 = vmatpush1.bf16.msra.mxu0 0
    %252 = vmatprep.mubr.bf16.mxu0 0
    %253 = vmatmul.mubr.bf16.gmra.mrb[0].mxu0 %v156
    %v254 = vpop.f32.mrb[0].mxu0
    %v255 = vadd.f32 %v122, %v254
    %v256 = vpop.f32.mrb[0].mxu0
    %v257 = vpop.f32.mrb[0].mxu0
    %v258 = vadd.f32 %v122, %v257
    %v259 = vpop.f32.mrb[0].mxu0
    %260 = vmatprep.mubr.bf16.mxu0 0
    %261 = vmatmul.mubr.bf16.gmra.mrb[0].mxu0 %v157
    %v262 = vpop.f32.mrb[0].mxu0
    %v263 = vadd.f32 %v122, %v262
    %v264 = vpop.f32.mrb[0].mxu0
    %v265 = vpop.f32.mrb[0].mxu0
    %v266 = vadd.f32 %v122, %v265
    %v267 = vpop.f32.mrb[0].mxu0
    %268 = vmatprep.mubr.bf16.mxu0 0
    %269 = vmatmul.mubr.bf16.gmra.mrb[0].mxu0 %v158
    %v270 = vpop.f32.mrb[0].mxu0
    %v271 = vadd.f32 %v122, %v270
    %v272 = vpop.f32.mrb[0].mxu0
    %v273 = vpop.f32.mrb[0].mxu0
    %v274 = vadd.f32 %v122, %v273
    %v275 = vpop.f32.mrb[0].mxu0
    %276 = vmatprep.mubr.bf16.mxu0 0
    %277 = vmatmul.mubr.bf16.gmra.mrb[0].mxu0 %v159
    %v278 = vpop.f32.mrb[0].mxu0
    %v279 = vadd.f32 %v122, %v278
    %v280 = vpop.f32.mrb[0].mxu0
    %v281 = vpop.f32.mrb[0].mxu0
    %v282 = vadd.f32 %v122, %v281
    %v283 = vpop.f32.mrb[0].mxu0
    %284 = vmatprep.mubr.bf16.mxu0 0
    %285 = vmatmul.mubr.bf16.gmra.mrb[0].mxu0 %v160
    %v286 = vpop.f32.mrb[0].mxu0
    %v287 = vadd.f32 %v122, %v286
    %v288 = vpop.f32.mrb[0].mxu0
    %v289 = vpop.f32.mrb[0].mxu0
    %v290 = vadd.f32 %v122, %v289
    %v291 = vpop.f32.mrb[0].mxu0
    %292 = vmatprep.mubr.bf16.mxu0 0
    %293 = vmatmul.mubr.bf16.gmra.mrb[0].mxu0 %v161
    %v294 = vpop.f32.mrb[0].mxu0
    %v295 = vadd.f32 %v122, %v294
    %v296 = vpop.f32.mrb[0].mxu0
    %v297 = vpop.f32.mrb[0].mxu0
    %v298 = vadd.f32 %v122, %v297
    %v299 = vpop.f32.mrb[0].mxu0
    %300 = vmatprep.mubr.bf16.mxu0 0
    %301 = vmatmul.mubr.bf16.gmra.mrb[0].mxu0 %v162
    %v302 = vpop.f32.mrb[0].mxu0
    %v303 = vadd.f32 %v122, %v302
    %v304 = vpop.f32.mrb[0].mxu0
    %v305 = vpop.f32.mrb[0].mxu0
    %v306 = vadd.f32 %v122, %v305
    %v307 = vpop.f32.mrb[0].mxu0
    %308 = vmatprep.mubr.bf16.mxu0 0
    %309 = vmatmul.mubr.bf16.gmra.mrb[0].mxu0 %v163
    %v310 = vpop.f32.mrb[0].mxu0
    %v311 = vadd.f32 %v122, %v310
    %v312 = vpop.f32.mrb[0].mxu0
    %v313 = vpop.f32.mrb[0].mxu0
    %v314 = vadd.f32 %v122, %v313
    %v315 = vpop.f32.mrb[0].mxu0
    %316 = vdwg.mxu0
    %vm317 = vcmask 31744
    %v318 = vsel %vm317, %v255, -inf
    %319 = vmax.xlane.f32.xlu0 %v318
    %v320 = vpop.xlane.xlu0 %319
    %v321 = vsel %vm317, %v258, -inf
    %322 = vmax.xlane.f32.xlu0 %v321
    %v323 = vpop.xlane.xlu0 %322
    %v324 = vsel %vm317, %v263, -inf
    %325 = vmax.xlane.f32.xlu0 %v324
    %v326 = vpop.xlane.xlu0 %325
    %v327 = vsel %vm317, %v266, -inf
    %328 = vmax.xlane.f32.xlu0 %v327
    %v329 = vpop.xlane.xlu0 %328
    %v330 = vsel %vm317, %v271, -inf
    %331 = vmax.xlane.f32.xlu0 %v330
    %v332 = vpop.xlane.xlu0 %331
    %v333 = vsel %vm317, %v274, -inf
    %334 = vmax.xlane.f32.xlu0 %v333
    %v335 = vpop.xlane.xlu0 %334
    %v336 = vsel %vm317, %v279, -inf
    %337 = vmax.xlane.f32.xlu0 %v336
    %v338 = vpop.xlane.xlu0 %337
    %v339 = vsel %vm317, %v282, -inf
    %340 = vmax.xlane.f32.xlu0 %v339
    %v341 = vpop.xlane.xlu0 %340
    %v342 = vsel %vm317, %v287, -inf
    %343 = vmax.xlane.f32.xlu0 %v342
    %v344 = vpop.xlane.xlu0 %343
    %v345 = vsel %vm317, %v290, -inf
    %346 = vmax.xlane.f32.xlu0 %v345
    %v347 = vpop.xlane.xlu0 %346
    %v348 = vsel %vm317, %v295, -inf
    %349 = vmax.xlane.f32.xlu0 %v348
    %v350 = vpop.xlane.xlu0 %349
    %v351 = vsel %vm317, %v298, -inf
    %352 = vmax.xlane.f32.xlu0 %v351
    %v353 = vpop.xlane.xlu0 %352
    %v354 = vsel %vm317, %v303, -inf
    %355 = vmax.xlane.f32.xlu0 %v354
    %v356 = vpop.xlane.xlu0 %355
    %v357 = vsel %vm317, %v306, -inf
    %358 = vmax.xlane.f32.xlu0 %v357
    %v359 = vpop.xlane.xlu0 %358
    %v360 = vsel %vm317, %v311, -inf
    %361 = vmax.xlane.f32.xlu0 %v360
    %v362 = vpop.xlane.xlu0 %361
    %v363 = vsel %vm317, %v314, -inf
    %364 = vmax.xlane.f32.xlu0 %v363
    %v365 = vpop.xlane.xlu0 %364
    %v366 = vsub.f32 %v255, %v320
    %v367 = vsub.f32 %v258, %v323
    %v368 = vsub.f32 %v263, %v326
    %v369 = vsub.f32 %v266, %v329
    %v370 = vsub.f32 %v271, %v332
    %v371 = vsub.f32 %v274, %v335
    %v372 = vsub.f32 %v279, %v338
    %v373 = vsub.f32 %v282, %v341
    %v374 = vsub.f32 %v287, %v344
    %v375 = vsub.f32 %v290, %v347
    %v376 = vsub.f32 %v295, %v350
    %v377 = vsub.f32 %v298, %v353
    %v378 = vsub.f32 %v303, %v356
    %v379 = vsub.f32 %v306, %v359
    %v380 = vsub.f32 %v311, %v362
    %v381 = vsub.f32 %v314, %v365
    %v382 = vmul.f32 %v366, 1.442695
    %v383 = vpow.pop %v382
    %v384 = vmul.f32 %v367, 1.442695
    %v385 = vpow.pop %v384
    %v386 = vmul.f32 %v368, 1.442695
    %v387 = vpow.pop %v386
    %v388 = vmul.f32 %v369, 1.442695
    %v389 = vpow.pop %v388
    %v390 = vmul.f32 %v370, 1.442695
    %v391 = vpow.pop %v390
    %v392 = vmul.f32 %v371, 1.442695
    %v393 = vpow.pop %v392
    %v394 = vmul.f32 %v372, 1.442695
    %v395 = vpow.pop %v394
    %v396 = vmul.f32 %v373, 1.442695
    %v397 = vpow.pop %v396
    %v398 = vmul.f32 %v374, 1.442695
    %v399 = vpow.pop %v398
    %v400 = vmul.f32 %v375, 1.442695
    %v401 = vpow.pop %v400
    %v402 = vmul.f32 %v376, 1.442695
    %v403 = vpow.pop %v402
    %v404 = vmul.f32 %v377, 1.442695
    %v405 = vpow.pop %v404
    %v406 = vmul.f32 %v378, 1.442695
    %v407 = vpow.pop %v406
    %v408 = vmul.f32 %v379, 1.442695
    %v409 = vpow.pop %v408
    %v410 = vmul.f32 %v380, 1.442695
    %v411 = vpow.pop %v410
    %v412 = vmul.f32 %v381, 1.442695
    %v413 = vpow.pop %v412
    %v414 = vld [vmem:[%s2] sm:$0xff]
    %v415 = vld [vmem:[%s2 + $0x8] sm:$0xff]
    %v416 = vld [vmem:[%s2 + $0x10] sm:$0xff]
    %v417 = vld [vmem:[%s2 + $0x18] sm:$0xff]
    %v418 = vld [vmem:[%s2 + $0x20] sm:$0xff]
    %v419 = vld [vmem:[%s2 + $0x28] sm:$0xff]
    %v420 = vld [vmem:[%s2 + $0x30] sm:$0xff]
    %v421 = vld [vmem:[%s2 + $0x38] sm:$0xff]
    %v422 = vld [vmem:[%s2 + $0x40] sm:$0xff]
    %v423 = vld [vmem:[%s2 + $0x48] sm:$0xff]
    %v424 = vld [vmem:[%s2 + $0x50] sm:$0xff]
    %v425 = vld [vmem:[%s2 + $0x58] sm:$0xff]
    %v426 = vld [vmem:[%s2 + $0x60] sm:$0xff]
    %v427 = vld [vmem:[%s2 + $0x68] sm:$0xff]
    %v428 = vld [vmem:[%s2 + $0x70] sm:$0xff]
    %v429 = vld [vmem:[%s2 + $0x78] sm:$0xff]
    %v430 = vmul.f32 %v383, %v414
    %v431 = vmul.f32 %v385, %v415
    %v432 = vmul.f32 %v387, %v416
    %v433 = vmul.f32 %v389, %v417
    %v434 = vmul.f32 %v391, %v418
    %v435 = vmul.f32 %v393, %v419
    %v436 = vmul.f32 %v395, %v420
    %v437 = vmul.f32 %v397, %v421
    %v438 = vmul.f32 %v399, %v422
    %v439 = vmul.f32 %v401, %v423
    %v440 = vmul.f32 %v403, %v424
    %v441 = vmul.f32 %v405, %v425
    %v442 = vmul.f32 %v407, %v426
    %v443 = vmul.f32 %v409, %v427
    %v444 = vmul.f32 %v411, %v428
    %v445 = vmul.f32 %v413, %v429
    %446 = vst [vmem:[#allocation2] sm:$0xff] 0.0
    %447 = vst [vmem:[#allocation2 + $0x8] sm:$0xff] 0.0
    %448 = vst [vmem:[#allocation2 + $0x10] sm:$0xff] 0.0
    %449 = vst [vmem:[#allocation2 + $0x18] sm:$0xff] 0.0
    %450 = vst [vmem:[#allocation2 + $0x20] sm:$0xff] 0.0
    %451 = vst [vmem:[#allocation2 + $0x28] sm:$0xff] 0.0
    %452 = vst [vmem:[#allocation2 + $0x30] sm:$0xff] 0.0
    %453 = vst [vmem:[#allocation2 + $0x38] sm:$0xff] 0.0
    %454 = vst [vmem:[#allocation2 + $0x40] sm:$0xff] 0.0
    %455 = vst [vmem:[#allocation2 + $0x48] sm:$0xff] 0.0
    %456 = vst [vmem:[#allocation2 + $0x50] sm:$0xff] 0.0
    %457 = vst [vmem:[#allocation2 + $0x58] sm:$0xff] 0.0
    %458 = vst [vmem:[#allocation2 + $0x60] sm:$0xff] 0.0
    %459 = vst [vmem:[#allocation2 + $0x68] sm:$0xff] 0.0
    %460 = vst [vmem:[#allocation2 + $0x70] sm:$0xff] 0.0
    %461 = vst [vmem:[#allocation2 + $0x78] sm:$0xff] 0.0
    %vm462 = vcmask 7168
    %463 = vst.msk [vmem:[#allocation3] sm:$0xff] %vm462, 0.0
    %464 = vst.msk [vmem:[#allocation3 + $0x8] sm:$0xff] %vm462, 0.0
    %465 = vst.msk [vmem:[#allocation3 + $0x10] sm:$0xff] %vm462, 0.0
    %466 = vst.msk [vmem:[#allocation3 + $0x18] sm:$0xff] %vm462, 0.0
    %467 = vst.msk [vmem:[#allocation3 + $0x20] sm:$0xff] %vm462, 0.0
    %468 = vst.msk [vmem:[#allocation3 + $0x28] sm:$0xff] %vm462, 0.0
    %469 = vst.msk [vmem:[#allocation3 + $0x30] sm:$0xff] %vm462, 0.0
    %470 = vst.msk [vmem:[#allocation3 + $0x38] sm:$0xff] %vm462, 0.0
    %471 = vst.msk [vmem:[#allocation3 + $0x40] sm:$0xff] %vm462, 0.0
    %472 = vst.msk [vmem:[#allocation3 + $0x48] sm:$0xff] %vm462, 0.0
    %473 = vst.msk [vmem:[#allocation3 + $0x50] sm:$0xff] %vm462, 0.0
    %474 = vst.msk [vmem:[#allocation3 + $0x58] sm:$0xff] %vm462, 0.0
    %475 = vst.msk [vmem:[#allocation3 + $0x60] sm:$0xff] %vm462, 0.0
    %476 = vst.msk [vmem:[#allocation3 + $0x68] sm:$0xff] %vm462, 0.0
    %477 = vst.msk [vmem:[#allocation3 + $0x70] sm:$0xff] %vm462, 0.0
    %478 = vst.msk [vmem:[#allocation3 + $0x78] sm:$0xff] %vm462, 0.0
    %s479 = smul.u32 0, 128
    %s480 = sld [smem:[#allocation5 + %s479]]
    %p481 = scmp.gt.s32.totalorder %s480, 0
    // Predicated region
    $region54: #{tpu_custom_call.1} parent=1 // pred_check
      %p482 = pneg %p481
    $region55: #{tpu_custom_call.1} parent=1 // pred_check_branch
      %484 = sbr.rel (%p482) target = $region57
    $region56: #{tpu_custom_call.1} parent=1 // pred_region
      %v485 = vld [vmem:[#allocation6] sm:$0xf]
      %v486 = vld [vmem:[#allocation6 + $0x4] sm:$0xf]
      %v487 = vld [vmem:[#allocation6 + $0x8] sm:$0xf]
      %v488 = vld [vmem:[#allocation6 + $0xc] sm:$0xf]
      %v489 = vld [vmem:[#allocation6 + $0x10] sm:$0xf]
      %v490 = vld [vmem:[#allocation6 + $0x14] sm:$0xf]
      %v491 = vld [vmem:[#allocation6 + $0x18] sm:$0xf]
      %v492 = vld [vmem:[#allocation6 + $0x1c] sm:$0xf]
      %v493 = vld [vmem:[#allocation6 + $0x20] sm:$0xf]
      %v494 = vld [vmem:[#allocation6 + $0x24] sm:$0xf]
      %v495 = vld [vmem:[#allocation6 + $0x28] sm:$0xf]
      %v496 = vld [vmem:[#allocation6 + $0x2c] sm:$0xf]
      %v497 = vld [vmem:[#allocation6 + $0x30] sm:$0xf]
      %v498 = vld [vmem:[#allocation6 + $0x34] sm:$0xf]
      %v499 = vld [vmem:[#allocation6 + $0x38] sm:$0xf]
      %v500 = vld [vmem:[#allocation6 + $0x3c] sm:$0xf]
      %v501 = vld [vmem:[%s6] sm:$0x1]
      %v503 = vlaneseq
      %v504 = vshrl.u32 %v503, 7
      %v505 = vsub.s32 0, %v504
      %v506 = vrot.slane %v501, %v505
      %v524 = vunpack.c.l.b16 %v485
      %v525 = vunpack.c.l.b16 %v486
      %v526 = vunpack.c.l.b16 %v487
      %v527 = vunpack.c.l.b16 %v488
      %v528 = vunpack.c.l.b16 %v489
      %v529 = vunpack.c.l.b16 %v490
      %v530 = vunpack.c.l.b16 %v491
      %v531 = vunpack.c.l.b16 %v492
      %v532 = vunpack.c.l.b16 %v493
      %v533 = vunpack.c.l.b16 %v494
      %v534 = vunpack.c.l.b16 %v495
      %v535 = vunpack.c.l.b16 %v496
      %v536 = vunpack.c.l.b16 %v497
      %v537 = vunpack.c.l.b16 %v498
      %v538 = vunpack.c.l.b16 %v499
      %v539 = vunpack.c.l.b16 %v500
      %v540 = vpack.c.b16 %v525, %v524
      %v541 = vpack.c.b16 %v527, %v526
      %v542 = vpack.c.b16 %v529, %v528
      %v543 = vpack.c.b16 %v531, %v530
      %v544 = vpack.c.b16 %v533, %v532
      %v545 = vpack.c.b16 %v535, %v534
      %v546 = vpack.c.b16 %v537, %v536
      %v547 = vpack.c.b16 %v539, %v538
      %556 = vmatprep.subr.bf16.mxu0 0
      %557 = vmatpush1.bf16.msra.mxu0 %v540
      %558 = vmatprep.subr.bf16.mxu0 0
      %559 = vmatpush1.bf16.msra.mxu0 %v541
      %560 = vmatprep.subr.bf16.mxu0 0
      %561 = vmatpush1.bf16.msra.mxu0 %v542
      %562 = vmatprep.subr.bf16.mxu0 0
      %563 = vmatpush1.bf16.msra.mxu0 %v543
      %564 = vmatprep.subr.bf16.mxu0 0
      %565 = vmatpush1.bf16.msra.mxu0 %v544
      %566 = vmatprep.subr.bf16.mxu0 0
      %567 = vmatpush1.bf16.msra.mxu0 %v545
      %568 = vmatprep.subr.bf16.mxu0 0
      %569 = vmatpush1.bf16.msra.mxu0 %v546
      %570 = vmatprep.subr.bf16.mxu0 0
      %571 = vmatpush1.bf16.msra.mxu0 %v547
      %572 = vmatprep.subr.bf16.mxu0 0
      %573 = vmatpush1.bf16.msra.mxu0 0
      %574 = vmatprep.subr.bf16.mxu0 0
      %575 = vmatpush1.bf16.msra.mxu0 0
      %576 = vmatprep.subr.bf16.mxu0 0
      %577 = vmatpush1.bf16.msra.mxu0 0
      %578 = vmatprep.subr.bf16.mxu0 0
      %579 = vmatpush1.bf16.msra.mxu0 0
      %580 = vmatprep.subr.bf16.mxu0 0
      %581 = vmatpush1.bf16.msra.mxu0 0
      %582 = vmatprep.subr.bf16.mxu0 0
      %583 = vmatpush1.bf16.msra.mxu0 0
      %584 = vmatprep.subr.bf16.mxu0 0
      %585 = vmatpush1.bf16.msra.mxu0 0
      %586 = vmatprep.subr.bf16.mxu0 0
      %587 = vmatpush1.bf16.msra.mxu0 0
      %588 = vmatprep.mubr.bf16.mxu0 0
      %589 = vmatmul.mubr.bf16.gmra.mrb[0].mxu0 %v156
      %v590 = vpop.f32.mrb[0].mxu0
      %v591 = vadd.f32 %v506, %v590
      %v592 = vpop.f32.mrb[0].mxu0
      %v593 = vpop.f32.mrb[0].mxu0
      %v594 = vadd.f32 %v506, %v593
      %v595 = vpop.f32.mrb[0].mxu0
      %596 = vmatprep.mubr.bf16.mxu0 0
      %597 = vmatmul.mubr.bf16.gmra.mrb[0].mxu0 %v157
      %v598 = vpop.f32.mrb[0].mxu0
      %v599 = vadd.f32 %v506, %v598
      %v600 = vpop.f32.mrb[0].mxu0
      %v601 = vpop.f32.mrb[0].mxu0
      %v602 = vadd.f32 %v506, %v601
      %v603 = vpop.f32.mrb[0].mxu0
      %604 = vmatprep.mubr.bf16.mxu0 0
      %605 = vmatmul.mubr.bf16.gmra.mrb[0].mxu0 %v158
      %v606 = vpop.f32.mrb[0].mxu0
      %v607 = vadd.f32 %v506, %v606
      %v608 = vpop.f32.mrb[0].mxu0
      %v609 = vpop.f32.mrb[0].mxu0
      %v610 = vadd.f32 %v506, %v609
      %v611 = vpop.f32.mrb[0].mxu0
      %612 = vmatprep.mubr.bf16.mxu0 0
      %613 = vmatmul.mubr.bf16.gmra.mrb[0].mxu0 %v159
      %v614 = vpop.f32.mrb[0].mxu0
      %v615 = vadd.f32 %v506, %v614
      %v616 = vpop.f32.mrb[0].mxu0
      %v617 = vpop.f32.mrb[0].mxu0
      %v618 = vadd.f32 %v506, %v617
      %v619 = vpop.f32.mrb[0].mxu0
      %620 = vmatprep.mubr.bf16.mxu0 0
      %621 = vmatmul.mubr.bf16.gmra.mrb[0].mxu0 %v160
      %v622 = vpop.f32.mrb[0].mxu0
      %v623 = vadd.f32 %v506, %v622
      %v624 = vpop.f32.mrb[0].mxu0
      %v625 = vpop.f32.mrb[0].mxu0
      %v626 = vadd.f32 %v506, %v625
      %v627 = vpop.f32.mrb[0].mxu0
      %628 = vmatprep.mubr.bf16.mxu0 0
      %629 = vmatmul.mubr.bf16.gmra.mrb[0].mxu0 %v161
      %v630 = vpop.f32.mrb[0].mxu0
      %v631 = vadd.f32 %v506, %v630
      %v632 = vpop.f32.mrb[0].mxu0
      %v633 = vpop.f32.mrb[0].mxu0
      %v634 = vadd.f32 %v506, %v633
      %v635 = vpop.f32.mrb[0].mxu0
      %636 = vmatprep.mubr.bf16.mxu0 0
      %637 = vmatmul.mubr.bf16.gmra.mrb[0].mxu0 %v162
      %v638 = vpop.f32.mrb[0].mxu0
      %v639 = vadd.f32 %v506, %v638
      %v640 = vpop.f32.mrb[0].mxu0
      %v641 = vpop.f32.mrb[0].mxu0
      %v642 = vadd.f32 %v506, %v641
      %v643 = vpop.f32.mrb[0].mxu0
      %644 = vmatprep.mubr.bf16.mxu0 0
      %645 = vmatmul.mubr.bf16.gmra.mrb[0].mxu0 %v163
      %v646 = vpop.f32.mrb[0].mxu0
      %v647 = vadd.f32 %v506, %v646
      %v648 = vpop.f32.mrb[0].mxu0
      %v649 = vpop.f32.mrb[0].mxu0
      %v650 = vadd.f32 %v506, %v649
      %v651 = vpop.f32.mrb[0].mxu0
      %652 = vdwg.mxu0
      %vm653 = vcmp.gt.f32.partialorder %v591, 0.0
      %vm654 = vcmp.gt.f32.partialorder %v594, 0.0
      %vm655 = vcmp.gt.f32.partialorder %v599, 0.0
      %vm656 = vcmp.gt.f32.partialorder %v602, 0.0
      %vm657 = vcmp.gt.f32.partialorder %v607, 0.0
      %vm658 = vcmp.gt.f32.partialorder %v610, 0.0
      %vm659 = vcmp.gt.f32.partialorder %v615, 0.0
      %vm660 = vcmp.gt.f32.partialorder %v618, 0.0
      %vm661 = vcmp.gt.f32.partialorder %v623, 0.0
      %vm662 = vcmp.gt.f32.partialorder %v626, 0.0
      %vm663 = vcmp.gt.f32.partialorder %v631, 0.0
      %vm664 = vcmp.gt.f32.partialorder %v634, 0.0
      %vm665 = vcmp.gt.f32.partialorder %v639, 0.0
      %vm666 = vcmp.gt.f32.partialorder %v642, 0.0
      %vm667 = vcmp.gt.f32.partialorder %v647, 0.0
      %vm668 = vcmp.gt.f32.partialorder %v650, 0.0
      %v669 = vmul.f32 %v591, 0.01
      %v670 = vmul.f32 %v594, 0.01
      %v671 = vmul.f32 %v599, 0.01
      %v672 = vmul.f32 %v602, 0.01
      %v673 = vmul.f32 %v607, 0.01
      %v674 = vmul.f32 %v610, 0.01
      %v675 = vmul.f32 %v615, 0.01
      %v676 = vmul.f32 %v618, 0.01
      %v677 = vmul.f32 %v623, 0.01
      %v678 = vmul.f32 %v626, 0.01
      %v679 = vmul.f32 %v631, 0.01
      %v680 = vmul.f32 %v634, 0.01
      %v681 = vmul.f32 %v639, 0.01
      %v682 = vmul.f32 %v642, 0.01
      %v683 = vmul.f32 %v647, 0.01
      %v684 = vmul.f32 %v650, 0.01
      %v685 = vsel %vm653, %v591, %v669
      %v686 = vsel %vm654, %v594, %v670
      %v687 = vsel %vm655, %v599, %v671
      %v688 = vsel %vm656, %v602, %v672
      %v689 = vsel %vm657, %v607, %v673
      %v690 = vsel %vm658, %v610, %v674
      %v691 = vsel %vm659, %v615, %v675
      %v692 = vsel %vm660, %v618, %v676
      %v693 = vsel %vm661, %v623, %v677
      %v694 = vsel %vm662, %v626, %v678
      %v695 = vsel %vm663, %v631, %v679
      %v696 = vsel %vm664, %v634, %v680
      %v697 = vsel %vm665, %v639, %v681
      %v698 = vsel %vm666, %v642, %v682
      %v699 = vsel %vm667, %v647, %v683
      %v700 = vsel %vm668, %v650, %v684
      %v701 = vpack.c.bf16 %v686, %v685
      %v702 = vpack.c.bf16 %v688, %v687
      %v703 = vpack.c.bf16 %v690, %v689
      %v704 = vpack.c.bf16 %v692, %v691
      %v705 = vpack.c.bf16 %v694, %v693
      %v706 = vpack.c.bf16 %v696, %v695
      %v707 = vpack.c.bf16 %v698, %v697
      %v708 = vpack.c.bf16 %v700, %v699
      %v709 = vld [vmem:[#allocation9] sm:$0xf]
      %v710 = vld [vmem:[#allocation9 + $0x4] sm:$0xf]
      %v711 = vld [vmem:[#allocation9 + $0x8] sm:$0xf]
      %v712 = vld [vmem:[#allocation9 + $0xc] sm:$0xf]
      %v713 = vld [vmem:[#allocation9 + $0x10] sm:$0xf]
      %v714 = vld [vmem:[#allocation9 + $0x14] sm:$0xf]
      %v715 = vld [vmem:[#allocation9 + $0x18] sm:$0xf]
      %v716 = vld [vmem:[#allocation9 + $0x1c] sm:$0xf]
      %v717 = vld [vmem:[#allocation9 + $0x20] sm:$0xf]
      %v718 = vld [vmem:[#allocation9 + $0x24] sm:$0xf]
      %v719 = vld [vmem:[#allocation9 + $0x28] sm:$0xf]
      %v720 = vld [vmem:[#allocation9 + $0x2c] sm:$0xf]
      %v721 = vld [vmem:[#allocation9 + $0x30] sm:$0xf]
      %v722 = vld [vmem:[#allocation9 + $0x34] sm:$0xf]
      %v723 = vld [vmem:[#allocation9 + $0x38] sm:$0xf]
      %v724 = vld [vmem:[#allocation9 + $0x3c] sm:$0xf]
      %v725 = vld [vmem:[%s8] sm:$0x1]
      %v727 = vlaneseq
      %v728 = vshrl.u32 %v727, 7
      %v729 = vsub.s32 0, %v728
      %v730 = vrot.slane %v725, %v729
      %v748 = vunpack.c.l.b16 %v709
      %v749 = vunpack.c.l.b16 %v710
      %v750 = vunpack.c.l.b16 %v711
      %v751 = vunpack.c.l.b16 %v712
      %v752 = vunpack.c.l.b16 %v713
      %v753 = vunpack.c.l.b16 %v714
      %v754 = vunpack.c.l.b16 %v715
      %v755 = vunpack.c.l.b16 %v716
      %v756 = vunpack.c.l.b16 %v717
      %v757 = vunpack.c.l.b16 %v718
      %v758 = vunpack.c.l.b16 %v719
      %v759 = vunpack.c.l.b16 %v720
      %v760 = vunpack.c.l.b16 %v721
      %v761 = vunpack.c.l.b16 %v722
      %v762 = vunpack.c.l.b16 %v723
      %v763 = vunpack.c.l.b16 %v724
      %v764 = vpack.c.b16 %v749, %v748
      %v765 = vpack.c.b16 %v751, %v750
      %v766 = vpack.c.b16 %v753, %v752
      %v767 = vpack.c.b16 %v755, %v754
      %v768 = vpack.c.b16 %v757, %v756
      %v769 = vpack.c.b16 %v759, %v758
      %v770 = vpack.c.b16 %v761, %v760
      %v771 = vpack.c.b16 %v763, %v762
      %780 = vmatprep.subr.bf16.mxu0 0
      %781 = vmatpush1.bf16.msra.mxu0 %v764
      %782 = vmatprep.subr.bf16.mxu0 0
      %783 = vmatpush1.bf16.msra.mxu0 %v765
      %784 = vmatprep.subr.bf16.mxu0 0
      %785 = vmatpush1.bf16.msra.mxu0 %v766
      %786 = vmatprep.subr.bf16.mxu0 0
      %787 = vmatpush1.bf16.msra.mxu0 %v767
      %788 = vmatprep.subr.bf16.mxu0 0
      %789 = vmatpush1.bf16.msra.mxu0 %v768
      %790 = vmatprep.subr.bf16.mxu0 0
      %791 = vmatpush1.bf16.msra.mxu0 %v769
      %792 = vmatprep.subr.bf16.mxu0 0
      %793 = vmatpush1.bf16.msra.mxu0 %v770
      %794 = vmatprep.subr.bf16.mxu0 0
      %795 = vmatpush1.bf16.msra.mxu0 %v771
      %796 = vmatprep.subr.bf16.mxu0 0
      %797 = vmatpush1.bf16.msra.mxu0 0
      %798 = vmatprep.subr.bf16.mxu0 0
      %799 = vmatpush1.bf16.msra.mxu0 0
      %800 = vmatprep.subr.bf16.mxu0 0
      %801 = vmatpush1.bf16.msra.mxu0 0
      %802 = vmatprep.subr.bf16.mxu0 0
      %803 = vmatpush1.bf16.msra.mxu0 0
      %804 = vmatprep.subr.bf16.mxu0 0
      %805 = vmatpush1.bf16.msra.mxu0 0
      %806 = vmatprep.subr.bf16.mxu0 0
      %807 = vmatpush1.bf16.msra.mxu0 0
      %808 = vmatprep.subr.bf16.mxu0 0
      %809 = vmatpush1.bf16.msra.mxu0 0
      %810 = vmatprep.subr.bf16.mxu0 0
      %811 = vmatpush1.bf16.msra.mxu0 0
      %812 = vmatprep.mubr.bf16.mxu0 0
      %813 = vmatmul.mubr.bf16.gmra.mrb[0].mxu0 %v701
      %v814 = vpop.f32.mrb[0].mxu0
      %v815 = vadd.f32 %v730, %v814
      %v816 = vpop.f32.mrb[0].mxu0
      %v817 = vpop.f32.mrb[0].mxu0
      %v818 = vadd.f32 %v730, %v817
      %v819 = vpop.f32.mrb[0].mxu0
      %820 = vmatprep.mubr.bf16.mxu0 0
      %821 = vmatmul.mubr.bf16.gmra.mrb[0].mxu0 %v702
      %v822 = vpop.f32.mrb[0].mxu0
      %v823 = vadd.f32 %v730, %v822
      %v824 = vpop.f32.mrb[0].mxu0
      %v825 = vpop.f32.mrb[0].mxu0
      %v826 = vadd.f32 %v730, %v825
      %v827 = vpop.f32.mrb[0].mxu0
      %828 = vmatprep.mubr.bf16.mxu0 0
      %829 = vmatmul.mubr.bf16.gmra.mrb[0].mxu0 %v703
      %v830 = vpop.f32.mrb[0].mxu0
      %v831 = vadd.f32 %v730, %v830
      %v832 = vpop.f32.mrb[0].mxu0
      %v833 = vpop.f32.mrb[0].mxu0
      %v834 = vadd.f32 %v730, %v833
      %v835 = vpop.f32.mrb[0].mxu0
      %836 = vmatprep.mubr.bf16.mxu0 0
      %837 = vmatmul.mubr.bf16.gmra.mrb[0].mxu0 %v704
      %v838 = vpop.f32.mrb[0].mxu0
      %v839 = vadd.f32 %v730, %v838
      %v840 = vpop.f32.mrb[0].mxu0
      %v841 = vpop.f32.mrb[0].mxu0
      %v842 = vadd.f32 %v730, %v841
      %v843 = vpop.f32.mrb[0].mxu0
      %844 = vmatprep.mubr.bf16.mxu0 0
      %845 = vmatmul.mubr.bf16.gmra.mrb[0].mxu0 %v705
      %v846 = vpop.f32.mrb[0].mxu0
      %v847 = vadd.f32 %v730, %v846
      %v848 = vpop.f32.mrb[0].mxu0
      %v849 = vpop.f32.mrb[0].mxu0
      %v850 = vadd.f32 %v730, %v849
      %v851 = vpop.f32.mrb[0].mxu0
      %852 = vmatprep.mubr.bf16.mxu0 0
      %853 = vmatmul.mubr.bf16.gmra.mrb[0].mxu0 %v706
      %v854 = vpop.f32.mrb[0].mxu0
      %v855 = vadd.f32 %v730, %v854
      %v856 = vpop.f32.mrb[0].mxu0
      %v857 = vpop.f32.mrb[0].mxu0
      %v858 = vadd.f32 %v730, %v857
      %v859 = vpop.f32.mrb[0].mxu0
      %860 = vmatprep.mubr.bf16.mxu0 0
      %861 = vmatmul.mubr.bf16.gmra.mrb[0].mxu0 %v707
      %v862 = vpop.f32.mrb[0].mxu0
      %v863 = vadd.f32 %v730, %v862
      %v864 = vpop.f32.mrb[0].mxu0
      %v865 = vpop.f32.mrb[0].mxu0
      %v866 = vadd.f32 %v730, %v865
      %v867 = vpop.f32.mrb[0].mxu0
      %868 = vmatprep.mubr.bf16.mxu0 0
      %869 = vmatmul.mubr.bf16.gmra.mrb[0].mxu0 %v708
      %v870 = vpop.f32.mrb[0].mxu0
      %v871 = vadd.f32 %v730, %v870
      %v872 = vpop.f32.mrb[0].mxu0
      %v873 = vpop.f32.mrb[0].mxu0
      %v874 = vadd.f32 %v730, %v873
      %v875 = vpop.f32.mrb[0].mxu0
      %876 = vdwg.mxu0
      %vm877 = vcmp.gt.f32.partialorder %v815, 0.0
      %vm878 = vcmp.gt.f32.partialorder %v818, 0.0
      %vm879 = vcmp.gt.f32.partialorder %v823, 0.0
      %vm880 = vcmp.gt.f32.partialorder %v826, 0.0
      %vm881 = vcmp.gt.f32.partialorder %v831, 0.0
      %vm882 = vcmp.gt.f32.partialorder %v834, 0.0
      %vm883 = vcmp.gt.f32.partialorder %v839, 0.0
      %vm884 = vcmp.gt.f32.partialorder %v842, 0.0
      %vm885 = vcmp.gt.f32.partialorder %v847, 0.0
      %vm886 = vcmp.gt.f32.partialorder %v850, 0.0
      %vm887 = vcmp.gt.f32.partialorder %v855, 0.0
      %vm888 = vcmp.gt.f32.partialorder %v858, 0.0
      %vm889 = vcmp.gt.f32.partialorder %v863, 0.0
      %vm890 = vcmp.gt.f32.partialorder %v866, 0.0
      %vm891 = vcmp.gt.f32.partialorder %v871, 0.0
      %vm892 = vcmp.gt.f32.partialorder %v874, 0.0
      %v893 = vmul.f32 %v815, 0.01
      %v894 = vmul.f32 %v818, 0.01
      %v895 = vmul.f32 %v823, 0.01
      %v896 = vmul.f32 %v826, 0.01
      %v897 = vmul.f32 %v831, 0.01
      %v898 = vmul.f32 %v834, 0.01
      %v899 = vmul.f32 %v839, 0.01
      %v900 = vmul.f32 %v842, 0.01
      %v901 = vmul.f32 %v847, 0.01
      %v902 = vmul.f32 %v850, 0.01
      %v903 = vmul.f32 %v855, 0.01
      %v904 = vmul.f32 %v858, 0.01
      %v905 = vmul.f32 %v863, 0.01
      %v906 = vmul.f32 %v866, 0.01
      %v907 = vmul.f32 %v871, 0.01
      %v908 = vmul.f32 %v874, 0.01
      %v909 = vsel %vm877, %v815, %v893
      %v910 = vsel %vm878, %v818, %v894
      %v911 = vsel %vm879, %v823, %v895
      %v912 = vsel %vm880, %v826, %v896
      %v913 = vsel %vm881, %v831, %v897
      %v914 = vsel %vm882, %v834, %v898
      %v915 = vsel %vm883, %v839, %v899
      %v916 = vsel %vm884, %v842, %v900
      %v917 = vsel %vm885, %v847, %v901
      %v918 = vsel %vm886, %v850, %v902
      %v919 = vsel %vm887, %v855, %v903
      %v920 = vsel %vm888, %v858, %v904
      %v921 = vsel %vm889, %v863, %v905
      %v922 = vsel %vm890, %v866, %v906
      %v923 = vsel %vm891, %v871, %v907
      %v924 = vsel %vm892, %v874, %v908
      %v925 = vpack.c.bf16 %v910, %v909
      %v926 = vpack.c.bf16 %v912, %v911
      %v927 = vpack.c.bf16 %v914, %v913
      %v928 = vpack.c.bf16 %v916, %v915
      %v929 = vpack.c.bf16 %v918, %v917
      %v930 = vpack.c.bf16 %v920, %v919
      %v931 = vpack.c.bf16 %v922, %v921
      %v932 = vpack.c.bf16 %v924, %v923
      %v933 = vld [vmem:[#allocation11] sm:$0xf]
      %v934 = vld [vmem:[#allocation11 + $0x4] sm:$0xf]
      %v935 = vld [vmem:[#allocation11 + $0x8] sm:$0xf]
      %v936 = vld [vmem:[#allocation11 + $0xc] sm:$0xf]
      %v937 = vld [vmem:[#allocation11 + $0x10] sm:$0xf]
      %v938 = vld [vmem:[#allocation11 + $0x14] sm:$0xf]
      %v939 = vld [vmem:[#allocation11 + $0x18] sm:$0xf]
      %v940 = vld [vmem:[#allocation11 + $0x1c] sm:$0xf]
      %v941 = vld [vmem:[#allocation11 + $0x20] sm:$0xf]
      %v942 = vld [vmem:[#allocation11 + $0x24] sm:$0xf]
      %v943 = vld [vmem:[#allocation11 + $0x28] sm:$0xf]
      %v944 = vld [vmem:[#allocation11 + $0x2c] sm:$0xf]
      %v945 = vld [vmem:[#allocation11 + $0x30] sm:$0xf]
      %v946 = vld [vmem:[#allocation11 + $0x34] sm:$0xf]
      %v947 = vld [vmem:[#allocation11 + $0x38] sm:$0xf]
      %v948 = vld [vmem:[#allocation11 + $0x3c] sm:$0xf]
      %v949 = vld [vmem:[%s10] sm:$0x1]
      %v951 = vlaneseq
      %v952 = vshrl.u32 %v951, 7
      %v953 = vsub.s32 0, %v952
      %v954 = vrot.slane %v949, %v953
      %v972 = vunpack.c.l.b16 %v933
      %v973 = vunpack.c.l.b16 %v934
      %v974 = vunpack.c.l.b16 %v935
      %v975 = vunpack.c.l.b16 %v936
      %v976 = vunpack.c.l.b16 %v937
      %v977 = vunpack.c.l.b16 %v938
      %v978 = vunpack.c.l.b16 %v939
      %v979 = vunpack.c.l.b16 %v940
      %v980 = vunpack.c.l.b16 %v941
      %v981 = vunpack.c.l.b16 %v942
      %v982 = vunpack.c.l.b16 %v943
      %v983 = vunpack.c.l.b16 %v944
      %v984 = vunpack.c.l.b16 %v945
      %v985 = vunpack.c.l.b16 %v946
      %v986 = vunpack.c.l.b16 %v947
      %v987 = vunpack.c.l.b16 %v948
      %v988 = vpack.c.b16 %v973, %v972
      %v989 = vpack.c.b16 %v975, %v974
      %v990 = vpack.c.b16 %v977, %v976
      %v991 = vpack.c.b16 %v979, %v978
      %v992 = vpack.c.b16 %v981, %v980
      %v993 = vpack.c.b16 %v983, %v982
      %v994 = vpack.c.b16 %v985, %v984
      %v995 = vpack.c.b16 %v987, %v986
      %1004 = vmatprep.subr.bf16.mxu0 0
      %1005 = vmatpush1.bf16.msra.mxu0 %v988
      %1006 = vmatprep.subr.bf16.mxu0 0
      %1007 = vmatpush1.bf16.msra.mxu0 %v989
      %1008 = vmatprep.subr.bf16.mxu0 0
      %1009 = vmatpush1.bf16.msra.mxu0 %v990
      %1010 = vmatprep.subr.bf16.mxu0 0
      %1011 = vmatpush1.bf16.msra.mxu0 %v991
      %1012 = vmatprep.subr.bf16.mxu0 0
      %1013 = vmatpush1.bf16.msra.mxu0 %v992
      %1014 = vmatprep.subr.bf16.mxu0 0
      %1015 = vmatpush1.bf16.msra.mxu0 %v993
      %1016 = vmatprep.subr.bf16.mxu0 0
      %1017 = vmatpush1.bf16.msra.mxu0 %v994
      %1018 = vmatprep.subr.bf16.mxu0 0
      %1019 = vmatpush1.bf16.msra.mxu0 %v995
      %1020 = vmatprep.subr.bf16.mxu0 0
      %1021 = vmatpush1.bf16.msra.mxu0 0
      %1022 = vmatprep.subr.bf16.mxu0 0
      %1023 = vmatpush1.bf16.msra.mxu0 0
      %1024 = vmatprep.subr.bf16.mxu0 0
      %1025 = vmatpush1.bf16.msra.mxu0 0
      %1026 = vmatprep.subr.bf16.mxu0 0
      %1027 = vmatpush1.bf16.msra.mxu0 0
      %1028 = vmatprep.subr.bf16.mxu0 0
      %1029 = vmatpush1.bf16.msra.mxu0 0
      %1030 = vmatprep.subr.bf16.mxu0 0
      %1031 = vmatpush1.bf16.msra.mxu0 0
      %1032 = vmatprep.subr.bf16.mxu0 0
      %1033 = vmatpush1.bf16.msra.mxu0 0
      %1034 = vmatprep.subr.bf16.mxu0 0
      %1035 = vmatpush1.bf16.msra.mxu0 0
      %1036 = vmatprep.mubr.bf16.mxu0 0
      %1037 = vmatmul.mubr.bf16.gmra.mrb[0].mxu0 %v925
      %v1038 = vpop.f32.mrb[0].mxu0
      %v1039 = vadd.f32 %v954, %v1038
      %v1040 = vpop.f32.mrb[0].mxu0
      %v1041 = vpop.f32.mrb[0].mxu0
      %v1042 = vadd.f32 %v954, %v1041
      %v1043 = vpop.f32.mrb[0].mxu0
      %1044 = vmatprep.mubr.bf16.mxu0 0
      %1045 = vmatmul.mubr.bf16.gmra.mrb[0].mxu0 %v926
      %v1046 = vpop.f32.mrb[0].mxu0
      %v1047 = vadd.f32 %v954, %v1046
      %v1048 = vpop.f32.mrb[0].mxu0
      %v1049 = vpop.f32.mrb[0].mxu0
      %v1050 = vadd.f32 %v954, %v1049
      %v1051 = vpop.f32.mrb[0].mxu0
      %1052 = vmatprep.mubr.bf16.mxu0 0
      %1053 = vmatmul.mubr.bf16.gmra.mrb[0].mxu0 %v927
      %v1054 = vpop.f32.mrb[0].mxu0
      %v1055 = vadd.f32 %v954, %v1054
      %v1056 = vpop.f32.mrb[0].mxu0
      %v1057 = vpop.f32.mrb[0].mxu0
      %v1058 = vadd.f32 %v954, %v1057
      %v1059 = vpop.f32.mrb[0].mxu0
      %1060 = vmatprep.mubr.bf16.mxu0 0
      %1061 = vmatmul.mubr.bf16.gmra.mrb[0].mxu0 %v928
      %v1062 = vpop.f32.mrb[0].mxu0
      %v1063 = vadd.f32 %v954, %v1062
      %v1064 = vpop.f32.mrb[0].mxu0
      %v1065 = vpop.f32.mrb[0].mxu0
      %v1066 = vadd.f32 %v954, %v1065
      %v1067 = vpop.f32.mrb[0].mxu0
      %1068 = vmatprep.mubr.bf16.mxu0 0
      %1069 = vmatmul.mubr.bf16.gmra.mrb[0].mxu0 %v929
      %v1070 = vpop.f32.mrb[0].mxu0
      %v1071 = vadd.f32 %v954, %v1070
      %v1072 = vpop.f32.mrb[0].mxu0
      %v1073 = vpop.f32.mrb[0].mxu0
      %v1074 = vadd.f32 %v954, %v1073
      %v1075 = vpop.f32.mrb[0].mxu0
      %1076 = vmatprep.mubr.bf16.mxu0 0
      %1077 = vmatmul.mubr.bf16.gmra.mrb[0].mxu0 %v930
      %v1078 = vpop.f32.mrb[0].mxu0
      %v1079 = vadd.f32 %v954, %v1078
      %v1080 = vpop.f32.mrb[0].mxu0
      %v1081 = vpop.f32.mrb[0].mxu0
      %v1082 = vadd.f32 %v954, %v1081
      %v1083 = vpop.f32.mrb[0].mxu0
      %1084 = vmatprep.mubr.bf16.mxu0 0
      %1085 = vmatmul.mubr.bf16.gmra.mrb[0].mxu0 %v931
      %v1086 = vpop.f32.mrb[0].mxu0
      %v1087 = vadd.f32 %v954, %v1086
      %v1088 = vpop.f32.mrb[0].mxu0
      %v1089 = vpop.f32.mrb[0].mxu0
      %v1090 = vadd.f32 %v954, %v1089
      %v1091 = vpop.f32.mrb[0].mxu0
      %1092 = vmatprep.mubr.bf16.mxu0 0
      %1093 = vmatmul.mubr.bf16.gmra.mrb[0].mxu0 %v932
      %v1094 = vpop.f32.mrb[0].mxu0
      %v1095 = vadd.f32 %v954, %v1094
      %v1096 = vpop.f32.mrb[0].mxu0
      %v1097 = vpop.f32.mrb[0].mxu0
      %v1098 = vadd.f32 %v954, %v1097
      %v1099 = vpop.f32.mrb[0].mxu0
      %1100 = vdwg.mxu0
      %v1101 = vld [vmem:[#allocation2] sm:$0xff]
      %v1102 = vld [vmem:[#allocation2 + $0x8] sm:$0xff]
      %v1103 = vld [vmem:[#allocation2 + $0x10] sm:$0xff]
      %v1104 = vld [vmem:[#allocation2 + $0x18] sm:$0xff]
      %v1105 = vld [vmem:[#allocation2 + $0x20] sm:$0xff]
      %v1106 = vld [vmem:[#allocation2 + $0x28] sm:$0xff]
      %v1107 = vld [vmem:[#allocation2 + $0x30] sm:$0xff]
      %v1108 = vld [vmem:[#allocation2 + $0x38] sm:$0xff]
      %v1109 = vld [vmem:[#allocation2 + $0x40] sm:$0xff]
      %v1110 = vld [vmem:[#allocation2 + $0x48] sm:$0xff]
      %v1111 = vld [vmem:[#allocation2 + $0x50] sm:$0xff]
      %v1112 = vld [vmem:[#allocation2 + $0x58] sm:$0xff]
      %v1113 = vld [vmem:[#allocation2 + $0x60] sm:$0xff]
      %v1114 = vld [vmem:[#allocation2 + $0x68] sm:$0xff]
      %v1115 = vld [vmem:[#allocation2 + $0x70] sm:$0xff]
      %v1116 = vld [vmem:[#allocation2 + $0x78] sm:$0xff]
      %1118 = vset.pattern.permute.xlu0 0
      %1119 = vperm.xlu0 %1118, %v430
      %v1120 = vpop.permute.xlu0 %1119
      %1123 = vset.pattern.permute.xlu0 0
      %1124 = vperm.xlu0 %1123, %v431
      %v1125 = vpop.permute.xlu0 %1124
      %1128 = vset.pattern.permute.xlu0 0
      %1129 = vperm.xlu0 %1128, %v432
      %v1130 = vpop.permute.xlu0 %1129
      %1133 = vset.pattern.permute.xlu0 0
      %1134 = vperm.xlu0 %1133, %v433
      %v1135 = vpop.permute.xlu0 %1134
      %1138 = vset.pattern.permute.xlu0 0
      %1139 = vperm.xlu0 %1138, %v434
      %v1140 = vpop.permute.xlu0 %1139
      %1143 = vset.pattern.permute.xlu0 0
      %1144 = vperm.xlu0 %1143, %v435
      %v1145 = vpop.permute.xlu0 %1144
      %1148 = vset.pattern.permute.xlu0 0
      %1149 = vperm.xlu0 %1148, %v436
      %v1150 = vpop.permute.xlu0 %1149
      %1153 = vset.pattern.permute.xlu0 0
      %1154 = vperm.xlu0 %1153, %v437
      %v1155 = vpop.permute.xlu0 %1154
      %1158 = vset.pattern.permute.xlu0 0
      %1159 = vperm.xlu0 %1158, %v438
      %v1160 = vpop.permute.xlu0 %1159
      %1163 = vset.pattern.permute.xlu0 0
      %1164 = vperm.xlu0 %1163, %v439
      %v1165 = vpop.permute.xlu0 %1164
      %1168 = vset.pattern.permute.xlu0 0
      %1169 = vperm.xlu0 %1168, %v440
      %v1170 = vpop.permute.xlu0 %1169
      %1173 = vset.pattern.permute.xlu0 0
      %1174 = vperm.xlu0 %1173, %v441
      %v1175 = vpop.permute.xlu0 %1174
      %1178 = vset.pattern.permute.xlu0 0
      %1179 = vperm.xlu0 %1178, %v442
      %v1180 = vpop.permute.xlu0 %1179
      %1183 = vset.pattern.permute.xlu0 0
      %1184 = vperm.xlu0 %1183, %v443
      %v1185 = vpop.permute.xlu0 %1184
      %1188 = vset.pattern.permute.xlu0 0
      %1189 = vperm.xlu0 %1188, %v444
      %v1190 = vpop.permute.xlu0 %1189
      %1193 = vset.pattern.permute.xlu0 0
      %1194 = vperm.xlu0 %1193, %v445
      %v1195 = vpop.permute.xlu0 %1194
      %v1197 = vmul.f32 %v1120, %v1039
      %v1198 = vmul.f32 %v1125, %v1042
      %v1199 = vmul.f32 %v1130, %v1047
      %v1200 = vmul.f32 %v1135, %v1050
      %v1201 = vmul.f32 %v1140, %v1055
      %v1202 = vmul.f32 %v1145, %v1058
      %v1203 = vmul.f32 %v1150, %v1063
      %v1204 = vmul.f32 %v1155, %v1066
      %v1205 = vmul.f32 %v1160, %v1071
      %v1206 = vmul.f32 %v1165, %v1074
      %v1207 = vmul.f32 %v1170, %v1079
      %v1208 = vmul.f32 %v1175, %v1082
      %v1209 = vmul.f32 %v1180, %v1087
      %v1210 = vmul.f32 %v1185, %v1090
      %v1211 = vmul.f32 %v1190, %v1095
      %v1212 = vmul.f32 %v1195, %v1098
      %v1213 = vadd.f32 %v1101, %v1197
      %v1214 = vadd.f32 %v1102, %v1198
      %v1215 = vadd.f32 %v1103, %v1199
      %v1216 = vadd.f32 %v1104, %v1200
      %v1217 = vadd.f32 %v1105, %v1201
      %v1218 = vadd.f32 %v1106, %v1202
      %v1219 = vadd.f32 %v1107, %v1203
      %v1220 = vadd.f32 %v1108, %v1204
      %v1221 = vadd.f32 %v1109, %v1205
      %v1222 = vadd.f32 %v1110, %v1206
      %v1223 = vadd.f32 %v1111, %v1207
      %v1224 = vadd.f32 %v1112, %v1208
      %v1225 = vadd.f32 %v1113, %v1209
      %v1226 = vadd.f32 %v1114, %v1210
      %v1227 = vadd.f32 %v1115, %v1211
      %v1228 = vadd.f32 %v1116, %v1212
      %1229 = vst [vmem:[#allocation2] sm:$0xff] %v1213
      %1230 = vst [vmem:[#allocation2 + $0x8] sm:$0xff] %v1214
      %1231 = vst [vmem:[#allocation2 + $0x10] sm:$0xff] %v1215
      %1232 = vst [vmem:[#allocation2 + $0x18] sm:$0xff] %v1216
      %1233 = vst [vmem:[#allocation2 + $0x20] sm:$0xff] %v1217
      %1234 = vst [vmem:[#allocation2 + $0x28] sm:$0xff] %v1218
      %1235 = vst [vmem:[#allocation2 + $0x30] sm:$0xff] %v1219
      %1236 = vst [vmem:[#allocation2 + $0x38] sm:$0xff] %v1220
      %1237 = vst [vmem:[#allocation2 + $0x40] sm:$0xff] %v1221
      %1238 = vst [vmem:[#allocation2 + $0x48] sm:$0xff] %v1222
      %1239 = vst [vmem:[#allocation2 + $0x50] sm:$0xff] %v1223
      %1240 = vst [vmem:[#allocation2 + $0x58] sm:$0xff] %v1224
      %1241 = vst [vmem:[#allocation2 + $0x60] sm:$0xff] %v1225
      %1242 = vst [vmem:[#allocation2 + $0x68] sm:$0xff] %v1226
      %1243 = vst [vmem:[#allocation2 + $0x70] sm:$0xff] %v1227
      %1244 = vst [vmem:[#allocation2 + $0x78] sm:$0xff] %v1228
      %v1245 = vld [vmem:[#allocation3] sm:$0xff]
      %v1246 = vld [vmem:[#allocation3 + $0x8] sm:$0xff]
      %v1247 = vld [vmem:[#allocation3 + $0x10] sm:$0xff]
      %v1248 = vld [vmem:[#allocation3 + $0x18] sm:$0xff]
      %v1249 = vld [vmem:[#allocation3 + $0x20] sm:$0xff]
      %v1250 = vld [vmem:[#allocation3 + $0x28] sm:$0xff]
      %v1251 = vld [vmem:[#allocation3 + $0x30] sm:$0xff]
      %v1252 = vld [vmem:[#allocation3 + $0x38] sm:$0xff]
      %v1253 = vld [vmem:[#allocation3 + $0x40] sm:$0xff]
      %v1254 = vld [vmem:[#allocation3 + $0x48] sm:$0xff]
      %v1255 = vld [vmem:[#allocation3 + $0x50] sm:$0xff]
      %v1256 = vld [vmem:[#allocation3 + $0x58] sm:$0xff]
      %v1257 = vld [vmem:[#allocation3 + $0x60] sm:$0xff]
      %v1258 = vld [vmem:[#allocation3 + $0x68] sm:$0xff]
      %v1259 = vld [vmem:[#allocation3 + $0x70] sm:$0xff]
      %v1260 = vld [vmem:[#allocation3 + $0x78] sm:$0xff]
      %v1261 = vadd.f32 %v1245, %v430
      %v1262 = vadd.f32 %v1246, %v431
      %v1263 = vadd.f32 %v1247, %v432
      %v1264 = vadd.f32 %v1248, %v433
      %v1265 = vadd.f32 %v1249, %v434
      %v1266 = vadd.f32 %v1250, %v435
      %v1267 = vadd.f32 %v1251, %v436
      %v1268 = vadd.f32 %v1252, %v437
      %v1269 = vadd.f32 %v1253, %v438
      %v1270 = vadd.f32 %v1254, %v439
      %v1271 = vadd.f32 %v1255, %v440
      %v1272 = vadd.f32 %v1256, %v441
      %v1273 = vadd.f32 %v1257, %v442
      %v1274 = vadd.f32 %v1258, %v443
      %v1275 = vadd.f32 %v1259, %v444
      %v1276 = vadd.f32 %v1260, %v445
      %1277 = vst.msk [vmem:[#allocation3] sm:$0xff] %vm462, %v1261
      %1278 = vst.msk [vmem:[#allocation3 + $0x8] sm:$0xff] %vm462, %v1262
      %1279 = vst.msk [vmem:[#allocation3 + $0x10] sm:$0xff] %vm462, %v1263
      %1280 = vst.msk [vmem:[#allocation3 + $0x18] sm:$0xff] %vm462, %v1264
      %1281 = vst.msk [vmem:[#allocation3 + $0x20] sm:$0xff] %vm462, %v1265
      %1282 = vst.msk [vmem:[#allocation3 + $0x28] sm:$0xff] %vm462, %v1266
      %1283 = vst.msk [vmem:[#allocation3 + $0x30] sm:$0xff] %vm462, %v1267
      %1284 = vst.msk [vmem:[#allocation3 + $0x38] sm:$0xff] %vm462, %v1268
      %1285 = vst.msk [vmem:[#allocation3 + $0x40] sm:$0xff] %vm462, %v1269
      %1286 = vst.msk [vmem:[#allocation3 + $0x48] sm:$0xff] %vm462, %v1270
      %1287 = vst.msk [vmem:[#allocation3 + $0x50] sm:$0xff] %vm462, %v1271
      %1288 = vst.msk [vmem:[#allocation3 + $0x58] sm:$0xff] %vm462, %v1272
      %1289 = vst.msk [vmem:[#allocation3 + $0x60] sm:$0xff] %vm462, %v1273
      %1290 = vst.msk [vmem:[#allocation3 + $0x68] sm:$0xff] %vm462, %v1274
      %1291 = vst.msk [vmem:[#allocation3 + $0x70] sm:$0xff] %vm462, %v1275
      %1292 = vst.msk [vmem:[#allocation3 + $0x78] sm:$0xff] %vm462, %v1276
    $region57: #{tpu_custom_call.1} parent=1 // pred_fallthru
      _
    %s1293 = sadd.s32 %s479, 1
    %s1294 = sld [smem:[#allocation5 + %s1293]]
    %p1295 = scmp.gt.s32.totalorder %s1294, 0
    // Predicated region
    $region58: #{tpu_custom_call.1} parent=1 // pred_check
      %p1296 = pneg %p1295
    $region59: #{tpu_custom_call.1} parent=1 // pred_check_branch
      %1298 = sbr.rel (%p1296) target = $region61
    $region60: #{tpu_custom_call.1} parent=1 // pred_region
      %s1299 = scalar_lea.vmem [#allocation6], 64
      %v1300 = vld [vmem:[%s1299] sm:$0xf]
      %v1301 = vld [vmem:[%s1299 + $0x4] sm:$0xf]
      %v1302 = vld [vmem:[%s1299 + $0x8] sm:$0xf]
      %v1303 = vld [vmem:[%s1299 + $0xc] sm:$0xf]
      %v1304 = vld [vmem:[%s1299 + $0x10] sm:$0xf]
      %v1305 = vld [vmem:[%s1299 + $0x14] sm:$0xf]
      %v1306 = vld [vmem:[%s1299 + $0x18] sm:$0xf]
      %v1307 = vld [vmem:[%s1299 + $0x1c] sm:$0xf]
      %v1308 = vld [vmem:[%s1299 + $0x20] sm:$0xf]
      %v1309 = vld [vmem:[%s1299 + $0x24] sm:$0xf]
      %v1310 = vld [vmem:[%s1299 + $0x28] sm:$0xf]
      %v1311 = vld [vmem:[%s1299 + $0x2c] sm:$0xf]
      %v1312 = vld [vmem:[%s1299 + $0x30] sm:$0xf]
      %v1313 = vld [vmem:[%s1299 + $0x34] sm:$0xf]
      %v1314 = vld [vmem:[%s1299 + $0x38] sm:$0xf]
      %v1315 = vld [vmem:[%s1299 + $0x3c] sm:$0xf]
      %s1316 = scalar_lea.vmem %s6, 1
      %v1317 = vld [vmem:[%s1316] sm:$0x1]
      %v1319 = vlaneseq
      %v1320 = vshrl.u32 %v1319, 7
      %v1321 = vsub.s32 0, %v1320
      %v1322 = vrot.slane %v1317, %v1321
      %v1340 = vunpack.c.l.b16 %v1300
      %v1341 = vunpack.c.l.b16 %v1301
      %v1342 = vunpack.c.l.b16 %v1302
      %v1343 = vunpack.c.l.b16 %v1303
      %v1344 = vunpack.c.l.b16 %v1304
      %v1345 = vunpack.c.l.b16 %v1305
      %v1346 = vunpack.c.l.b16 %v1306
      %v1347 = vunpack.c.l.b16 %v1307
      %v1348 = vunpack.c.l.b16 %v1308
      %v1349 = vunpack.c.l.b16 %v1309
      %v1350 = vunpack.c.l.b16 %v1310
      %v1351 = vunpack.c.l.b16 %v1311
      %v1352 = vunpack.c.l.b16 %v1312
      %v1353 = vunpack.c.l.b16 %v1313
      %v1354 = vunpack.c.l.b16 %v1314
      %v1355 = vunpack.c.l.b16 %v1315
      %v1356 = vpack.c.b16 %v1341, %v1340
      %v1357 = vpack.c.b16 %v1343, %v1342
      %v1358 = vpack.c.b16 %v1345, %v1344
      %v1359 = vpack.c.b16 %v1347, %v1346
      %v1360 = vpack.c.b16 %v1349, %v1348
      %v1361 = vpack.c.b16 %v1351, %v1350
      %v1362 = vpack.c.b16 %v1353, %v1352
      %v1363 = vpack.c.b16 %v1355, %v1354
      %1372 = vmatprep.subr.bf16.mxu0 0
      %1373 = vmatpush1.bf16.msra.mxu0 %v1356
      %1374 = vmatprep.subr.bf16.mxu0 0
      %1375 = vmatpush1.bf16.msra.mxu0 %v1357
      %1376 = vmatprep.subr.bf16.mxu0 0
      %1377 = vmatpush1.bf16.msra.mxu0 %v1358
      %1378 = vmatprep.subr.bf16.mxu0 0
      %1379 = vmatpush1.bf16.msra.mxu0 %v1359
      %1380 = vmatprep.subr.bf16.mxu0 0
      %1381 = vmatpush1.bf16.msra.mxu0 %v1360
      %1382 = vmatprep.subr.bf16.mxu0 0
      %1383 = vmatpush1.bf16.msra.mxu0 %v1361
      %1384 = vmatprep.subr.bf16.mxu0 0
      %1385 = vmatpush1.bf16.msra.mxu0 %v1362
      %1386 = vmatprep.subr.bf16.mxu0 0
      %1387 = vmatpush1.bf16.msra.mxu0 %v1363
      %1388 = vmatprep.subr.bf16.mxu0 0
      %1389 = vmatpush1.bf16.msra.mxu0 0
      %1390 = vmatprep.subr.bf16.mxu0 0
      %1391 = vmatpush1.bf16.msra.mxu0 0
      %1392 = vmatprep.subr.bf16.mxu0 0
      %1393 = vmatpush1.bf16.msra.mxu0 0
      %1394 = vmatprep.subr.bf16.mxu0 0
      %1395 = vmatpush1.bf16.msra.mxu0 0
      %1396 = vmatprep.subr.bf16.mxu0 0
      %1397 = vmatpush1.bf16.msra.mxu0 0
      %1398 = vmatprep.subr.bf16.mxu0 0
      %1399 = vmatpush1.bf16.msra.mxu0 0
      %1400 = vmatprep.subr.bf16.mxu0 0
      %1401 = vmatpush1.bf16.msra.mxu0 0
      %1402 = vmatprep.subr.bf16.mxu0 0
      %1403 = vmatpush1.bf16.msra.mxu0 0
      %1404 = vmatprep.mubr.bf16.mxu0 0
      %1405 = vmatmul.mubr.bf16.gmra.mrb[0].mxu0 %v156
      %v1406 = vpop.f32.mrb[0].mxu0
      %v1407 = vadd.f32 %v1322, %v1406
      %v1408 = vpop.f32.mrb[0].mxu0
      %v1409 = vpop.f32.mrb[0].mxu0
      %v1410 = vadd.f32 %v1322, %v1409
      %v1411 = vpop.f32.mrb[0].mxu0
      %1412 = vmatprep.mubr.bf16.mxu0 0
      %1413 = vmatmul.mubr.bf16.gmra.mrb[0].mxu0 %v157
      %v1414 = vpop.f32.mrb[0].mxu0
      %v1415 = vadd.f32 %v1322, %v1414
      %v1416 = vpop.f32.mrb[0].mxu0
      %v1417 = vpop.f32.mrb[0].mxu0
      %v1418 = vadd.f32 %v1322, %v1417
      %v1419 = vpop.f32.mrb[0].mxu0
      %1420 = vmatprep.mubr.bf16.mxu0 0
      %1421 = vmatmul.mubr.bf16.gmra.mrb[0].mxu0 %v158
      %v1422 = vpop.f32.mrb[0].mxu0
      %v1423 = vadd.f32 %v1322, %v1422
      %v1424 = vpop.f32.mrb[0].mxu0
      %v1425 = vpop.f32.mrb[0].mxu0
      %v1426 = vadd.f32 %v1322, %v1425
      %v1427 = vpop.f32.mrb[0].mxu0
      %1428 = vmatprep.mubr.bf16.mxu0 0
      %1429 = vmatmul.mubr.bf16.gmra.mrb[0].mxu0 %v159
      %v1430 = vpop.f32.mrb[0].mxu0
      %v1431 = vadd.f32 %v1322, %v1430
      %v1432 = vpop.f32.mrb[0].mxu0
      %v1433 = vpop.f32.mrb[0].mxu0
      %v1434 = vadd.f32 %v1322, %v1433
      %v1435 = vpop.f32.mrb[0].mxu0
      %1436 = vmatprep.mubr.bf16.mxu0 0
      %1437 = vmatmul.mubr.bf16.gmra.mrb[0].mxu0 %v160
      %v1438 = vpop.f32.mrb[0].mxu0
      %v1439 = vadd.f32 %v1322, %v1438
      %v1440 = vpop.f32.mrb[0].mxu0
      %v1441 = vpop.f32.mrb[0].mxu0
      %v1442 = vadd.f32 %v1322, %v1441
      %v1443 = vpop.f32.mrb[0].mxu0
      %1444 = vmatprep.mubr.bf16.mxu0 0
      %1445 = vmatmul.mubr.bf16.gmra.mrb[0].mxu0 %v161
      %v1446 = vpop.f32.mrb[0].mxu0
      %v1447 = vadd.f32 %v1322, %v1446
      %v1448 = vpop.f32.mrb[0].mxu0
      %v1449 = vpop.f32.mrb[0].mxu0
      %v1450 = vadd.f32 %v1322, %v1449
      %v1451 = vpop.f32.mrb[0].mxu0
      %1452 = vmatprep.mubr.bf16.mxu0 0
      %1453 = vmatmul.mubr.bf16.gmra.mrb[0].mxu0 %v162
      %v1454 = vpop.f32.mrb[0].mxu0
      %v1455 = vadd.f32 %v1322, %v1454
      %v1456 = vpop.f32.mrb[0].mxu0
      %v1457 = vpop.f32.mrb[0].mxu0
      %v1458 = vadd.f32 %v1322, %v1457
      %v1459 = vpop.f32.mrb[0].mxu0
      %1460 = vmatprep.mubr.bf16.mxu0 0
      %1461 = vmatmul.mubr.bf16.gmra.mrb[0].mxu0 %v163
      %v1462 = vpop.f32.mrb[0].mxu0
      %v1463 = vadd.f32 %v1322, %v1462
      %v1464 = vpop.f32.mrb[0].mxu0
      %v1465 = vpop.f32.mrb[0].mxu0
      %v1466 = vadd.f32 %v1322, %v1465
      %v1467 = vpop.f32.mrb[0].mxu0
      %1468 = vdwg.mxu0
      %vm1469 = vcmp.gt.f32.partialorder %v1407, 0.0
      %vm1470 = vcmp.gt.f32.partialorder %v1410, 0.0
      %vm1471 = vcmp.gt.f32.partialorder %v1415, 0.0
      %vm1472 = vcmp.gt.f32.partialorder %v1418, 0.0
      %vm1473 = vcmp.gt.f32.partialorder %v1423, 0.0
      %vm1474 = vcmp.gt.f32.partialorder %v1426, 0.0
      %vm1475 = vcmp.gt.f32.partialorder %v1431, 0.0
      %vm1476 = vcmp.gt.f32.partialorder %v1434, 0.0
      %vm1477 = vcmp.gt.f32.partialorder %v1439, 0.0
      %vm1478 = vcmp.gt.f32.partialorder %v1442, 0.0
      %vm1479 = vcmp.gt.f32.partialorder %v1447, 0.0
      %vm1480 = vcmp.gt.f32.partialorder %v1450, 0.0
      %vm1481 = vcmp.gt.f32.partialorder %v1455, 0.0
      %vm1482 = vcmp.gt.f32.partialorder %v1458, 0.0
      %vm1483 = vcmp.gt.f32.partialorder %v1463, 0.0
      %vm1484 = vcmp.gt.f32.partialorder %v1466, 0.0
      %v1485 = vmul.f32 %v1407, 0.01
      %v1486 = vmul.f32 %v1410, 0.01
      %v1487 = vmul.f32 %v1415, 0.01
      %v1488 = vmul.f32 %v1418, 0.01
      %v1489 = vmul.f32 %v1423, 0.01
      %v1490 = vmul.f32 %v1426, 0.01
      %v1491 = vmul.f32 %v1431, 0.01
      %v1492 = vmul.f32 %v1434, 0.01
      %v1493 = vmul.f32 %v1439, 0.01
      %v1494 = vmul.f32 %v1442, 0.01
      %v1495 = vmul.f32 %v1447, 0.01
      %v1496 = vmul.f32 %v1450, 0.01
      %v1497 = vmul.f32 %v1455, 0.01
      %v1498 = vmul.f32 %v1458, 0.01
      %v1499 = vmul.f32 %v1463, 0.01
      %v1500 = vmul.f32 %v1466, 0.01
      %v1501 = vsel %vm1469, %v1407, %v1485
      %v1502 = vsel %vm1470, %v1410, %v1486
      %v1503 = vsel %vm1471, %v1415, %v1487
      %v1504 = vsel %vm1472, %v1418, %v1488
      %v1505 = vsel %vm1473, %v1423, %v1489
      %v1506 = vsel %vm1474, %v1426, %v1490
      %v1507 = vsel %vm1475, %v1431, %v1491
      %v1508 = vsel %vm1476, %v1434, %v1492
      %v1509 = vsel %vm1477, %v1439, %v1493
      %v1510 = vsel %vm1478, %v1442, %v1494
      %v1511 = vsel %vm1479, %v1447, %v1495
      %v1512 = vsel %vm1480, %v1450, %v1496
      %v1513 = vsel %vm1481, %v1455, %v1497
      %v1514 = vsel %vm1482, %v1458, %v1498
      %v1515 = vsel %vm1483, %v1463, %v1499
      %v1516 = vsel %vm1484, %v1466, %v1500
      %v1517 = vpack.c.bf16 %v1502, %v1501
      %v1518 = vpack.c.bf16 %v1504, %v1503
      %v1519 = vpack.c.bf16 %v1506, %v1505
      %v1520 = vpack.c.bf16 %v1508, %v1507
      %v1521 = vpack.c.bf16 %v1510, %v1509
      %v1522 = vpack.c.bf16 %v1512, %v1511
      %v1523 = vpack.c.bf16 %v1514, %v1513
      %v1524 = vpack.c.bf16 %v1516, %v1515
      %s1525 = scalar_lea.vmem [#allocation9], 64
      %v1526 = vld [vmem:[%s1525] sm:$0xf]
      %v1527 = vld [vmem:[%s1525 + $0x4] sm:$0xf]
      %v1528 = vld [vmem:[%s1525 + $0x8] sm:$0xf]
      %v1529 = vld [vmem:[%s1525 + $0xc] sm:$0xf]
      %v1530 = vld [vmem:[%s1525 + $0x10] sm:$0xf]
      %v1531 = vld [vmem:[%s1525 + $0x14] sm:$0xf]
      %v1532 = vld [vmem:[%s1525 + $0x18] sm:$0xf]
      %v1533 = vld [vmem:[%s1525 + $0x1c] sm:$0xf]
      %v1534 = vld [vmem:[%s1525 + $0x20] sm:$0xf]
      %v1535 = vld [vmem:[%s1525 + $0x24] sm:$0xf]
      %v1536 = vld [vmem:[%s1525 + $0x28] sm:$0xf]
      %v1537 = vld [vmem:[%s1525 + $0x2c] sm:$0xf]
      %v1538 = vld [vmem:[%s1525 + $0x30] sm:$0xf]
      %v1539 = vld [vmem:[%s1525 + $0x34] sm:$0xf]
      %v1540 = vld [vmem:[%s1525 + $0x38] sm:$0xf]
      %v1541 = vld [vmem:[%s1525 + $0x3c] sm:$0xf]
      %s1542 = scalar_lea.vmem %s8, 1
      %v1543 = vld [vmem:[%s1542] sm:$0x1]
      %v1545 = vlaneseq
      %v1546 = vshrl.u32 %v1545, 7
      %v1547 = vsub.s32 0, %v1546
      %v1548 = vrot.slane %v1543, %v1547
      %v1566 = vunpack.c.l.b16 %v1526
      %v1567 = vunpack.c.l.b16 %v1527
      %v1568 = vunpack.c.l.b16 %v1528
      %v1569 = vunpack.c.l.b16 %v1529
      %v1570 = vunpack.c.l.b16 %v1530
      %v1571 = vunpack.c.l.b16 %v1531
      %v1572 = vunpack.c.l.b16 %v1532
      %v1573 = vunpack.c.l.b16 %v1533
      %v1574 = vunpack.c.l.b16 %v1534
      %v1575 = vunpack.c.l.b16 %v1535
      %v1576 = vunpack.c.l.b16 %v1536
      %v1577 = vunpack.c.l.b16 %v1537
      %v1578 = vunpack.c.l.b16 %v1538
      %v1579 = vunpack.c.l.b16 %v1539
      %v1580 = vunpack.c.l.b16 %v1540
      %v1581 = vunpack.c.l.b16 %v1541
      %v1582 = vpack.c.b16 %v1567, %v1566
      %v1583 = vpack.c.b16 %v1569, %v1568
      %v1584 = vpack.c.b16 %v1571, %v1570
      %v1585 = vpack.c.b16 %v1573, %v1572
      %v1586 = vpack.c.b16 %v1575, %v1574
      %v1587 = vpack.c.b16 %v1577, %v1576
      %v1588 = vpack.c.b16 %v1579, %v1578
      %v1589 = vpack.c.b16 %v1581, %v1580
      %1598 = vmatprep.subr.bf16.mxu0 0
      %1599 = vmatpush1.bf16.msra.mxu0 %v1582
      %1600 = vmatprep.subr.bf16.mxu0 0
      %1601 = vmatpush1.bf16.msra.mxu0 %v1583
      %1602 = vmatprep.subr.bf16.mxu0 0
      %1603 = vmatpush1.bf16.msra.mxu0 %v1584
      %1604 = vmatprep.subr.bf16.mxu0 0
      %1605 = vmatpush1.bf16.msra.mxu0 %v1585
      %1606 = vmatprep.subr.bf16.mxu0 0
      %1607 = vmatpush1.bf16.msra.mxu0 %v1586
      %1608 = vmatprep.subr.bf16.mxu0 0
      %1609 = vmatpush1.bf16.msra.mxu0 %v1587
      %1610 = vmatprep.subr.bf16.mxu0 0
      %1611 = vmatpush1.bf16.msra.mxu0 %v1588
      %1612 = vmatprep.subr.bf16.mxu0 0
      %1613 = vmatpush1.bf16.msra.mxu0 %v1589
      %1614 = vmatprep.subr.bf16.mxu0 0
      %1615 = vmatpush1.bf16.msra.mxu0 0
      %1616 = vmatprep.subr.bf16.mxu0 0
      %1617 = vmatpush1.bf16.msra.mxu0 0
      %1618 = vmatprep.subr.bf16.mxu0 0
      %1619 = vmatpush1.bf16.msra.mxu0 0
      %1620 = vmatprep.subr.bf16.mxu0 0
      %1621 = vmatpush1.bf16.msra.mxu0 0
      %1622 = vmatprep.subr.bf16.mxu0 0
      %1623 = vmatpush1.bf16.msra.mxu0 0
      %1624 = vmatprep.subr.bf16.mxu0 0
      %1625 = vmatpush1.bf16.msra.mxu0 0
      %1626 = vmatprep.subr.bf16.mxu0 0
      %1627 = vmatpush1.bf16.msra.mxu0 0
      %1628 = vmatprep.subr.bf16.mxu0 0
      %1629 = vmatpush1.bf16.msra.mxu0 0
      %1630 = vmatprep.mubr.bf16.mxu0 0
      %1631 = vmatmul.mubr.bf16.gmra.mrb[0].mxu0 %v1517
      %v1632 = vpop.f32.mrb[0].mxu0
      %v1633 = vadd.f32 %v1548, %v1632
      %v1634 = vpop.f32.mrb[0].mxu0
      %v1635 = vpop.f32.mrb[0].mxu0
      %v1636 = vadd.f32 %v1548, %v1635
      %v1637 = vpop.f32.mrb[0].mxu0
      %1638 = vmatprep.mubr.bf16.mxu0 0
      %1639 = vmatmul.mubr.bf16.gmra.mrb[0].mxu0 %v1518
      %v1640 = vpop.f32.mrb[0].mxu0
      %v1641 = vadd.f32 %v1548, %v1640
      %v1642 = vpop.f32.mrb[0].mxu0
      %v1643 = vpop.f32.mrb[0].mxu0
      %v1644 = vadd.f32 %v1548, %v1643
      %v1645 = vpop.f32.mrb[0].mxu0
      %1646 = vmatprep.mubr.bf16.mxu0 0
      %1647 = vmatmul.mubr.bf16.gmra.mrb[0].mxu0 %v1519
      %v1648 = vpop.f32.mrb[0].mxu0
      %v1649 = vadd.f32 %v1548, %v1648
      %v1650 = vpop.f32.mrb[0].mxu0
      %v1651 = vpop.f32.mrb[0].mxu0
      %v1652 = vadd.f32 %v1548, %v1651
      %v1653 = vpop.f32.mrb[0].mxu0
      %1654 = vmatprep.mubr.bf16.mxu0 0
      %1655 = vmatmul.mubr.bf16.gmra.mrb[0].mxu0 %v1520
      %v1656 = vpop.f32.mrb[0].mxu0
      %v1657 = vadd.f32 %v1548, %v1656
      %v1658 = vpop.f32.mrb[0].mxu0
      %v1659 = vpop.f32.mrb[0].mxu0
      %v1660 = vadd.f32 %v1548, %v1659
      %v1661 = vpop.f32.mrb[0].mxu0
      %1662 = vmatprep.mubr.bf16.mxu0 0
      %1663 = vmatmul.mubr.bf16.gmra.mrb[0].mxu0 %v1521
      %v1664 = vpop.f32.mrb[0].mxu0
      %v1665 = vadd.f32 %v1548, %v1664
      %v1666 = vpop.f32.mrb[0].mxu0
      %v1667 = vpop.f32.mrb[0].mxu0
      %v1668 = vadd.f32 %v1548, %v1667
      %v1669 = vpop.f32.mrb[0].mxu0
      %1670 = vmatprep.mubr.bf16.mxu0 0
      %1671 = vmatmul.mubr.bf16.gmra.mrb[0].mxu0 %v1522
      %v1672 = vpop.f32.mrb[0].mxu0
      %v1673 = vadd.f32 %v1548, %v1672
      %v1674 = vpop.f32.mrb[0].mxu0
      %v1675 = vpop.f32.mrb[0].mxu0
      %v1676 = vadd.f32 %v1548, %v1675
      %v1677 = vpop.f32.mrb[0].mxu0
      %1678 = vmatprep.mubr.bf16.mxu0 0
      %1679 = vmatmul.mubr.bf16.gmra.mrb[0].mxu0 %v1523
      %v1680 = vpop.f32.mrb[0].mxu0
      %v1681 = vadd.f32 %v1548, %v1680
      %v1682 = vpop.f32.mrb[0].mxu0
      %v1683 = vpop.f32.mrb[0].mxu0
      %v1684 = vadd.f32 %v1548, %v1683
      %v1685 = vpop.f32.mrb[0].mxu0
      %1686 = vmatprep.mubr.bf16.mxu0 0
      %1687 = vmatmul.mubr.bf16.gmra.mrb[0].mxu0 %v1524
      %v1688 = vpop.f32.mrb[0].mxu0
      %v1689 = vadd.f32 %v1548, %v1688
      %v1690 = vpop.f32.mrb[0].mxu0
      %v1691 = vpop.f32.mrb[0].mxu0
      %v1692 = vadd.f32 %v1548, %v1691
      %v1693 = vpop.f32.mrb[0].mxu0
      %1694 = vdwg.mxu0
      %vm1695 = vcmp.gt.f32.partialorder %v1633, 0.0
      %vm1696 = vcmp.gt.f32.partialorder %v1636, 0.0
      %vm1697 = vcmp.gt.f32.partialorder %v1641, 0.0
      %vm1698 = vcmp.gt.f32.partialorder %v1644, 0.0
      %vm1699 = vcmp.gt.f32.partialorder %v1649, 0.0
      %vm1700 = vcmp.gt.f32.partialorder %v1652, 0.0
      %vm1701 = vcmp.gt.f32.partialorder %v1657, 0.0
      %vm1702 = vcmp.gt.f32.partialorder %v1660, 0.0
      %vm1703 = vcmp.gt.f32.partialorder %v1665, 0.0
      %vm1704 = vcmp.gt.f32.partialorder %v1668, 0.0
      %vm1705 = vcmp.gt.f32.partialorder %v1673, 0.0
      %vm1706 = vcmp.gt.f32.partialorder %v1676, 0.0
      %vm1707 = vcmp.gt.f32.partialorder %v1681, 0.0
      %vm1708 = vcmp.gt.f32.partialorder %v1684, 0.0
      %vm1709 = vcmp.gt.f32.partialorder %v1689, 0.0
      %vm1710 = vcmp.gt.f32.partialorder %v1692, 0.0
      %v1711 = vmul.f32 %v1633, 0.01
      %v1712 = vmul.f32 %v1636, 0.01
      %v1713 = vmul.f32 %v1641, 0.01
      %v1714 = vmul.f32 %v1644, 0.01
      %v1715 = vmul.f32 %v1649, 0.01
      %v1716 = vmul.f32 %v1652, 0.01
      %v1717 = vmul.f32 %v1657, 0.01
      %v1718 = vmul.f32 %v1660, 0.01
      %v1719 = vmul.f32 %v1665, 0.01
      %v1720 = vmul.f32 %v1668, 0.01
      %v1721 = vmul.f32 %v1673, 0.01
      %v1722 = vmul.f32 %v1676, 0.01
      %v1723 = vmul.f32 %v1681, 0.01
      %v1724 = vmul.f32 %v1684, 0.01
      %v1725 = vmul.f32 %v1689, 0.01
      %v1726 = vmul.f32 %v1692, 0.01
      %v1727 = vsel %vm1695, %v1633, %v1711
      %v1728 = vsel %vm1696, %v1636, %v1712
      %v1729 = vsel %vm1697, %v1641, %v1713
      %v1730 = vsel %vm1698, %v1644, %v1714
      %v1731 = vsel %vm1699, %v1649, %v1715
      %v1732 = vsel %vm1700, %v1652, %v1716
      %v1733 = vsel %vm1701, %v1657, %v1717
      %v1734 = vsel %vm1702, %v1660, %v1718
      %v1735 = vsel %vm1703, %v1665, %v1719
      %v1736 = vsel %vm1704, %v1668, %v1720
      %v1737 = vsel %vm1705, %v1673, %v1721
      %v1738 = vsel %vm1706, %v1676, %v1722
      %v1739 = vsel %vm1707, %v1681, %v1723
      %v1740 = vsel %vm1708, %v1684, %v1724
      %v1741 = vsel %vm1709, %v1689, %v1725
      %v1742 = vsel %vm1710, %v1692, %v1726
      %v1743 = vpack.c.bf16 %v1728, %v1727
      %v1744 = vpack.c.bf16 %v1730, %v1729
      %v1745 = vpack.c.bf16 %v1732, %v1731
      %v1746 = vpack.c.bf16 %v1734, %v1733
      %v1747 = vpack.c.bf16 %v1736, %v1735
      %v1748 = vpack.c.bf16 %v1738, %v1737
      %v1749 = vpack.c.bf16 %v1740, %v1739
      %v1750 = vpack.c.bf16 %v1742, %v1741
      %s1751 = scalar_lea.vmem [#allocation11], 64
      %v1752 = vld [vmem:[%s1751] sm:$0xf]
      %v1753 = vld [vmem:[%s1751 + $0x4] sm:$0xf]
      %v1754 = vld [vmem:[%s1751 + $0x8] sm:$0xf]
      %v1755 = vld [vmem:[%s1751 + $0xc] sm:$0xf]
      %v1756 = vld [vmem:[%s1751 + $0x10] sm:$0xf]
      %v1757 = vld [vmem:[%s1751 + $0x14] sm:$0xf]
      %v1758 = vld [vmem:[%s1751 + $0x18] sm:$0xf]
      %v1759 = vld [vmem:[%s1751 + $0x1c] sm:$0xf]
      %v1760 = vld [vmem:[%s1751 + $0x20] sm:$0xf]
      %v1761 = vld [vmem:[%s1751 + $0x24] sm:$0xf]
      %v1762 = vld [vmem:[%s1751 + $0x28] sm:$0xf]
      %v1763 = vld [vmem:[%s1751 + $0x2c] sm:$0xf]
      %v1764 = vld [vmem:[%s1751 + $0x30] sm:$0xf]
      %v1765 = vld [vmem:[%s1751 + $0x34] sm:$0xf]
      %v1766 = vld [vmem:[%s1751 + $0x38] sm:$0xf]
      %v1767 = vld [vmem:[%s1751 + $0x3c] sm:$0xf]
      %s1768 = scalar_lea.vmem %s10, 1
      %v1769 = vld [vmem:[%s1768] sm:$0x1]
      %v1771 = vlaneseq
      %v1772 = vshrl.u32 %v1771, 7
      %v1773 = vsub.s32 0, %v1772
      %v1774 = vrot.slane %v1769, %v1773
      %v1792 = vunpack.c.l.b16 %v1752
      %v1793 = vunpack.c.l.b16 %v1753
      %v1794 = vunpack.c.l.b16 %v1754
      %v1795 = vunpack.c.l.b16 %v1755
      %v1796 = vunpack.c.l.b16 %v1756
      %v1797 = vunpack.c.l.b16 %v1757
      %v1798 = vunpack.c.l.b16 %v1758
      %v1799 = vunpack.c.l.b16 %v1759
      %v1800 = vunpack.c.l.b16 %v1760
      %v1801 = vunpack.c.l.b16 %v1761
      %v1802 = vunpack.c.l.b16 %v1762
      %v1803 = vunpack.c.l.b16 %v1763
      %v1804 = vunpack.c.l.b16 %v1764
      %v1805 = vunpack.c.l.b16 %v1765
      %v1806 = vunpack.c.l.b16 %v1766
      %v1807 = vunpack.c.l.b16 %v1767
      %v1808 = vpack.c.b16 %v1793, %v1792
      %v1809 = vpack.c.b16 %v1795, %v1794
      %v1810 = vpack.c.b16 %v1797, %v1796
      %v1811 = vpack.c.b16 %v1799, %v1798
      %v1812 = vpack.c.b16 %v1801, %v1800
      %v1813 = vpack.c.b16 %v1803, %v1802
      %v1814 = vpack.c.b16 %v1805, %v1804
      %v1815 = vpack.c.b16 %v1807, %v1806
      %1824 = vmatprep.subr.bf16.mxu0 0
      %1825 = vmatpush1.bf16.msra.mxu0 %v1808
      %1826 = vmatprep.subr.bf16.mxu0 0
      %1827 = vmatpush1.bf16.msra.mxu0 %v1809
      %1828 = vmatprep.subr.bf16.mxu0 0
      %1829 = vmatpush1.bf16.msra.mxu0 %v1810
      %1830 = vmatprep.subr.bf16.mxu0 0
      %1831 = vmatpush1.bf16.msra.mxu0 %v1811
      %1832 = vmatprep.subr.bf16.mxu0 0
      %1833 = vmatpush1.bf16.msra.mxu0 %v1812
      %1834 = vmatprep.subr.bf16.mxu0 0
      %1835 = vmatpush1.bf16.msra.mxu0 %v1813
      %1836 = vmatprep.subr.bf16.mxu0 0
      %1837 = vmatpush1.bf16.msra.mxu0 %v1814
      %1838 = vmatprep.subr.bf16.mxu0 0
      %1839 = vmatpush1.bf16.msra.mxu0 %v1815
      %1840 = vmatprep.subr.bf16.mxu0 0
      %1841 = vmatpush1.bf16.msra.mxu0 0
      %1842 = vmatprep.subr.bf16.mxu0 0
      %1843 = vmatpush1.bf16.msra.mxu0 0
      %1844 = vmatprep.subr.bf16.mxu0 0
      %1845 = vmatpush1.bf16.msra.mxu0 0
      %1846 = vmatprep.subr.bf16.mxu0 0
      %1847 = vmatpush1.bf16.msra.mxu0 0
      %1848 = vmatprep.subr.bf16.mxu0 0
      %1849 = vmatpush1.bf16.msra.mxu0 0
      %1850 = vmatprep.subr.bf16.mxu0 0
      %1851 = vmatpush1.bf16.msra.mxu0 0
      %1852 = vmatprep.subr.bf16.mxu0 0
      %1853 = vmatpush1.bf16.msra.mxu0 0
      %1854 = vmatprep.subr.bf16.mxu0 0
      %1855 = vmatpush1.bf16.msra.mxu0 0
      %1856 = vmatprep.mubr.bf16.mxu0 0
      %1857 = vmatmul.mubr.bf16.gmra.mrb[0].mxu0 %v1743
      %v1858 = vpop.f32.mrb[0].mxu0
      %v1859 = vadd.f32 %v1774, %v1858
      %v1860 = vpop.f32.mrb[0].mxu0
      %v1861 = vpop.f32.mrb[0].mxu0
      %v1862 = vadd.f32 %v1774, %v1861
      %v1863 = vpop.f32.mrb[0].mxu0
      %1864 = vmatprep.mubr.bf16.mxu0 0
      %1865 = vmatmul.mubr.bf16.gmra.mrb[0].mxu0 %v1744
      %v1866 = vpop.f32.mrb[0].mxu0
      %v1867 = vadd.f32 %v1774, %v1866
      %v1868 = vpop.f32.mrb[0].mxu0
      %v1869 = vpop.f32.mrb[0].mxu0
      %v1870 = vadd.f32 %v1774, %v1869
      %v1871 = vpop.f32.mrb[0].mxu0
      %1872 = vmatprep.mubr.bf16.mxu0 0
      %1873 = vmatmul.mubr.bf16.gmra.mrb[0].mxu0 %v1745
      %v1874 = vpop.f32.mrb[0].mxu0
      %v1875 = vadd.f32 %v1774, %v1874
      %v1876 = vpop.f32.mrb[0].mxu0
      %v1877 = vpop.f32.mrb[0].mxu0
      %v1878 = vadd.f32 %v1774, %v1877
      %v1879 = vpop.f32.mrb[0].mxu0
      %1880 = vmatprep.mubr.bf16.mxu0 0
      %1881 = vmatmul.mubr.bf16.gmra.mrb[0].mxu0 %v1746
      %v1882 = vpop.f32.mrb[0].mxu0
      %v1883 = vadd.f32 %v1774, %v1882
      %v1884 = vpop.f32.mrb[0].mxu0
      %v1885 = vpop.f32.mrb[0].mxu0
      %v1886 = vadd.f32 %v1774, %v1885
      %v1887 = vpop.f32.mrb[0].mxu0
      %1888 = vmatprep.mubr.bf16.mxu0 0
      %1889 = vmatmul.mubr.bf16.gmra.mrb[0].mxu0 %v1747
      %v1890 = vpop.f32.mrb[0].mxu0
      %v1891 = vadd.f32 %v1774, %v1890
      %v1892 = vpop.f32.mrb[0].mxu0
      %v1893 = vpop.f32.mrb[0].mxu0
      %v1894 = vadd.f32 %v1774, %v1893
      %v1895 = vpop.f32.mrb[0].mxu0
      %1896 = vmatprep.mubr.bf16.mxu0 0
      %1897 = vmatmul.mubr.bf16.gmra.mrb[0].mxu0 %v1748
      %v1898 = vpop.f32.mrb[0].mxu0
      %v1899 = vadd.f32 %v1774, %v1898
      %v1900 = vpop.f32.mrb[0].mxu0
      %v1901 = vpop.f32.mrb[0].mxu0
      %v1902 = vadd.f32 %v1774, %v1901
      %v1903 = vpop.f32.mrb[0].mxu0
      %1904 = vmatprep.mubr.bf16.mxu0 0
      %1905 = vmatmul.mubr.bf16.gmra.mrb[0].mxu0 %v1749
      %v1906 = vpop.f32.mrb[0].mxu0
      %v1907 = vadd.f32 %v1774, %v1906
      %v1908 = vpop.f32.mrb[0].mxu0
      %v1909 = vpop.f32.mrb[0].mxu0
      %v1910 = vadd.f32 %v1774, %v1909
      %v1911 = vpop.f32.mrb[0].mxu0
      %1912 = vmatprep.mubr.bf16.mxu0 0
      %1913 = vmatmul.mubr.bf16.gmra.mrb[0].mxu0 %v1750
      %v1914 = vpop.f32.mrb[0].mxu0
      %v1915 = vadd.f32 %v1774, %v1914
      %v1916 = vpop.f32.mrb[0].mxu0
      %v1917 = vpop.f32.mrb[0].mxu0
      %v1918 = vadd.f32 %v1774, %v1917
      %v1919 = vpop.f32.mrb[0].mxu0
      %1920 = vdwg.mxu0
      %v1921 = vld [vmem:[#allocation2] sm:$0xff]
      %v1922 = vld [vmem:[#allocation2 + $0x8] sm:$0xff]
      %v1923 = vld [vmem:[#allocation2 + $0x10] sm:$0xff]
      %v1924 = vld [vmem:[#allocation2 + $0x18] sm:$0xff]
      %v1925 = vld [vmem:[#allocation2 + $0x20] sm:$0xff]
      %v1926 = vld [vmem:[#allocation2 + $0x28] sm:$0xff]
      %v1927 = vld [vmem:[#allocation2 + $0x30] sm:$0xff]
      %v1928 = vld [vmem:[#allocation2 + $0x38] sm:$0xff]
      %v1929 = vld [vmem:[#allocation2 + $0x40] sm:$0xff]
      %v1930 = vld [vmem:[#allocation2 + $0x48] sm:$0xff]
      %v1931 = vld [vmem:[#allocation2 + $0x50] sm:$0xff]
      %v1932 = vld [vmem:[#allocation2 + $0x58] sm:$0xff]
      %v1933 = vld [vmem:[#allocation2 + $0x60] sm:$0xff]
      %v1934 = vld [vmem:[#allocation2 + $0x68] sm:$0xff]
      %v1935 = vld [vmem:[#allocation2 + $0x70] sm:$0xff]
      %v1936 = vld [vmem:[#allocation2 + $0x78] sm:$0xff]
      %1938 = vset.pattern.permute.xlu0 1
      %1939 = vperm.xlu0 %1938, %v430
      %v1940 = vpop.permute.xlu0 %1939
      %1943 = vset.pattern.permute.xlu0 1
      %1944 = vperm.xlu0 %1943, %v431
      %v1945 = vpop.permute.xlu0 %1944
      %1948 = vset.pattern.permute.xlu0 1
      %1949 = vperm.xlu0 %1948, %v432
      %v1950 = vpop.permute.xlu0 %1949
      %1953 = vset.pattern.permute.xlu0 1
      %1954 = vperm.xlu0 %1953, %v433
      %v1955 = vpop.permute.xlu0 %1954
      %1958 = vset.pattern.permute.xlu0 1
      %1959 = vperm.xlu0 %1958, %v434
      %v1960 = vpop.permute.xlu0 %1959
      %1963 = vset.pattern.permute.xlu0 1
      %1964 = vperm.xlu0 %1963, %v435
      %v1965 = vpop.permute.xlu0 %1964
      %1968 = vset.pattern.permute.xlu0 1
      %1969 = vperm.xlu0 %1968, %v436
      %v1970 = vpop.permute.xlu0 %1969
      %1973 = vset.pattern.permute.xlu0 1
      %1974 = vperm.xlu0 %1973, %v437
      %v1975 = vpop.permute.xlu0 %1974
      %1978 = vset.pattern.permute.xlu0 1
      %1979 = vperm.xlu0 %1978, %v438
      %v1980 = vpop.permute.xlu0 %1979
      %1983 = vset.pattern.permute.xlu0 1
      %1984 = vperm.xlu0 %1983, %v439
      %v1985 = vpop.permute.xlu0 %1984
      %1988 = vset.pattern.permute.xlu0 1
      %1989 = vperm.xlu0 %1988, %v440
      %v1990 = vpop.permute.xlu0 %1989
      %1993 = vset.pattern.permute.xlu0 1
      %1994 = vperm.xlu0 %1993, %v441
      %v1995 = vpop.permute.xlu0 %1994
      %1998 = vset.pattern.permute.xlu0 1
      %1999 = vperm.xlu0 %1998, %v442
      %v2000 = vpop.permute.xlu0 %1999
      %2003 = vset.pattern.permute.xlu0 1
      %2004 = vperm.xlu0 %2003, %v443
      %v2005 = vpop.permute.xlu0 %2004
      %2008 = vset.pattern.permute.xlu0 1
      %2009 = vperm.xlu0 %2008, %v444
      %v2010 = vpop.permute.xlu0 %2009
      %2013 = vset.pattern.permute.xlu0 1
      %2014 = vperm.xlu0 %2013, %v445
      %v2015 = vpop.permute.xlu0 %2014
      %v2017 = vmul.f32 %v1940, %v1859
      %v2018 = vmul.f32 %v1945, %v1862
      %v2019 = vmul.f32 %v1950, %v1867
      %v2020 = vmul.f32 %v1955, %v1870
      %v2021 = vmul.f32 %v1960, %v1875
      %v2022 = vmul.f32 %v1965, %v1878
      %v2023 = vmul.f32 %v1970, %v1883
      %v2024 = vmul.f32 %v1975, %v1886
      %v2025 = vmul.f32 %v1980, %v1891
      %v2026 = vmul.f32 %v1985, %v1894
      %v2027 = vmul.f32 %v1990, %v1899
      %v2028 = vmul.f32 %v1995, %v1902
      %v2029 = vmul.f32 %v2000, %v1907
      %v2030 = vmul.f32 %v2005, %v1910
      %v2031 = vmul.f32 %v2010, %v1915
      %v2032 = vmul.f32 %v2015, %v1918
      %v2033 = vadd.f32 %v1921, %v2017
      %v2034 = vadd.f32 %v1922, %v2018
      %v2035 = vadd.f32 %v1923, %v2019
      %v2036 = vadd.f32 %v1924, %v2020
      %v2037 = vadd.f32 %v1925, %v2021
      %v2038 = vadd.f32 %v1926, %v2022
      %v2039 = vadd.f32 %v1927, %v2023
      %v2040 = vadd.f32 %v1928, %v2024
      %v2041 = vadd.f32 %v1929, %v2025
      %v2042 = vadd.f32 %v1930, %v2026
      %v2043 = vadd.f32 %v1931, %v2027
      %v2044 = vadd.f32 %v1932, %v2028
      %v2045 = vadd.f32 %v1933, %v2029
      %v2046 = vadd.f32 %v1934, %v2030
      %v2047 = vadd.f32 %v1935, %v2031
      %v2048 = vadd.f32 %v1936, %v2032
      %2049 = vst [vmem:[#allocation2] sm:$0xff] %v2033
      %2050 = vst [vmem:[#allocation2 + $0x8] sm:$0xff] %v2034
      %2051 = vst [vmem:[#allocation2 + $0x10] sm:$0xff] %v2035
      %2052 = vst [vmem:[#allocation2 + $0x18] sm:$0xff] %v2036
      %2053 = vst [vmem:[#allocation2 + $0x20] sm:$0xff] %v2037
      %2054 = vst [vmem:[#allocation2 + $0x28] sm:$0xff] %v2038
      %2055 = vst [vmem:[#allocation2 + $0x30] sm:$0xff] %v2039
      %2056 = vst [vmem:[#allocation2 + $0x38] sm:$0xff] %v2040
      %2057 = vst [vmem:[#allocation2 + $0x40] sm:$0xff] %v2041
      %2058 = vst [vmem:[#allocation2 + $0x48] sm:$0xff] %v2042
      %2059 = vst [vmem:[#allocation2 + $0x50] sm:$0xff] %v2043
      %2060 = vst [vmem:[#allocation2 + $0x58] sm:$0xff] %v2044
      %2061 = vst [vmem:[#allocation2 + $0x60] sm:$0xff] %v2045
      %2062 = vst [vmem:[#allocation2 + $0x68] sm:$0xff] %v2046
      %2063 = vst [vmem:[#allocation2 + $0x70] sm:$0xff] %v2047
      %2064 = vst [vmem:[#allocation2 + $0x78] sm:$0xff] %v2048
      %v2065 = vld [vmem:[#allocation3] sm:$0xff]
      %v2066 = vld [vmem:[#allocation3 + $0x8] sm:$0xff]
      %v2067 = vld [vmem:[#allocation3 + $0x10] sm:$0xff]
      %v2068 = vld [vmem:[#allocation3 + $0x18] sm:$0xff]
      %v2069 = vld [vmem:[#allocation3 + $0x20] sm:$0xff]
      %v2070 = vld [vmem:[#allocation3 + $0x28] sm:$0xff]
      %v2071 = vld [vmem:[#allocation3 + $0x30] sm:$0xff]
      %v2072 = vld [vmem:[#allocation3 + $0x38] sm:$0xff]
      %v2073 = vld [vmem:[#allocation3 + $0x40] sm:$0xff]
      %v2074 = vld [vmem:[#allocation3 + $0x48] sm:$0xff]
      %v2075 = vld [vmem:[#allocation3 + $0x50] sm:$0xff]
      %v2076 = vld [vmem:[#allocation3 + $0x58] sm:$0xff]
      %v2077 = vld [vmem:[#allocation3 + $0x60] sm:$0xff]
      %v2078 = vld [vmem:[#allocation3 + $0x68] sm:$0xff]
      %v2079 = vld [vmem:[#allocation3 + $0x70] sm:$0xff]
      %v2080 = vld [vmem:[#allocation3 + $0x78] sm:$0xff]
      %2081 = vrot.lane.b32.xlu0 %v430, 127
      %v2082 = vpop.permute.xlu0 %2081
      %2083 = vrot.lane.b32.xlu0 %v431, 127
      %v2084 = vpop.permute.xlu0 %2083
      %2085 = vrot.lane.b32.xlu0 %v432, 127
      %v2086 = vpop.permute.xlu0 %2085
      %2087 = vrot.lane.b32.xlu0 %v433, 127
      %v2088 = vpop.permute.xlu0 %2087
      %2089 = vrot.lane.b32.xlu0 %v434, 127
      %v2090 = vpop.permute.xlu0 %2089
      %2091 = vrot.lane.b32.xlu0 %v435, 127
      %v2092 = vpop.permute.xlu0 %2091
      %2093 = vrot.lane.b32.xlu0 %v436, 127
      %v2094 = vpop.permute.xlu0 %2093
      %2095 = vrot.lane.b32.xlu0 %v437, 127
      %v2096 = vpop.permute.xlu0 %2095
      %2097 = vrot.lane.b32.xlu0 %v438, 127
      %v2098 = vpop.permute.xlu0 %2097
      %2099 = vrot.lane.b32.xlu0 %v439, 127
      %v2100 = vpop.permute.xlu0 %2099
      %2101 = vrot.lane.b32.xlu0 %v440, 127
      %v2102 = vpop.permute.xlu0 %2101
      %2103 = vrot.lane.b32.xlu0 %v441, 127
      %v2104 = vpop.permute.xlu0 %2103
      %2105 = vrot.lane.b32.xlu0 %v442, 127
      %v2106 = vpop.permute.xlu0 %2105
      %2107 = vrot.lane.b32.xlu0 %v443, 127
      %v2108 = vpop.permute.xlu0 %2107
      %2109 = vrot.lane.b32.xlu0 %v444, 127
      %v2110 = vpop.permute.xlu0 %2109
      %2111 = vrot.lane.b32.xlu0 %v445, 127
      %v2112 = vpop.permute.xlu0 %2111
      %v2129 = vadd.f32 %v2065, %v2082
      %v2130 = vadd.f32 %v2066, %v2084
      %v2131 = vadd.f32 %v2067, %v2086
      %v2132 = vadd.f32 %v2068, %v2088
      %v2133 = vadd.f32 %v2069, %v2090
      %v2134 = vadd.f32 %v2070, %v2092
      %v2135 = vadd.f32 %v2071, %v2094
      %v2136 = vadd.f32 %v2072, %v2096
      %v2137 = vadd.f32 %v2073, %v2098
      %v2138 = vadd.f32 %v2074, %v2100
      %v2139 = vadd.f32 %v2075, %v2102
      %v2140 = vadd.f32 %v2076, %v2104
      %v2141 = vadd.f32 %v2077, %v2106
      %v2142 = vadd.f32 %v2078, %v2108
      %v2143 = vadd.f32 %v2079, %v2110
      %v2144 = vadd.f32 %v2080, %v2112
      %2145 = vst.msk [vmem:[#allocation3] sm:$0xff] %vm462, %v2129
      %2146 = vst.msk [vmem:[#allocation3 + $0x8] sm:$0xff] %vm462, %v2130
      %2147 = vst.msk [vmem:[#allocation3 + $0x10] sm:$0xff] %vm462, %v2131
      %2148 = vst.msk [vmem:[#allocation3 + $0x18] sm:$0xff] %vm462, %v2132
      %2149 = vst.msk [vmem:[#allocation3 + $0x20] sm:$0xff] %vm462, %v2133
      %2150 = vst.msk [vmem:[#allocation3 + $0x28] sm:$0xff] %vm462, %v2134
      %2151 = vst.msk [vmem:[#allocation3 + $0x30] sm:$0xff] %vm462, %v2135
      %2152 = vst.msk [vmem:[#allocation3 + $0x38] sm:$0xff] %vm462, %v2136
      %2153 = vst.msk [vmem:[#allocation3 + $0x40] sm:$0xff] %vm462, %v2137
      %2154 = vst.msk [vmem:[#allocation3 + $0x48] sm:$0xff] %vm462, %v2138
      %2155 = vst.msk [vmem:[#allocation3 + $0x50] sm:$0xff] %vm462, %v2139
      %2156 = vst.msk [vmem:[#allocation3 + $0x58] sm:$0xff] %vm462, %v2140
      %2157 = vst.msk [vmem:[#allocation3 + $0x60] sm:$0xff] %vm462, %v2141
      %2158 = vst.msk [vmem:[#allocation3 + $0x68] sm:$0xff] %vm462, %v2142
      %2159 = vst.msk [vmem:[#allocation3 + $0x70] sm:$0xff] %vm462, %v2143
      %2160 = vst.msk [vmem:[#allocation3 + $0x78] sm:$0xff] %vm462, %v2144
    $region61: #{tpu_custom_call.1} parent=1 // pred_fallthru
      _
    %s2161 = sadd.s32 %s479, 2
    %s2162 = sld [smem:[#allocation5 + %s2161]]
    %p2163 = scmp.gt.s32.totalorder %s2162, 0
    // Predicated region
    $region62: #{tpu_custom_call.1} parent=1 // pred_check
      %p2164 = pneg %p2163
    $region63: #{tpu_custom_call.1} parent=1 // pred_check_branch
      %2166 = sbr.rel (%p2164) target = $region65
    $region64: #{tpu_custom_call.1} parent=1 // pred_region
      %s2167 = scalar_lea.vmem [#allocation6], 128
      %v2168 = vld [vmem:[%s2167] sm:$0xf]
      %v2169 = vld [vmem:[%s2167 + $0x4] sm:$0xf]
      %v2170 = vld [vmem:[%s2167 + $0x8] sm:$0xf]
      %v2171 = vld [vmem:[%s2167 + $0xc] sm:$0xf]
      %v2172 = vld [vmem:[%s2167 + $0x10] sm:$0xf]
      %v2173 = vld [vmem:[%s2167 + $0x14] sm:$0xf]
      %v2174 = vld [vmem:[%s2167 + $0x18] sm:$0xf]
      %v2175 = vld [vmem:[%s2167 + $0x1c] sm:$0xf]
      %v2176 = vld [vmem:[%s2167 + $0x20] sm:$0xf]
      %v2177 = vld [vmem:[%s2167 + $0x24] sm:$0xf]
      %v2178 = vld [vmem:[%s2167 + $0x28] sm:$0xf]
      %v2179 = vld [vmem:[%s2167 + $0x2c] sm:$0xf]
      %v2180 = vld [vmem:[%s2167 + $0x30] sm:$0xf]
      %v2181 = vld [vmem:[%s2167 + $0x34] sm:$0xf]
      %v2182 = vld [vmem:[%s2167 + $0x38] sm:$0xf]
      %v2183 = vld [vmem:[%s2167 + $0x3c] sm:$0xf]
      %s2184 = scalar_lea.vmem %s6, 2
      %v2185 = vld [vmem:[%s2184] sm:$0x1]
      %v2187 = vlaneseq
      %v2188 = vshrl.u32 %v2187, 7
      %v2189 = vsub.s32 0, %v2188
      %v2190 = vrot.slane %v2185, %v2189
      %v2208 = vunpack.c.l.b16 %v2168
      %v2209 = vunpack.c.l.b16 %v2169
      %v2210 = vunpack.c.l.b16 %v2170
      %v2211 = vunpack.c.l.b16 %v2171
      %v2212 = vunpack.c.l.b16 %v2172
      %v2213 = vunpack.c.l.b16 %v2173
      %v2214 = vunpack.c.l.b16 %v2174
      %v2215 = vunpack.c.l.b16 %v2175
      %v2216 = vunpack.c.l.b16 %v2176
      %v2217 = vunpack.c.l.b16 %v2177
      %v2218 = vunpack.c.l.b16 %v2178
      %v2219 = vunpack.c.l.b16 %v2179
      %v2220 = vunpack.c.l.b16 %v2180
      %v2221 = vunpack.c.l.b16 %v2181
      %v2222 = vunpack.c.l.b16 %v2182
      %v2223 = vunpack.c.l.b16 %v2183
      %v2224 = vpack.c.b16 %v2209, %v2208
      %v2225 = vpack.c.b16 %v2211, %v2210
      %v2226 = vpack.c.b16 %v2213, %v2212
      %v2227 = vpack.c.b16 %v2215, %v2214
      %v2228 = vpack.c.b16 %v2217, %v2216
      %v2229 = vpack.c.b16 %v2219, %v2218
      %v2230 = vpack.c.b16 %v2221, %v2220
      %v2231 = vpack.c.b16 %v2223, %v2222
      %2240 = vmatprep.subr.bf16.mxu0 0
      %2241 = vmatpush1.bf16.msra.mxu0 %v2224
      %2242 = vmatprep.subr.bf16.mxu0 0
      %2243 = vmatpush1.bf16.msra.mxu0 %v2225
      %2244 = vmatprep.subr.bf16.mxu0 0
      %2245 = vmatpush1.bf16.msra.mxu0 %v2226
      %2246 = vmatprep.subr.bf16.mxu0 0
      %2247 = vmatpush1.bf16.msra.mxu0 %v2227
      %2248 = vmatprep.subr.bf16.mxu0 0
      %2249 = vmatpush1.bf16.msra.mxu0 %v2228
      %2250 = vmatprep.subr.bf16.mxu0 0
      %2251 = vmatpush1.bf16.msra.mxu0 %v2229
      %2252 = vmatprep.subr.bf16.mxu0 0
      %2253 = vmatpush1.bf16.msra.mxu0 %v2230
      %2254 = vmatprep.subr.bf16.mxu0 0
      %2255 = vmatpush1.bf16.msra.mxu0 %v2231
      %2256 = vmatprep.subr.bf16.mxu0 0
      %2257 = vmatpush1.bf16.msra.mxu0 0
      %2258 = vmatprep.subr.bf16.mxu0 0
      %2259 = vmatpush1.bf16.msra.mxu0 0
      %2260 = vmatprep.subr.bf16.mxu0 0
      %2261 = vmatpush1.bf16.msra.mxu0 0
      %2262 = vmatprep.subr.bf16.mxu0 0
      %2263 = vmatpush1.bf16.msra.mxu0 0
      %2264 = vmatprep.subr.bf16.mxu0 0
      %2265 = vmatpush1.bf16.msra.mxu0 0
      %2266 = vmatprep.subr.bf16.mxu0 0
      %2267 = vmatpush1.bf16.msra.mxu0 0
      %2268 = vmatprep.subr.bf16.mxu0 0
      %2269 = vmatpush1.bf16.msra.mxu0 0
      %2270 = vmatprep.subr.bf16.mxu0 0
      %2271 = vmatpush1.bf16.msra.mxu0 0
      %2272 = vmatprep.mubr.bf16.mxu0 0
      %2273 = vmatmul.mubr.bf16.gmra.mrb[0].mxu0 %v156
      %v2274 = vpop.f32.mrb[0].mxu0
      %v2275 = vadd.f32 %v2190, %v2274
      %v2276 = vpop.f32.mrb[0].mxu0
      %v2277 = vpop.f32.mrb[0].mxu0
      %v2278 = vadd.f32 %v2190, %v2277
      %v2279 = vpop.f32.mrb[0].mxu0
      %2280 = vmatprep.mubr.bf16.mxu0 0
      %2281 = vmatmul.mubr.bf16.gmra.mrb[0].mxu0 %v157
      %v2282 = vpop.f32.mrb[0].mxu0
      %v2283 = vadd.f32 %v2190, %v2282
      %v2284 = vpop.f32.mrb[0].mxu0
      %v2285 = vpop.f32.mrb[0].mxu0
      %v2286 = vadd.f32 %v2190, %v2285
      %v2287 = vpop.f32.mrb[0].mxu0
      %2288 = vmatprep.mubr.bf16.mxu0 0
      %2289 = vmatmul.mubr.bf16.gmra.mrb[0].mxu0 %v158
      %v2290 = vpop.f32.mrb[0].mxu0
      %v2291 = vadd.f32 %v2190, %v2290
      %v2292 = vpop.f32.mrb[0].mxu0
      %v2293 = vpop.f32.mrb[0].mxu0
      %v2294 = vadd.f32 %v2190, %v2293
      %v2295 = vpop.f32.mrb[0].mxu0
      %2296 = vmatprep.mubr.bf16.mxu0 0
      %2297 = vmatmul.mubr.bf16.gmra.mrb[0].mxu0 %v159
      %v2298 = vpop.f32.mrb[0].mxu0
      %v2299 = vadd.f32 %v2190, %v2298
      %v2300 = vpop.f32.mrb[0].mxu0
      %v2301 = vpop.f32.mrb[0].mxu0
      %v2302 = vadd.f32 %v2190, %v2301
      %v2303 = vpop.f32.mrb[0].mxu0
      %2304 = vmatprep.mubr.bf16.mxu0 0
      %2305 = vmatmul.mubr.bf16.gmra.mrb[0].mxu0 %v160
      %v2306 = vpop.f32.mrb[0].mxu0
      %v2307 = vadd.f32 %v2190, %v2306
      %v2308 = vpop.f32.mrb[0].mxu0
      %v2309 = vpop.f32.mrb[0].mxu0
      %v2310 = vadd.f32 %v2190, %v2309
      %v2311 = vpop.f32.mrb[0].mxu0
      %2312 = vmatprep.mubr.bf16.mxu0 0
      %2313 = vmatmul.mubr.bf16.gmra.mrb[0].mxu0 %v161
      %v2314 = vpop.f32.mrb[0].mxu0
      %v2315 = vadd.f32 %v2190, %v2314
      %v2316 = vpop.f32.mrb[0].mxu0
      %v2317 = vpop.f32.mrb[0].mxu0
      %v2318 = vadd.f32 %v2190, %v2317
      %v2319 = vpop.f32.mrb[0].mxu0
      %2320 = vmatprep.mubr.bf16.mxu0 0
      %2321 = vmatmul.mubr.bf16.gmra.mrb[0].mxu0 %v162
      %v2322 = vpop.f32.mrb[0].mxu0
      %v2323 = vadd.f32 %v2190, %v2322
      %v2324 = vpop.f32.mrb[0].mxu0
      %v2325 = vpop.f32.mrb[0].mxu0
      %v2326 = vadd.f32 %v2190, %v2325
      %v2327 = vpop.f32.mrb[0].mxu0
      %2328 = vmatprep.mubr.bf16.mxu0 0
      %2329 = vmatmul.mubr.bf16.gmra.mrb[0].mxu0 %v163
      %v2330 = vpop.f32.mrb[0].mxu0
      %v2331 = vadd.f32 %v2190, %v2330
      %v2332 = vpop.f32.mrb[0].mxu0
      %v2333 = vpop.f32.mrb[0].mxu0
      %v2334 = vadd.f32 %v2190, %v2333
      %v2335 = vpop.f32.mrb[0].mxu0
      %2336 = vdwg.mxu0
      %vm2337 = vcmp.gt.f32.partialorder %v2275, 0.0
      %vm2338 = vcmp.gt.f32.partialorder %v2278, 0.0
      %vm2339 = vcmp.gt.f32.partialorder %v2283, 0.0
      %vm2340 = vcmp.gt.f32.partialorder %v2286, 0.0
      %vm2341 = vcmp.gt.f32.partialorder %v2291, 0.0
      %vm2342 = vcmp.gt.f32.partialorder %v2294, 0.0
      %vm2343 = vcmp.gt.f32.partialorder %v2299, 0.0
      %vm2344 = vcmp.gt.f32.partialorder %v2302, 0.0
      %vm2345 = vcmp.gt.f32.partialorder %v2307, 0.0
      %vm2346 = vcmp.gt.f32.partialorder %v2310, 0.0
      %vm2347 = vcmp.gt.f32.partialorder %v2315, 0.0
      %vm2348 = vcmp.gt.f32.partialorder %v2318, 0.0
      %vm2349 = vcmp.gt.f32.partialorder %v2323, 0.0
      %vm2350 = vcmp.gt.f32.partialorder %v2326, 0.0
      %vm2351 = vcmp.gt.f32.partialorder %v2331, 0.0
      %vm2352 = vcmp.gt.f32.partialorder %v2334, 0.0
      %v2353 = vmul.f32 %v2275, 0.01
      %v2354 = vmul.f32 %v2278, 0.01
      %v2355 = vmul.f32 %v2283, 0.01
      %v2356 = vmul.f32 %v2286, 0.01
      %v2357 = vmul.f32 %v2291, 0.01
      %v2358 = vmul.f32 %v2294, 0.01
      %v2359 = vmul.f32 %v2299, 0.01
      %v2360 = vmul.f32 %v2302, 0.01
      %v2361 = vmul.f32 %v2307, 0.01
      %v2362 = vmul.f32 %v2310, 0.01
      %v2363 = vmul.f32 %v2315, 0.01
      %v2364 = vmul.f32 %v2318, 0.01
      %v2365 = vmul.f32 %v2323, 0.01
      %v2366 = vmul.f32 %v2326, 0.01
      %v2367 = vmul.f32 %v2331, 0.01
      %v2368 = vmul.f32 %v2334, 0.01
      %v2369 = vsel %vm2337, %v2275, %v2353
      %v2370 = vsel %vm2338, %v2278, %v2354
      %v2371 = vsel %vm2339, %v2283, %v2355
      %v2372 = vsel %vm2340, %v2286, %v2356
      %v2373 = vsel %vm2341, %v2291, %v2357
      %v2374 = vsel %vm2342, %v2294, %v2358
      %v2375 = vsel %vm2343, %v2299, %v2359
      %v2376 = vsel %vm2344, %v2302, %v2360
      %v2377 = vsel %vm2345, %v2307, %v2361
      %v2378 = vsel %vm2346, %v2310, %v2362
      %v2379 = vsel %vm2347, %v2315, %v2363
      %v2380 = vsel %vm2348, %v2318, %v2364
      %v2381 = vsel %vm2349, %v2323, %v2365
      %v2382 = vsel %vm2350, %v2326, %v2366
      %v2383 = vsel %vm2351, %v2331, %v2367
      %v2384 = vsel %vm2352, %v2334, %v2368
      %v2385 = vpack.c.bf16 %v2370, %v2369
      %v2386 = vpack.c.bf16 %v2372, %v2371
      %v2387 = vpack.c.bf16 %v2374, %v2373
      %v2388 = vpack.c.bf16 %v2376, %v2375
      %v2389 = vpack.c.bf16 %v2378, %v2377
      %v2390 = vpack.c.bf16 %v2380, %v2379
      %v2391 = vpack.c.bf16 %v2382, %v2381
      %v2392 = vpack.c.bf16 %v2384, %v2383
      %s2393 = scalar_lea.vmem [#allocation9], 128
      %v2394 = vld [vmem:[%s2393] sm:$0xf]
      %v2395 = vld [vmem:[%s2393 + $0x4] sm:$0xf]
      %v2396 = vld [vmem:[%s2393 + $0x8] sm:$0xf]
      %v2397 = vld [vmem:[%s2393 + $0xc] sm:$0xf]
      %v2398 = vld [vmem:[%s2393 + $0x10] sm:$0xf]
      %v2399 = vld [vmem:[%s2393 + $0x14] sm:$0xf]
      %v2400 = vld [vmem:[%s2393 + $0x18] sm:$0xf]
      %v2401 = vld [vmem:[%s2393 + $0x1c] sm:$0xf]
      %v2402 = vld [vmem:[%s2393 + $0x20] sm:$0xf]
      %v2403 = vld [vmem:[%s2393 + $0x24] sm:$0xf]
      %v2404 = vld [vmem:[%s2393 + $0x28] sm:$0xf]
      %v2405 = vld [vmem:[%s2393 + $0x2c] sm:$0xf]
      %v2406 = vld [vmem:[%s2393 + $0x30] sm:$0xf]
      %v2407 = vld [vmem:[%s2393 + $0x34] sm:$0xf]
      %v2408 = vld [vmem:[%s2393 + $0x38] sm:$0xf]
      %v2409 = vld [vmem:[%s2393 + $0x3c] sm:$0xf]
      %s2410 = scalar_lea.vmem %s8, 2
      %v2411 = vld [vmem:[%s2410] sm:$0x1]
      %v2413 = vlaneseq
      %v2414 = vshrl.u32 %v2413, 7
      %v2415 = vsub.s32 0, %v2414
      %v2416 = vrot.slane %v2411, %v2415
      %v2434 = vunpack.c.l.b16 %v2394
      %v2435 = vunpack.c.l.b16 %v2395
      %v2436 = vunpack.c.l.b16 %v2396
      %v2437 = vunpack.c.l.b16 %v2397
      %v2438 = vunpack.c.l.b16 %v2398
      %v2439 = vunpack.c.l.b16 %v2399
      %v2440 = vunpack.c.l.b16 %v2400
      %v2441 = vunpack.c.l.b16 %v2401
      %v2442 = vunpack.c.l.b16 %v2402
      %v2443 = vunpack.c.l.b16 %v2403
      %v2444 = vunpack.c.l.b16 %v2404
      %v2445 = vunpack.c.l.b16 %v2405
      %v2446 = vunpack.c.l.b16 %v2406
      %v2447 = vunpack.c.l.b16 %v2407
      %v2448 = vunpack.c.l.b16 %v2408
      %v2449 = vunpack.c.l.b16 %v2409
      %v2450 = vpack.c.b16 %v2435, %v2434
      %v2451 = vpack.c.b16 %v2437, %v2436
      %v2452 = vpack.c.b16 %v2439, %v2438
      %v2453 = vpack.c.b16 %v2441, %v2440
      %v2454 = vpack.c.b16 %v2443, %v2442
      %v2455 = vpack.c.b16 %v2445, %v2444
      %v2456 = vpack.c.b16 %v2447, %v2446
      %v2457 = vpack.c.b16 %v2449, %v2448
      %2466 = vmatprep.subr.bf16.mxu0 0
      %2467 = vmatpush1.bf16.msra.mxu0 %v2450
      %2468 = vmatprep.subr.bf16.mxu0 0
      %2469 = vmatpush1.bf16.msra.mxu0 %v2451
      %2470 = vmatprep.subr.bf16.mxu0 0
      %2471 = vmatpush1.bf16.msra.mxu0 %v2452
      %2472 = vmatprep.subr.bf16.mxu0 0
      %2473 = vmatpush1.bf16.msra.mxu0 %v2453
      %2474 = vmatprep.subr.bf16.mxu0 0
      %2475 = vmatpush1.bf16.msra.mxu0 %v2454
      %2476 = vmatprep.subr.bf16.mxu0 0
      %2477 = vmatpush1.bf16.msra.mxu0 %v2455
      %2478 = vmatprep.subr.bf16.mxu0 0
      %2479 = vmatpush1.bf16.msra.mxu0 %v2456
      %2480 = vmatprep.subr.bf16.mxu0 0
      %2481 = vmatpush1.bf16.msra.mxu0 %v2457
      %2482 = vmatprep.subr.bf16.mxu0 0
      %2483 = vmatpush1.bf16.msra.mxu0 0
      %2484 = vmatprep.subr.bf16.mxu0 0
      %2485 = vmatpush1.bf16.msra.mxu0 0
      %2486 = vmatprep.subr.bf16.mxu0 0
      %2487 = vmatpush1.bf16.msra.mxu0 0
      %2488 = vmatprep.subr.bf16.mxu0 0
      %2489 = vmatpush1.bf16.msra.mxu0 0
      %2490 = vmatprep.subr.bf16.mxu0 0
      %2491 = vmatpush1.bf16.msra.mxu0 0
      %2492 = vmatprep.subr.bf16.mxu0 0
      %2493 = vmatpush1.bf16.msra.mxu0 0
      %2494 = vmatprep.subr.bf16.mxu0 0
      %2495 = vmatpush1.bf16.msra.mxu0 0
      %2496 = vmatprep.subr.bf16.mxu0 0
      %2497 = vmatpush1.bf16.msra.mxu0 0
      %2498 = vmatprep.mubr.bf16.mxu0 0
      %2499 = vmatmul.mubr.bf16.gmra.mrb[0].mxu0 %v2385
      %v2500 = vpop.f32.mrb[0].mxu0
      %v2501 = vadd.f32 %v2416, %v2500
      %v2502 = vpop.f32.mrb[0].mxu0
      %v2503 = vpop.f32.mrb[0].mxu0
      %v2504 = vadd.f32 %v2416, %v2503
      %v2505 = vpop.f32.mrb[0].mxu0
      %2506 = vmatprep.mubr.bf16.mxu0 0
      %2507 = vmatmul.mubr.bf16.gmra.mrb[0].mxu0 %v2386
      %v2508 = vpop.f32.mrb[0].mxu0
      %v2509 = vadd.f32 %v2416, %v2508
      %v2510 = vpop.f32.mrb[0].mxu0
      %v2511 = vpop.f32.mrb[0].mxu0
      %v2512 = vadd.f32 %v2416, %v2511
      %v2513 = vpop.f32.mrb[0].mxu0
      %2514 = vmatprep.mubr.bf16.mxu0 0
      %2515 = vmatmul.mubr.bf16.gmra.mrb[0].mxu0 %v2387
      %v2516 = vpop.f32.mrb[0].mxu0
      %v2517 = vadd.f32 %v2416, %v2516
      %v2518 = vpop.f32.mrb[0].mxu0
      %v2519 = vpop.f32.mrb[0].mxu0
      %v2520 = vadd.f32 %v2416, %v2519
      %v2521 = vpop.f32.mrb[0].mxu0
      %2522 = vmatprep.mubr.bf16.mxu0 0
      %2523 = vmatmul.mubr.bf16.gmra.mrb[0].mxu0 %v2388
      %v2524 = vpop.f32.mrb[0].mxu0
      %v2525 = vadd.f32 %v2416, %v2524
      %v2526 = vpop.f32.mrb[0].mxu0
      %v2527 = vpop.f32.mrb[0].mxu0
      %v2528 = vadd.f32 %v2416, %v2527
      %v2529 = vpop.f32.mrb[0].mxu0
      %2530 = vmatprep.mubr.bf16.mxu0 0
      %2531 = vmatmul.mubr.bf16.gmra.mrb[0].mxu0 %v2389
      %v2532 = vpop.f32.mrb[0].mxu0
      %v2533 = vadd.f32 %v2416, %v2532
      %v2534 = vpop.f32.mrb[0].mxu0
      %v2535 = vpop.f32.mrb[0].mxu0
      %v2536 = vadd.f32 %v2416, %v2535
      %v2537 = vpop.f32.mrb[0].mxu0
      %2538 = vmatprep.mubr.bf16.mxu0 0
      %2539 = vmatmul.mubr.bf16.gmra.mrb[0].mxu0 %v2390
      %v2540 = vpop.f32.mrb[0].mxu0
      %v2541 = vadd.f32 %v2416, %v2540
      %v2542 = vpop.f32.mrb[0].mxu0
      %v2543 = vpop.f32.mrb[0].mxu0
      %v2544 = vadd.f32 %v2416, %v2543
      %v2545 = vpop.f32.mrb[0].mxu0
      %2546 = vmatprep.mubr.bf16.mxu0 0
      %2547 = vmatmul.mubr.bf16.gmra.mrb[0].mxu0 %v2391
      %v2548 = vpop.f32.mrb[0].mxu0
      %v2549 = vadd.f32 %v2416, %v2548
      %v2550 = vpop.f32.mrb[0].mxu0
      %v2551 = vpop.f32.mrb[0].mxu0
      %v2552 = vadd.f32 %v2416, %v2551
      %v2553 = vpop.f32.mrb[0].mxu0
      %2554 = vmatprep.mubr.bf16.mxu0 0
      %2555 = vmatmul.mubr.bf16.gmra.mrb[0].mxu0 %v2392
      %v2556 = vpop.f32.mrb[0].mxu0
      %v2557 = vadd.f32 %v2416, %v2556
      %v2558 = vpop.f32.mrb[0].mxu0
      %v2559 = vpop.f32.mrb[0].mxu0
      %v2560 = vadd.f32 %v2416, %v2559
      %v2561 = vpop.f32.mrb[0].mxu0
      %2562 = vdwg.mxu0
      %vm2563 = vcmp.gt.f32.partialorder %v2501, 0.0
      %vm2564 = vcmp.gt.f32.partialorder %v2504, 0.0
      %vm2565 = vcmp.gt.f32.partialorder %v2509, 0.0
      %vm2566 = vcmp.gt.f32.partialorder %v2512, 0.0
      %vm2567 = vcmp.gt.f32.partialorder %v2517, 0.0
      %vm2568 = vcmp.gt.f32.partialorder %v2520, 0.0
      %vm2569 = vcmp.gt.f32.partialorder %v2525, 0.0
      %vm2570 = vcmp.gt.f32.partialorder %v2528, 0.0
      %vm2571 = vcmp.gt.f32.partialorder %v2533, 0.0
      %vm2572 = vcmp.gt.f32.partialorder %v2536, 0.0
      %vm2573 = vcmp.gt.f32.partialorder %v2541, 0.0
      %vm2574 = vcmp.gt.f32.partialorder %v2544, 0.0
      %vm2575 = vcmp.gt.f32.partialorder %v2549, 0.0
      %vm2576 = vcmp.gt.f32.partialorder %v2552, 0.0
      %vm2577 = vcmp.gt.f32.partialorder %v2557, 0.0
      %vm2578 = vcmp.gt.f32.partialorder %v2560, 0.0
      %v2579 = vmul.f32 %v2501, 0.01
      %v2580 = vmul.f32 %v2504, 0.01
      %v2581 = vmul.f32 %v2509, 0.01
      %v2582 = vmul.f32 %v2512, 0.01
      %v2583 = vmul.f32 %v2517, 0.01
      %v2584 = vmul.f32 %v2520, 0.01
      %v2585 = vmul.f32 %v2525, 0.01
      %v2586 = vmul.f32 %v2528, 0.01
      %v2587 = vmul.f32 %v2533, 0.01
      %v2588 = vmul.f32 %v2536, 0.01
      %v2589 = vmul.f32 %v2541, 0.01
      %v2590 = vmul.f32 %v2544, 0.01
      %v2591 = vmul.f32 %v2549, 0.01
      %v2592 = vmul.f32 %v2552, 0.01
      %v2593 = vmul.f32 %v2557, 0.01
      %v2594 = vmul.f32 %v2560, 0.01
      %v2595 = vsel %vm2563, %v2501, %v2579
      %v2596 = vsel %vm2564, %v2504, %v2580
      %v2597 = vsel %vm2565, %v2509, %v2581
      %v2598 = vsel %vm2566, %v2512, %v2582
      %v2599 = vsel %vm2567, %v2517, %v2583
      %v2600 = vsel %vm2568, %v2520, %v2584
      %v2601 = vsel %vm2569, %v2525, %v2585
      %v2602 = vsel %vm2570, %v2528, %v2586
      %v2603 = vsel %vm2571, %v2533, %v2587
      %v2604 = vsel %vm2572, %v2536, %v2588
      %v2605 = vsel %vm2573, %v2541, %v2589
      %v2606 = vsel %vm2574, %v2544, %v2590
      %v2607 = vsel %vm2575, %v2549, %v2591
      %v2608 = vsel %vm2576, %v2552, %v2592
      %v2609 = vsel %vm2577, %v2557, %v2593
      %v2610 = vsel %vm2578, %v2560, %v2594
      %v2611 = vpack.c.bf16 %v2596, %v2595
      %v2612 = vpack.c.bf16 %v2598, %v2597
      %v2613 = vpack.c.bf16 %v2600, %v2599
      %v2614 = vpack.c.bf16 %v2602, %v2601
      %v2615 = vpack.c.bf16 %v2604, %v2603
      %v2616 = vpack.c.bf16 %v2606, %v2605
      %v2617 = vpack.c.bf16 %v2608, %v2607
      %v2618 = vpack.c.bf16 %v2610, %v2609
      %s2619 = scalar_lea.vmem [#allocation11], 128
      %v2620 = vld [vmem:[%s2619] sm:$0xf]
      %v2621 = vld [vmem:[%s2619 + $0x4] sm:$0xf]
      %v2622 = vld [vmem:[%s2619 + $0x8] sm:$0xf]
      %v2623 = vld [vmem:[%s2619 + $0xc] sm:$0xf]
      %v2624 = vld [vmem:[%s2619 + $0x10] sm:$0xf]
      %v2625 = vld [vmem:[%s2619 + $0x14] sm:$0xf]
      %v2626 = vld [vmem:[%s2619 + $0x18] sm:$0xf]
      %v2627 = vld [vmem:[%s2619 + $0x1c] sm:$0xf]
      %v2628 = vld [vmem:[%s2619 + $0x20] sm:$0xf]
      %v2629 = vld [vmem:[%s2619 + $0x24] sm:$0xf]
      %v2630 = vld [vmem:[%s2619 + $0x28] sm:$0xf]
      %v2631 = vld [vmem:[%s2619 + $0x2c] sm:$0xf]
      %v2632 = vld [vmem:[%s2619 + $0x30] sm:$0xf]
      %v2633 = vld [vmem:[%s2619 + $0x34] sm:$0xf]
      %v2634 = vld [vmem:[%s2619 + $0x38] sm:$0xf]
      %v2635 = vld [vmem:[%s2619 + $0x3c] sm:$0xf]
      %s2636 = scalar_lea.vmem %s10, 2
      %v2637 = vld [vmem:[%s2636] sm:$0x1]
      %v2639 = vlaneseq
      %v2640 = vshrl.u32 %v2639, 7
      %v2641 = vsub.s32 0, %v2640
      %v2642 = vrot.slane %v2637, %v2641
      %v2660 = vunpack.c.l.b16 %v2620
      %v2661 = vunpack.c.l.b16 %v2621
      %v2662 = vunpack.c.l.b16 %v2622
      %v2663 = vunpack.c.l.b16 %v2623
      %v2664 = vunpack.c.l.b16 %v2624
      %v2665 = vunpack.c.l.b16 %v2625
      %v2666 = vunpack.c.l.b16 %v2626
      %v2667 = vunpack.c.l.b16 %v2627
      %v2668 = vunpack.c.l.b16 %v2628
      %v2669 = vunpack.c.l.b16 %v2629
      %v2670 = vunpack.c.l.b16 %v2630
      %v2671 = vunpack.c.l.b16 %v2631
      %v2672 = vunpack.c.l.b16 %v2632
      %v2673 = vunpack.c.l.b16 %v2633
      %v2674 = vunpack.c.l.b16 %v2634
      %v2675 = vunpack.c.l.b16 %v2635
      %v2676 = vpack.c.b16 %v2661, %v2660
      %v2677 = vpack.c.b16 %v2663, %v2662
      %v2678 = vpack.c.b16 %v2665, %v2664
      %v2679 = vpack.c.b16 %v2667, %v2666
      %v2680 = vpack.c.b16 %v2669, %v2668
      %v2681 = vpack.c.b16 %v2671, %v2670
      %v2682 = vpack.c.b16 %v2673, %v2672
      %v2683 = vpack.c.b16 %v2675, %v2674
      %2692 = vmatprep.subr.bf16.mxu0 0
      %2693 = vmatpush1.bf16.msra.mxu0 %v2676
      %2694 = vmatprep.subr.bf16.mxu0 0
      %2695 = vmatpush1.bf16.msra.mxu0 %v2677
      %2696 = vmatprep.subr.bf16.mxu0 0
      %2697 = vmatpush1.bf16.msra.mxu0 %v2678
      %2698 = vmatprep.subr.bf16.mxu0 0
      %2699 = vmatpush1.bf16.msra.mxu0 %v2679
      %2700 = vmatprep.subr.bf16.mxu0 0
      %2701 = vmatpush1.bf16.msra.mxu0 %v2680
      %2702 = vmatprep.subr.bf16.mxu0 0
      %2703 = vmatpush1.bf16.msra.mxu0 %v2681
      %2704 = vmatprep.subr.bf16.mxu0 0
      %2705 = vmatpush1.bf16.msra.mxu0 %v2682
      %2706 = vmatprep.subr.bf16.mxu0 0
      %2707 = vmatpush1.bf16.msra.mxu0 %v2683
      %2708 = vmatprep.subr.bf16.mxu0 0
      %2709 = vmatpush1.bf16.msra.mxu0 0
      %2710 = vmatprep.subr.bf16.mxu0 0
      %2711 = vmatpush1.bf16.msra.mxu0 0
      %2712 = vmatprep.subr.bf16.mxu0 0
      %2713 = vmatpush1.bf16.msra.mxu0 0
      %2714 = vmatprep.subr.bf16.mxu0 0
      %2715 = vmatpush1.bf16.msra.mxu0 0
      %2716 = vmatprep.subr.bf16.mxu0 0
      %2717 = vmatpush1.bf16.msra.mxu0 0
      %2718 = vmatprep.subr.bf16.mxu0 0
      %2719 = vmatpush1.bf16.msra.mxu0 0
      %2720 = vmatprep.subr.bf16.mxu0 0
      %2721 = vmatpush1.bf16.msra.mxu0 0
      %2722 = vmatprep.subr.bf16.mxu0 0
      %2723 = vmatpush1.bf16.msra.mxu0 0
      %2724 = vmatprep.mubr.bf16.mxu0 0
      %2725 = vmatmul.mubr.bf16.gmra.mrb[0].mxu0 %v2611
      %v2726 = vpop.f32.mrb[0].mxu0
      %v2727 = vadd.f32 %v2642, %v2726
      %v2728 = vpop.f32.mrb[0].mxu0
      %v2729 = vpop.f32.mrb[0].mxu0
      %v2730 = vadd.f32 %v2642, %v2729
      %v2731 = vpop.f32.mrb[0].mxu0
      %2732 = vmatprep.mubr.bf16.mxu0 0
      %2733 = vmatmul.mubr.bf16.gmra.mrb[0].mxu0 %v2612
      %v2734 = vpop.f32.mrb[0].mxu0
      %v2735 = vadd.f32 %v2642, %v2734
      %v2736 = vpop.f32.mrb[0].mxu0
      %v2737 = vpop.f32.mrb[0].mxu0
      %v2738 = vadd.f32 %v2642, %v2737
      %v2739 = vpop.f32.mrb[0].mxu0
      %2740 = vmatprep.mubr.bf16.mxu0 0
      %2741 = vmatmul.mubr.bf16.gmra.mrb[0].mxu0 %v2613
      %v2742 = vpop.f32.mrb[0].mxu0
      %v2743 = vadd.f32 %v2642, %v2742
      %v2744 = vpop.f32.mrb[0].mxu0
      %v2745 = vpop.f32.mrb[0].mxu0
      %v2746 = vadd.f32 %v2642, %v2745
      %v2747 = vpop.f32.mrb[0].mxu0
      %2748 = vmatprep.mubr.bf16.mxu0 0
      %2749 = vmatmul.mubr.bf16.gmra.mrb[0].mxu0 %v2614
      %v2750 = vpop.f32.mrb[0].mxu0
      %v2751 = vadd.f32 %v2642, %v2750
      %v2752 = vpop.f32.mrb[0].mxu0
      %v2753 = vpop.f32.mrb[0].mxu0
      %v2754 = vadd.f32 %v2642, %v2753
      %v2755 = vpop.f32.mrb[0].mxu0
      %2756 = vmatprep.mubr.bf16.mxu0 0
      %2757 = vmatmul.mubr.bf16.gmra.mrb[0].mxu0 %v2615
      %v2758 = vpop.f32.mrb[0].mxu0
      %v2759 = vadd.f32 %v2642, %v2758
      %v2760 = vpop.f32.mrb[0].mxu0
      %v2761 = vpop.f32.mrb[0].mxu0
      %v2762 = vadd.f32 %v2642, %v2761
      %v2763 = vpop.f32.mrb[0].mxu0
      %2764 = vmatprep.mubr.bf16.mxu0 0
      %2765 = vmatmul.mubr.bf16.gmra.mrb[0].mxu0 %v2616
      %v2766 = vpop.f32.mrb[0].mxu0
      %v2767 = vadd.f32 %v2642, %v2766
      %v2768 = vpop.f32.mrb[0].mxu0
      %v2769 = vpop.f32.mrb[0].mxu0
      %v2770 = vadd.f32 %v2642, %v2769
      %v2771 = vpop.f32.mrb[0].mxu0
      %2772 = vmatprep.mubr.bf16.mxu0 0
      %2773 = vmatmul.mubr.bf16.gmra.mrb[0].mxu0 %v2617
      %v2774 = vpop.f32.mrb[0].mxu0
      %v2775 = vadd.f32 %v2642, %v2774
      %v2776 = vpop.f32.mrb[0].mxu0
      %v2777 = vpop.f32.mrb[0].mxu0
      %v2778 = vadd.f32 %v2642, %v2777
      %v2779 = vpop.f32.mrb[0].mxu0
      %2780 = vmatprep.mubr.bf16.mxu0 0
      %2781 = vmatmul.mubr.bf16.gmra.mrb[0].mxu0 %v2618
      %v2782 = vpop.f32.mrb[0].mxu0
      %v2783 = vadd.f32 %v2642, %v2782
      %v2784 = vpop.f32.mrb[0].mxu0
      %v2785 = vpop.f32.mrb[0].mxu0
      %v2786 = vadd.f32 %v2642, %v2785
      %v2787 = vpop.f32.mrb[0].mxu0
      %2788 = vdwg.mxu0
      %v2789 = vld [vmem:[#allocation2] sm:$0xff]
      %v2790 = vld [vmem:[#allocation2 + $0x8] sm:$0xff]
      %v2791 = vld [vmem:[#allocation2 + $0x10] sm:$0xff]
      %v2792 = vld [vmem:[#allocation2 + $0x18] sm:$0xff]
      %v2793 = vld [vmem:[#allocation2 + $0x20] sm:$0xff]
      %v2794 = vld [vmem:[#allocation2 + $0x28] sm:$0xff]
      %v2795 = vld [vmem:[#allocation2 + $0x30] sm:$0xff]
      %v2796 = vld [vmem:[#allocation2 + $0x38] sm:$0xff]
      %v2797 = vld [vmem:[#allocation2 + $0x40] sm:$0xff]
      %v2798 = vld [vmem:[#allocation2 + $0x48] sm:$0xff]
      %v2799 = vld [vmem:[#allocation2 + $0x50] sm:$0xff]
      %v2800 = vld [vmem:[#allocation2 + $0x58] sm:$0xff]
      %v2801 = vld [vmem:[#allocation2 + $0x60] sm:$0xff]
      %v2802 = vld [vmem:[#allocation2 + $0x68] sm:$0xff]
      %v2803 = vld [vmem:[#allocation2 + $0x70] sm:$0xff]
      %v2804 = vld [vmem:[#allocation2 + $0x78] sm:$0xff]
      %2806 = vset.pattern.permute.xlu0 2
      %2807 = vperm.xlu0 %2806, %v430
      %v2808 = vpop.permute.xlu0 %2807
      %2811 = vset.pattern.permute.xlu0 2
      %2812 = vperm.xlu0 %2811, %v431
      %v2813 = vpop.permute.xlu0 %2812
      %2816 = vset.pattern.permute.xlu0 2
      %2817 = vperm.xlu0 %2816, %v432
      %v2818 = vpop.permute.xlu0 %2817
      %2821 = vset.pattern.permute.xlu0 2
      %2822 = vperm.xlu0 %2821, %v433
      %v2823 = vpop.permute.xlu0 %2822
      %2826 = vset.pattern.permute.xlu0 2
      %2827 = vperm.xlu0 %2826, %v434
      %v2828 = vpop.permute.xlu0 %2827
      %2831 = vset.pattern.permute.xlu0 2
      %2832 = vperm.xlu0 %2831, %v435
      %v2833 = vpop.permute.xlu0 %2832
      %2836 = vset.pattern.permute.xlu0 2
      %2837 = vperm.xlu0 %2836, %v436
      %v2838 = vpop.permute.xlu0 %2837
      %2841 = vset.pattern.permute.xlu0 2
      %2842 = vperm.xlu0 %2841, %v437
      %v2843 = vpop.permute.xlu0 %2842
      %2846 = vset.pattern.permute.xlu0 2
      %2847 = vperm.xlu0 %2846, %v438
      %v2848 = vpop.permute.xlu0 %2847
      %2851 = vset.pattern.permute.xlu0 2
      %2852 = vperm.xlu0 %2851, %v439
      %v2853 = vpop.permute.xlu0 %2852
      %2856 = vset.pattern.permute.xlu0 2
      %2857 = vperm.xlu0 %2856, %v440
      %v2858 = vpop.permute.xlu0 %2857
      %2861 = vset.pattern.permute.xlu0 2
      %2862 = vperm.xlu0 %2861, %v441
      %v2863 = vpop.permute.xlu0 %2862
      %2866 = vset.pattern.permute.xlu0 2
      %2867 = vperm.xlu0 %2866, %v442
      %v2868 = vpop.permute.xlu0 %2867
      %2871 = vset.pattern.permute.xlu0 2
      %2872 = vperm.xlu0 %2871, %v443
      %v2873 = vpop.permute.xlu0 %2872
      %2876 = vset.pattern.permute.xlu0 2
      %2877 = vperm.xlu0 %2876, %v444
      %v2878 = vpop.permute.xlu0 %2877
      %2881 = vset.pattern.permute.xlu0 2
      %2882 = vperm.xlu0 %2881, %v445
      %v2883 = vpop.permute.xlu0 %2882
      %v2885 = vmul.f32 %v2808, %v2727
      %v2886 = vmul.f32 %v2813, %v2730
      %v2887 = vmul.f32 %v2818, %v2735
      %v2888 = vmul.f32 %v2823, %v2738
      %v2889 = vmul.f32 %v2828, %v2743
      %v2890 = vmul.f32 %v2833, %v2746
      %v2891 = vmul.f32 %v2838, %v2751
      %v2892 = vmul.f32 %v2843, %v2754
      %v2893 = vmul.f32 %v2848, %v2759
      %v2894 = vmul.f32 %v2853, %v2762
      %v2895 = vmul.f32 %v2858, %v2767
      %v2896 = vmul.f32 %v2863, %v2770
      %v2897 = vmul.f32 %v2868, %v2775
      %v2898 = vmul.f32 %v2873, %v2778
      %v2899 = vmul.f32 %v2878, %v2783
      %v2900 = vmul.f32 %v2883, %v2786
      %v2901 = vadd.f32 %v2789, %v2885
      %v2902 = vadd.f32 %v2790, %v2886
      %v2903 = vadd.f32 %v2791, %v2887
      %v2904 = vadd.f32 %v2792, %v2888
      %v2905 = vadd.f32 %v2793, %v2889
      %v2906 = vadd.f32 %v2794, %v2890
      %v2907 = vadd.f32 %v2795, %v2891
      %v2908 = vadd.f32 %v2796, %v2892
      %v2909 = vadd.f32 %v2797, %v2893
      %v2910 = vadd.f32 %v2798, %v2894
      %v2911 = vadd.f32 %v2799, %v2895
      %v2912 = vadd.f32 %v2800, %v2896
      %v2913 = vadd.f32 %v2801, %v2897
      %v2914 = vadd.f32 %v2802, %v2898
      %v2915 = vadd.f32 %v2803, %v2899
      %v2916 = vadd.f32 %v2804, %v2900
      %2917 = vst [vmem:[#allocation2] sm:$0xff] %v2901
      %2918 = vst [vmem:[#allocation2 + $0x8] sm:$0xff] %v2902
      %2919 = vst [vmem:[#allocation2 + $0x10] sm:$0xff] %v2903
      %2920 = vst [vmem:[#allocation2 + $0x18] sm:$0xff] %v2904
      %2921 = vst [vmem:[#allocation2 + $0x20] sm:$0xff] %v2905
      %2922 = vst [vmem:[#allocation2 + $0x28] sm:$0xff] %v2906
      %2923 = vst [vmem:[#allocation2 + $0x30] sm:$0xff] %v2907
      %2924 = vst [vmem:[#allocation2 + $0x38] sm:$0xff] %v2908
      %2925 = vst [vmem:[#allocation2 + $0x40] sm:$0xff] %v2909
      %2926 = vst [vmem:[#allocation2 + $0x48] sm:$0xff] %v2910
      %2927 = vst [vmem:[#allocation2 + $0x50] sm:$0xff] %v2911
      %2928 = vst [vmem:[#allocation2 + $0x58] sm:$0xff] %v2912
      %2929 = vst [vmem:[#allocation2 + $0x60] sm:$0xff] %v2913
      %2930 = vst [vmem:[#allocation2 + $0x68] sm:$0xff] %v2914
      %2931 = vst [vmem:[#allocation2 + $0x70] sm:$0xff] %v2915
      %2932 = vst [vmem:[#allocation2 + $0x78] sm:$0xff] %v2916
      %v2933 = vld [vmem:[#allocation3] sm:$0xff]
      %v2934 = vld [vmem:[#allocation3 + $0x8] sm:$0xff]
      %v2935 = vld [vmem:[#allocation3 + $0x10] sm:$0xff]
      %v2936 = vld [vmem:[#allocation3 + $0x18] sm:$0xff]
      %v2937 = vld [vmem:[#allocation3 + $0x20] sm:$0xff]
      %v2938 = vld [vmem:[#allocation3 + $0x28] sm:$0xff]
      %v2939 = vld [vmem:[#allocation3 + $0x30] sm:$0xff]
      %v2940 = vld [vmem:[#allocation3 + $0x38] sm:$0xff]
      %v2941 = vld [vmem:[#allocation3 + $0x40] sm:$0xff]
      %v2942 = vld [vmem:[#allocation3 + $0x48] sm:$0xff]
      %v2943 = vld [vmem:[#allocation3 + $0x50] sm:$0xff]
      %v2944 = vld [vmem:[#allocation3 + $0x58] sm:$0xff]
      %v2945 = vld [vmem:[#allocation3 + $0x60] sm:$0xff]
      %v2946 = vld [vmem:[#allocation3 + $0x68] sm:$0xff]
      %v2947 = vld [vmem:[#allocation3 + $0x70] sm:$0xff]
      %v2948 = vld [vmem:[#allocation3 + $0x78] sm:$0xff]
      %2949 = vrot.lane.b32.xlu0 %v430, 126
      %v2950 = vpop.permute.xlu0 %2949
      %2951 = vrot.lane.b32.xlu0 %v431, 126
      %v2952 = vpop.permute.xlu0 %2951
      %2953 = vrot.lane.b32.xlu0 %v432, 126
      %v2954 = vpop.permute.xlu0 %2953
      %2955 = vrot.lane.b32.xlu0 %v433, 126
      %v2956 = vpop.permute.xlu0 %2955
      %2957 = vrot.lane.b32.xlu0 %v434, 126
      %v2958 = vpop.permute.xlu0 %2957
      %2959 = vrot.lane.b32.xlu0 %v435, 126
      %v2960 = vpop.permute.xlu0 %2959
      %2961 = vrot.lane.b32.xlu0 %v436, 126
      %v2962 = vpop.permute.xlu0 %2961
      %2963 = vrot.lane.b32.xlu0 %v437, 126
      %v2964 = vpop.permute.xlu0 %2963
      %2965 = vrot.lane.b32.xlu0 %v438, 126
      %v2966 = vpop.permute.xlu0 %2965
      %2967 = vrot.lane.b32.xlu0 %v439, 126
      %v2968 = vpop.permute.xlu0 %2967
      %2969 = vrot.lane.b32.xlu0 %v440, 126
      %v2970 = vpop.permute.xlu0 %2969
      %2971 = vrot.lane.b32.xlu0 %v441, 126
      %v2972 = vpop.permute.xlu0 %2971
      %2973 = vrot.lane.b32.xlu0 %v442, 126
      %v2974 = vpop.permute.xlu0 %2973
      %2975 = vrot.lane.b32.xlu0 %v443, 126
      %v2976 = vpop.permute.xlu0 %2975
      %2977 = vrot.lane.b32.xlu0 %v444, 126
      %v2978 = vpop.permute.xlu0 %2977
      %2979 = vrot.lane.b32.xlu0 %v445, 126
      %v2980 = vpop.permute.xlu0 %2979
      %v2997 = vadd.f32 %v2933, %v2950
      %v2998 = vadd.f32 %v2934, %v2952
      %v2999 = vadd.f32 %v2935, %v2954
      %v3000 = vadd.f32 %v2936, %v2956
      %v3001 = vadd.f32 %v2937, %v2958
      %v3002 = vadd.f32 %v2938, %v2960
      %v3003 = vadd.f32 %v2939, %v2962
      %v3004 = vadd.f32 %v2940, %v2964
      %v3005 = vadd.f32 %v2941, %v2966
      %v3006 = vadd.f32 %v2942, %v2968
      %v3007 = vadd.f32 %v2943, %v2970
      %v3008 = vadd.f32 %v2944, %v2972
      %v3009 = vadd.f32 %v2945, %v2974
      %v3010 = vadd.f32 %v2946, %v2976
      %v3011 = vadd.f32 %v2947, %v2978
      %v3012 = vadd.f32 %v2948, %v2980
      %3013 = vst.msk [vmem:[#allocation3] sm:$0xff] %vm462, %v2997
      %3014 = vst.msk [vmem:[#allocation3 + $0x8] sm:$0xff] %vm462, %v2998
      %3015 = vst.msk [vmem:[#allocation3 + $0x10] sm:$0xff] %vm462, %v2999
      %3016 = vst.msk [vmem:[#allocation3 + $0x18] sm:$0xff] %vm462, %v3000
      %3017 = vst.msk [vmem:[#allocation3 + $0x20] sm:$0xff] %vm462, %v3001
      %3018 = vst.msk [vmem:[#allocation3 + $0x28] sm:$0xff] %vm462, %v3002
      %3019 = vst.msk [vmem:[#allocation3 + $0x30] sm:$0xff] %vm462, %v3003
      %3020 = vst.msk [vmem:[#allocation3 + $0x38] sm:$0xff] %vm462, %v3004
      %3021 = vst.msk [vmem:[#allocation3 + $0x40] sm:$0xff] %vm462, %v3005
      %3022 = vst.msk [vmem:[#allocation3 + $0x48] sm:$0xff] %vm462, %v3006
      %3023 = vst.msk [vmem:[#allocation3 + $0x50] sm:$0xff] %vm462, %v3007
      %3024 = vst.msk [vmem:[#allocation3 + $0x58] sm:$0xff] %vm462, %v3008
      %3025 = vst.msk [vmem:[#allocation3 + $0x60] sm:$0xff] %vm462, %v3009
      %3026 = vst.msk [vmem:[#allocation3 + $0x68] sm:$0xff] %vm462, %v3010
      %3027 = vst.msk [vmem:[#allocation3 + $0x70] sm:$0xff] %vm462, %v3011
      %3028 = vst.msk [vmem:[#allocation3 + $0x78] sm:$0xff] %vm462, %v3012
    $region65: #{tpu_custom_call.1} parent=1 // pred_fallthru
      _
    %s3029 = sadd.s32 %s479, 3
    %s3030 = sld [smem:[#allocation5 + %s3029]]
    %p3031 = scmp.gt.s32.totalorder %s3030, 0
    // Predicated region
    $region66: #{tpu_custom_call.1} parent=1 // pred_check
      %p3032 = pneg %p3031
    $region67: #{tpu_custom_call.1} parent=1 // pred_check_branch
      %3034 = sbr.rel (%p3032) target = $region69
    $region68: #{tpu_custom_call.1} parent=1 // pred_region
      %s3035 = scalar_lea.vmem [#allocation6], 192
      %v3036 = vld [vmem:[%s3035] sm:$0xf]
      %v3037 = vld [vmem:[%s3035 + $0x4] sm:$0xf]
      %v3038 = vld [vmem:[%s3035 + $0x8] sm:$0xf]
      %v3039 = vld [vmem:[%s3035 + $0xc] sm:$0xf]
      %v3040 = vld [vmem:[%s3035 + $0x10] sm:$0xf]
      %v3041 = vld [vmem:[%s3035 + $0x14] sm:$0xf]
      %v3042 = vld [vmem:[%s3035 + $0x18] sm:$0xf]
      %v3043 = vld [vmem:[%s3035 + $0x1c] sm:$0xf]
      %v3044 = vld [vmem:[%s3035 + $0x20] sm:$0xf]
      %v3045 = vld [vmem:[%s3035 + $0x24] sm:$0xf]
      %v3046 = vld [vmem:[%s3035 + $0x28] sm:$0xf]
      %v3047 = vld [vmem:[%s3035 + $0x2c] sm:$0xf]
      %v3048 = vld [vmem:[%s3035 + $0x30] sm:$0xf]
      %v3049 = vld [vmem:[%s3035 + $0x34] sm:$0xf]
      %v3050 = vld [vmem:[%s3035 + $0x38] sm:$0xf]
      %v3051 = vld [vmem:[%s3035 + $0x3c] sm:$0xf]
      %s3052 = scalar_lea.vmem %s6, 3
      %v3053 = vld [vmem:[%s3052] sm:$0x1]
      %v3055 = vlaneseq
      %v3056 = vshrl.u32 %v3055, 7
      %v3057 = vsub.s32 0, %v3056
      %v3058 = vrot.slane %v3053, %v3057
      %v3076 = vunpack.c.l.b16 %v3036
      %v3077 = vunpack.c.l.b16 %v3037
      %v3078 = vunpack.c.l.b16 %v3038
      %v3079 = vunpack.c.l.b16 %v3039
      %v3080 = vunpack.c.l.b16 %v3040
      %v3081 = vunpack.c.l.b16 %v3041
      %v3082 = vunpack.c.l.b16 %v3042
      %v3083 = vunpack.c.l.b16 %v3043
      %v3084 = vunpack.c.l.b16 %v3044
      %v3085 = vunpack.c.l.b16 %v3045
      %v3086 = vunpack.c.l.b16 %v3046
      %v3087 = vunpack.c.l.b16 %v3047
      %v3088 = vunpack.c.l.b16 %v3048
      %v3089 = vunpack.c.l.b16 %v3049
      %v3090 = vunpack.c.l.b16 %v3050
      %v3091 = vunpack.c.l.b16 %v3051
      %v3092 = vpack.c.b16 %v3077, %v3076
      %v3093 = vpack.c.b16 %v3079, %v3078
      %v3094 = vpack.c.b16 %v3081, %v3080
      %v3095 = vpack.c.b16 %v3083, %v3082
      %v3096 = vpack.c.b16 %v3085, %v3084
      %v3097 = vpack.c.b16 %v3087, %v3086
      %v3098 = vpack.c.b16 %v3089, %v3088
      %v3099 = vpack.c.b16 %v3091, %v3090
      %3108 = vmatprep.subr.bf16.mxu0 0
      %3109 = vmatpush1.bf16.msra.mxu0 %v3092
      %3110 = vmatprep.subr.bf16.mxu0 0
      %3111 = vmatpush1.bf16.msra.mxu0 %v3093
      %3112 = vmatprep.subr.bf16.mxu0 0
      %3113 = vmatpush1.bf16.msra.mxu0 %v3094
      %3114 = vmatprep.subr.bf16.mxu0 0
      %3115 = vmatpush1.bf16.msra.mxu0 %v3095
      %3116 = vmatprep.subr.bf16.mxu0 0
      %3117 = vmatpush1.bf16.msra.mxu0 %v3096
      %3118 = vmatprep.subr.bf16.mxu0 0
      %3119 = vmatpush1.bf16.msra.mxu0 %v3097
      %3120 = vmatprep.subr.bf16.mxu0 0
      %3121 = vmatpush1.bf16.msra.mxu0 %v3098
      %3122 = vmatprep.subr.bf16.mxu0 0
      %3123 = vmatpush1.bf16.msra.mxu0 %v3099
      %3124 = vmatprep.subr.bf16.mxu0 0
      %3125 = vmatpush1.bf16.msra.mxu0 0
      %3126 = vmatprep.subr.bf16.mxu0 0
      %3127 = vmatpush1.bf16.msra.mxu0 0
      %3128 = vmatprep.subr.bf16.mxu0 0
      %3129 = vmatpush1.bf16.msra.mxu0 0
      %3130 = vmatprep.subr.bf16.mxu0 0
      %3131 = vmatpush1.bf16.msra.mxu0 0
      %3132 = vmatprep.subr.bf16.mxu0 0
      %3133 = vmatpush1.bf16.msra.mxu0 0
      %3134 = vmatprep.subr.bf16.mxu0 0
      %3135 = vmatpush1.bf16.msra.mxu0 0
      %3136 = vmatprep.subr.bf16.mxu0 0
      %3137 = vmatpush1.bf16.msra.mxu0 0
      %3138 = vmatprep.subr.bf16.mxu0 0
      %3139 = vmatpush1.bf16.msra.mxu0 0
      %3140 = vmatprep.mubr.bf16.mxu0 0
      %3141 = vmatmul.mubr.bf16.gmra.mrb[0].mxu0 %v156
      %v3142 = vpop.f32.mrb[0].mxu0
      %v3143 = vadd.f32 %v3058, %v3142
      %v3144 = vpop.f32.mrb[0].mxu0
      %v3145 = vpop.f32.mrb[0].mxu0
      %v3146 = vadd.f32 %v3058, %v3145
      %v3147 = vpop.f32.mrb[0].mxu0
      %3148 = vmatprep.mubr.bf16.mxu0 0
      %3149 = vmatmul.mubr.bf16.gmra.mrb[0].mxu0 %v157
      %v3150 = vpop.f32.mrb[0].mxu0
      %v3151 = vadd.f32 %v3058, %v3150
      %v3152 = vpop.f32.mrb[0].mxu0
      %v3153 = vpop.f32.mrb[0].mxu0
      %v3154 = vadd.f32 %v3058, %v3153
      %v3155 = vpop.f32.mrb[0].mxu0
      %3156 = vmatprep.mubr.bf16.mxu0 0
      %3157 = vmatmul.mubr.bf16.gmra.mrb[0].mxu0 %v158
      %v3158 = vpop.f32.mrb[0].mxu0
      %v3159 = vadd.f32 %v3058, %v3158
      %v3160 = vpop.f32.mrb[0].mxu0
      %v3161 = vpop.f32.mrb[0].mxu0
      %v3162 = vadd.f32 %v3058, %v3161
      %v3163 = vpop.f32.mrb[0].mxu0
      %3164 = vmatprep.mubr.bf16.mxu0 0
      %3165 = vmatmul.mubr.bf16.gmra.mrb[0].mxu0 %v159
      %v3166 = vpop.f32.mrb[0].mxu0
      %v3167 = vadd.f32 %v3058, %v3166
      %v3168 = vpop.f32.mrb[0].mxu0
      %v3169 = vpop.f32.mrb[0].mxu0
      %v3170 = vadd.f32 %v3058, %v3169
      %v3171 = vpop.f32.mrb[0].mxu0
      %3172 = vmatprep.mubr.bf16.mxu0 0
      %3173 = vmatmul.mubr.bf16.gmra.mrb[0].mxu0 %v160
      %v3174 = vpop.f32.mrb[0].mxu0
      %v3175 = vadd.f32 %v3058, %v3174
      %v3176 = vpop.f32.mrb[0].mxu0
      %v3177 = vpop.f32.mrb[0].mxu0
      %v3178 = vadd.f32 %v3058, %v3177
      %v3179 = vpop.f32.mrb[0].mxu0
      %3180 = vmatprep.mubr.bf16.mxu0 0
      %3181 = vmatmul.mubr.bf16.gmra.mrb[0].mxu0 %v161
      %v3182 = vpop.f32.mrb[0].mxu0
      %v3183 = vadd.f32 %v3058, %v3182
      %v3184 = vpop.f32.mrb[0].mxu0
      %v3185 = vpop.f32.mrb[0].mxu0
      %v3186 = vadd.f32 %v3058, %v3185
      %v3187 = vpop.f32.mrb[0].mxu0
      %3188 = vmatprep.mubr.bf16.mxu0 0
      %3189 = vmatmul.mubr.bf16.gmra.mrb[0].mxu0 %v162
      %v3190 = vpop.f32.mrb[0].mxu0
      %v3191 = vadd.f32 %v3058, %v3190
      %v3192 = vpop.f32.mrb[0].mxu0
      %v3193 = vpop.f32.mrb[0].mxu0
      %v3194 = vadd.f32 %v3058, %v3193
      %v3195 = vpop.f32.mrb[0].mxu0
      %3196 = vmatprep.mubr.bf16.mxu0 0
      %3197 = vmatmul.mubr.bf16.gmra.mrb[0].mxu0 %v163
      %v3198 = vpop.f32.mrb[0].mxu0
      %v3199 = vadd.f32 %v3058, %v3198
      %v3200 = vpop.f32.mrb[0].mxu0
      %v3201 = vpop.f32.mrb[0].mxu0
      %v3202 = vadd.f32 %v3058, %v3201
      %v3203 = vpop.f32.mrb[0].mxu0
      %3204 = vdwg.mxu0
      %vm3205 = vcmp.gt.f32.partialorder %v3143, 0.0
      %vm3206 = vcmp.gt.f32.partialorder %v3146, 0.0
      %vm3207 = vcmp.gt.f32.partialorder %v3151, 0.0
      %vm3208 = vcmp.gt.f32.partialorder %v3154, 0.0
      %vm3209 = vcmp.gt.f32.partialorder %v3159, 0.0
      %vm3210 = vcmp.gt.f32.partialorder %v3162, 0.0
      %vm3211 = vcmp.gt.f32.partialorder %v3167, 0.0
      %vm3212 = vcmp.gt.f32.partialorder %v3170, 0.0
      %vm3213 = vcmp.gt.f32.partialorder %v3175, 0.0
      %vm3214 = vcmp.gt.f32.partialorder %v3178, 0.0
      %vm3215 = vcmp.gt.f32.partialorder %v3183, 0.0
      %vm3216 = vcmp.gt.f32.partialorder %v3186, 0.0
      %vm3217 = vcmp.gt.f32.partialorder %v3191, 0.0
      %vm3218 = vcmp.gt.f32.partialorder %v3194, 0.0
      %vm3219 = vcmp.gt.f32.partialorder %v3199, 0.0
      %vm3220 = vcmp.gt.f32.partialorder %v3202, 0.0
      %v3221 = vmul.f32 %v3143, 0.01
      %v3222 = vmul.f32 %v3146, 0.01
      %v3223 = vmul.f32 %v3151, 0.01
      %v3224 = vmul.f32 %v3154, 0.01
      %v3225 = vmul.f32 %v3159, 0.01
      %v3226 = vmul.f32 %v3162, 0.01
      %v3227 = vmul.f32 %v3167, 0.01
      %v3228 = vmul.f32 %v3170, 0.01
      %v3229 = vmul.f32 %v3175, 0.01
      %v3230 = vmul.f32 %v3178, 0.01
      %v3231 = vmul.f32 %v3183, 0.01
      %v3232 = vmul.f32 %v3186, 0.01
      %v3233 = vmul.f32 %v3191, 0.01
      %v3234 = vmul.f32 %v3194, 0.01
      %v3235 = vmul.f32 %v3199, 0.01
      %v3236 = vmul.f32 %v3202, 0.01
      %v3237 = vsel %vm3205, %v3143, %v3221
      %v3238 = vsel %vm3206, %v3146, %v3222
      %v3239 = vsel %vm3207, %v3151, %v3223
      %v3240 = vsel %vm3208, %v3154, %v3224
      %v3241 = vsel %vm3209, %v3159, %v3225
      %v3242 = vsel %vm3210, %v3162, %v3226
      %v3243 = vsel %vm3211, %v3167, %v3227
      %v3244 = vsel %vm3212, %v3170, %v3228
      %v3245 = vsel %vm3213, %v3175, %v3229
      %v3246 = vsel %vm3214, %v3178, %v3230
      %v3247 = vsel %vm3215, %v3183, %v3231
      %v3248 = vsel %vm3216, %v3186, %v3232
      %v3249 = vsel %vm3217, %v3191, %v3233
      %v3250 = vsel %vm3218, %v3194, %v3234
      %v3251 = vsel %vm3219, %v3199, %v3235
      %v3252 = vsel %vm3220, %v3202, %v3236
      %v3253 = vpack.c.bf16 %v3238, %v3237
      %v3254 = vpack.c.bf16 %v3240, %v3239
      %v3255 = vpack.c.bf16 %v3242, %v3241
      %v3256 = vpack.c.bf16 %v3244, %v3243
      %v3257 = vpack.c.bf16 %v3246, %v3245
      %v3258 = vpack.c.bf16 %v3248, %v3247
      %v3259 = vpack.c.bf16 %v3250, %v3249
      %v3260 = vpack.c.bf16 %v3252, %v3251
      %s3261 = scalar_lea.vmem [#allocation9], 192
      %v3262 = vld [vmem:[%s3261] sm:$0xf]
      %v3263 = vld [vmem:[%s3261 + $0x4] sm:$0xf]
      %v3264 = vld [vmem:[%s3261 + $0x8] sm:$0xf]
      %v3265 = vld [vmem:[%s3261 + $0xc] sm:$0xf]
      %v3266 = vld [vmem:[%s3261 + $0x10] sm:$0xf]
      %v3267 = vld [vmem:[%s3261 + $0x14] sm:$0xf]
      %v3268 = vld [vmem:[%s3261 + $0x18] sm:$0xf]
      %v3269 = vld [vmem:[%s3261 + $0x1c] sm:$0xf]
      %v3270 = vld [vmem:[%s3261 + $0x20] sm:$0xf]
      %v3271 = vld [vmem:[%s3261 + $0x24] sm:$0xf]
      %v3272 = vld [vmem:[%s3261 + $0x28] sm:$0xf]
      %v3273 = vld [vmem:[%s3261 + $0x2c] sm:$0xf]
      %v3274 = vld [vmem:[%s3261 + $0x30] sm:$0xf]
      %v3275 = vld [vmem:[%s3261 + $0x34] sm:$0xf]
      %v3276 = vld [vmem:[%s3261 + $0x38] sm:$0xf]
      %v3277 = vld [vmem:[%s3261 + $0x3c] sm:$0xf]
      %s3278 = scalar_lea.vmem %s8, 3
      %v3279 = vld [vmem:[%s3278] sm:$0x1]
      %v3281 = vlaneseq
      %v3282 = vshrl.u32 %v3281, 7
      %v3283 = vsub.s32 0, %v3282
      %v3284 = vrot.slane %v3279, %v3283
      %v3302 = vunpack.c.l.b16 %v3262
      %v3303 = vunpack.c.l.b16 %v3263
      %v3304 = vunpack.c.l.b16 %v3264
      %v3305 = vunpack.c.l.b16 %v3265
      %v3306 = vunpack.c.l.b16 %v3266
      %v3307 = vunpack.c.l.b16 %v3267
      %v3308 = vunpack.c.l.b16 %v3268
      %v3309 = vunpack.c.l.b16 %v3269
      %v3310 = vunpack.c.l.b16 %v3270
      %v3311 = vunpack.c.l.b16 %v3271
      %v3312 = vunpack.c.l.b16 %v3272
      %v3313 = vunpack.c.l.b16 %v3273
      %v3314 = vunpack.c.l.b16 %v3274
      %v3315 = vunpack.c.l.b16 %v3275
      %v3316 = vunpack.c.l.b16 %v3276
      %v3317 = vunpack.c.l.b16 %v3277
      %v3318 = vpack.c.b16 %v3303, %v3302
      %v3319 = vpack.c.b16 %v3305, %v3304
      %v3320 = vpack.c.b16 %v3307, %v3306
      %v3321 = vpack.c.b16 %v3309, %v3308
      %v3322 = vpack.c.b16 %v3311, %v3310
      %v3323 = vpack.c.b16 %v3313, %v3312
      %v3324 = vpack.c.b16 %v3315, %v3314
      %v3325 = vpack.c.b16 %v3317, %v3316
      %3334 = vmatprep.subr.bf16.mxu0 0
      %3335 = vmatpush1.bf16.msra.mxu0 %v3318
      %3336 = vmatprep.subr.bf16.mxu0 0
      %3337 = vmatpush1.bf16.msra.mxu0 %v3319
      %3338 = vmatprep.subr.bf16.mxu0 0
      %3339 = vmatpush1.bf16.msra.mxu0 %v3320
      %3340 = vmatprep.subr.bf16.mxu0 0
      %3341 = vmatpush1.bf16.msra.mxu0 %v3321
      %3342 = vmatprep.subr.bf16.mxu0 0
      %3343 = vmatpush1.bf16.msra.mxu0 %v3322
      %3344 = vmatprep.subr.bf16.mxu0 0
      %3345 = vmatpush1.bf16.msra.mxu0 %v3323
      %3346 = vmatprep.subr.bf16.mxu0 0
      %3347 = vmatpush1.bf16.msra.mxu0 %v3324
      %3348 = vmatprep.subr.bf16.mxu0 0
      %3349 = vmatpush1.bf16.msra.mxu0 %v3325
      %3350 = vmatprep.subr.bf16.mxu0 0
      %3351 = vmatpush1.bf16.msra.mxu0 0
      %3352 = vmatprep.subr.bf16.mxu0 0
      %3353 = vmatpush1.bf16.msra.mxu0 0
      %3354 = vmatprep.subr.bf16.mxu0 0
      %3355 = vmatpush1.bf16.msra.mxu0 0
      %3356 = vmatprep.subr.bf16.mxu0 0
      %3357 = vmatpush1.bf16.msra.mxu0 0
      %3358 = vmatprep.subr.bf16.mxu0 0
      %3359 = vmatpush1.bf16.msra.mxu0 0
      %3360 = vmatprep.subr.bf16.mxu0 0
      %3361 = vmatpush1.bf16.msra.mxu0 0
      %3362 = vmatprep.subr.bf16.mxu0 0
      %3363 = vmatpush1.bf16.msra.mxu0 0
      %3364 = vmatprep.subr.bf16.mxu0 0
      %3365 = vmatpush1.bf16.msra.mxu0 0
      %3366 = vmatprep.mubr.bf16.mxu0 0
      %3367 = vmatmul.mubr.bf16.gmra.mrb[0].mxu0 %v3253
      %v3368 = vpop.f32.mrb[0].mxu0
      %v3369 = vadd.f32 %v3284, %v3368
      %v3370 = vpop.f32.mrb[0].mxu0
      %v3371 = vpop.f32.mrb[0].mxu0
      %v3372 = vadd.f32 %v3284, %v3371
      %v3373 = vpop.f32.mrb[0].mxu0
      %3374 = vmatprep.mubr.bf16.mxu0 0
      %3375 = vmatmul.mubr.bf16.gmra.mrb[0].mxu0 %v3254
      %v3376 = vpop.f32.mrb[0].mxu0
      %v3377 = vadd.f32 %v3284, %v3376
      %v3378 = vpop.f32.mrb[0].mxu0
      %v3379 = vpop.f32.mrb[0].mxu0
      %v3380 = vadd.f32 %v3284, %v3379
      %v3381 = vpop.f32.mrb[0].mxu0
      %3382 = vmatprep.mubr.bf16.mxu0 0
      %3383 = vmatmul.mubr.bf16.gmra.mrb[0].mxu0 %v3255
      %v3384 = vpop.f32.mrb[0].mxu0
      %v3385 = vadd.f32 %v3284, %v3384
      %v3386 = vpop.f32.mrb[0].mxu0
      %v3387 = vpop.f32.mrb[0].mxu0
      %v3388 = vadd.f32 %v3284, %v3387
      %v3389 = vpop.f32.mrb[0].mxu0
      %3390 = vmatprep.mubr.bf16.mxu0 0
      %3391 = vmatmul.mubr.bf16.gmra.mrb[0].mxu0 %v3256
      %v3392 = vpop.f32.mrb[0].mxu0
      %v3393 = vadd.f32 %v3284, %v3392
      %v3394 = vpop.f32.mrb[0].mxu0
      %v3395 = vpop.f32.mrb[0].mxu0
      %v3396 = vadd.f32 %v3284, %v3395
      %v3397 = vpop.f32.mrb[0].mxu0
      %3398 = vmatprep.mubr.bf16.mxu0 0
      %3399 = vmatmul.mubr.bf16.gmra.mrb[0].mxu0 %v3257
      %v3400 = vpop.f32.mrb[0].mxu0
      %v3401 = vadd.f32 %v3284, %v3400
      %v3402 = vpop.f32.mrb[0].mxu0
      %v3403 = vpop.f32.mrb[0].mxu0
      %v3404 = vadd.f32 %v3284, %v3403
      %v3405 = vpop.f32.mrb[0].mxu0
      %3406 = vmatprep.mubr.bf16.mxu0 0
      %3407 = vmatmul.mubr.bf16.gmra.mrb[0].mxu0 %v3258
      %v3408 = vpop.f32.mrb[0].mxu0
      %v3409 = vadd.f32 %v3284, %v3408
      %v3410 = vpop.f32.mrb[0].mxu0
      %v3411 = vpop.f32.mrb[0].mxu0
      %v3412 = vadd.f32 %v3284, %v3411
      %v3413 = vpop.f32.mrb[0].mxu0
      %3414 = vmatprep.mubr.bf16.mxu0 0
      %3415 = vmatmul.mubr.bf16.gmra.mrb[0].mxu0 %v3259
      %v3416 = vpop.f32.mrb[0].mxu0
      %v3417 = vadd.f32 %v3284, %v3416
      %v3418 = vpop.f32.mrb[0].mxu0
      %v3419 = vpop.f32.mrb[0].mxu0
      %v3420 = vadd.f32 %v3284, %v3419
      %v3421 = vpop.f32.mrb[0].mxu0
      %3422 = vmatprep.mubr.bf16.mxu0 0
      %3423 = vmatmul.mubr.bf16.gmra.mrb[0].mxu0 %v3260
      %v3424 = vpop.f32.mrb[0].mxu0
      %v3425 = vadd.f32 %v3284, %v3424
      %v3426 = vpop.f32.mrb[0].mxu0
      %v3427 = vpop.f32.mrb[0].mxu0
      %v3428 = vadd.f32 %v3284, %v3427
      %v3429 = vpop.f32.mrb[0].mxu0
      %3430 = vdwg.mxu0
      %vm3431 = vcmp.gt.f32.partialorder %v3369, 0.0
      %vm3432 = vcmp.gt.f32.partialorder %v3372, 0.0
      %vm3433 = vcmp.gt.f32.partialorder %v3377, 0.0
      %vm3434 = vcmp.gt.f32.partialorder %v3380, 0.0
      %vm3435 = vcmp.gt.f32.partialorder %v3385, 0.0
      %vm3436 = vcmp.gt.f32.partialorder %v3388, 0.0
      %vm3437 = vcmp.gt.f32.partialorder %v3393, 0.0
      %vm3438 = vcmp.gt.f32.partialorder %v3396, 0.0
      %vm3439 = vcmp.gt.f32.partialorder %v3401, 0.0
      %vm3440 = vcmp.gt.f32.partialorder %v3404, 0.0
      %vm3441 = vcmp.gt.f32.partialorder %v3409, 0.0
      %vm3442 = vcmp.gt.f32.partialorder %v3412, 0.0
      %vm3443 = vcmp.gt.f32.partialorder %v3417, 0.0
      %vm3444 = vcmp.gt.f32.partialorder %v3420, 0.0
      %vm3445 = vcmp.gt.f32.partialorder %v3425, 0.0
      %vm3446 = vcmp.gt.f32.partialorder %v3428, 0.0
      %v3447 = vmul.f32 %v3369, 0.01
      %v3448 = vmul.f32 %v3372, 0.01
      %v3449 = vmul.f32 %v3377, 0.01
      %v3450 = vmul.f32 %v3380, 0.01
      %v3451 = vmul.f32 %v3385, 0.01
      %v3452 = vmul.f32 %v3388, 0.01
      %v3453 = vmul.f32 %v3393, 0.01
      %v3454 = vmul.f32 %v3396, 0.01
      %v3455 = vmul.f32 %v3401, 0.01
      %v3456 = vmul.f32 %v3404, 0.01
      %v3457 = vmul.f32 %v3409, 0.01
      %v3458 = vmul.f32 %v3412, 0.01
      %v3459 = vmul.f32 %v3417, 0.01
      %v3460 = vmul.f32 %v3420, 0.01
      %v3461 = vmul.f32 %v3425, 0.01
      %v3462 = vmul.f32 %v3428, 0.01
      %v3463 = vsel %vm3431, %v3369, %v3447
      %v3464 = vsel %vm3432, %v3372, %v3448
      %v3465 = vsel %vm3433, %v3377, %v3449
      %v3466 = vsel %vm3434, %v3380, %v3450
      %v3467 = vsel %vm3435, %v3385, %v3451
      %v3468 = vsel %vm3436, %v3388, %v3452
      %v3469 = vsel %vm3437, %v3393, %v3453
      %v3470 = vsel %vm3438, %v3396, %v3454
      %v3471 = vsel %vm3439, %v3401, %v3455
      %v3472 = vsel %vm3440, %v3404, %v3456
      %v3473 = vsel %vm3441, %v3409, %v3457
      %v3474 = vsel %vm3442, %v3412, %v3458
      %v3475 = vsel %vm3443, %v3417, %v3459
      %v3476 = vsel %vm3444, %v3420, %v3460
      %v3477 = vsel %vm3445, %v3425, %v3461
      %v3478 = vsel %vm3446, %v3428, %v3462
      %v3479 = vpack.c.bf16 %v3464, %v3463
      %v3480 = vpack.c.bf16 %v3466, %v3465
      %v3481 = vpack.c.bf16 %v3468, %v3467
      %v3482 = vpack.c.bf16 %v3470, %v3469
      %v3483 = vpack.c.bf16 %v3472, %v3471
      %v3484 = vpack.c.bf16 %v3474, %v3473
      %v3485 = vpack.c.bf16 %v3476, %v3475
      %v3486 = vpack.c.bf16 %v3478, %v3477
      %s3487 = scalar_lea.vmem [#allocation11], 192
      %v3488 = vld [vmem:[%s3487] sm:$0xf]
      %v3489 = vld [vmem:[%s3487 + $0x4] sm:$0xf]
      %v3490 = vld [vmem:[%s3487 + $0x8] sm:$0xf]
      %v3491 = vld [vmem:[%s3487 + $0xc] sm:$0xf]
      %v3492 = vld [vmem:[%s3487 + $0x10] sm:$0xf]
      %v3493 = vld [vmem:[%s3487 + $0x14] sm:$0xf]
      %v3494 = vld [vmem:[%s3487 + $0x18] sm:$0xf]
      %v3495 = vld [vmem:[%s3487 + $0x1c] sm:$0xf]
      %v3496 = vld [vmem:[%s3487 + $0x20] sm:$0xf]
      %v3497 = vld [vmem:[%s3487 + $0x24] sm:$0xf]
      %v3498 = vld [vmem:[%s3487 + $0x28] sm:$0xf]
      %v3499 = vld [vmem:[%s3487 + $0x2c] sm:$0xf]
      %v3500 = vld [vmem:[%s3487 + $0x30] sm:$0xf]
      %v3501 = vld [vmem:[%s3487 + $0x34] sm:$0xf]
      %v3502 = vld [vmem:[%s3487 + $0x38] sm:$0xf]
      %v3503 = vld [vmem:[%s3487 + $0x3c] sm:$0xf]
      %s3504 = scalar_lea.vmem %s10, 3
      %v3505 = vld [vmem:[%s3504] sm:$0x1]
      %v3507 = vlaneseq
      %v3508 = vshrl.u32 %v3507, 7
      %v3509 = vsub.s32 0, %v3508
      %v3510 = vrot.slane %v3505, %v3509
      %v3528 = vunpack.c.l.b16 %v3488
      %v3529 = vunpack.c.l.b16 %v3489
      %v3530 = vunpack.c.l.b16 %v3490
      %v3531 = vunpack.c.l.b16 %v3491
      %v3532 = vunpack.c.l.b16 %v3492
      %v3533 = vunpack.c.l.b16 %v3493
      %v3534 = vunpack.c.l.b16 %v3494
      %v3535 = vunpack.c.l.b16 %v3495
      %v3536 = vunpack.c.l.b16 %v3496
      %v3537 = vunpack.c.l.b16 %v3497
      %v3538 = vunpack.c.l.b16 %v3498
      %v3539 = vunpack.c.l.b16 %v3499
      %v3540 = vunpack.c.l.b16 %v3500
      %v3541 = vunpack.c.l.b16 %v3501
      %v3542 = vunpack.c.l.b16 %v3502
      %v3543 = vunpack.c.l.b16 %v3503
      %v3544 = vpack.c.b16 %v3529, %v3528
      %v3545 = vpack.c.b16 %v3531, %v3530
      %v3546 = vpack.c.b16 %v3533, %v3532
      %v3547 = vpack.c.b16 %v3535, %v3534
      %v3548 = vpack.c.b16 %v3537, %v3536
      %v3549 = vpack.c.b16 %v3539, %v3538
      %v3550 = vpack.c.b16 %v3541, %v3540
      %v3551 = vpack.c.b16 %v3543, %v3542
      %3560 = vmatprep.subr.bf16.mxu0 0
      %3561 = vmatpush1.bf16.msra.mxu0 %v3544
      %3562 = vmatprep.subr.bf16.mxu0 0
      %3563 = vmatpush1.bf16.msra.mxu0 %v3545
      %3564 = vmatprep.subr.bf16.mxu0 0
      %3565 = vmatpush1.bf16.msra.mxu0 %v3546
      %3566 = vmatprep.subr.bf16.mxu0 0
      %3567 = vmatpush1.bf16.msra.mxu0 %v3547
      %3568 = vmatprep.subr.bf16.mxu0 0
      %3569 = vmatpush1.bf16.msra.mxu0 %v3548
      %3570 = vmatprep.subr.bf16.mxu0 0
      %3571 = vmatpush1.bf16.msra.mxu0 %v3549
      %3572 = vmatprep.subr.bf16.mxu0 0
      %3573 = vmatpush1.bf16.msra.mxu0 %v3550
      %3574 = vmatprep.subr.bf16.mxu0 0
      %3575 = vmatpush1.bf16.msra.mxu0 %v3551
      %3576 = vmatprep.subr.bf16.mxu0 0
      %3577 = vmatpush1.bf16.msra.mxu0 0
      %3578 = vmatprep.subr.bf16.mxu0 0
      %3579 = vmatpush1.bf16.msra.mxu0 0
      %3580 = vmatprep.subr.bf16.mxu0 0
      %3581 = vmatpush1.bf16.msra.mxu0 0
      %3582 = vmatprep.subr.bf16.mxu0 0
      %3583 = vmatpush1.bf16.msra.mxu0 0
      %3584 = vmatprep.subr.bf16.mxu0 0
      %3585 = vmatpush1.bf16.msra.mxu0 0
      %3586 = vmatprep.subr.bf16.mxu0 0
      %3587 = vmatpush1.bf16.msra.mxu0 0
      %3588 = vmatprep.subr.bf16.mxu0 0
      %3589 = vmatpush1.bf16.msra.mxu0 0
      %3590 = vmatprep.subr.bf16.mxu0 0
      %3591 = vmatpush1.bf16.msra.mxu0 0
      %3592 = vmatprep.mubr.bf16.mxu0 0
      %3593 = vmatmul.mubr.bf16.gmra.mrb[0].mxu0 %v3479
      %v3594 = vpop.f32.mrb[0].mxu0
      %v3595 = vadd.f32 %v3510, %v3594
      %v3596 = vpop.f32.mrb[0].mxu0
      %v3597 = vpop.f32.mrb[0].mxu0
      %v3598 = vadd.f32 %v3510, %v3597
      %v3599 = vpop.f32.mrb[0].mxu0
      %3600 = vmatprep.mubr.bf16.mxu0 0
      %3601 = vmatmul.mubr.bf16.gmra.mrb[0].mxu0 %v3480
      %v3602 = vpop.f32.mrb[0].mxu0
      %v3603 = vadd.f32 %v3510, %v3602
      %v3604 = vpop.f32.mrb[0].mxu0
      %v3605 = vpop.f32.mrb[0].mxu0
      %v3606 = vadd.f32 %v3510, %v3605
      %v3607 = vpop.f32.mrb[0].mxu0
      %3608 = vmatprep.mubr.bf16.mxu0 0
      %3609 = vmatmul.mubr.bf16.gmra.mrb[0].mxu0 %v3481
      %v3610 = vpop.f32.mrb[0].mxu0
      %v3611 = vadd.f32 %v3510, %v3610
      %v3612 = vpop.f32.mrb[0].mxu0
      %v3613 = vpop.f32.mrb[0].mxu0
      %v3614 = vadd.f32 %v3510, %v3613
      %v3615 = vpop.f32.mrb[0].mxu0
      %3616 = vmatprep.mubr.bf16.mxu0 0
      %3617 = vmatmul.mubr.bf16.gmra.mrb[0].mxu0 %v3482
      %v3618 = vpop.f32.mrb[0].mxu0
      %v3619 = vadd.f32 %v3510, %v3618
      %v3620 = vpop.f32.mrb[0].mxu0
      %v3621 = vpop.f32.mrb[0].mxu0
      %v3622 = vadd.f32 %v3510, %v3621
      %v3623 = vpop.f32.mrb[0].mxu0
      %3624 = vmatprep.mubr.bf16.mxu0 0
      %3625 = vmatmul.mubr.bf16.gmra.mrb[0].mxu0 %v3483
      %v3626 = vpop.f32.mrb[0].mxu0
      %v3627 = vadd.f32 %v3510, %v3626
      %v3628 = vpop.f32.mrb[0].mxu0
      %v3629 = vpop.f32.mrb[0].mxu0
      %v3630 = vadd.f32 %v3510, %v3629
      %v3631 = vpop.f32.mrb[0].mxu0
      %3632 = vmatprep.mubr.bf16.mxu0 0
      %3633 = vmatmul.mubr.bf16.gmra.mrb[0].mxu0 %v3484
      %v3634 = vpop.f32.mrb[0].mxu0
      %v3635 = vadd.f32 %v3510, %v3634
      %v3636 = vpop.f32.mrb[0].mxu0
      %v3637 = vpop.f32.mrb[0].mxu0
      %v3638 = vadd.f32 %v3510, %v3637
      %v3639 = vpop.f32.mrb[0].mxu0
      %3640 = vmatprep.mubr.bf16.mxu0 0
      %3641 = vmatmul.mubr.bf16.gmra.mrb[0].mxu0 %v3485
      %v3642 = vpop.f32.mrb[0].mxu0
      %v3643 = vadd.f32 %v3510, %v3642
      %v3644 = vpop.f32.mrb[0].mxu0
      %v3645 = vpop.f32.mrb[0].mxu0
      %v3646 = vadd.f32 %v3510, %v3645
      %v3647 = vpop.f32.mrb[0].mxu0
      %3648 = vmatprep.mubr.bf16.mxu0 0
      %3649 = vmatmul.mubr.bf16.gmra.mrb[0].mxu0 %v3486
      %v3650 = vpop.f32.mrb[0].mxu0
      %v3651 = vadd.f32 %v3510, %v3650
      %v3652 = vpop.f32.mrb[0].mxu0
      %v3653 = vpop.f32.mrb[0].mxu0
      %v3654 = vadd.f32 %v3510, %v3653
      %v3655 = vpop.f32.mrb[0].mxu0
      %3656 = vdwg.mxu0
      %v3657 = vld [vmem:[#allocation2] sm:$0xff]
      %v3658 = vld [vmem:[#allocation2 + $0x8] sm:$0xff]
      %v3659 = vld [vmem:[#allocation2 + $0x10] sm:$0xff]
      %v3660 = vld [vmem:[#allocation2 + $0x18] sm:$0xff]
      %v3661 = vld [vmem:[#allocation2 + $0x20] sm:$0xff]
      %v3662 = vld [vmem:[#allocation2 + $0x28] sm:$0xff]
      %v3663 = vld [vmem:[#allocation2 + $0x30] sm:$0xff]
      %v3664 = vld [vmem:[#allocation2 + $0x38] sm:$0xff]
      %v3665 = vld [vmem:[#allocation2 + $0x40] sm:$0xff]
      %v3666 = vld [vmem:[#allocation2 + $0x48] sm:$0xff]
      %v3667 = vld [vmem:[#allocation2 + $0x50] sm:$0xff]
      %v3668 = vld [vmem:[#allocation2 + $0x58] sm:$0xff]
      %v3669 = vld [vmem:[#allocation2 + $0x60] sm:$0xff]
      %v3670 = vld [vmem:[#allocation2 + $0x68] sm:$0xff]
      %v3671 = vld [vmem:[#allocation2 + $0x70] sm:$0xff]
      %v3672 = vld [vmem:[#allocation2 + $0x78] sm:$0xff]
      %3674 = vset.pattern.permute.xlu0 3
      %3675 = vperm.xlu0 %3674, %v430
      %v3676 = vpop.permute.xlu0 %3675
      %3679 = vset.pattern.permute.xlu0 3
      %3680 = vperm.xlu0 %3679, %v431
      %v3681 = vpop.permute.xlu0 %3680
      %3684 = vset.pattern.permute.xlu0 3
      %3685 = vperm.xlu0 %3684, %v432
      %v3686 = vpop.permute.xlu0 %3685
      %3689 = vset.pattern.permute.xlu0 3
      %3690 = vperm.xlu0 %3689, %v433
      %v3691 = vpop.permute.xlu0 %3690
      %3694 = vset.pattern.permute.xlu0 3
      %3695 = vperm.xlu0 %3694, %v434
      %v3696 = vpop.permute.xlu0 %3695
      %3699 = vset.pattern.permute.xlu0 3
      %3700 = vperm.xlu0 %3699, %v435
      %v3701 = vpop.permute.xlu0 %3700
      %3704 = vset.pattern.permute.xlu0 3
      %3705 = vperm.xlu0 %3704, %v436
      %v3706 = vpop.permute.xlu0 %3705
      %3709 = vset.pattern.permute.xlu0 3
      %3710 = vperm.xlu0 %3709, %v437
      %v3711 = vpop.permute.xlu0 %3710
      %3714 = vset.pattern.permute.xlu0 3
      %3715 = vperm.xlu0 %3714, %v438
      %v3716 = vpop.permute.xlu0 %3715
      %3719 = vset.pattern.permute.xlu0 3
      %3720 = vperm.xlu0 %3719, %v439
      %v3721 = vpop.permute.xlu0 %3720
      %3724 = vset.pattern.permute.xlu0 3
      %3725 = vperm.xlu0 %3724, %v440
      %v3726 = vpop.permute.xlu0 %3725
      %3729 = vset.pattern.permute.xlu0 3
      %3730 = vperm.xlu0 %3729, %v441
      %v3731 = vpop.permute.xlu0 %3730
      %3734 = vset.pattern.permute.xlu0 3
      %3735 = vperm.xlu0 %3734, %v442
      %v3736 = vpop.permute.xlu0 %3735
      %3739 = vset.pattern.permute.xlu0 3
      %3740 = vperm.xlu0 %3739, %v443
      %v3741 = vpop.permute.xlu0 %3740
      %3744 = vset.pattern.permute.xlu0 3
      %3745 = vperm.xlu0 %3744, %v444
      %v3746 = vpop.permute.xlu0 %3745
      %3749 = vset.pattern.permute.xlu0 3
      %3750 = vperm.xlu0 %3749, %v445
      %v3751 = vpop.permute.xlu0 %3750
      %v3753 = vmul.f32 %v3676, %v3595
      %v3754 = vmul.f32 %v3681, %v3598
      %v3755 = vmul.f32 %v3686, %v3603
      %v3756 = vmul.f32 %v3691, %v3606
      %v3757 = vmul.f32 %v3696, %v3611
      %v3758 = vmul.f32 %v3701, %v3614
      %v3759 = vmul.f32 %v3706, %v3619
      %v3760 = vmul.f32 %v3711, %v3622
      %v3761 = vmul.f32 %v3716, %v3627
      %v3762 = vmul.f32 %v3721, %v3630
      %v3763 = vmul.f32 %v3726, %v3635
      %v3764 = vmul.f32 %v3731, %v3638
      %v3765 = vmul.f32 %v3736, %v3643
      %v3766 = vmul.f32 %v3741, %v3646
      %v3767 = vmul.f32 %v3746, %v3651
      %v3768 = vmul.f32 %v3751, %v3654
      %v3769 = vadd.f32 %v3657, %v3753
      %v3770 = vadd.f32 %v3658, %v3754
      %v3771 = vadd.f32 %v3659, %v3755
      %v3772 = vadd.f32 %v3660, %v3756
      %v3773 = vadd.f32 %v3661, %v3757
      %v3774 = vadd.f32 %v3662, %v3758
      %v3775 = vadd.f32 %v3663, %v3759
      %v3776 = vadd.f32 %v3664, %v3760
      %v3777 = vadd.f32 %v3665, %v3761
      %v3778 = vadd.f32 %v3666, %v3762
      %v3779 = vadd.f32 %v3667, %v3763
      %v3780 = vadd.f32 %v3668, %v3764
      %v3781 = vadd.f32 %v3669, %v3765
      %v3782 = vadd.f32 %v3670, %v3766
      %v3783 = vadd.f32 %v3671, %v3767
      %v3784 = vadd.f32 %v3672, %v3768
      %3785 = vst [vmem:[#allocation2] sm:$0xff] %v3769
      %3786 = vst [vmem:[#allocation2 + $0x8] sm:$0xff] %v3770
      %3787 = vst [vmem:[#allocation2 + $0x10] sm:$0xff] %v3771
      %3788 = vst [vmem:[#allocation2 + $0x18] sm:$0xff] %v3772
      %3789 = vst [vmem:[#allocation2 + $0x20] sm:$0xff] %v3773
      %3790 = vst [vmem:[#allocation2 + $0x28] sm:$0xff] %v3774
      %3791 = vst [vmem:[#allocation2 + $0x30] sm:$0xff] %v3775
      %3792 = vst [vmem:[#allocation2 + $0x38] sm:$0xff] %v3776
      %3793 = vst [vmem:[#allocation2 + $0x40] sm:$0xff] %v3777
      %3794 = vst [vmem:[#allocation2 + $0x48] sm:$0xff] %v3778
      %3795 = vst [vmem:[#allocation2 + $0x50] sm:$0xff] %v3779
      %3796 = vst [vmem:[#allocation2 + $0x58] sm:$0xff] %v3780
      %3797 = vst [vmem:[#allocation2 + $0x60] sm:$0xff] %v3781
      %3798 = vst [vmem:[#allocation2 + $0x68] sm:$0xff] %v3782
      %3799 = vst [vmem:[#allocation2 + $0x70] sm:$0xff] %v3783
      %3800 = vst [vmem:[#allocation2 + $0x78] sm:$0xff] %v3784
      %v3801 = vld [vmem:[#allocation3] sm:$0xff]
      %v3802 = vld [vmem:[#allocation3 + $0x8] sm:$0xff]
      %v3803 = vld [vmem:[#allocation3 + $0x10] sm:$0xff]
      %v3804 = vld [vmem:[#allocation3 + $0x18] sm:$0xff]
      %v3805 = vld [vmem:[#allocation3 + $0x20] sm:$0xff]
      %v3806 = vld [vmem:[#allocation3 + $0x28] sm:$0xff]
      %v3807 = vld [vmem:[#allocation3 + $0x30] sm:$0xff]
      %v3808 = vld [vmem:[#allocation3 + $0x38] sm:$0xff]
      %v3809 = vld [vmem:[#allocation3 + $0x40] sm:$0xff]
      %v3810 = vld [vmem:[#allocation3 + $0x48] sm:$0xff]
      %v3811 = vld [vmem:[#allocation3 + $0x50] sm:$0xff]
      %v3812 = vld [vmem:[#allocation3 + $0x58] sm:$0xff]
      %v3813 = vld [vmem:[#allocation3 + $0x60] sm:$0xff]
      %v3814 = vld [vmem:[#allocation3 + $0x68] sm:$0xff]
      %v3815 = vld [vmem:[#allocation3 + $0x70] sm:$0xff]
      %v3816 = vld [vmem:[#allocation3 + $0x78] sm:$0xff]
      %3817 = vrot.lane.b32.xlu0 %v430, 125
      %v3818 = vpop.permute.xlu0 %3817
      %3819 = vrot.lane.b32.xlu0 %v431, 125
      %v3820 = vpop.permute.xlu0 %3819
      %3821 = vrot.lane.b32.xlu0 %v432, 125
      %v3822 = vpop.permute.xlu0 %3821
      %3823 = vrot.lane.b32.xlu0 %v433, 125
      %v3824 = vpop.permute.xlu0 %3823
      %3825 = vrot.lane.b32.xlu0 %v434, 125
      %v3826 = vpop.permute.xlu0 %3825
      %3827 = vrot.lane.b32.xlu0 %v435, 125
      %v3828 = vpop.permute.xlu0 %3827
      %3829 = vrot.lane.b32.xlu0 %v436, 125
      %v3830 = vpop.permute.xlu0 %3829
      %3831 = vrot.lane.b32.xlu0 %v437, 125
      %v3832 = vpop.permute.xlu0 %3831
      %3833 = vrot.lane.b32.xlu0 %v438, 125
      %v3834 = vpop.permute.xlu0 %3833
      %3835 = vrot.lane.b32.xlu0 %v439, 125
      %v3836 = vpop.permute.xlu0 %3835
      %3837 = vrot.lane.b32.xlu0 %v440, 125
      %v3838 = vpop.permute.xlu0 %3837
      %3839 = vrot.lane.b32.xlu0 %v441, 125
      %v3840 = vpop.permute.xlu0 %3839
      %3841 = vrot.lane.b32.xlu0 %v442, 125
      %v3842 = vpop.permute.xlu0 %3841
      %3843 = vrot.lane.b32.xlu0 %v443, 125
      %v3844 = vpop.permute.xlu0 %3843
      %3845 = vrot.lane.b32.xlu0 %v444, 125
      %v3846 = vpop.permute.xlu0 %3845
      %3847 = vrot.lane.b32.xlu0 %v445, 125
      %v3848 = vpop.permute.xlu0 %3847
      %v3865 = vadd.f32 %v3801, %v3818
      %v3866 = vadd.f32 %v3802, %v3820
      %v3867 = vadd.f32 %v3803, %v3822
      %v3868 = vadd.f32 %v3804, %v3824
      %v3869 = vadd.f32 %v3805, %v3826
      %v3870 = vadd.f32 %v3806, %v3828
      %v3871 = vadd.f32 %v3807, %v3830
      %v3872 = vadd.f32 %v3808, %v3832
      %v3873 = vadd.f32 %v3809, %v3834
      %v3874 = vadd.f32 %v3810, %v3836
      %v3875 = vadd.f32 %v3811, %v3838
      %v3876 = vadd.f32 %v3812, %v3840
      %v3877 = vadd.f32 %v3813, %v3842
      %v3878 = vadd.f32 %v3814, %v3844
      %v3879 = vadd.f32 %v3815, %v3846
      %v3880 = vadd.f32 %v3816, %v3848
      %3881 = vst.msk [vmem:[#allocation3] sm:$0xff] %vm462, %v3865
      %3882 = vst.msk [vmem:[#allocation3 + $0x8] sm:$0xff] %vm462, %v3866
      %3883 = vst.msk [vmem:[#allocation3 + $0x10] sm:$0xff] %vm462, %v3867
      %3884 = vst.msk [vmem:[#allocation3 + $0x18] sm:$0xff] %vm462, %v3868
      %3885 = vst.msk [vmem:[#allocation3 + $0x20] sm:$0xff] %vm462, %v3869
      %3886 = vst.msk [vmem:[#allocation3 + $0x28] sm:$0xff] %vm462, %v3870
      %3887 = vst.msk [vmem:[#allocation3 + $0x30] sm:$0xff] %vm462, %v3871
      %3888 = vst.msk [vmem:[#allocation3 + $0x38] sm:$0xff] %vm462, %v3872
      %3889 = vst.msk [vmem:[#allocation3 + $0x40] sm:$0xff] %vm462, %v3873
      %3890 = vst.msk [vmem:[#allocation3 + $0x48] sm:$0xff] %vm462, %v3874
      %3891 = vst.msk [vmem:[#allocation3 + $0x50] sm:$0xff] %vm462, %v3875
      %3892 = vst.msk [vmem:[#allocation3 + $0x58] sm:$0xff] %vm462, %v3876
      %3893 = vst.msk [vmem:[#allocation3 + $0x60] sm:$0xff] %vm462, %v3877
      %3894 = vst.msk [vmem:[#allocation3 + $0x68] sm:$0xff] %vm462, %v3878
      %3895 = vst.msk [vmem:[#allocation3 + $0x70] sm:$0xff] %vm462, %v3879
      %3896 = vst.msk [vmem:[#allocation3 + $0x78] sm:$0xff] %vm462, %v3880
    $region69: #{tpu_custom_call.1} parent=1 // pred_fallthru
      _
    %v3897 = vld [vmem:[#allocation3] sm:$0xff]
    %v3898 = vld [vmem:[#allocation3 + $0x8] sm:$0xff]
    %v3899 = vld [vmem:[#allocation3 + $0x10] sm:$0xff]
    %v3900 = vld [vmem:[#allocation3 + $0x18] sm:$0xff]
    %v3901 = vld [vmem:[#allocation3 + $0x20] sm:$0xff]
    %v3902 = vld [vmem:[#allocation3 + $0x28] sm:$0xff]
    %v3903 = vld [vmem:[#allocation3 + $0x30] sm:$0xff]
    %v3904 = vld [vmem:[#allocation3 + $0x38] sm:$0xff]
    %v3905 = vld [vmem:[#allocation3 + $0x40] sm:$0xff]
    %v3906 = vld [vmem:[#allocation3 + $0x48] sm:$0xff]
    %v3907 = vld [vmem:[#allocation3 + $0x50] sm:$0xff]
    %v3908 = vld [vmem:[#allocation3 + $0x58] sm:$0xff]
    %v3909 = vld [vmem:[#allocation3 + $0x60] sm:$0xff]
    %v3910 = vld [vmem:[#allocation3 + $0x68] sm:$0xff]
    %v3911 = vld [vmem:[#allocation3 + $0x70] sm:$0xff]
    %v3912 = vld [vmem:[#allocation3 + $0x78] sm:$0xff]
    %v3913 = vmax.f32 %v3897, 1e-12
    %v3914 = vmax.f32 %v3898, 1e-12
    %v3915 = vmax.f32 %v3899, 1e-12
    %v3916 = vmax.f32 %v3900, 1e-12
    %v3917 = vmax.f32 %v3901, 1e-12
    %v3918 = vmax.f32 %v3902, 1e-12
    %v3919 = vmax.f32 %v3903, 1e-12
    %v3920 = vmax.f32 %v3904, 1e-12
    %v3921 = vmax.f32 %v3905, 1e-12
    %v3922 = vmax.f32 %v3906, 1e-12
    %v3923 = vmax.f32 %v3907, 1e-12
    %v3924 = vmax.f32 %v3908, 1e-12
    %v3925 = vmax.f32 %v3909, 1e-12
    %v3926 = vmax.f32 %v3910, 1e-12
    %v3927 = vmax.f32 %v3911, 1e-12
    %v3928 = vmax.f32 %v3912, 1e-12
    %v3929 = vrcp.pop %v3913
    %v3930 = vrcp.pop %v3914
    %v3931 = vrcp.pop %v3915
    %v3932 = vrcp.pop %v3916
    %v3933 = vrcp.pop %v3917
    %v3934 = vrcp.pop %v3918
    %v3935 = vrcp.pop %v3919
    %v3936 = vrcp.pop %v3920
    %v3937 = vrcp.pop %v3921
    %v3938 = vrcp.pop %v3922
    %v3939 = vrcp.pop %v3923
    %v3940 = vrcp.pop %v3924
    %v3941 = vrcp.pop %v3925
    %v3942 = vrcp.pop %v3926
    %v3943 = vrcp.pop %v3927
    %v3944 = vrcp.pop %v3928
    %v3945 = vld [vmem:[#allocation2] sm:$0xff]
    %v3946 = vld [vmem:[#allocation2 + $0x8] sm:$0xff]
    %v3947 = vld [vmem:[#allocation2 + $0x10] sm:$0xff]
    %v3948 = vld [vmem:[#allocation2 + $0x18] sm:$0xff]
    %v3949 = vld [vmem:[#allocation2 + $0x20] sm:$0xff]
    %v3950 = vld [vmem:[#allocation2 + $0x28] sm:$0xff]
    %v3951 = vld [vmem:[#allocation2 + $0x30] sm:$0xff]
    %v3952 = vld [vmem:[#allocation2 + $0x38] sm:$0xff]
    %v3953 = vld [vmem:[#allocation2 + $0x40] sm:$0xff]
    %v3954 = vld [vmem:[#allocation2 + $0x48] sm:$0xff]
    %v3955 = vld [vmem:[#allocation2 + $0x50] sm:$0xff]
    %v3956 = vld [vmem:[#allocation2 + $0x58] sm:$0xff]
    %v3957 = vld [vmem:[#allocation2 + $0x60] sm:$0xff]
    %v3958 = vld [vmem:[#allocation2 + $0x68] sm:$0xff]
    %v3959 = vld [vmem:[#allocation2 + $0x70] sm:$0xff]
    %v3960 = vld [vmem:[#allocation2 + $0x78] sm:$0xff]
    %3962 = vset.pattern.permute.xlu0 0
    %3963 = vperm.xlu0 %3962, %v3929
    %v3964 = vpop.permute.xlu0 %3963
    %3967 = vset.pattern.permute.xlu0 0
    %3968 = vperm.xlu0 %3967, %v3930
    %v3969 = vpop.permute.xlu0 %3968
    %3972 = vset.pattern.permute.xlu0 0
    %3973 = vperm.xlu0 %3972, %v3931
    %v3974 = vpop.permute.xlu0 %3973
    %3977 = vset.pattern.permute.xlu0 0
    %3978 = vperm.xlu0 %3977, %v3932
    %v3979 = vpop.permute.xlu0 %3978
    %3982 = vset.pattern.permute.xlu0 0
    %3983 = vperm.xlu0 %3982, %v3933
    %v3984 = vpop.permute.xlu0 %3983
    %3987 = vset.pattern.permute.xlu0 0
    %3988 = vperm.xlu0 %3987, %v3934
    %v3989 = vpop.permute.xlu0 %3988
    %3992 = vset.pattern.permute.xlu0 0
    %3993 = vperm.xlu0 %3992, %v3935
    %v3994 = vpop.permute.xlu0 %3993
    %3997 = vset.pattern.permute.xlu0 0
    %3998 = vperm.xlu0 %3997, %v3936
    %v3999 = vpop.permute.xlu0 %3998
    %4002 = vset.pattern.permute.xlu0 0
    %4003 = vperm.xlu0 %4002, %v3937
    %v4004 = vpop.permute.xlu0 %4003
    %4007 = vset.pattern.permute.xlu0 0
    %4008 = vperm.xlu0 %4007, %v3938
    %v4009 = vpop.permute.xlu0 %4008
    %4012 = vset.pattern.permute.xlu0 0
    %4013 = vperm.xlu0 %4012, %v3939
    %v4014 = vpop.permute.xlu0 %4013
    %4017 = vset.pattern.permute.xlu0 0
    %4018 = vperm.xlu0 %4017, %v3940
    %v4019 = vpop.permute.xlu0 %4018
    %4022 = vset.pattern.permute.xlu0 0
    %4023 = vperm.xlu0 %4022, %v3941
    %v4024 = vpop.permute.xlu0 %4023
    %4027 = vset.pattern.permute.xlu0 0
    %4028 = vperm.xlu0 %4027, %v3942
    %v4029 = vpop.permute.xlu0 %4028
    %4032 = vset.pattern.permute.xlu0 0
    %4033 = vperm.xlu0 %4032, %v3943
    %v4034 = vpop.permute.xlu0 %4033
    %4037 = vset.pattern.permute.xlu0 0
    %4038 = vperm.xlu0 %4037, %v3944
    %v4039 = vpop.permute.xlu0 %4038
    %v4041 = vmul.f32 %v3945, %v3964
    %v4042 = vmul.f32 %v3946, %v3969
    %v4043 = vmul.f32 %v3947, %v3974
    %v4044 = vmul.f32 %v3948, %v3979
    %v4045 = vmul.f32 %v3949, %v3984
    %v4046 = vmul.f32 %v3950, %v3989
    %v4047 = vmul.f32 %v3951, %v3994
    %v4048 = vmul.f32 %v3952, %v3999
    %v4049 = vmul.f32 %v3953, %v4004
    %v4050 = vmul.f32 %v3954, %v4009
    %v4051 = vmul.f32 %v3955, %v4014
    %v4052 = vmul.f32 %v3956, %v4019
    %v4053 = vmul.f32 %v3957, %v4024
    %v4054 = vmul.f32 %v3958, %v4029
    %v4055 = vmul.f32 %v3959, %v4034
    %v4056 = vmul.f32 %v3960, %v4039
    %4057 = vst [vmem:[#allocation12] sm:$0xff] %v4041
    %4058 = vst [vmem:[#allocation12 + $0x8] sm:$0xff] %v4042
    %4059 = vst [vmem:[#allocation12 + $0x10] sm:$0xff] %v4043
    %4060 = vst [vmem:[#allocation12 + $0x18] sm:$0xff] %v4044
    %4061 = vst [vmem:[#allocation12 + $0x20] sm:$0xff] %v4045
    %4062 = vst [vmem:[#allocation12 + $0x28] sm:$0xff] %v4046
    %4063 = vst [vmem:[#allocation12 + $0x30] sm:$0xff] %v4047
    %4064 = vst [vmem:[#allocation12 + $0x38] sm:$0xff] %v4048
    %4065 = vst [vmem:[#allocation12 + $0x40] sm:$0xff] %v4049
    %4066 = vst [vmem:[#allocation12 + $0x48] sm:$0xff] %v4050
    %4067 = vst [vmem:[#allocation12 + $0x50] sm:$0xff] %v4051
    %4068 = vst [vmem:[#allocation12 + $0x58] sm:$0xff] %v4052
    %4069 = vst [vmem:[#allocation12 + $0x60] sm:$0xff] %v4053
    %4070 = vst [vmem:[#allocation12 + $0x68] sm:$0xff] %v4054
    %4071 = vst [vmem:[#allocation12 + $0x70] sm:$0xff] %v4055
    %4072 = vst [vmem:[#allocation12 + $0x78] sm:$0xff] %v4056
    // Predicated region
    $region70: #{tpu_custom_call.1} parent=1 // pred_check
      _
    $region71: #{tpu_custom_call.1} parent=1 // pred_check_branch
      %4074 = sbr.rel (0) target = $region73
    $region72: #{tpu_custom_call.1} parent=1 // pred_region
      %s4076 = ssub.s32 2048, 2048
      %4077 = vsyncadd [#allocation8], %s4076
      %s4078 = sshll.u32 [#allocation12], 4
      %s4079 = int_to_ptr.vmem [resolvable:$true] %s4078
      %4084 = dma.vmem_to_hbm [thread:$0]  %s4079, 2048, %s11, [#allocation8], 128, 128, 8
    $region73: #{tpu_custom_call.1} parent=1 // pred_fallthru
      _
    // Predicated region
    $region74: #{tpu_custom_call.1} parent=1 // pred_check
      _
    $region75: #{tpu_custom_call.1} parent=1 // pred_check_branch
      %4086 = sbr.rel (0) target = $region77
    $region76: #{tpu_custom_call.1} parent=1 // pred_region
      %4087 = dma.done [#allocation8], 2048
    $region77: #{tpu_custom_call.1} parent=1 // pred_fallthru
      _
    %4088 = vsyncpa [#allocation7], 1
    %4089 = vsyncpa [#allocation10], 1
    %4090 = vsyncpa [#allocation8], 1

</llo_original>
